<compile_context>
chip_gen: v7x
topology: tpu7x:2x2x1
jax: 0.10.0
libtpu: 0.0.40
codegen_flags: <defaults>
</compile_context>

<pallas_src>
import functools

import jax
import jax.numpy as jnp
from jax.experimental import pallas as pl
from jax.experimental.pallas import tpu as pltpu


# ----------------------------- Pallas kernel --------------------------------

def _residual_block_kernel(xp_ref, w1_ref, s1_ref, t1_ref,
                           w2_ref, s2_ref, t2_ref,
                           o_ref, hpad_ref, *, H, W, C):
    """One batch element per grid step.

    xp_ref    : (H+2, W+2, C) f32   zero-padded NHWC input slice
    w{1,2}_ref: (9, C, C)     bf16  per-tap conv weights, tap-major (kh*3+kw)
    s*/t*_ref : (1, C)        f32   folded conv-bias + BN scale / shift
    o_ref     : (H, W, C)     f32   output
    hpad_ref  : (H+2, W+2, C) bf16  VMEM scratch: padded intermediate activation
    """
    # ---- conv1 (+ folded BN1) + ReLU -> VMEM scratch (never hits HBM) ------
    acc1 = jnp.zeros((H * W, C), jnp.float32)
    for t in range(9):
        i, j = t // 3, t % 3
        patch = xp_ref[i:i + H, j:j + W, :].astype(jnp.bfloat16)
        acc1 = acc1 + jnp.dot(patch.reshape(H * W, C), w1_ref[t],
                              preferred_element_type=jnp.float32)
    h = jnp.maximum(acc1 * s1_ref[...] + t1_ref[...], 0.0)

    hpad_ref[...] = jnp.zeros_like(hpad_ref)            # zero halo == 'same' pad
    hpad_ref[1:H + 1, 1:W + 1, :] = h.reshape(H, W, C).astype(hpad_ref.dtype)

    # ---- conv2 (+ folded BN2) + residual add + ReLU ------------------------
    acc2 = jnp.zeros((H * W, C), jnp.float32)
    for t in range(9):
        i, j = t // 3, t % 3
        patch = hpad_ref[i:i + H, j:j + W, :]            # already bf16
        acc2 = acc2 + jnp.dot(patch.reshape(H * W, C), w2_ref[t],
                              preferred_element_type=jnp.float32)
    residual = xp_ref[1:H + 1, 1:W + 1, :].reshape(H * W, C)   # f32 input
    y = jnp.maximum(acc2 * s2_ref[...] + t2_ref[...] + residual, 0.0)
    o_ref[...] = y.reshape(H, W, C).astype(o_ref.dtype)


# ------------------------------- JAX glue ------------------------------------

def _fold_bn(bias, gamma, beta, mean, var, eps=1e-5):
    """Inference-mode BN folded onto the (bias-less) conv accumulator."""
    scale = gamma / jnp.sqrt(var + eps)
    shift = (bias - mean) * scale + beta
    return scale.astype(jnp.float32), shift.astype(jnp.float32)


def _tap_major(w_oihw):
    """(Cout, Cin, 3, 3) -> (9, Cin, Cout); tap index = kh*3 + kw."""
    cout, cin = w_oihw.shape[0], w_oihw.shape[1]
    return jnp.transpose(w_oihw, (2, 3, 1, 0)).reshape(9, cin, cout)


def residual_block_forward(params, x_nchw):
    """PyTorch ResidualBlock.forward (inference-mode BN). NCHW in / NCHW out."""
    N, C, H, W = x_nchw.shape
    Hp, Wp = H + 2, W + 2

    x = jnp.transpose(x_nchw, (0, 2, 3, 1))                      # -> NHWC
    xp = jnp.pad(x, ((0, 0), (1, 1), (1, 1), (0, 0)))            # 'same' padding

    w1 = _tap_major(params["w1"]).astype(jnp.bfloat16)
    w2 = _tap_major(params["w2"]).astype(jnp.bfloat16)
    s1, t1 = _fold_bn(params["b1"], *params["bn1"])
    s2, t2 = _fold_bn(params["b2"], *params["bn2"])

    flops = 2 * 2 * N * H * W * C * C * 9                # two convs, 2 flops/MAC
    bytes_accessed = (xp.size + N * H * W * C) * 4 + 2 * 9 * C * C * 2 + 4 * C * 4

    out = pl.pallas_call(
        functools.partial(_residual_block_kernel, H=H, W=W, C=C),
        out_shape=jax.ShapeDtypeStruct((N, H, W, C), jnp.float32),
        grid_spec=pltpu.PrefetchScalarGridSpec(
            num_scalar_prefetch=0,
            grid=(N,),
            in_specs=[
                pl.BlockSpec((pl.Squeezed(), Hp, Wp, C), lambda n: (n, 0, 0, 0)),
                pl.BlockSpec((9, C, C), lambda n: (0, 0, 0)),
                pl.BlockSpec((1, C), lambda n: (0, 0)),
                pl.BlockSpec((1, C), lambda n: (0, 0)),
                pl.BlockSpec((9, C, C), lambda n: (0, 0, 0)),
                pl.BlockSpec((1, C), lambda n: (0, 0)),
                pl.BlockSpec((1, C), lambda n: (0, 0)),
            ],
            out_specs=pl.BlockSpec((pl.Squeezed(), H, W, C),
                                   lambda n: (n, 0, 0, 0)),
            scratch_shapes=[pltpu.VMEM((Hp, Wp, C), jnp.bfloat16)],
        ),
        compiler_params=pltpu.CompilerParams(
            dimension_semantics=("parallel",),   # megacore / both TCs on v7x
            vmem_limit_bytes=32 * 1024 * 1024,
        ),
        cost_estimate=pl.CostEstimate(flops=flops, transcendentals=0,
                                      bytes_accessed=bytes_accessed),
    )(xp, w1, s1[None, :], t1[None, :], w2, s2[None, :], t2[None, :])

    return jnp.transpose(out, (0, 3, 1, 2))                      # -> NCHW


# ------------------------ Pure-JAX reference (check) -------------------------

def residual_block_reference(params, x_nchw):
    """Mirrors the kernel math (bf16 MXU operands, f32 accumulation/epilogue)."""
    x = jnp.transpose(x_nchw, (0, 2, 3, 1))
    N, H, W, C = x.shape

    def conv3x3(h_nhwc, w_taps, scale, shift):
        hp = jnp.pad(h_nhwc, ((0, 0), (1, 1), (1, 1), (0, 0))).astype(jnp.bfloat16)
        acc = jnp.zeros((N, H, W, C), jnp.float32)
        for t in range(9):
            i, j = t // 3, t % 3
            acc = acc + jnp.einsum("nhwc,cd->nhwd",
                                   hp[:, i:i + H, j:j + W, :], w_taps[t],
                                   preferred_element_type=jnp.float32)
        return acc * scale + shift

    w1 = _tap_major(params["w1"]).astype(jnp.bfloat16)
    w2 = _tap_major(params["w2"]).astype(jnp.bfloat16)
    s1, t1 = _fold_bn(params["b1"], *params["bn1"])
    s2, t2 = _fold_bn(params["b2"], *params["bn2"])

    h = jnp.maximum(conv3x3(x, w1, s1, t1), 0.0)
    h = h.astype(jnp.bfloat16).astype(jnp.float32)   # kernel scratch is bf16
    y = jnp.maximum(conv3x3(h, w2, s2, t2) + x, 0.0)
    return jnp.transpose(y, (0, 3, 1, 2))


# --------------------------- Parameter creation -------------------------------

def init_params(key, channels):
    ks = jax.random.split(key, 4)

    def conv(k):
        kw, kb = jax.random.split(k)
        w = 0.1 * jax.random.normal(kw, (channels, channels, 3, 3), jnp.float32)
        b = 0.1 * jax.random.normal(kb, (channels,), jnp.float32)
        return w, b

    def bn(k):
        k1, k2, k3, k4 = jax.random.split(k, 4)
        gamma = 1.0 + 0.1 * jax.random.normal(k1, (channels,), jnp.float32)
        beta = 0.1 * jax.random.normal(k2, (channels,), jnp.float32)
        mean = 0.1 * jax.random.normal(k3, (channels,), jnp.float32)
        var = 1.0 + 0.1 * jax.random.uniform(k4, (channels,), jnp.float32)
        return gamma, beta, mean, var

    w1, b1 = conv(ks[0])
    w2, b2 = conv(ks[1])
    return dict(w1=w1, b1=b1, bn1=bn(ks[2]), w2=w2, b2=b2, bn2=bn(ks[3]))


# ----------------------------------- Main -------------------------------------

if __name__ == "__main__":
    key = jax.random.PRNGKey(0)
    k_params, k_x = jax.random.split(key)

    N, C, H, W = 2, 32, 16, 16                       # small NCHW like PyTorch
    params = init_params(k_params, C)
    x = jax.random.normal(k_x, (N, C, H, W), jnp.float32)

    fwd = jax.jit(residual_block_forward)
    out = fwd(params, x)
    jax.block_until_ready(out)
    assert out.shape == (N, C, H, W) and out.dtype == jnp.float32

    ref = residual_block_reference(params, x)
    max_err = float(jnp.max(jnp.abs(out - ref)))
    assert max_err < 2e-2, f"mismatch vs pure-JAX reference: max|err|={max_err}"

    print("KERNEL_OK")
</pallas_src>

<mosaic_0001>
module attributes {stable_mosaic.version = 11 : i64} {
  func.func @_residual_block_kernel(%arg0: i32, %arg1: memref<1x18x18x32xf32, #tpu.memory_space<vmem>>, %arg2: memref<9x32x32xbf16, #tpu.memory_space<vmem>>, %arg3: memref<1x32xf32, #tpu.memory_space<vmem>>, %arg4: memref<1x32xf32, #tpu.memory_space<vmem>>, %arg5: memref<9x32x32xbf16, #tpu.memory_space<vmem>>, %arg6: memref<1x32xf32, #tpu.memory_space<vmem>>, %arg7: memref<1x32xf32, #tpu.memory_space<vmem>>, %arg8: memref<1x16x16x32xf32, #tpu.memory_space<vmem>>, %arg9: memref<18x18x32xbf16, #tpu.memory_space<vmem>>) attributes {dimension_semantics = [#tpu.dimension_semantics<parallel>], iteration_bounds = array<i64: 2>, scalar_prefetch = 0 : i64, scratch_operands = 1 : i64, tpu.core_type = #tpu.core_type<tc>, window_params = [{transform_indices = @transform_0, window_bounds = array<i64: 1, 18, 18, 32>}, {pipeline_mode = #tpu.pipeline_mode<synchronous>, transform_indices = @transform_1, window_bounds = array<i64: 9, 32, 32>}, {pipeline_mode = #tpu.pipeline_mode<synchronous>, transform_indices = @transform_2, window_bounds = array<i64: 1, 32>}, {pipeline_mode = #tpu.pipeline_mode<synchronous>, transform_indices = @transform_3, window_bounds = array<i64: 1, 32>}, {pipeline_mode = #tpu.pipeline_mode<synchronous>, transform_indices = @transform_4, window_bounds = array<i64: 9, 32, 32>}, {pipeline_mode = #tpu.pipeline_mode<synchronous>, transform_indices = @transform_5, window_bounds = array<i64: 1, 32>}, {pipeline_mode = #tpu.pipeline_mode<synchronous>, transform_indices = @transform_6, window_bounds = array<i64: 1, 32>}, {transform_indices = @transform_7, window_bounds = array<i64: 1, 16, 16, 32>}]} {
    %cst = arith.constant 0.000000e+00 : f32
    %0 = vector.broadcast %cst : f32 to vector<256x32xf32>
    %c0 = arith.constant 0 : index
    %c0_0 = arith.constant 0 : index
    %c0_1 = arith.constant 0 : index
    %c0_2 = arith.constant 0 : index
    %1 = vector.load %arg1[%c0, %c0_0, %c0_1, %c0_2] : memref<1x18x18x32xf32, #tpu.memory_space<vmem>>, vector<1x16x16x32xf32>
    %2 = vector.shape_cast %1 : vector<1x16x16x32xf32> to vector<16x16x32xf32>
    %3 = arith.truncf %2 : vector<16x16x32xf32> to vector<16x16x32xbf16>
    %4 = vector.shape_cast %3 : vector<16x16x32xbf16> to vector<256x32xbf16>
    %c0_3 = arith.constant 0 : index
    %c0_4 = arith.constant 0 : index
    %c0_5 = arith.constant 0 : index
    %5 = vector.load %arg2[%c0_3, %c0_4, %c0_5] : memref<9x32x32xbf16, #tpu.memory_space<vmem>>, vector<1x32x32xbf16>
    %6 = vector.shape_cast %5 : vector<1x32x32xbf16> to vector<32x32xbf16>
    %cst_6 = arith.constant dense<0.000000e+00> : vector<256x32xf32>
    %7 = tpu.matmul %4, %6, %cst_6 {dimension_numbers = #tpu.dot_dimension_numbers<[1], [0], [0], [1], [0, 0, 1, 1], [], []>} : vector<256x32xbf16>, vector<32x32xbf16>, vector<256x32xf32> -> vector<256x32xf32>
    %8 = arith.addf %0, %7 : vector<256x32xf32>
    %c0_7 = arith.constant 0 : index
    %c0_8 = arith.constant 0 : index
    %c1 = arith.constant 1 : index
    %c0_9 = arith.constant 0 : index
    %9 = vector.load %arg1[%c0_7, %c0_8, %c1, %c0_9] : memref<1x18x18x32xf32, #tpu.memory_space<vmem>>, vector<1x16x16x32xf32>
    %10 = vector.shape_cast %9 : vector<1x16x16x32xf32> to vector<16x16x32xf32>
    %11 = arith.truncf %10 : vector<16x16x32xf32> to vector<16x16x32xbf16>
    %12 = vector.shape_cast %11 : vector<16x16x32xbf16> to vector<256x32xbf16>
    %c1_10 = arith.constant 1 : index
    %c0_11 = arith.constant 0 : index
    %c0_12 = arith.constant 0 : index
    %13 = vector.load %arg2[%c1_10, %c0_11, %c0_12] : memref<9x32x32xbf16, #tpu.memory_space<vmem>>, vector<1x32x32xbf16>
    %14 = vector.shape_cast %13 : vector<1x32x32xbf16> to vector<32x32xbf16>
    %cst_13 = arith.constant dense<0.000000e+00> : vector<256x32xf32>
    %15 = tpu.matmul %12, %14, %cst_13 {dimension_numbers = #tpu.dot_dimension_numbers<[1], [0], [0], [1], [0, 0, 1, 1], [], []>} : vector<256x32xbf16>, vector<32x32xbf16>, vector<256x32xf32> -> vector<256x32xf32>
    %16 = arith.addf %8, %15 : vector<256x32xf32>
    %c0_14 = arith.constant 0 : index
    %c0_15 = arith.constant 0 : index
    %c2 = arith.constant 2 : index
    %c0_16 = arith.constant 0 : index
    %17 = vector.load %arg1[%c0_14, %c0_15, %c2, %c0_16] : memref<1x18x18x32xf32, #tpu.memory_space<vmem>>, vector<1x16x16x32xf32>
    %18 = vector.shape_cast %17 : vector<1x16x16x32xf32> to vector<16x16x32xf32>
    %19 = arith.truncf %18 : vector<16x16x32xf32> to vector<16x16x32xbf16>
    %20 = vector.shape_cast %19 : vector<16x16x32xbf16> to vector<256x32xbf16>
    %c2_17 = arith.constant 2 : index
    %c0_18 = arith.constant 0 : index
    %c0_19 = arith.constant 0 : index
    %21 = vector.load %arg2[%c2_17, %c0_18, %c0_19] : memref<9x32x32xbf16, #tpu.memory_space<vmem>>, vector<1x32x32xbf16>
    %22 = vector.shape_cast %21 : vector<1x32x32xbf16> to vector<32x32xbf16>
    %cst_20 = arith.constant dense<0.000000e+00> : vector<256x32xf32>
    %23 = tpu.matmul %20, %22, %cst_20 {dimension_numbers = #tpu.dot_dimension_numbers<[1], [0], [0], [1], [0, 0, 1, 1], [], []>} : vector<256x32xbf16>, vector<32x32xbf16>, vector<256x32xf32> -> vector<256x32xf32>
    %24 = arith.addf %16, %23 : vector<256x32xf32>
    %c0_21 = arith.constant 0 : index
    %c1_22 = arith.constant 1 : index
    %c0_23 = arith.constant 0 : index
    %c0_24 = arith.constant 0 : index
    %25 = vector.load %arg1[%c0_21, %c1_22, %c0_23, %c0_24] : memref<1x18x18x32xf32, #tpu.memory_space<vmem>>, vector<1x16x16x32xf32>
    %26 = vector.shape_cast %25 : vector<1x16x16x32xf32> to vector<16x16x32xf32>
    %27 = arith.truncf %26 : vector<16x16x32xf32> to vector<16x16x32xbf16>
    %28 = vector.shape_cast %27 : vector<16x16x32xbf16> to vector<256x32xbf16>
    %c3 = arith.constant 3 : index
    %c0_25 = arith.constant 0 : index
    %c0_26 = arith.constant 0 : index
    %29 = vector.load %arg2[%c3, %c0_25, %c0_26] : memref<9x32x32xbf16, #tpu.memory_space<vmem>>, vector<1x32x32xbf16>
    %30 = vector.shape_cast %29 : vector<1x32x32xbf16> to vector<32x32xbf16>
    %cst_27 = arith.constant dense<0.000000e+00> : vector<256x32xf32>
    %31 = tpu.matmul %28, %30, %cst_27 {dimension_numbers = #tpu.dot_dimension_numbers<[1], [0], [0], [1], [0, 0, 1, 1], [], []>} : vector<256x32xbf16>, vector<32x32xbf16>, vector<256x32xf32> -> vector<256x32xf32>
    %32 = arith.addf %24, %31 : vector<256x32xf32>
    %c0_28 = arith.constant 0 : index
    %c1_29 = arith.constant 1 : index
    %c1_30 = arith.constant 1 : index
    %c0_31 = arith.constant 0 : index
    %33 = vector.load %arg1[%c0_28, %c1_29, %c1_30, %c0_31] : memref<1x18x18x32xf32, #tpu.memory_space<vmem>>, vector<1x16x16x32xf32>
    %34 = vector.shape_cast %33 : vector<1x16x16x32xf32> to vector<16x16x32xf32>
    %35 = arith.truncf %34 : vector<16x16x32xf32> to vector<16x16x32xbf16>
    %36 = vector.shape_cast %35 : vector<16x16x32xbf16> to vector<256x32xbf16>
    %c4 = arith.constant 4 : index
    %c0_32 = arith.constant 0 : index
    %c0_33 = arith.constant 0 : index
    %37 = vector.load %arg2[%c4, %c0_32, %c0_33] : memref<9x32x32xbf16, #tpu.memory_space<vmem>>, vector<1x32x32xbf16>
    %38 = vector.shape_cast %37 : vector<1x32x32xbf16> to vector<32x32xbf16>
    %cst_34 = arith.constant dense<0.000000e+00> : vector<256x32xf32>
    %39 = tpu.matmul %36, %38, %cst_34 {dimension_numbers = #tpu.dot_dimension_numbers<[1], [0], [0], [1], [0, 0, 1, 1], [], []>} : vector<256x32xbf16>, vector<32x32xbf16>, vector<256x32xf32> -> vector<256x32xf32>
    %40 = arith.addf %32, %39 : vector<256x32xf32>
    %c0_35 = arith.constant 0 : index
    %c1_36 = arith.constant 1 : index
    %c2_37 = arith.constant 2 : index
    %c0_38 = arith.constant 0 : index
    %41 = vector.load %arg1[%c0_35, %c1_36, %c2_37, %c0_38] : memref<1x18x18x32xf32, #tpu.memory_space<vmem>>, vector<1x16x16x32xf32>
    %42 = vector.shape_cast %41 : vector<1x16x16x32xf32> to vector<16x16x32xf32>
    %43 = arith.truncf %42 : vector<16x16x32xf32> to vector<16x16x32xbf16>
    %44 = vector.shape_cast %43 : vector<16x16x32xbf16> to vector<256x32xbf16>
    %c5 = arith.constant 5 : index
    %c0_39 = arith.constant 0 : index
    %c0_40 = arith.constant 0 : index
    %45 = vector.load %arg2[%c5, %c0_39, %c0_40] : memref<9x32x32xbf16, #tpu.memory_space<vmem>>, vector<1x32x32xbf16>
    %46 = vector.shape_cast %45 : vector<1x32x32xbf16> to vector<32x32xbf16>
    %cst_41 = arith.constant dense<0.000000e+00> : vector<256x32xf32>
    %47 = tpu.matmul %44, %46, %cst_41 {dimension_numbers = #tpu.dot_dimension_numbers<[1], [0], [0], [1], [0, 0, 1, 1], [], []>} : vector<256x32xbf16>, vector<32x32xbf16>, vector<256x32xf32> -> vector<256x32xf32>
    %48 = arith.addf %40, %47 : vector<256x32xf32>
    %c0_42 = arith.constant 0 : index
    %c2_43 = arith.constant 2 : index
    %c0_44 = arith.constant 0 : index
    %c0_45 = arith.constant 0 : index
    %49 = vector.load %arg1[%c0_42, %c2_43, %c0_44, %c0_45] : memref<1x18x18x32xf32, #tpu.memory_space<vmem>>, vector<1x16x16x32xf32>
    %50 = vector.shape_cast %49 : vector<1x16x16x32xf32> to vector<16x16x32xf32>
    %51 = arith.truncf %50 : vector<16x16x32xf32> to vector<16x16x32xbf16>
    %52 = vector.shape_cast %51 : vector<16x16x32xbf16> to vector<256x32xbf16>
    %c6 = arith.constant 6 : index
    %c0_46 = arith.constant 0 : index
    %c0_47 = arith.constant 0 : index
    %53 = vector.load %arg2[%c6, %c0_46, %c0_47] : memref<9x32x32xbf16, #tpu.memory_space<vmem>>, vector<1x32x32xbf16>
    %54 = vector.shape_cast %53 : vector<1x32x32xbf16> to vector<32x32xbf16>
    %cst_48 = arith.constant dense<0.000000e+00> : vector<256x32xf32>
    %55 = tpu.matmul %52, %54, %cst_48 {dimension_numbers = #tpu.dot_dimension_numbers<[1], [0], [0], [1], [0, 0, 1, 1], [], []>} : vector<256x32xbf16>, vector<32x32xbf16>, vector<256x32xf32> -> vector<256x32xf32>
    %56 = arith.addf %48, %55 : vector<256x32xf32>
    %c0_49 = arith.constant 0 : index
    %c2_50 = arith.constant 2 : index
    %c1_51 = arith.constant 1 : index
    %c0_52 = arith.constant 0 : index
    %57 = vector.load %arg1[%c0_49, %c2_50, %c1_51, %c0_52] : memref<1x18x18x32xf32, #tpu.memory_space<vmem>>, vector<1x16x16x32xf32>
    %58 = vector.shape_cast %57 : vector<1x16x16x32xf32> to vector<16x16x32xf32>
    %59 = arith.truncf %58 : vector<16x16x32xf32> to vector<16x16x32xbf16>
    %60 = vector.shape_cast %59 : vector<16x16x32xbf16> to vector<256x32xbf16>
    %c7 = arith.constant 7 : index
    %c0_53 = arith.constant 0 : index
    %c0_54 = arith.constant 0 : index
    %61 = vector.load %arg2[%c7, %c0_53, %c0_54] : memref<9x32x32xbf16, #tpu.memory_space<vmem>>, vector<1x32x32xbf16>
    %62 = vector.shape_cast %61 : vector<1x32x32xbf16> to vector<32x32xbf16>
    %cst_55 = arith.constant dense<0.000000e+00> : vector<256x32xf32>
    %63 = tpu.matmul %60, %62, %cst_55 {dimension_numbers = #tpu.dot_dimension_numbers<[1], [0], [0], [1], [0, 0, 1, 1], [], []>} : vector<256x32xbf16>, vector<32x32xbf16>, vector<256x32xf32> -> vector<256x32xf32>
    %64 = arith.addf %56, %63 : vector<256x32xf32>
    %c0_56 = arith.constant 0 : index
    %c2_57 = arith.constant 2 : index
    %c2_58 = arith.constant 2 : index
    %c0_59 = arith.constant 0 : index
    %65 = vector.load %arg1[%c0_56, %c2_57, %c2_58, %c0_59] : memref<1x18x18x32xf32, #tpu.memory_space<vmem>>, vector<1x16x16x32xf32>
    %66 = vector.shape_cast %65 : vector<1x16x16x32xf32> to vector<16x16x32xf32>
    %67 = arith.truncf %66 : vector<16x16x32xf32> to vector<16x16x32xbf16>
    %68 = vector.shape_cast %67 : vector<16x16x32xbf16> to vector<256x32xbf16>
    %c8 = arith.constant 8 : index
    %c0_60 = arith.constant 0 : index
    %c0_61 = arith.constant 0 : index
    %69 = vector.load %arg2[%c8, %c0_60, %c0_61] : memref<9x32x32xbf16, #tpu.memory_space<vmem>>, vector<1x32x32xbf16>
    %70 = vector.shape_cast %69 : vector<1x32x32xbf16> to vector<32x32xbf16>
    %cst_62 = arith.constant dense<0.000000e+00> : vector<256x32xf32>
    %71 = tpu.matmul %68, %70, %cst_62 {dimension_numbers = #tpu.dot_dimension_numbers<[1], [0], [0], [1], [0, 0, 1, 1], [], []>} : vector<256x32xbf16>, vector<32x32xbf16>, vector<256x32xf32> -> vector<256x32xf32>
    %72 = arith.addf %64, %71 : vector<256x32xf32>
    %c0_63 = arith.constant 0 : index
    %c0_64 = arith.constant 0 : index
    %73 = vector.load %arg3[%c0_63, %c0_64] : memref<1x32xf32, #tpu.memory_space<vmem>>, vector<1x32xf32>
    %74 = vector.broadcast %73 : vector<1x32xf32> to vector<256x32xf32>
    %75 = arith.mulf %72, %74 : vector<256x32xf32>
    %c0_65 = arith.constant 0 : index
    %c0_66 = arith.constant 0 : index
    %76 = vector.load %arg4[%c0_65, %c0_66] : memref<1x32xf32, #tpu.memory_space<vmem>>, vector<1x32xf32>
    %77 = vector.broadcast %76 : vector<1x32xf32> to vector<256x32xf32>
    %78 = arith.addf %75, %77 : vector<256x32xf32>
    %cst_67 = arith.constant 0.000000e+00 : f32
    %79 = vector.broadcast %cst_67 : f32 to vector<256x32xf32>
    %80 = arith.maximumf %78, %79 : vector<256x32xf32>
    %cst_68 = arith.constant 0.000000e+00 : bf16
    %81 = vector.broadcast %cst_68 : bf16 to vector<18x18x32xbf16>
    %c0_69 = arith.constant 0 : index
    %c0_70 = arith.constant 0 : index
    %c0_71 = arith.constant 0 : index
    %82 = vector.load %arg9[%c0_69, %c0_70, %c0_71] : memref<18x18x32xbf16, #tpu.memory_space<vmem>>, vector<18x18x32xbf16>
    tpu.vector_store %arg9[%c0_69, %c0_70, %c0_71], %81 {strides = array<i32>} : memref<18x18x32xbf16, #tpu.memory_space<vmem>>, vector<18x18x32xbf16>,
    %83 = vector.shape_cast %80 : vector<256x32xf32> to vector<16x16x32xf32>
    %84 = arith.truncf %83 : vector<16x16x32xf32> to vector<16x16x32xbf16>
    %c1_72 = arith.constant 1 : index
    %c1_73 = arith.constant 1 : index
    %c0_74 = arith.constant 0 : index
    %85 = vector.load %arg9[%c1_72, %c1_73, %c0_74] : memref<18x18x32xbf16, #tpu.memory_space<vmem>>, vector<16x16x32xbf16>
    tpu.vector_store %arg9[%c1_72, %c1_73, %c0_74], %84 {strides = array<i32>} : memref<18x18x32xbf16, #tpu.memory_space<vmem>>, vector<16x16x32xbf16>,
    %cst_75 = arith.constant 0.000000e+00 : f32
    %86 = vector.broadcast %cst_75 : f32 to vector<256x32xf32>
    %c0_76 = arith.constant 0 : index
    %c0_77 = arith.constant 0 : index
    %c0_78 = arith.constant 0 : index
    %87 = vector.load %arg9[%c0_76, %c0_77, %c0_78] : memref<18x18x32xbf16, #tpu.memory_space<vmem>>, vector<16x16x32xbf16>
    %88 = vector.shape_cast %87 : vector<16x16x32xbf16> to vector<256x32xbf16>
    %c0_79 = arith.constant 0 : index
    %c0_80 = arith.constant 0 : index
    %c0_81 = arith.constant 0 : index
    %89 = vector.load %arg5[%c0_79, %c0_80, %c0_81] : memref<9x32x32xbf16, #tpu.memory_space<vmem>>, vector<1x32x32xbf16>
    %90 = vector.shape_cast %89 : vector<1x32x32xbf16> to vector<32x32xbf16>
    %cst_82 = arith.constant dense<0.000000e+00> : vector<256x32xf32>
    %91 = tpu.matmul %88, %90, %cst_82 {dimension_numbers = #tpu.dot_dimension_numbers<[1], [0], [0], [1], [0, 0, 1, 1], [], []>} : vector<256x32xbf16>, vector<32x32xbf16>, vector<256x32xf32> -> vector<256x32xf32>
    %92 = arith.addf %86, %91 : vector<256x32xf32>
    %c0_83 = arith.constant 0 : index
    %c1_84 = arith.constant 1 : index
    %c0_85 = arith.constant 0 : index
    %93 = vector.load %arg9[%c0_83, %c1_84, %c0_85] : memref<18x18x32xbf16, #tpu.memory_space<vmem>>, vector<16x16x32xbf16>
    %94 = vector.shape_cast %93 : vector<16x16x32xbf16> to vector<256x32xbf16>
    %c1_86 = arith.constant 1 : index
    %c0_87 = arith.constant 0 : index
    %c0_88 = arith.constant 0 : index
    %95 = vector.load %arg5[%c1_86, %c0_87, %c0_88] : memref<9x32x32xbf16, #tpu.memory_space<vmem>>, vector<1x32x32xbf16>
    %96 = vector.shape_cast %95 : vector<1x32x32xbf16> to vector<32x32xbf16>
    %cst_89 = arith.constant dense<0.000000e+00> : vector<256x32xf32>
    %97 = tpu.matmul %94, %96, %cst_89 {dimension_numbers = #tpu.dot_dimension_numbers<[1], [0], [0], [1], [0, 0, 1, 1], [], []>} : vector<256x32xbf16>, vector<32x32xbf16>, vector<256x32xf32> -> vector<256x32xf32>
    %98 = arith.addf %92, %97 : vector<256x32xf32>
    %c0_90 = arith.constant 0 : index
    %c2_91 = arith.constant 2 : index
    %c0_92 = arith.constant 0 : index
    %99 = vector.load %arg9[%c0_90, %c2_91, %c0_92] : memref<18x18x32xbf16, #tpu.memory_space<vmem>>, vector<16x16x32xbf16>
    %100 = vector.shape_cast %99 : vector<16x16x32xbf16> to vector<256x32xbf16>
    %c2_93 = arith.constant 2 : index
    %c0_94 = arith.constant 0 : index
    %c0_95 = arith.constant 0 : index
    %101 = vector.load %arg5[%c2_93, %c0_94, %c0_95] : memref<9x32x32xbf16, #tpu.memory_space<vmem>>, vector<1x32x32xbf16>
    %102 = vector.shape_cast %101 : vector<1x32x32xbf16> to vector<32x32xbf16>
    %cst_96 = arith.constant dense<0.000000e+00> : vector<256x32xf32>
    %103 = tpu.matmul %100, %102, %cst_96 {dimension_numbers = #tpu.dot_dimension_numbers<[1], [0], [0], [1], [0, 0, 1, 1], [], []>} : vector<256x32xbf16>, vector<32x32xbf16>, vector<256x32xf32> -> vector<256x32xf32>
    %104 = arith.addf %98, %103 : vector<256x32xf32>
    %c1_97 = arith.constant 1 : index
    %c0_98 = arith.constant 0 : index
    %c0_99 = arith.constant 0 : index
    %105 = vector.load %arg9[%c1_97, %c0_98, %c0_99] : memref<18x18x32xbf16, #tpu.memory_space<vmem>>, vector<16x16x32xbf16>
    %106 = vector.shape_cast %105 : vector<16x16x32xbf16> to vector<256x32xbf16>
    %c3_100 = arith.constant 3 : index
    %c0_101 = arith.constant 0 : index
    %c0_102 = arith.constant 0 : index
    %107 = vector.load %arg5[%c3_100, %c0_101, %c0_102] : memref<9x32x32xbf16, #tpu.memory_space<vmem>>, vector<1x32x32xbf16>
    %108 = vector.shape_cast %107 : vector<1x32x32xbf16> to vector<32x32xbf16>
    %cst_103 = arith.constant dense<0.000000e+00> : vector<256x32xf32>
    %109 = tpu.matmul %106, %108, %cst_103 {dimension_numbers = #tpu.dot_dimension_numbers<[1], [0], [0], [1], [0, 0, 1, 1], [], []>} : vector<256x32xbf16>, vector<32x32xbf16>, vector<256x32xf32> -> vector<256x32xf32>
    %110 = arith.addf %104, %109 : vector<256x32xf32>
    %c1_104 = arith.constant 1 : index
    %c1_105 = arith.constant 1 : index
    %c0_106 = arith.constant 0 : index
    %111 = vector.load %arg9[%c1_104, %c1_105, %c0_106] : memref<18x18x32xbf16, #tpu.memory_space<vmem>>, vector<16x16x32xbf16>
    %112 = vector.shape_cast %111 : vector<16x16x32xbf16> to vector<256x32xbf16>
    %c4_107 = arith.constant 4 : index
    %c0_108 = arith.constant 0 : index
    %c0_109 = arith.constant 0 : index
    %113 = vector.load %arg5[%c4_107, %c0_108, %c0_109] : memref<9x32x32xbf16, #tpu.memory_space<vmem>>, vector<1x32x32xbf16>
    %114 = vector.shape_cast %113 : vector<1x32x32xbf16> to vector<32x32xbf16>
    %cst_110 = arith.constant dense<0.000000e+00> : vector<256x32xf32>
    %115 = tpu.matmul %112, %114, %cst_110 {dimension_numbers = #tpu.dot_dimension_numbers<[1], [0], [0], [1], [0, 0, 1, 1], [], []>} : vector<256x32xbf16>, vector<32x32xbf16>, vector<256x32xf32> -> vector<256x32xf32>
    %116 = arith.addf %110, %115 : vector<256x32xf32>
    %c1_111 = arith.constant 1 : index
    %c2_112 = arith.constant 2 : index
    %c0_113 = arith.constant 0 : index
    %117 = vector.load %arg9[%c1_111, %c2_112, %c0_113] : memref<18x18x32xbf16, #tpu.memory_space<vmem>>, vector<16x16x32xbf16>
    %118 = vector.shape_cast %117 : vector<16x16x32xbf16> to vector<256x32xbf16>
    %c5_114 = arith.constant 5 : index
    %c0_115 = arith.constant 0 : index
    %c0_116 = arith.constant 0 : index
    %119 = vector.load %arg5[%c5_114, %c0_115, %c0_116] : memref<9x32x32xbf16, #tpu.memory_space<vmem>>, vector<1x32x32xbf16>
    %120 = vector.shape_cast %119 : vector<1x32x32xbf16> to vector<32x32xbf16>
    %cst_117 = arith.constant dense<0.000000e+00> : vector<256x32xf32>
    %121 = tpu.matmul %118, %120, %cst_117 {dimension_numbers = #tpu.dot_dimension_numbers<[1], [0], [0], [1], [0, 0, 1, 1], [], []>} : vector<256x32xbf16>, vector<32x32xbf16>, vector<256x32xf32> -> vector<256x32xf32>
    %122 = arith.addf %116, %121 : vector<256x32xf32>
    %c2_118 = arith.constant 2 : index
    %c0_119 = arith.constant 0 : index
    %c0_120 = arith.constant 0 : index
    %123 = vector.load %arg9[%c2_118, %c0_119, %c0_120] : memref<18x18x32xbf16, #tpu.memory_space<vmem>>, vector<16x16x32xbf16>
    %124 = vector.shape_cast %123 : vector<16x16x32xbf16> to vector<256x32xbf16>
    %c6_121 = arith.constant 6 : index
    %c0_122 = arith.constant 0 : index
    %c0_123 = arith.constant 0 : index
    %125 = vector.load %arg5[%c6_121, %c0_122, %c0_123] : memref<9x32x32xbf16, #tpu.memory_space<vmem>>, vector<1x32x32xbf16>
    %126 = vector.shape_cast %125 : vector<1x32x32xbf16> to vector<32x32xbf16>
    %cst_124 = arith.constant dense<0.000000e+00> : vector<256x32xf32>
    %127 = tpu.matmul %124, %126, %cst_124 {dimension_numbers = #tpu.dot_dimension_numbers<[1], [0], [0], [1], [0, 0, 1, 1], [], []>} : vector<256x32xbf16>, vector<32x32xbf16>, vector<256x32xf32> -> vector<256x32xf32>
    %128 = arith.addf %122, %127 : vector<256x32xf32>
    %c2_125 = arith.constant 2 : index
    %c1_126 = arith.constant 1 : index
    %c0_127 = arith.constant 0 : index
    %129 = vector.load %arg9[%c2_125, %c1_126, %c0_127] : memref<18x18x32xbf16, #tpu.memory_space<vmem>>, vector<16x16x32xbf16>
    %130 = vector.shape_cast %129 : vector<16x16x32xbf16> to vector<256x32xbf16>
    %c7_128 = arith.constant 7 : index
    %c0_129 = arith.constant 0 : index
    %c0_130 = arith.constant 0 : index
    %131 = vector.load %arg5[%c7_128, %c0_129, %c0_130] : memref<9x32x32xbf16, #tpu.memory_space<vmem>>, vector<1x32x32xbf16>
    %132 = vector.shape_cast %131 : vector<1x32x32xbf16> to vector<32x32xbf16>
    %cst_131 = arith.constant dense<0.000000e+00> : vector<256x32xf32>
    %133 = tpu.matmul %130, %132, %cst_131 {dimension_numbers = #tpu.dot_dimension_numbers<[1], [0], [0], [1], [0, 0, 1, 1], [], []>} : vector<256x32xbf16>, vector<32x32xbf16>, vector<256x32xf32> -> vector<256x32xf32>
    %134 = arith.addf %128, %133 : vector<256x32xf32>
    %c2_132 = arith.constant 2 : index
    %c2_133 = arith.constant 2 : index
    %c0_134 = arith.constant 0 : index
    %135 = vector.load %arg9[%c2_132, %c2_133, %c0_134] : memref<18x18x32xbf16, #tpu.memory_space<vmem>>, vector<16x16x32xbf16>
    %136 = vector.shape_cast %135 : vector<16x16x32xbf16> to vector<256x32xbf16>
    %c8_135 = arith.constant 8 : index
    %c0_136 = arith.constant 0 : index
    %c0_137 = arith.constant 0 : index
    %137 = vector.load %arg5[%c8_135, %c0_136, %c0_137] : memref<9x32x32xbf16, #tpu.memory_space<vmem>>, vector<1x32x32xbf16>
    %138 = vector.shape_cast %137 : vector<1x32x32xbf16> to vector<32x32xbf16>
    %cst_138 = arith.constant dense<0.000000e+00> : vector<256x32xf32>
    %139 = tpu.matmul %136, %138, %cst_138 {dimension_numbers = #tpu.dot_dimension_numbers<[1], [0], [0], [1], [0, 0, 1, 1], [], []>} : vector<256x32xbf16>, vector<32x32xbf16>, vector<256x32xf32> -> vector<256x32xf32>
    %140 = arith.addf %134, %139 : vector<256x32xf32>
    %c0_139 = arith.constant 0 : index
    %c1_140 = arith.constant 1 : index
    %c1_141 = arith.constant 1 : index
    %c0_142 = arith.constant 0 : index
    %141 = vector.load %arg1[%c0_139, %c1_140, %c1_141, %c0_142] : memref<1x18x18x32xf32, #tpu.memory_space<vmem>>, vector<1x16x16x32xf32>
    %142 = vector.shape_cast %141 : vector<1x16x16x32xf32> to vector<16x16x32xf32>
    %143 = vector.shape_cast %142 : vector<16x16x32xf32> to vector<256x32xf32>
    %c0_143 = arith.constant 0 : index
    %c0_144 = arith.constant 0 : index
    %144 = vector.load %arg6[%c0_143, %c0_144] : memref<1x32xf32, #tpu.memory_space<vmem>>, vector<1x32xf32>
    %145 = vector.broadcast %144 : vector<1x32xf32> to vector<256x32xf32>
    %146 = arith.mulf %140, %145 : vector<256x32xf32>
    %c0_145 = arith.constant 0 : index
    %c0_146 = arith.constant 0 : index
    %147 = vector.load %arg7[%c0_145, %c0_146] : memref<1x32xf32, #tpu.memory_space<vmem>>, vector<1x32xf32>
    %148 = vector.broadcast %147 : vector<1x32xf32> to vector<256x32xf32>
    %149 = arith.addf %146, %148 : vector<256x32xf32>
    %150 = arith.addf %149, %143 : vector<256x32xf32>
    %cst_147 = arith.constant 0.000000e+00 : f32
    %151 = vector.broadcast %cst_147 : f32 to vector<256x32xf32>
    %152 = arith.maximumf %150, %151 : vector<256x32xf32>
    %153 = vector.shape_cast %152 : vector<256x32xf32> to vector<16x16x32xf32>
    %c0_148 = arith.constant 0 : index
    %c0_149 = arith.constant 0 : index
    %c0_150 = arith.constant 0 : index
    %c0_151 = arith.constant 0 : index
    %154 = vector.load %arg8[%c0_148, %c0_149, %c0_150, %c0_151] : memref<1x16x16x32xf32, #tpu.memory_space<vmem>>, vector<1x16x16x32xf32>
    %155 = vector.shape_cast %154 : vector<1x16x16x32xf32> to vector<16x16x32xf32>
    %156 = vector.shape_cast %153 : vector<16x16x32xf32> to vector<1x16x16x32xf32>
    tpu.vector_store %arg8[%c0_148, %c0_149, %c0_150, %c0_151], %156 {strides = array<i32>} : memref<1x16x16x32xf32, #tpu.memory_space<vmem>>, vector<1x16x16x32xf32>,
    return
  }
  func.func @transform_0(%arg0: i32) -> (i32, i32, i32, i32) {
    %c0_i32 = arith.constant 0 : i32
    %c0_i32_0 = arith.constant 0 : i32
    %c0_i32_1 = arith.constant 0 : i32
    %c0_i32_2 = arith.constant 0 : i32
    return %arg0, %c0_i32, %c0_i32_0, %c0_i32_1 : i32, i32, i32, i32
  }
  func.func @transform_1(%arg0: i32) -> (i32, i32, i32) {
    %c0_i32 = arith.constant 0 : i32
    %c0_i32_0 = arith.constant 0 : i32
    %c0_i32_1 = arith.constant 0 : i32
    %c0_i32_2 = arith.constant 0 : i32
    return %c0_i32, %c0_i32_0, %c0_i32_1 : i32, i32, i32
  }
  func.func @transform_2(%arg0: i32) -> (i32, i32) {
    %c0_i32 = arith.constant 0 : i32
    %c0_i32_0 = arith.constant 0 : i32
    %c0_i32_1 = arith.constant 0 : i32
    return %c0_i32, %c0_i32_0 : i32, i32
  }
  func.func @transform_3(%arg0: i32) -> (i32, i32) {
    %c0_i32 = arith.constant 0 : i32
    %c0_i32_0 = arith.constant 0 : i32
    %c0_i32_1 = arith.constant 0 : i32
    return %c0_i32, %c0_i32_0 : i32, i32
  }
  func.func @transform_4(%arg0: i32) -> (i32, i32, i32) {
    %c0_i32 = arith.constant 0 : i32
    %c0_i32_0 = arith.constant 0 : i32
    %c0_i32_1 = arith.constant 0 : i32
    %c0_i32_2 = arith.constant 0 : i32
    return %c0_i32, %c0_i32_0, %c0_i32_1 : i32, i32, i32
  }
  func.func @transform_5(%arg0: i32) -> (i32, i32) {
    %c0_i32 = arith.constant 0 : i32
    %c0_i32_0 = arith.constant 0 : i32
    %c0_i32_1 = arith.constant 0 : i32
    return %c0_i32, %c0_i32_0 : i32, i32
  }
  func.func @transform_6(%arg0: i32) -> (i32, i32) {
    %c0_i32 = arith.constant 0 : i32
    %c0_i32_0 = arith.constant 0 : i32
    %c0_i32_1 = arith.constant 0 : i32
    return %c0_i32, %c0_i32_0 : i32, i32
  }
  func.func @transform_7(%arg0: i32) -> (i32, i32, i32, i32) {
    %c0_i32 = arith.constant 0 : i32
    %c0_i32_0 = arith.constant 0 : i32
    %c0_i32_1 = arith.constant 0 : i32
    %c0_i32_2 = arith.constant 0 : i32
    return %arg0, %c0_i32, %c0_i32_0, %c0_i32_1 : i32, i32, i32, i32
  }
}

</mosaic_0001>

<llo_original>
// kernel: residual_block_forward.1
$region0: #{residual_block_forward.1}
  #allocation0 [shape = 'u32[]', space=smem, size = 0x4, offset = 0x4, fixed_abs, tag = 'smem constant byte address 0x4 - core index']
  #allocation1 [shape = 'u32[144,128]{1,0:T(1,128)}', space=vmem, size = 0x12000, scoped, tag = 'internal scratch']
  #allocation2 [shape = 'bf16[18,18,32]{2,1,0:T(8,128)(2,1)}', space=vmem, size = 0x1b000, scoped, tag = 'scratch operand']
  %s0 = inlined_call_operand.vmem [shape: f32[2,18,18,32], index: 0, kind: input, shape index: {}]
  %s1 = inlined_call_operand.vmem [shape: bf16[9,32,32], index: 1, kind: input, shape index: {}]
  %s2 = inlined_call_operand.vmem [shape: f32[1,32], index: 2, kind: input, shape index: {}]
  %s3 = inlined_call_operand.vmem [shape: f32[1,32], index: 3, kind: input, shape index: {}]
  %s4 = inlined_call_operand.vmem [shape: bf16[9,32,32], index: 4, kind: input, shape index: {}]
  %s5 = inlined_call_operand.vmem [shape: f32[1,32], index: 5, kind: input, shape index: {}]
  %s6 = inlined_call_operand.vmem [shape: f32[1,32], index: 6, kind: input, shape index: {}]
  %s7 = inlined_call_operand.hbm [shape: f32[2,16,16,32], index: 7, kind: output, shape index: {}]
  %s8 = sld [smem:[#allocation0]]
  $region61: #{residual_block_forward.1} parent=0
    _
  %s10 = ssub.s32 1, %s8
  %s11 = scalar_select 0, %s10, %s8
  $region1: #{residual_block_forward.1} parent=0
    #allocation3 [shape = 'u8[262144]{0}', space=vmem, size = 0x40000, scoped, tag = 'output window, operand 0']
    #allocation4 [shape = 's32[2]{0}', space=sflag, size = 0x8, scoped, tag = 'scoped memory for residual_block_forward.1']
    %12 = vsyncpa [#allocation4], 0
    %s13 = scalar_lea.sflag [#allocation4], 1
    %14 = vsyncpa %s13, 0
    loop: start=0, step=1, limit=4
    $region2: #{residual_block_forward.1} parent=1 // loop_pre_header
      _
    $region3: #{residual_block_forward.1} parent=1 // loop_header
      %s16 = sphi 0, %s20
      %p17 = scmp.ge.s32.totalorder %s16, 4
      %s26 = sphi 0, %s28
      %s29 = sphi 0, %s26
      %s30 = sphi 0, %s29
      %s46 = sphi 0, %s30
      %s50 = sphi 0, %s50
      %s52 = sphi 0, %s50
      %s53 = sphi 0, %s52
      %s67 = sphi 0, %s53
      %s71 = sphi 0, %s71
      %s73 = sphi 0, %s71
      %s74 = sphi 0, %s73
      %s88 = sphi 0, %s74
      %s92 = sphi 0, %s92
      %s94 = sphi 0, %s92
      %s95 = sphi 0, %s94
      %s109 = sphi 0, %s95
      %s113 = sphi 0, %s113
      %s115 = sphi 0, %s113
      %s116 = sphi 0, %s115
      %s130 = sphi 0, %s116
      %s134 = sphi 0, %s134
      %s136 = sphi 0, %s134
      %s137 = sphi 0, %s136
      %s151 = sphi 0, %s137
      %s155 = sphi 0, %s155
      %s157 = sphi 0, %s155
      %s158 = sphi 0, %s157
      %s172 = sphi 0, %s158
      %s178 = sphi 0, %s180
      %s181 = sphi 0, %s178
      %s182 = sphi 0, %s181
      %s198 = sphi 0, %s182
    $region4: #{residual_block_forward.1} parent=1 // loop_header_branch
      %19 = sbr.rel (%p17) target = $region8
    $region5: #{residual_block_forward.1} parent=1 // loop_body
      %s21 = ssub.s32 %s16, 1
      %s22 = ssub.s32 %s16, 2
      %s23 = sadd.s32 %s16, 1
      %s24 = ssub.s32 %s16, %s23
      %p25 = scmp.eq.s32.totalorder %s24, 0
      %s27 = sadd.s32 %s26, 1
      %s28 = scalar_select %p25, %s26, %s27
      %p31 = pneg %p25
      %p32 = scmp.eq.s32.totalorder %s16, 1
      %p33 = por %p31, %p32
      %p34 = scmp.ne.s32.totalorder %s26, %s29
      %p35 = scmp.eq.s32.totalorder %s16, 0
      %p36 = por %p34, %p35
      %p37 = scmp.ne.s32.totalorder %s26, %s29
      %p38 = scmp.eq.s32.totalorder %s21, 1
      %p39 = por %p37, %p38
      %p40 = scmp.ne.s32.totalorder %s29, %s30
      %p41 = scmp.eq.s32.totalorder %s21, 0
      %p42 = por %p40, %p41
      %p43 = scmp.ne.s32.totalorder %s29, %s30
      %p44 = scmp.eq.s32.totalorder %s22, 1
      %p45 = por %p43, %p44
      %p47 = scmp.ne.s32.totalorder %s30, %s46
      %p48 = scmp.eq.s32.totalorder %s22, 0
      %p49 = por %p47, %p48
      %s51 = sadd.s32 %s50, 1
      %p54 = scmp.eq.s32.totalorder %s16, 1
      %p55 = scmp.ne.s32.totalorder %s50, %s52
      %p56 = scmp.eq.s32.totalorder %s16, 0
      %p57 = por %p55, %p56
      %p58 = scmp.ne.s32.totalorder %s50, %s52
      %p59 = scmp.eq.s32.totalorder %s21, 1
      %p60 = por %p58, %p59
      %p61 = scmp.ne.s32.totalorder %s52, %s53
      %p62 = scmp.eq.s32.totalorder %s21, 0
      %p63 = por %p61, %p62
      %p64 = scmp.ne.s32.totalorder %s52, %s53
      %p65 = scmp.eq.s32.totalorder %s22, 1
      %p66 = por %p64, %p65
      %p68 = scmp.ne.s32.totalorder %s53, %s67
      %p69 = scmp.eq.s32.totalorder %s22, 0
      %p70 = por %p68, %p69
      %s72 = sadd.s32 %s71, 1
      %p75 = scmp.eq.s32.totalorder %s16, 1
      %p76 = scmp.ne.s32.totalorder %s71, %s73
      %p77 = scmp.eq.s32.totalorder %s16, 0
      %p78 = por %p76, %p77
      %p79 = scmp.ne.s32.totalorder %s71, %s73
      %p80 = scmp.eq.s32.totalorder %s21, 1
      %p81 = por %p79, %p80
      %p82 = scmp.ne.s32.totalorder %s73, %s74
      %p83 = scmp.eq.s32.totalorder %s21, 0
      %p84 = por %p82, %p83
      %p85 = scmp.ne.s32.totalorder %s73, %s74
      %p86 = scmp.eq.s32.totalorder %s22, 1
      %p87 = por %p85, %p86
      %p89 = scmp.ne.s32.totalorder %s74, %s88
      %p90 = scmp.eq.s32.totalorder %s22, 0
      %p91 = por %p89, %p90
      %s93 = sadd.s32 %s92, 1
      %p96 = scmp.eq.s32.totalorder %s16, 1
      %p97 = scmp.ne.s32.totalorder %s92, %s94
      %p98 = scmp.eq.s32.totalorder %s16, 0
      %p99 = por %p97, %p98
      %p100 = scmp.ne.s32.totalorder %s92, %s94
      %p101 = scmp.eq.s32.totalorder %s21, 1
      %p102 = por %p100, %p101
      %p103 = scmp.ne.s32.totalorder %s94, %s95
      %p104 = scmp.eq.s32.totalorder %s21, 0
      %p105 = por %p103, %p104
      %p106 = scmp.ne.s32.totalorder %s94, %s95
      %p107 = scmp.eq.s32.totalorder %s22, 1
      %p108 = por %p106, %p107
      %p110 = scmp.ne.s32.totalorder %s95, %s109
      %p111 = scmp.eq.s32.totalorder %s22, 0
      %p112 = por %p110, %p111
      %s114 = sadd.s32 %s113, 1
      %p117 = scmp.eq.s32.totalorder %s16, 1
      %p118 = scmp.ne.s32.totalorder %s113, %s115
      %p119 = scmp.eq.s32.totalorder %s16, 0
      %p120 = por %p118, %p119
      %p121 = scmp.ne.s32.totalorder %s113, %s115
      %p122 = scmp.eq.s32.totalorder %s21, 1
      %p123 = por %p121, %p122
      %p124 = scmp.ne.s32.totalorder %s115, %s116
      %p125 = scmp.eq.s32.totalorder %s21, 0
      %p126 = por %p124, %p125
      %p127 = scmp.ne.s32.totalorder %s115, %s116
      %p128 = scmp.eq.s32.totalorder %s22, 1
      %p129 = por %p127, %p128
      %p131 = scmp.ne.s32.totalorder %s116, %s130
      %p132 = scmp.eq.s32.totalorder %s22, 0
      %p133 = por %p131, %p132
      %s135 = sadd.s32 %s134, 1
      %p138 = scmp.eq.s32.totalorder %s16, 1
      %p139 = scmp.ne.s32.totalorder %s134, %s136
      %p140 = scmp.eq.s32.totalorder %s16, 0
      %p141 = por %p139, %p140
      %p142 = scmp.ne.s32.totalorder %s134, %s136
      %p143 = scmp.eq.s32.totalorder %s21, 1
      %p144 = por %p142, %p143
      %p145 = scmp.ne.s32.totalorder %s136, %s137
      %p146 = scmp.eq.s32.totalorder %s21, 0
      %p147 = por %p145, %p146
      %p148 = scmp.ne.s32.totalorder %s136, %s137
      %p149 = scmp.eq.s32.totalorder %s22, 1
      %p150 = por %p148, %p149
      %p152 = scmp.ne.s32.totalorder %s137, %s151
      %p153 = scmp.eq.s32.totalorder %s22, 0
      %p154 = por %p152, %p153
      %s156 = sadd.s32 %s155, 1
      %p159 = scmp.eq.s32.totalorder %s16, 1
      %p160 = scmp.ne.s32.totalorder %s155, %s157
      %p161 = scmp.eq.s32.totalorder %s16, 0
      %p162 = por %p160, %p161
      %p163 = scmp.ne.s32.totalorder %s155, %s157
      %p164 = scmp.eq.s32.totalorder %s21, 1
      %p165 = por %p163, %p164
      %p166 = scmp.ne.s32.totalorder %s157, %s158
      %p167 = scmp.eq.s32.totalorder %s21, 0
      %p168 = por %p166, %p167
      %p169 = scmp.ne.s32.totalorder %s157, %s158
      %p170 = scmp.eq.s32.totalorder %s22, 1
      %p171 = por %p169, %p170
      %p173 = scmp.ne.s32.totalorder %s158, %s172
      %p174 = scmp.eq.s32.totalorder %s22, 0
      %p175 = por %p173, %p174
      %s176 = ssub.s32 %s16, %s23
      %p177 = scmp.eq.s32.totalorder %s176, 0
      %s179 = sadd.s32 %s178, 1
      %s180 = scalar_select %p177, %s178, %s179
      %p183 = pneg %p177
      %p184 = scmp.eq.s32.totalorder %s16, 1
      %p185 = por %p183, %p184
      %p186 = scmp.ne.s32.totalorder %s178, %s181
      %p187 = scmp.eq.s32.totalorder %s16, 0
      %p188 = por %p186, %p187
      %p189 = scmp.ne.s32.totalorder %s178, %s181
      %p190 = scmp.eq.s32.totalorder %s21, 1
      %p191 = por %p189, %p190
      %p192 = scmp.ne.s32.totalorder %s181, %s182
      %p193 = scmp.eq.s32.totalorder %s21, 0
      %p194 = por %p192, %p193
      %p195 = scmp.ne.s32.totalorder %s181, %s182
      %p196 = scmp.eq.s32.totalorder %s22, 1
      %p197 = por %p195, %p196
      %p199 = scmp.ne.s32.totalorder %s182, %s198
      %p200 = scmp.eq.s32.totalorder %s22, 0
      %p201 = por %p199, %p200
      %p202 = scmp.le.s32.totalorder 1, %s16
      %p203 = scmp.lt.s32.totalorder %s16, 3
      %p204 = pnand %p202, %p203
      %p205 = pneg %p204
      // Predicated region
      $region9: #{residual_block_forward.1} parent=5 // pred_check
        _
      $region10: #{residual_block_forward.1} parent=5 // pred_check_branch
        %207 = sbr.rel (%p204) target = $region12
      $region11: #{residual_block_forward.1} parent=5 // pred_region
        %s208 = ssub.s32 %s16, 1
        // Predicated region
        $region13: #{residual_block_forward.1} parent=11 // pred_check
          %p209 = pneg %p63
        $region14: #{residual_block_forward.1} parent=11 // pred_check_branch
          %211 = sbr.rel (%p209) target = $region16
        $region15: #{residual_block_forward.1} parent=11 // pred_region
          _
        $region16: #{residual_block_forward.1} parent=11 // pred_fallthru
          _
        // Predicated region
        $region17: #{residual_block_forward.1} parent=11 // pred_check
          %p212 = pneg %p84
        $region18: #{residual_block_forward.1} parent=11 // pred_check_branch
          %214 = sbr.rel (%p212) target = $region20
        $region19: #{residual_block_forward.1} parent=11 // pred_region
          _
        $region20: #{residual_block_forward.1} parent=11 // pred_fallthru
          _
        // Predicated region
        $region21: #{residual_block_forward.1} parent=11 // pred_check
          %p215 = pneg %p105
        $region22: #{residual_block_forward.1} parent=11 // pred_check_branch
          %217 = sbr.rel (%p215) target = $region24
        $region23: #{residual_block_forward.1} parent=11 // pred_region
          _
        $region24: #{residual_block_forward.1} parent=11 // pred_fallthru
          _
        // Predicated region
        $region25: #{residual_block_forward.1} parent=11 // pred_check
          %p218 = pneg %p126
        $region26: #{residual_block_forward.1} parent=11 // pred_check_branch
          %220 = sbr.rel (%p218) target = $region28
        $region27: #{residual_block_forward.1} parent=11 // pred_region
          _
        $region28: #{residual_block_forward.1} parent=11 // pred_fallthru
          _
        // Predicated region
        $region29: #{residual_block_forward.1} parent=11 // pred_check
          %p221 = pneg %p147
        $region30: #{residual_block_forward.1} parent=11 // pred_check_branch
          %223 = sbr.rel (%p221) target = $region32
        $region31: #{residual_block_forward.1} parent=11 // pred_region
          _
        $region32: #{residual_block_forward.1} parent=11 // pred_fallthru
          _
        // Predicated region
        $region33: #{residual_block_forward.1} parent=11 // pred_check
          %p224 = pneg %p168
        $region34: #{residual_block_forward.1} parent=11 // pred_check_branch
          %226 = sbr.rel (%p224) target = $region36
        $region35: #{residual_block_forward.1} parent=11 // pred_region
          _
        $region36: #{residual_block_forward.1} parent=11 // pred_fallthru
          _
      $region12: #{residual_block_forward.1} parent=5 // pred_fallthru
        _
      %p227 = scmp.lt.s32.totalorder %s16, 2
      // Predicated region
      $region37: #{residual_block_forward.1} parent=5 // pred_check
        %p228 = pneg %p227
      $region38: #{residual_block_forward.1} parent=5 // pred_check_branch
        %230 = sbr.rel (%p228) target = $region40
      $region39: #{residual_block_forward.1} parent=5 // pred_region
        // Predicated region
        $region41: #{residual_block_forward.1} parent=39 // pred_check
          %p231 = pneg %p36
        $region42: #{residual_block_forward.1} parent=39 // pred_check_branch
          %233 = sbr.rel (%p231) target = $region44
        $region43: #{residual_block_forward.1} parent=39 // pred_region
          %p234 = scmp.lt.s32.totalorder %s16, 1
          %s235 = scalar_select %p234, %s16, 1
          %s236 = smul.addr %s235, 54
          %s237 = smul.addr %s236, 8
          %s238 = scalar_lea.vmem %s0, %s237
        $region44: #{residual_block_forward.1} parent=39 // pred_fallthru
          _
      $region40: #{residual_block_forward.1} parent=5 // pred_fallthru
        _
      %p239 = scmp.le.s32.totalorder 1, %s16
      %p240 = scmp.lt.s32.totalorder %s16, 3
      %p241 = pnand %p239, %p240
      %p242 = pneg %p241
      // Predicated region
      $region45: #{residual_block_forward.1} parent=5 // pred_check
        _
      $region46: #{residual_block_forward.1} parent=5 // pred_check_branch
        %244 = sbr.rel (%p241) target = $region48
      $region47: #{residual_block_forward.1} parent=5 // pred_region
        %s245 = ssub.s32 %s16, 1
        %p246 = scmp.lt.s32.totalorder %s21, 1
        %s247 = scalar_select %p246, %s21, 1
        %s248 = smul.addr %s247, 54
        %s249 = smul.addr %s248, 8
        %s250 = scalar_lea.vmem %s0, %s249
        %p251 = pneg %p42
        %p252 = pneg %p39
        %p253 = pneg %p63
        %p254 = pneg %p60
        %p255 = pneg %p84
        %p256 = pneg %p81
        %p257 = pneg %p105
        %p258 = pneg %p102
        %p259 = pneg %p126
        %p260 = pneg %p123
        %p261 = pneg %p147
        %p262 = pneg %p144
        %p263 = pneg %p168
        %p264 = pneg %p165
        %p265 = pneg %p194
        %p266 = pneg %p191
        %s267 = sand.u32 %s181, 1
        %s268 = scalar_lea.sflag [#allocation4], %s267
        %s269 = sand.u32 %s181, 1
        %s270 = smul.addr %s269, 256
        %s271 = scalar_lea.vmem [#allocation3], %s270
        %p272 = scmp.lt.s32.totalorder %s21, 1
        %s273 = scalar_select %p272, %s21, 1
        %s274 = smul.addr %s273, 54
        %s275 = smul.addr %s274, 8
        %s276 = scalar_lea.vmem %s0, %s275
        %v278 = vld [vmem:[%s276] sm:$0xff]
        %v279 = vld [vmem:[%s276 + $0x8] sm:$0xff]
        %v280 = vld [vmem:[%s276 + $0x18] sm:$0xff]
        %v281 = vld [vmem:[%s276 + $0x20] sm:$0xff]
        %v282 = vld [vmem:[%s276 + $0x30] sm:$0xff]
        %v283 = vld [vmem:[%s276 + $0x38] sm:$0xff]
        %v284 = vld [vmem:[%s276 + $0x48] sm:$0xff]
        %v285 = vld [vmem:[%s276 + $0x50] sm:$0xff]
        %v286 = vld [vmem:[%s276 + $0x60] sm:$0xff]
        %v287 = vld [vmem:[%s276 + $0x68] sm:$0xff]
        %v288 = vld [vmem:[%s276 + $0x78] sm:$0xff]
        %v289 = vld [vmem:[%s276 + $0x80] sm:$0xff]
        %v290 = vld [vmem:[%s276 + $0x90] sm:$0xff]
        %v291 = vld [vmem:[%s276 + $0x98] sm:$0xff]
        %v292 = vld [vmem:[%s276 + $0xa8] sm:$0xff]
        %v293 = vld [vmem:[%s276 + $0xb0] sm:$0xff]
        %v294 = vld [vmem:[%s276 + $0xc0] sm:$0xff]
        %v295 = vld [vmem:[%s276 + $0xc8] sm:$0xff]
        %v296 = vld [vmem:[%s276 + $0xd8] sm:$0xff]
        %v297 = vld [vmem:[%s276 + $0xe0] sm:$0xff]
        %v298 = vld [vmem:[%s276 + $0xf0] sm:$0xff]
        %v299 = vld [vmem:[%s276 + $0xf8] sm:$0xff]
        %v300 = vld [vmem:[%s276 + $0x108] sm:$0xff]
        %v301 = vld [vmem:[%s276 + $0x110] sm:$0xff]
        %v302 = vld [vmem:[%s276 + $0x120] sm:$0xff]
        %v303 = vld [vmem:[%s276 + $0x128] sm:$0xff]
        %v304 = vld [vmem:[%s276 + $0x138] sm:$0xff]
        %v305 = vld [vmem:[%s276 + $0x140] sm:$0xff]
        %v306 = vld [vmem:[%s276 + $0x150] sm:$0xff]
        %v307 = vld [vmem:[%s276 + $0x158] sm:$0xff]
        %v308 = vld [vmem:[%s276 + $0x168] sm:$0xff]
        %v309 = vld [vmem:[%s276 + $0x170] sm:$0xff]
        %v310 = vpack.c.bf16 %v279, %v278
        %v311 = vpack.c.bf16 %v281, %v280
        %v312 = vpack.c.bf16 %v283, %v282
        %v313 = vpack.c.bf16 %v285, %v284
        %v314 = vpack.c.bf16 %v287, %v286
        %v315 = vpack.c.bf16 %v289, %v288
        %v316 = vpack.c.bf16 %v291, %v290
        %v317 = vpack.c.bf16 %v293, %v292
        %v318 = vpack.c.bf16 %v295, %v294
        %v319 = vpack.c.bf16 %v297, %v296
        %v320 = vpack.c.bf16 %v299, %v298
        %v321 = vpack.c.bf16 %v301, %v300
        %v322 = vpack.c.bf16 %v303, %v302
        %v323 = vpack.c.bf16 %v305, %v304
        %v324 = vpack.c.bf16 %v307, %v306
        %v325 = vpack.c.bf16 %v309, %v308
        %v326 = vld [vmem:[%s1] sm:$0xf]
        %v327 = vld [vmem:[%s1 + $0x4] sm:$0xf]
        %v328 = vld [vmem:[%s1 + $0x8] sm:$0xf]
        %v329 = vld [vmem:[%s1 + $0xc] sm:$0xf]
        %v330 = vld [vmem:[%s276 + $0x1] sm:$0xff]
        %v331 = vld [vmem:[%s276 + $0x9] sm:$0xff]
        %v332 = vld [vmem:[%s276 + $0x19] sm:$0xff]
        %v333 = vld [vmem:[%s276 + $0x21] sm:$0xff]
        %v334 = vld [vmem:[%s276 + $0x31] sm:$0xff]
        %v335 = vld [vmem:[%s276 + $0x39] sm:$0xff]
        %v336 = vld [vmem:[%s276 + $0x49] sm:$0xff]
        %v337 = vld [vmem:[%s276 + $0x51] sm:$0xff]
        %v338 = vld [vmem:[%s276 + $0x61] sm:$0xff]
        %v339 = vld [vmem:[%s276 + $0x69] sm:$0xff]
        %v340 = vld [vmem:[%s276 + $0x79] sm:$0xff]
        %v341 = vld [vmem:[%s276 + $0x81] sm:$0xff]
        %v342 = vld [vmem:[%s276 + $0x91] sm:$0xff]
        %v343 = vld [vmem:[%s276 + $0x99] sm:$0xff]
        %v344 = vld [vmem:[%s276 + $0xa9] sm:$0xff]
        %v345 = vld [vmem:[%s276 + $0xb1] sm:$0xff]
        %v346 = vld [vmem:[%s276 + $0xc1] sm:$0xff]
        %v347 = vld [vmem:[%s276 + $0xc9] sm:$0xff]
        %v348 = vld [vmem:[%s276 + $0xd9] sm:$0xff]
        %v349 = vld [vmem:[%s276 + $0xe1] sm:$0xff]
        %v350 = vld [vmem:[%s276 + $0xf1] sm:$0xff]
        %v351 = vld [vmem:[%s276 + $0xf9] sm:$0xff]
        %v352 = vld [vmem:[%s276 + $0x109] sm:$0xff]
        %v353 = vld [vmem:[%s276 + $0x111] sm:$0xff]
        %v354 = vld [vmem:[%s276 + $0x121] sm:$0xff]
        %v355 = vld [vmem:[%s276 + $0x129] sm:$0xff]
        %v356 = vld [vmem:[%s276 + $0x139] sm:$0xff]
        %v357 = vld [vmem:[%s276 + $0x141] sm:$0xff]
        %v358 = vld [vmem:[%s276 + $0x151] sm:$0xff]
        %v359 = vld [vmem:[%s276 + $0x159] sm:$0xff]
        %v360 = vld [vmem:[%s276 + $0x169] sm:$0xff]
        %v361 = vld [vmem:[%s276 + $0x171] sm:$0xff]
        %v362 = vpack.c.bf16 %v331, %v330
        %v363 = vpack.c.bf16 %v333, %v332
        %v364 = vpack.c.bf16 %v335, %v334
        %v365 = vpack.c.bf16 %v337, %v336
        %v366 = vpack.c.bf16 %v339, %v338
        %v367 = vpack.c.bf16 %v341, %v340
        %v368 = vpack.c.bf16 %v343, %v342
        %v369 = vpack.c.bf16 %v345, %v344
        %v370 = vpack.c.bf16 %v347, %v346
        %v371 = vpack.c.bf16 %v349, %v348
        %v372 = vpack.c.bf16 %v351, %v350
        %v373 = vpack.c.bf16 %v353, %v352
        %v374 = vpack.c.bf16 %v355, %v354
        %v375 = vpack.c.bf16 %v357, %v356
        %v376 = vpack.c.bf16 %v359, %v358
        %v377 = vpack.c.bf16 %v361, %v360
        %s378 = scalar_lea.vmem %s1, 16
        %v379 = vld [vmem:[%s378] sm:$0xf]
        %v380 = vld [vmem:[%s378 + $0x4] sm:$0xf]
        %v381 = vld [vmem:[%s378 + $0x8] sm:$0xf]
        %v382 = vld [vmem:[%s378 + $0xc] sm:$0xf]
        %v387 = vunpack.c.l.b16 %v379
        %v388 = vunpack.c.l.b16 %v380
        %v389 = vunpack.c.l.b16 %v381
        %v390 = vunpack.c.l.b16 %v382
        %v391 = vpack.c.b16 %v388, %v387
        %v392 = vpack.c.b16 %v390, %v389
        %vm395 = vcmask 261120
        %v397 = vsel %vm395, %v362, 0
        %v400 = vsel %vm395, %v363, 0
        %v403 = vsel %vm395, %v364, 0
        %v406 = vsel %vm395, %v365, 0
        %v409 = vsel %vm395, %v366, 0
        %v412 = vsel %vm395, %v367, 0
        %v415 = vsel %vm395, %v368, 0
        %v418 = vsel %vm395, %v369, 0
        %v421 = vsel %vm395, %v370, 0
        %v424 = vsel %vm395, %v371, 0
        %v427 = vsel %vm395, %v372, 0
        %v430 = vsel %vm395, %v373, 0
        %v433 = vsel %vm395, %v374, 0
        %v436 = vsel %vm395, %v375, 0
        %v439 = vsel %vm395, %v376, 0
        %v442 = vsel %vm395, %v377, 0
        %444 = vmatprep.subr.bf16.mxu0 0
        %445 = vmatpush1.bf16.msra.mxu0 %v391
        %446 = vmatprep.subr.bf16.mxu0 0
        %447 = vmatpush1.bf16.msra.mxu0 %v392
        %448 = vmatprep.subr.bf16.mxu0 0
        %449 = vmatpush1.bf16.msra.mxu0 0
        %450 = vmatprep.subr.bf16.mxu0 0
        %451 = vmatpush1.bf16.msra.mxu0 0
        %452 = vmatprep.subr.bf16.mxu0 0
        %453 = vmatpush1.bf16.msra.mxu0 0
        %454 = vmatprep.subr.bf16.mxu0 0
        %455 = vmatpush1.bf16.msra.mxu0 0
        %456 = vmatprep.subr.bf16.mxu0 0
        %457 = vmatpush1.bf16.msra.mxu0 0
        %458 = vmatprep.subr.bf16.mxu0 0
        %459 = vmatpush1.bf16.msra.mxu0 0
        %460 = vmatprep.subr.bf16.mxu0 0
        %461 = vmatpush1.bf16.msra.mxu0 0
        %462 = vmatprep.subr.bf16.mxu0 0
        %463 = vmatpush1.bf16.msra.mxu0 0
        %464 = vmatprep.subr.bf16.mxu0 0
        %465 = vmatpush1.bf16.msra.mxu0 0
        %466 = vmatprep.subr.bf16.mxu0 0
        %467 = vmatpush1.bf16.msra.mxu0 0
        %468 = vmatprep.subr.bf16.mxu0 0
        %469 = vmatpush1.bf16.msra.mxu0 0
        %470 = vmatprep.subr.bf16.mxu0 0
        %471 = vmatpush1.bf16.msra.mxu0 0
        %472 = vmatprep.subr.bf16.mxu0 0
        %473 = vmatpush1.bf16.msra.mxu0 0
        %474 = vmatprep.subr.bf16.mxu0 0
        %475 = vmatpush1.bf16.msra.mxu0 0
        %476 = vmatprep.mubr.bf16.mxu0 0
        %477 = vmatmul.mubr.bf16.gmra.mrb[0].mxu0 %v397
        %v478 = vpop.f32.mrb[0].mxu0
        %v479 = vadd.f32 0.0, %v478
        %v480 = vpop.f32.mrb[0].mxu0
        %v481 = vpop.f32.mrb[0].mxu0
        %v482 = vadd.f32 0.0, %v481
        %v483 = vpop.f32.mrb[0].mxu0
        %484 = vmatprep.mubr.bf16.mxu0 0
        %485 = vmatmul.mubr.bf16.gmra.mrb[0].mxu0 %v400
        %v486 = vpop.f32.mrb[0].mxu0
        %v487 = vadd.f32 0.0, %v486
        %v488 = vpop.f32.mrb[0].mxu0
        %v489 = vpop.f32.mrb[0].mxu0
        %v490 = vadd.f32 0.0, %v489
        %v491 = vpop.f32.mrb[0].mxu0
        %492 = vmatprep.mubr.bf16.mxu0 0
        %493 = vmatmul.mubr.bf16.gmra.mrb[0].mxu0 %v403
        %v494 = vpop.f32.mrb[0].mxu0
        %v495 = vadd.f32 0.0, %v494
        %v496 = vpop.f32.mrb[0].mxu0
        %v497 = vpop.f32.mrb[0].mxu0
        %v498 = vadd.f32 0.0, %v497
        %v499 = vpop.f32.mrb[0].mxu0
        %500 = vmatprep.mubr.bf16.mxu0 0
        %501 = vmatmul.mubr.bf16.gmra.mrb[0].mxu0 %v406
        %v502 = vpop.f32.mrb[0].mxu0
        %v503 = vadd.f32 0.0, %v502
        %v504 = vpop.f32.mrb[0].mxu0
        %v505 = vpop.f32.mrb[0].mxu0
        %v506 = vadd.f32 0.0, %v505
        %v507 = vpop.f32.mrb[0].mxu0
        %508 = vmatprep.mubr.bf16.mxu0 0
        %509 = vmatmul.mubr.bf16.gmra.mrb[0].mxu0 %v409
        %v510 = vpop.f32.mrb[0].mxu0
        %v511 = vadd.f32 0.0, %v510
        %v512 = vpop.f32.mrb[0].mxu0
        %v513 = vpop.f32.mrb[0].mxu0
        %v514 = vadd.f32 0.0, %v513
        %v515 = vpop.f32.mrb[0].mxu0
        %516 = vmatprep.mubr.bf16.mxu0 0
        %517 = vmatmul.mubr.bf16.gmra.mrb[0].mxu0 %v412
        %v518 = vpop.f32.mrb[0].mxu0
        %v519 = vadd.f32 0.0, %v518
        %v520 = vpop.f32.mrb[0].mxu0
        %v521 = vpop.f32.mrb[0].mxu0
        %v522 = vadd.f32 0.0, %v521
        %v523 = vpop.f32.mrb[0].mxu0
        %524 = vmatprep.mubr.bf16.mxu0 0
        %525 = vmatmul.mubr.bf16.gmra.mrb[0].mxu0 %v415
        %v526 = vpop.f32.mrb[0].mxu0
        %v527 = vadd.f32 0.0, %v526
        %v528 = vpop.f32.mrb[0].mxu0
        %v529 = vpop.f32.mrb[0].mxu0
        %v530 = vadd.f32 0.0, %v529
        %v531 = vpop.f32.mrb[0].mxu0
        %532 = vmatprep.mubr.bf16.mxu0 0
        %533 = vmatmul.mubr.bf16.gmra.mrb[0].mxu0 %v418
        %v534 = vpop.f32.mrb[0].mxu0
        %v535 = vadd.f32 0.0, %v534
        %v536 = vpop.f32.mrb[0].mxu0
        %v537 = vpop.f32.mrb[0].mxu0
        %v538 = vadd.f32 0.0, %v537
        %v539 = vpop.f32.mrb[0].mxu0
        %540 = vmatprep.mubr.bf16.mxu0 0
        %541 = vmatmul.mubr.bf16.gmra.mrb[0].mxu0 %v421
        %v542 = vpop.f32.mrb[0].mxu0
        %v543 = vadd.f32 0.0, %v542
        %v544 = vpop.f32.mrb[0].mxu0
        %v545 = vpop.f32.mrb[0].mxu0
        %v546 = vadd.f32 0.0, %v545
        %v547 = vpop.f32.mrb[0].mxu0
        %548 = vmatprep.mubr.bf16.mxu0 0
        %549 = vmatmul.mubr.bf16.gmra.mrb[0].mxu0 %v424
        %v550 = vpop.f32.mrb[0].mxu0
        %v551 = vadd.f32 0.0, %v550
        %v552 = vpop.f32.mrb[0].mxu0
        %v553 = vpop.f32.mrb[0].mxu0
        %v554 = vadd.f32 0.0, %v553
        %v555 = vpop.f32.mrb[0].mxu0
        %556 = vmatprep.mubr.bf16.mxu0 0
        %557 = vmatmul.mubr.bf16.gmra.mrb[0].mxu0 %v427
        %v558 = vpop.f32.mrb[0].mxu0
        %v559 = vadd.f32 0.0, %v558
        %v560 = vpop.f32.mrb[0].mxu0
        %v561 = vpop.f32.mrb[0].mxu0
        %v562 = vadd.f32 0.0, %v561
        %v563 = vpop.f32.mrb[0].mxu0
        %564 = vmatprep.mubr.bf16.mxu0 0
        %565 = vmatmul.mubr.bf16.gmra.mrb[0].mxu0 %v430
        %v566 = vpop.f32.mrb[0].mxu0
        %v567 = vadd.f32 0.0, %v566
        %v568 = vpop.f32.mrb[0].mxu0
        %v569 = vpop.f32.mrb[0].mxu0
        %v570 = vadd.f32 0.0, %v569
        %v571 = vpop.f32.mrb[0].mxu0
        %572 = vmatprep.mubr.bf16.mxu0 0
        %573 = vmatmul.mubr.bf16.gmra.mrb[0].mxu0 %v433
        %v574 = vpop.f32.mrb[0].mxu0
        %v575 = vadd.f32 0.0, %v574
        %v576 = vpop.f32.mrb[0].mxu0
        %v577 = vpop.f32.mrb[0].mxu0
        %v578 = vadd.f32 0.0, %v577
        %v579 = vpop.f32.mrb[0].mxu0
        %580 = vmatprep.mubr.bf16.mxu0 0
        %581 = vmatmul.mubr.bf16.gmra.mrb[0].mxu0 %v436
        %v582 = vpop.f32.mrb[0].mxu0
        %v583 = vadd.f32 0.0, %v582
        %v584 = vpop.f32.mrb[0].mxu0
        %v585 = vpop.f32.mrb[0].mxu0
        %v586 = vadd.f32 0.0, %v585
        %v587 = vpop.f32.mrb[0].mxu0
        %588 = vmatprep.mubr.bf16.mxu0 0
        %589 = vmatmul.mubr.bf16.gmra.mrb[0].mxu0 %v439
        %v590 = vpop.f32.mrb[0].mxu0
        %v591 = vadd.f32 0.0, %v590
        %v592 = vpop.f32.mrb[0].mxu0
        %v593 = vpop.f32.mrb[0].mxu0
        %v594 = vadd.f32 0.0, %v593
        %v595 = vpop.f32.mrb[0].mxu0
        %596 = vmatprep.mubr.bf16.mxu0 0
        %597 = vmatmul.mubr.bf16.gmra.mrb[0].mxu0 %v442
        %v598 = vpop.f32.mrb[0].mxu0
        %v599 = vadd.f32 0.0, %v598
        %v600 = vpop.f32.mrb[0].mxu0
        %v601 = vpop.f32.mrb[0].mxu0
        %v602 = vadd.f32 0.0, %v601
        %v603 = vpop.f32.mrb[0].mxu0
        %604 = vdwg.mxu0
        %v609 = vunpack.c.l.b16 %v326
        %v610 = vunpack.c.l.b16 %v327
        %v611 = vunpack.c.l.b16 %v328
        %v612 = vunpack.c.l.b16 %v329
        %v613 = vpack.c.b16 %v610, %v609
        %v614 = vpack.c.b16 %v612, %v611
        %v618 = vsel %vm395, %v310, 0
        %v621 = vsel %vm395, %v311, 0
        %v624 = vsel %vm395, %v312, 0
        %v627 = vsel %vm395, %v313, 0
        %v630 = vsel %vm395, %v314, 0
        %v633 = vsel %vm395, %v315, 0
        %v636 = vsel %vm395, %v316, 0
        %v639 = vsel %vm395, %v317, 0
        %v642 = vsel %vm395, %v318, 0
        %v645 = vsel %vm395, %v319, 0
        %v648 = vsel %vm395, %v320, 0
        %v651 = vsel %vm395, %v321, 0
        %v654 = vsel %vm395, %v322, 0
        %v657 = vsel %vm395, %v323, 0
        %v660 = vsel %vm395, %v324, 0
        %v663 = vsel %vm395, %v325, 0
        %665 = vmatprep.subr.bf16.mxu0 0
        %666 = vmatpush1.bf16.msra.mxu0 %v613
        %667 = vmatprep.subr.bf16.mxu0 0
        %668 = vmatpush1.bf16.msra.mxu0 %v614
        %669 = vmatprep.subr.bf16.mxu0 0
        %670 = vmatpush1.bf16.msra.mxu0 0
        %671 = vmatprep.subr.bf16.mxu0 0
        %672 = vmatpush1.bf16.msra.mxu0 0
        %673 = vmatprep.subr.bf16.mxu0 0
        %674 = vmatpush1.bf16.msra.mxu0 0
        %675 = vmatprep.subr.bf16.mxu0 0
        %676 = vmatpush1.bf16.msra.mxu0 0
        %677 = vmatprep.subr.bf16.mxu0 0
        %678 = vmatpush1.bf16.msra.mxu0 0
        %679 = vmatprep.subr.bf16.mxu0 0
        %680 = vmatpush1.bf16.msra.mxu0 0
        %681 = vmatprep.subr.bf16.mxu0 0
        %682 = vmatpush1.bf16.msra.mxu0 0
        %683 = vmatprep.subr.bf16.mxu0 0
        %684 = vmatpush1.bf16.msra.mxu0 0
        %685 = vmatprep.subr.bf16.mxu0 0
        %686 = vmatpush1.bf16.msra.mxu0 0
        %687 = vmatprep.subr.bf16.mxu0 0
        %688 = vmatpush1.bf16.msra.mxu0 0
        %689 = vmatprep.subr.bf16.mxu0 0
        %690 = vmatpush1.bf16.msra.mxu0 0
        %691 = vmatprep.subr.bf16.mxu0 0
        %692 = vmatpush1.bf16.msra.mxu0 0
        %693 = vmatprep.subr.bf16.mxu0 0
        %694 = vmatpush1.bf16.msra.mxu0 0
        %695 = vmatprep.subr.bf16.mxu0 0
        %696 = vmatpush1.bf16.msra.mxu0 0
        %697 = vmatprep.mubr.bf16.mxu0 0
        %698 = vmatmul.mubr.bf16.gmra.mrb[0].mxu0 %v618
        %v699 = vpop.f32.mrb[0].mxu0
        %v700 = vadd.f32 %v479, %v699
        %v701 = vpop.f32.mrb[0].mxu0
        %v702 = vpop.f32.mrb[0].mxu0
        %v703 = vadd.f32 %v482, %v702
        %v704 = vpop.f32.mrb[0].mxu0
        %705 = vmatprep.mubr.bf16.mxu0 0
        %706 = vmatmul.mubr.bf16.gmra.mrb[0].mxu0 %v621
        %v707 = vpop.f32.mrb[0].mxu0
        %v708 = vadd.f32 %v487, %v707
        %v709 = vpop.f32.mrb[0].mxu0
        %v710 = vpop.f32.mrb[0].mxu0
        %v711 = vadd.f32 %v490, %v710
        %v712 = vpop.f32.mrb[0].mxu0
        %713 = vmatprep.mubr.bf16.mxu0 0
        %714 = vmatmul.mubr.bf16.gmra.mrb[0].mxu0 %v624
        %v715 = vpop.f32.mrb[0].mxu0
        %v716 = vadd.f32 %v495, %v715
        %v717 = vpop.f32.mrb[0].mxu0
        %v718 = vpop.f32.mrb[0].mxu0
        %v719 = vadd.f32 %v498, %v718
        %v720 = vpop.f32.mrb[0].mxu0
        %721 = vmatprep.mubr.bf16.mxu0 0
        %722 = vmatmul.mubr.bf16.gmra.mrb[0].mxu0 %v627
        %v723 = vpop.f32.mrb[0].mxu0
        %v724 = vadd.f32 %v503, %v723
        %v725 = vpop.f32.mrb[0].mxu0
        %v726 = vpop.f32.mrb[0].mxu0
        %v727 = vadd.f32 %v506, %v726
        %v728 = vpop.f32.mrb[0].mxu0
        %729 = vmatprep.mubr.bf16.mxu0 0
        %730 = vmatmul.mubr.bf16.gmra.mrb[0].mxu0 %v630
        %v731 = vpop.f32.mrb[0].mxu0
        %v732 = vadd.f32 %v511, %v731
        %v733 = vpop.f32.mrb[0].mxu0
        %v734 = vpop.f32.mrb[0].mxu0
        %v735 = vadd.f32 %v514, %v734
        %v736 = vpop.f32.mrb[0].mxu0
        %737 = vmatprep.mubr.bf16.mxu0 0
        %738 = vmatmul.mubr.bf16.gmra.mrb[0].mxu0 %v633
        %v739 = vpop.f32.mrb[0].mxu0
        %v740 = vadd.f32 %v519, %v739
        %v741 = vpop.f32.mrb[0].mxu0
        %v742 = vpop.f32.mrb[0].mxu0
        %v743 = vadd.f32 %v522, %v742
        %v744 = vpop.f32.mrb[0].mxu0
        %745 = vmatprep.mubr.bf16.mxu0 0
        %746 = vmatmul.mubr.bf16.gmra.mrb[0].mxu0 %v636
        %v747 = vpop.f32.mrb[0].mxu0
        %v748 = vadd.f32 %v527, %v747
        %v749 = vpop.f32.mrb[0].mxu0
        %v750 = vpop.f32.mrb[0].mxu0
        %v751 = vadd.f32 %v530, %v750
        %v752 = vpop.f32.mrb[0].mxu0
        %753 = vmatprep.mubr.bf16.mxu0 0
        %754 = vmatmul.mubr.bf16.gmra.mrb[0].mxu0 %v639
        %v755 = vpop.f32.mrb[0].mxu0
        %v756 = vadd.f32 %v535, %v755
        %v757 = vpop.f32.mrb[0].mxu0
        %v758 = vpop.f32.mrb[0].mxu0
        %v759 = vadd.f32 %v538, %v758
        %v760 = vpop.f32.mrb[0].mxu0
        %761 = vmatprep.mubr.bf16.mxu0 0
        %762 = vmatmul.mubr.bf16.gmra.mrb[0].mxu0 %v642
        %v763 = vpop.f32.mrb[0].mxu0
        %v764 = vadd.f32 %v543, %v763
        %v765 = vpop.f32.mrb[0].mxu0
        %v766 = vpop.f32.mrb[0].mxu0
        %v767 = vadd.f32 %v546, %v766
        %v768 = vpop.f32.mrb[0].mxu0
        %769 = vmatprep.mubr.bf16.mxu0 0
        %770 = vmatmul.mubr.bf16.gmra.mrb[0].mxu0 %v645
        %v771 = vpop.f32.mrb[0].mxu0
        %v772 = vadd.f32 %v551, %v771
        %v773 = vpop.f32.mrb[0].mxu0
        %v774 = vpop.f32.mrb[0].mxu0
        %v775 = vadd.f32 %v554, %v774
        %v776 = vpop.f32.mrb[0].mxu0
        %777 = vmatprep.mubr.bf16.mxu0 0
        %778 = vmatmul.mubr.bf16.gmra.mrb[0].mxu0 %v648
        %v779 = vpop.f32.mrb[0].mxu0
        %v780 = vadd.f32 %v559, %v779
        %v781 = vpop.f32.mrb[0].mxu0
        %v782 = vpop.f32.mrb[0].mxu0
        %v783 = vadd.f32 %v562, %v782
        %v784 = vpop.f32.mrb[0].mxu0
        %785 = vmatprep.mubr.bf16.mxu0 0
        %786 = vmatmul.mubr.bf16.gmra.mrb[0].mxu0 %v651
        %v787 = vpop.f32.mrb[0].mxu0
        %v788 = vadd.f32 %v567, %v787
        %v789 = vpop.f32.mrb[0].mxu0
        %v790 = vpop.f32.mrb[0].mxu0
        %v791 = vadd.f32 %v570, %v790
        %v792 = vpop.f32.mrb[0].mxu0
        %793 = vmatprep.mubr.bf16.mxu0 0
        %794 = vmatmul.mubr.bf16.gmra.mrb[0].mxu0 %v654
        %v795 = vpop.f32.mrb[0].mxu0
        %v796 = vadd.f32 %v575, %v795
        %v797 = vpop.f32.mrb[0].mxu0
        %v798 = vpop.f32.mrb[0].mxu0
        %v799 = vadd.f32 %v578, %v798
        %v800 = vpop.f32.mrb[0].mxu0
        %801 = vmatprep.mubr.bf16.mxu0 0
        %802 = vmatmul.mubr.bf16.gmra.mrb[0].mxu0 %v657
        %v803 = vpop.f32.mrb[0].mxu0
        %v804 = vadd.f32 %v583, %v803
        %v805 = vpop.f32.mrb[0].mxu0
        %v806 = vpop.f32.mrb[0].mxu0
        %v807 = vadd.f32 %v586, %v806
        %v808 = vpop.f32.mrb[0].mxu0
        %809 = vmatprep.mubr.bf16.mxu0 0
        %810 = vmatmul.mubr.bf16.gmra.mrb[0].mxu0 %v660
        %v811 = vpop.f32.mrb[0].mxu0
        %v812 = vadd.f32 %v591, %v811
        %v813 = vpop.f32.mrb[0].mxu0
        %v814 = vpop.f32.mrb[0].mxu0
        %v815 = vadd.f32 %v594, %v814
        %v816 = vpop.f32.mrb[0].mxu0
        %817 = vmatprep.mubr.bf16.mxu0 0
        %818 = vmatmul.mubr.bf16.gmra.mrb[0].mxu0 %v663
        %v819 = vpop.f32.mrb[0].mxu0
        %v820 = vadd.f32 %v599, %v819
        %v821 = vpop.f32.mrb[0].mxu0
        %v822 = vpop.f32.mrb[0].mxu0
        %v823 = vadd.f32 %v602, %v822
        %v824 = vpop.f32.mrb[0].mxu0
        %825 = vdwg.mxu0
        %v826 = vld [vmem:[%s276 + $0x2] sm:$0xff]
        %v827 = vld [vmem:[%s276 + $0xa] sm:$0xff]
        %v828 = vld [vmem:[%s276 + $0x1a] sm:$0xff]
        %v829 = vld [vmem:[%s276 + $0x22] sm:$0xff]
        %v830 = vld [vmem:[%s276 + $0x32] sm:$0xff]
        %v831 = vld [vmem:[%s276 + $0x3a] sm:$0xff]
        %v832 = vld [vmem:[%s276 + $0x4a] sm:$0xff]
        %v833 = vld [vmem:[%s276 + $0x52] sm:$0xff]
        %v834 = vld [vmem:[%s276 + $0x62] sm:$0xff]
        %v835 = vld [vmem:[%s276 + $0x6a] sm:$0xff]
        %v836 = vld [vmem:[%s276 + $0x7a] sm:$0xff]
        %v837 = vld [vmem:[%s276 + $0x82] sm:$0xff]
        %v838 = vld [vmem:[%s276 + $0x92] sm:$0xff]
        %v839 = vld [vmem:[%s276 + $0x9a] sm:$0xff]
        %v840 = vld [vmem:[%s276 + $0xaa] sm:$0xff]
        %v841 = vld [vmem:[%s276 + $0xb2] sm:$0xff]
        %v842 = vld [vmem:[%s276 + $0xc2] sm:$0xff]
        %v843 = vld [vmem:[%s276 + $0xca] sm:$0xff]
        %v844 = vld [vmem:[%s276 + $0xda] sm:$0xff]
        %v845 = vld [vmem:[%s276 + $0xe2] sm:$0xff]
        %v846 = vld [vmem:[%s276 + $0xf2] sm:$0xff]
        %v847 = vld [vmem:[%s276 + $0xfa] sm:$0xff]
        %v848 = vld [vmem:[%s276 + $0x10a] sm:$0xff]
        %v849 = vld [vmem:[%s276 + $0x112] sm:$0xff]
        %v850 = vld [vmem:[%s276 + $0x122] sm:$0xff]
        %v851 = vld [vmem:[%s276 + $0x12a] sm:$0xff]
        %v852 = vld [vmem:[%s276 + $0x13a] sm:$0xff]
        %v853 = vld [vmem:[%s276 + $0x142] sm:$0xff]
        %v854 = vld [vmem:[%s276 + $0x152] sm:$0xff]
        %v855 = vld [vmem:[%s276 + $0x15a] sm:$0xff]
        %v856 = vld [vmem:[%s276 + $0x16a] sm:$0xff]
        %v857 = vld [vmem:[%s276 + $0x172] sm:$0xff]
        %v858 = vpack.c.bf16 %v827, %v826
        %v859 = vpack.c.bf16 %v829, %v828
        %v860 = vpack.c.bf16 %v831, %v830
        %v861 = vpack.c.bf16 %v833, %v832
        %v862 = vpack.c.bf16 %v835, %v834
        %v863 = vpack.c.bf16 %v837, %v836
        %v864 = vpack.c.bf16 %v839, %v838
        %v865 = vpack.c.bf16 %v841, %v840
        %v866 = vpack.c.bf16 %v843, %v842
        %v867 = vpack.c.bf16 %v845, %v844
        %v868 = vpack.c.bf16 %v847, %v846
        %v869 = vpack.c.bf16 %v849, %v848
        %v870 = vpack.c.bf16 %v851, %v850
        %v871 = vpack.c.bf16 %v853, %v852
        %v872 = vpack.c.bf16 %v855, %v854
        %v873 = vpack.c.bf16 %v857, %v856
        %s874 = scalar_lea.vmem %s1, 32
        %v875 = vld [vmem:[%s874] sm:$0xf]
        %v876 = vld [vmem:[%s874 + $0x4] sm:$0xf]
        %v877 = vld [vmem:[%s874 + $0x8] sm:$0xf]
        %v878 = vld [vmem:[%s874 + $0xc] sm:$0xf]
        %v883 = vunpack.c.l.b16 %v875
        %v884 = vunpack.c.l.b16 %v876
        %v885 = vunpack.c.l.b16 %v877
        %v886 = vunpack.c.l.b16 %v878
        %v887 = vpack.c.b16 %v884, %v883
        %v888 = vpack.c.b16 %v886, %v885
        %v892 = vsel %vm395, %v858, 0
        %v895 = vsel %vm395, %v859, 0
        %v898 = vsel %vm395, %v860, 0
        %v901 = vsel %vm395, %v861, 0
        %v904 = vsel %vm395, %v862, 0
        %v907 = vsel %vm395, %v863, 0
        %v910 = vsel %vm395, %v864, 0
        %v913 = vsel %vm395, %v865, 0
        %v916 = vsel %vm395, %v866, 0
        %v919 = vsel %vm395, %v867, 0
        %v922 = vsel %vm395, %v868, 0
        %v925 = vsel %vm395, %v869, 0
        %v928 = vsel %vm395, %v870, 0
        %v931 = vsel %vm395, %v871, 0
        %v934 = vsel %vm395, %v872, 0
        %v937 = vsel %vm395, %v873, 0
        %939 = vmatprep.subr.bf16.mxu0 0
        %940 = vmatpush1.bf16.msra.mxu0 %v887
        %941 = vmatprep.subr.bf16.mxu0 0
        %942 = vmatpush1.bf16.msra.mxu0 %v888
        %943 = vmatprep.subr.bf16.mxu0 0
        %944 = vmatpush1.bf16.msra.mxu0 0
        %945 = vmatprep.subr.bf16.mxu0 0
        %946 = vmatpush1.bf16.msra.mxu0 0
        %947 = vmatprep.subr.bf16.mxu0 0
        %948 = vmatpush1.bf16.msra.mxu0 0
        %949 = vmatprep.subr.bf16.mxu0 0
        %950 = vmatpush1.bf16.msra.mxu0 0
        %951 = vmatprep.subr.bf16.mxu0 0
        %952 = vmatpush1.bf16.msra.mxu0 0
        %953 = vmatprep.subr.bf16.mxu0 0
        %954 = vmatpush1.bf16.msra.mxu0 0
        %955 = vmatprep.subr.bf16.mxu0 0
        %956 = vmatpush1.bf16.msra.mxu0 0
        %957 = vmatprep.subr.bf16.mxu0 0
        %958 = vmatpush1.bf16.msra.mxu0 0
        %959 = vmatprep.subr.bf16.mxu0 0
        %960 = vmatpush1.bf16.msra.mxu0 0
        %961 = vmatprep.subr.bf16.mxu0 0
        %962 = vmatpush1.bf16.msra.mxu0 0
        %963 = vmatprep.subr.bf16.mxu0 0
        %964 = vmatpush1.bf16.msra.mxu0 0
        %965 = vmatprep.subr.bf16.mxu0 0
        %966 = vmatpush1.bf16.msra.mxu0 0
        %967 = vmatprep.subr.bf16.mxu0 0
        %968 = vmatpush1.bf16.msra.mxu0 0
        %969 = vmatprep.subr.bf16.mxu0 0
        %970 = vmatpush1.bf16.msra.mxu0 0
        %971 = vmatprep.mubr.bf16.mxu0 0
        %972 = vmatmul.mubr.bf16.gmra.mrb[0].mxu0 %v892
        %v973 = vpop.f32.mrb[0].mxu0
        %v974 = vadd.f32 0.0, %v973
        %v975 = vpop.f32.mrb[0].mxu0
        %v976 = vpop.f32.mrb[0].mxu0
        %v977 = vadd.f32 0.0, %v976
        %v978 = vpop.f32.mrb[0].mxu0
        %979 = vmatprep.mubr.bf16.mxu0 0
        %980 = vmatmul.mubr.bf16.gmra.mrb[0].mxu0 %v895
        %v981 = vpop.f32.mrb[0].mxu0
        %v982 = vadd.f32 0.0, %v981
        %v983 = vpop.f32.mrb[0].mxu0
        %v984 = vpop.f32.mrb[0].mxu0
        %v985 = vadd.f32 0.0, %v984
        %v986 = vpop.f32.mrb[0].mxu0
        %987 = vmatprep.mubr.bf16.mxu0 0
        %988 = vmatmul.mubr.bf16.gmra.mrb[0].mxu0 %v898
        %v989 = vpop.f32.mrb[0].mxu0
        %v990 = vadd.f32 0.0, %v989
        %v991 = vpop.f32.mrb[0].mxu0
        %v992 = vpop.f32.mrb[0].mxu0
        %v993 = vadd.f32 0.0, %v992
        %v994 = vpop.f32.mrb[0].mxu0
        %995 = vmatprep.mubr.bf16.mxu0 0
        %996 = vmatmul.mubr.bf16.gmra.mrb[0].mxu0 %v901
        %v997 = vpop.f32.mrb[0].mxu0
        %v998 = vadd.f32 0.0, %v997
        %v999 = vpop.f32.mrb[0].mxu0
        %v1000 = vpop.f32.mrb[0].mxu0
        %v1001 = vadd.f32 0.0, %v1000
        %v1002 = vpop.f32.mrb[0].mxu0
        %1003 = vmatprep.mubr.bf16.mxu0 0
        %1004 = vmatmul.mubr.bf16.gmra.mrb[0].mxu0 %v904
        %v1005 = vpop.f32.mrb[0].mxu0
        %v1006 = vadd.f32 0.0, %v1005
        %v1007 = vpop.f32.mrb[0].mxu0
        %v1008 = vpop.f32.mrb[0].mxu0
        %v1009 = vadd.f32 0.0, %v1008
        %v1010 = vpop.f32.mrb[0].mxu0
        %1011 = vmatprep.mubr.bf16.mxu0 0
        %1012 = vmatmul.mubr.bf16.gmra.mrb[0].mxu0 %v907
        %v1013 = vpop.f32.mrb[0].mxu0
        %v1014 = vadd.f32 0.0, %v1013
        %v1015 = vpop.f32.mrb[0].mxu0
        %v1016 = vpop.f32.mrb[0].mxu0
        %v1017 = vadd.f32 0.0, %v1016
        %v1018 = vpop.f32.mrb[0].mxu0
        %1019 = vmatprep.mubr.bf16.mxu0 0
        %1020 = vmatmul.mubr.bf16.gmra.mrb[0].mxu0 %v910
        %v1021 = vpop.f32.mrb[0].mxu0
        %v1022 = vadd.f32 0.0, %v1021
        %v1023 = vpop.f32.mrb[0].mxu0
        %v1024 = vpop.f32.mrb[0].mxu0
        %v1025 = vadd.f32 0.0, %v1024
        %v1026 = vpop.f32.mrb[0].mxu0
        %1027 = vmatprep.mubr.bf16.mxu0 0
        %1028 = vmatmul.mubr.bf16.gmra.mrb[0].mxu0 %v913
        %v1029 = vpop.f32.mrb[0].mxu0
        %v1030 = vadd.f32 0.0, %v1029
        %v1031 = vpop.f32.mrb[0].mxu0
        %v1032 = vpop.f32.mrb[0].mxu0
        %v1033 = vadd.f32 0.0, %v1032
        %v1034 = vpop.f32.mrb[0].mxu0
        %1035 = vmatprep.mubr.bf16.mxu0 0
        %1036 = vmatmul.mubr.bf16.gmra.mrb[0].mxu0 %v916
        %v1037 = vpop.f32.mrb[0].mxu0
        %v1038 = vadd.f32 0.0, %v1037
        %v1039 = vpop.f32.mrb[0].mxu0
        %v1040 = vpop.f32.mrb[0].mxu0
        %v1041 = vadd.f32 0.0, %v1040
        %v1042 = vpop.f32.mrb[0].mxu0
        %1043 = vmatprep.mubr.bf16.mxu0 0
        %1044 = vmatmul.mubr.bf16.gmra.mrb[0].mxu0 %v919
        %v1045 = vpop.f32.mrb[0].mxu0
        %v1046 = vadd.f32 0.0, %v1045
        %v1047 = vpop.f32.mrb[0].mxu0
        %v1048 = vpop.f32.mrb[0].mxu0
        %v1049 = vadd.f32 0.0, %v1048
        %v1050 = vpop.f32.mrb[0].mxu0
        %1051 = vmatprep.mubr.bf16.mxu0 0
        %1052 = vmatmul.mubr.bf16.gmra.mrb[0].mxu0 %v922
        %v1053 = vpop.f32.mrb[0].mxu0
        %v1054 = vadd.f32 0.0, %v1053
        %v1055 = vpop.f32.mrb[0].mxu0
        %v1056 = vpop.f32.mrb[0].mxu0
        %v1057 = vadd.f32 0.0, %v1056
        %v1058 = vpop.f32.mrb[0].mxu0
        %1059 = vmatprep.mubr.bf16.mxu0 0
        %1060 = vmatmul.mubr.bf16.gmra.mrb[0].mxu0 %v925
        %v1061 = vpop.f32.mrb[0].mxu0
        %v1062 = vadd.f32 0.0, %v1061
        %v1063 = vpop.f32.mrb[0].mxu0
        %v1064 = vpop.f32.mrb[0].mxu0
        %v1065 = vadd.f32 0.0, %v1064
        %v1066 = vpop.f32.mrb[0].mxu0
        %1067 = vmatprep.mubr.bf16.mxu0 0
        %1068 = vmatmul.mubr.bf16.gmra.mrb[0].mxu0 %v928
        %v1069 = vpop.f32.mrb[0].mxu0
        %v1070 = vadd.f32 0.0, %v1069
        %v1071 = vpop.f32.mrb[0].mxu0
        %v1072 = vpop.f32.mrb[0].mxu0
        %v1073 = vadd.f32 0.0, %v1072
        %v1074 = vpop.f32.mrb[0].mxu0
        %1075 = vmatprep.mubr.bf16.mxu0 0
        %1076 = vmatmul.mubr.bf16.gmra.mrb[0].mxu0 %v931
        %v1077 = vpop.f32.mrb[0].mxu0
        %v1078 = vadd.f32 0.0, %v1077
        %v1079 = vpop.f32.mrb[0].mxu0
        %v1080 = vpop.f32.mrb[0].mxu0
        %v1081 = vadd.f32 0.0, %v1080
        %v1082 = vpop.f32.mrb[0].mxu0
        %1083 = vmatprep.mubr.bf16.mxu0 0
        %1084 = vmatmul.mubr.bf16.gmra.mrb[0].mxu0 %v934
        %v1085 = vpop.f32.mrb[0].mxu0
        %v1086 = vadd.f32 0.0, %v1085
        %v1087 = vpop.f32.mrb[0].mxu0
        %v1088 = vpop.f32.mrb[0].mxu0
        %v1089 = vadd.f32 0.0, %v1088
        %v1090 = vpop.f32.mrb[0].mxu0
        %1091 = vmatprep.mubr.bf16.mxu0 0
        %1092 = vmatmul.mubr.bf16.gmra.mrb[0].mxu0 %v937
        %v1093 = vpop.f32.mrb[0].mxu0
        %v1094 = vadd.f32 0.0, %v1093
        %v1095 = vpop.f32.mrb[0].mxu0
        %v1096 = vpop.f32.mrb[0].mxu0
        %v1097 = vadd.f32 0.0, %v1096
        %v1098 = vpop.f32.mrb[0].mxu0
        %1099 = vdwg.mxu0
        %v1100 = vadd.f32 %v700, %v974
        %v1101 = vadd.f32 %v703, %v977
        %v1102 = vadd.f32 %v708, %v982
        %v1103 = vadd.f32 %v711, %v985
        %v1104 = vadd.f32 %v716, %v990
        %v1105 = vadd.f32 %v719, %v993
        %v1106 = vadd.f32 %v724, %v998
        %v1107 = vadd.f32 %v727, %v1001
        %v1108 = vadd.f32 %v732, %v1006
        %v1109 = vadd.f32 %v735, %v1009
        %v1110 = vadd.f32 %v740, %v1014
        %v1111 = vadd.f32 %v743, %v1017
        %v1112 = vadd.f32 %v748, %v1022
        %v1113 = vadd.f32 %v751, %v1025
        %v1114 = vadd.f32 %v756, %v1030
        %v1115 = vadd.f32 %v759, %v1033
        %v1116 = vadd.f32 %v764, %v1038
        %v1117 = vadd.f32 %v767, %v1041
        %v1118 = vadd.f32 %v772, %v1046
        %v1119 = vadd.f32 %v775, %v1049
        %v1120 = vadd.f32 %v780, %v1054
        %v1121 = vadd.f32 %v783, %v1057
        %v1122 = vadd.f32 %v788, %v1062
        %v1123 = vadd.f32 %v791, %v1065
        %v1124 = vadd.f32 %v796, %v1070
        %v1125 = vadd.f32 %v799, %v1073
        %v1126 = vadd.f32 %v804, %v1078
        %v1127 = vadd.f32 %v807, %v1081
        %v1128 = vadd.f32 %v812, %v1086
        %v1129 = vadd.f32 %v815, %v1089
        %v1130 = vadd.f32 %v820, %v1094
        %v1131 = vadd.f32 %v823, %v1097
        %s1132 = scalar_lea.vmem %s276, 24
        %v1133 = vld [vmem:[%s1132] sm:$0xff]
        %v1134 = vld [vmem:[%s1132 + $0x8] sm:$0xff]
        %v1135 = vld [vmem:[%s1132 + $0x18] sm:$0xff]
        %v1136 = vld [vmem:[%s1132 + $0x20] sm:$0xff]
        %v1137 = vld [vmem:[%s1132 + $0x30] sm:$0xff]
        %v1138 = vld [vmem:[%s1132 + $0x38] sm:$0xff]
        %v1139 = vld [vmem:[%s1132 + $0x48] sm:$0xff]
        %v1140 = vld [vmem:[%s1132 + $0x50] sm:$0xff]
        %v1141 = vld [vmem:[%s1132 + $0x60] sm:$0xff]
        %v1142 = vld [vmem:[%s1132 + $0x68] sm:$0xff]
        %v1143 = vld [vmem:[%s1132 + $0x78] sm:$0xff]
        %v1144 = vld [vmem:[%s1132 + $0x80] sm:$0xff]
        %v1145 = vld [vmem:[%s1132 + $0x90] sm:$0xff]
        %v1146 = vld [vmem:[%s1132 + $0x98] sm:$0xff]
        %v1147 = vld [vmem:[%s1132 + $0xa8] sm:$0xff]
        %v1148 = vld [vmem:[%s1132 + $0xb0] sm:$0xff]
        %v1149 = vld [vmem:[%s1132 + $0xc0] sm:$0xff]
        %v1150 = vld [vmem:[%s1132 + $0xc8] sm:$0xff]
        %v1151 = vld [vmem:[%s1132 + $0xd8] sm:$0xff]
        %v1152 = vld [vmem:[%s1132 + $0xe0] sm:$0xff]
        %v1153 = vld [vmem:[%s1132 + $0xf0] sm:$0xff]
        %v1154 = vld [vmem:[%s1132 + $0xf8] sm:$0xff]
        %v1155 = vld [vmem:[%s1132 + $0x108] sm:$0xff]
        %v1156 = vld [vmem:[%s1132 + $0x110] sm:$0xff]
        %v1157 = vld [vmem:[%s1132 + $0x120] sm:$0xff]
        %v1158 = vld [vmem:[%s1132 + $0x128] sm:$0xff]
        %v1159 = vld [vmem:[%s1132 + $0x138] sm:$0xff]
        %v1160 = vld [vmem:[%s1132 + $0x140] sm:$0xff]
        %v1161 = vld [vmem:[%s1132 + $0x150] sm:$0xff]
        %v1162 = vld [vmem:[%s1132 + $0x158] sm:$0xff]
        %v1163 = vld [vmem:[%s1132 + $0x168] sm:$0xff]
        %v1164 = vld [vmem:[%s1132 + $0x170] sm:$0xff]
        %v1165 = vpack.c.bf16 %v1134, %v1133
        %v1166 = vpack.c.bf16 %v1136, %v1135
        %v1167 = vpack.c.bf16 %v1138, %v1137
        %v1168 = vpack.c.bf16 %v1140, %v1139
        %v1169 = vpack.c.bf16 %v1142, %v1141
        %v1170 = vpack.c.bf16 %v1144, %v1143
        %v1171 = vpack.c.bf16 %v1146, %v1145
        %v1172 = vpack.c.bf16 %v1148, %v1147
        %v1173 = vpack.c.bf16 %v1150, %v1149
        %v1174 = vpack.c.bf16 %v1152, %v1151
        %v1175 = vpack.c.bf16 %v1154, %v1153
        %v1176 = vpack.c.bf16 %v1156, %v1155
        %v1177 = vpack.c.bf16 %v1158, %v1157
        %v1178 = vpack.c.bf16 %v1160, %v1159
        %v1179 = vpack.c.bf16 %v1162, %v1161
        %v1180 = vpack.c.bf16 %v1164, %v1163
        %s1181 = scalar_lea.vmem %s1, 48
        %v1182 = vld [vmem:[%s1181] sm:$0xf]
        %v1183 = vld [vmem:[%s1181 + $0x4] sm:$0xf]
        %v1184 = vld [vmem:[%s1181 + $0x8] sm:$0xf]
        %v1185 = vld [vmem:[%s1181 + $0xc] sm:$0xf]
        %v1190 = vunpack.c.l.b16 %v1182
        %v1191 = vunpack.c.l.b16 %v1183
        %v1192 = vunpack.c.l.b16 %v1184
        %v1193 = vunpack.c.l.b16 %v1185
        %v1194 = vpack.c.b16 %v1191, %v1190
        %v1195 = vpack.c.b16 %v1193, %v1192
        %v1199 = vsel %vm395, %v1165, 0
        %v1202 = vsel %vm395, %v1166, 0
        %v1205 = vsel %vm395, %v1167, 0
        %v1208 = vsel %vm395, %v1168, 0
        %v1211 = vsel %vm395, %v1169, 0
        %v1214 = vsel %vm395, %v1170, 0
        %v1217 = vsel %vm395, %v1171, 0
        %v1220 = vsel %vm395, %v1172, 0
        %v1223 = vsel %vm395, %v1173, 0
        %v1226 = vsel %vm395, %v1174, 0
        %v1229 = vsel %vm395, %v1175, 0
        %v1232 = vsel %vm395, %v1176, 0
        %v1235 = vsel %vm395, %v1177, 0
        %v1238 = vsel %vm395, %v1178, 0
        %v1241 = vsel %vm395, %v1179, 0
        %v1244 = vsel %vm395, %v1180, 0
        %1246 = vmatprep.subr.bf16.mxu0 0
        %1247 = vmatpush1.bf16.msra.mxu0 %v1194
        %1248 = vmatprep.subr.bf16.mxu0 0
        %1249 = vmatpush1.bf16.msra.mxu0 %v1195
        %1250 = vmatprep.subr.bf16.mxu0 0
        %1251 = vmatpush1.bf16.msra.mxu0 0
        %1252 = vmatprep.subr.bf16.mxu0 0
        %1253 = vmatpush1.bf16.msra.mxu0 0
        %1254 = vmatprep.subr.bf16.mxu0 0
        %1255 = vmatpush1.bf16.msra.mxu0 0
        %1256 = vmatprep.subr.bf16.mxu0 0
        %1257 = vmatpush1.bf16.msra.mxu0 0
        %1258 = vmatprep.subr.bf16.mxu0 0
        %1259 = vmatpush1.bf16.msra.mxu0 0
        %1260 = vmatprep.subr.bf16.mxu0 0
        %1261 = vmatpush1.bf16.msra.mxu0 0
        %1262 = vmatprep.subr.bf16.mxu0 0
        %1263 = vmatpush1.bf16.msra.mxu0 0
        %1264 = vmatprep.subr.bf16.mxu0 0
        %1265 = vmatpush1.bf16.msra.mxu0 0
        %1266 = vmatprep.subr.bf16.mxu0 0
        %1267 = vmatpush1.bf16.msra.mxu0 0
        %1268 = vmatprep.subr.bf16.mxu0 0
        %1269 = vmatpush1.bf16.msra.mxu0 0
        %1270 = vmatprep.subr.bf16.mxu0 0
        %1271 = vmatpush1.bf16.msra.mxu0 0
        %1272 = vmatprep.subr.bf16.mxu0 0
        %1273 = vmatpush1.bf16.msra.mxu0 0
        %1274 = vmatprep.subr.bf16.mxu0 0
        %1275 = vmatpush1.bf16.msra.mxu0 0
        %1276 = vmatprep.subr.bf16.mxu0 0
        %1277 = vmatpush1.bf16.msra.mxu0 0
        %1278 = vmatprep.mubr.bf16.mxu0 0
        %1279 = vmatmul.mubr.bf16.gmra.mrb[0].mxu0 %v1199
        %v1280 = vpop.f32.mrb[0].mxu0
        %v1281 = vadd.f32 0.0, %v1280
        %v1282 = vpop.f32.mrb[0].mxu0
        %v1283 = vpop.f32.mrb[0].mxu0
        %v1284 = vadd.f32 0.0, %v1283
        %v1285 = vpop.f32.mrb[0].mxu0
        %1286 = vmatprep.mubr.bf16.mxu0 0
        %1287 = vmatmul.mubr.bf16.gmra.mrb[0].mxu0 %v1202
        %v1288 = vpop.f32.mrb[0].mxu0
        %v1289 = vadd.f32 0.0, %v1288
        %v1290 = vpop.f32.mrb[0].mxu0
        %v1291 = vpop.f32.mrb[0].mxu0
        %v1292 = vadd.f32 0.0, %v1291
        %v1293 = vpop.f32.mrb[0].mxu0
        %1294 = vmatprep.mubr.bf16.mxu0 0
        %1295 = vmatmul.mubr.bf16.gmra.mrb[0].mxu0 %v1205
        %v1296 = vpop.f32.mrb[0].mxu0
        %v1297 = vadd.f32 0.0, %v1296
        %v1298 = vpop.f32.mrb[0].mxu0
        %v1299 = vpop.f32.mrb[0].mxu0
        %v1300 = vadd.f32 0.0, %v1299
        %v1301 = vpop.f32.mrb[0].mxu0
        %1302 = vmatprep.mubr.bf16.mxu0 0
        %1303 = vmatmul.mubr.bf16.gmra.mrb[0].mxu0 %v1208
        %v1304 = vpop.f32.mrb[0].mxu0
        %v1305 = vadd.f32 0.0, %v1304
        %v1306 = vpop.f32.mrb[0].mxu0
        %v1307 = vpop.f32.mrb[0].mxu0
        %v1308 = vadd.f32 0.0, %v1307
        %v1309 = vpop.f32.mrb[0].mxu0
        %1310 = vmatprep.mubr.bf16.mxu0 0
        %1311 = vmatmul.mubr.bf16.gmra.mrb[0].mxu0 %v1211
        %v1312 = vpop.f32.mrb[0].mxu0
        %v1313 = vadd.f32 0.0, %v1312
        %v1314 = vpop.f32.mrb[0].mxu0
        %v1315 = vpop.f32.mrb[0].mxu0
        %v1316 = vadd.f32 0.0, %v1315
        %v1317 = vpop.f32.mrb[0].mxu0
        %1318 = vmatprep.mubr.bf16.mxu0 0
        %1319 = vmatmul.mubr.bf16.gmra.mrb[0].mxu0 %v1214
        %v1320 = vpop.f32.mrb[0].mxu0
        %v1321 = vadd.f32 0.0, %v1320
        %v1322 = vpop.f32.mrb[0].mxu0
        %v1323 = vpop.f32.mrb[0].mxu0
        %v1324 = vadd.f32 0.0, %v1323
        %v1325 = vpop.f32.mrb[0].mxu0
        %1326 = vmatprep.mubr.bf16.mxu0 0
        %1327 = vmatmul.mubr.bf16.gmra.mrb[0].mxu0 %v1217
        %v1328 = vpop.f32.mrb[0].mxu0
        %v1329 = vadd.f32 0.0, %v1328
        %v1330 = vpop.f32.mrb[0].mxu0
        %v1331 = vpop.f32.mrb[0].mxu0
        %v1332 = vadd.f32 0.0, %v1331
        %v1333 = vpop.f32.mrb[0].mxu0
        %1334 = vmatprep.mubr.bf16.mxu0 0
        %1335 = vmatmul.mubr.bf16.gmra.mrb[0].mxu0 %v1220
        %v1336 = vpop.f32.mrb[0].mxu0
        %v1337 = vadd.f32 0.0, %v1336
        %v1338 = vpop.f32.mrb[0].mxu0
        %v1339 = vpop.f32.mrb[0].mxu0
        %v1340 = vadd.f32 0.0, %v1339
        %v1341 = vpop.f32.mrb[0].mxu0
        %1342 = vmatprep.mubr.bf16.mxu0 0
        %1343 = vmatmul.mubr.bf16.gmra.mrb[0].mxu0 %v1223
        %v1344 = vpop.f32.mrb[0].mxu0
        %v1345 = vadd.f32 0.0, %v1344
        %v1346 = vpop.f32.mrb[0].mxu0
        %v1347 = vpop.f32.mrb[0].mxu0
        %v1348 = vadd.f32 0.0, %v1347
        %v1349 = vpop.f32.mrb[0].mxu0
        %1350 = vmatprep.mubr.bf16.mxu0 0
        %1351 = vmatmul.mubr.bf16.gmra.mrb[0].mxu0 %v1226
        %v1352 = vpop.f32.mrb[0].mxu0
        %v1353 = vadd.f32 0.0, %v1352
        %v1354 = vpop.f32.mrb[0].mxu0
        %v1355 = vpop.f32.mrb[0].mxu0
        %v1356 = vadd.f32 0.0, %v1355
        %v1357 = vpop.f32.mrb[0].mxu0
        %1358 = vmatprep.mubr.bf16.mxu0 0
        %1359 = vmatmul.mubr.bf16.gmra.mrb[0].mxu0 %v1229
        %v1360 = vpop.f32.mrb[0].mxu0
        %v1361 = vadd.f32 0.0, %v1360
        %v1362 = vpop.f32.mrb[0].mxu0
        %v1363 = vpop.f32.mrb[0].mxu0
        %v1364 = vadd.f32 0.0, %v1363
        %v1365 = vpop.f32.mrb[0].mxu0
        %1366 = vmatprep.mubr.bf16.mxu0 0
        %1367 = vmatmul.mubr.bf16.gmra.mrb[0].mxu0 %v1232
        %v1368 = vpop.f32.mrb[0].mxu0
        %v1369 = vadd.f32 0.0, %v1368
        %v1370 = vpop.f32.mrb[0].mxu0
        %v1371 = vpop.f32.mrb[0].mxu0
        %v1372 = vadd.f32 0.0, %v1371
        %v1373 = vpop.f32.mrb[0].mxu0
        %1374 = vmatprep.mubr.bf16.mxu0 0
        %1375 = vmatmul.mubr.bf16.gmra.mrb[0].mxu0 %v1235
        %v1376 = vpop.f32.mrb[0].mxu0
        %v1377 = vadd.f32 0.0, %v1376
        %v1378 = vpop.f32.mrb[0].mxu0
        %v1379 = vpop.f32.mrb[0].mxu0
        %v1380 = vadd.f32 0.0, %v1379
        %v1381 = vpop.f32.mrb[0].mxu0
        %1382 = vmatprep.mubr.bf16.mxu0 0
        %1383 = vmatmul.mubr.bf16.gmra.mrb[0].mxu0 %v1238
        %v1384 = vpop.f32.mrb[0].mxu0
        %v1385 = vadd.f32 0.0, %v1384
        %v1386 = vpop.f32.mrb[0].mxu0
        %v1387 = vpop.f32.mrb[0].mxu0
        %v1388 = vadd.f32 0.0, %v1387
        %v1389 = vpop.f32.mrb[0].mxu0
        %1390 = vmatprep.mubr.bf16.mxu0 0
        %1391 = vmatmul.mubr.bf16.gmra.mrb[0].mxu0 %v1241
        %v1392 = vpop.f32.mrb[0].mxu0
        %v1393 = vadd.f32 0.0, %v1392
        %v1394 = vpop.f32.mrb[0].mxu0
        %v1395 = vpop.f32.mrb[0].mxu0
        %v1396 = vadd.f32 0.0, %v1395
        %v1397 = vpop.f32.mrb[0].mxu0
        %1398 = vmatprep.mubr.bf16.mxu0 0
        %1399 = vmatmul.mubr.bf16.gmra.mrb[0].mxu0 %v1244
        %v1400 = vpop.f32.mrb[0].mxu0
        %v1401 = vadd.f32 0.0, %v1400
        %v1402 = vpop.f32.mrb[0].mxu0
        %v1403 = vpop.f32.mrb[0].mxu0
        %v1404 = vadd.f32 0.0, %v1403
        %v1405 = vpop.f32.mrb[0].mxu0
        %1406 = vdwg.mxu0
        %v1407 = vadd.f32 %v1100, %v1281
        %v1408 = vadd.f32 %v1101, %v1284
        %v1409 = vadd.f32 %v1102, %v1289
        %v1410 = vadd.f32 %v1103, %v1292
        %v1411 = vadd.f32 %v1104, %v1297
        %v1412 = vadd.f32 %v1105, %v1300
        %v1413 = vadd.f32 %v1106, %v1305
        %v1414 = vadd.f32 %v1107, %v1308
        %v1415 = vadd.f32 %v1108, %v1313
        %v1416 = vadd.f32 %v1109, %v1316
        %v1417 = vadd.f32 %v1110, %v1321
        %v1418 = vadd.f32 %v1111, %v1324
        %v1419 = vadd.f32 %v1112, %v1329
        %v1420 = vadd.f32 %v1113, %v1332
        %v1421 = vadd.f32 %v1114, %v1337
        %v1422 = vadd.f32 %v1115, %v1340
        %v1423 = vadd.f32 %v1116, %v1345
        %v1424 = vadd.f32 %v1117, %v1348
        %v1425 = vadd.f32 %v1118, %v1353
        %v1426 = vadd.f32 %v1119, %v1356
        %v1427 = vadd.f32 %v1120, %v1361
        %v1428 = vadd.f32 %v1121, %v1364
        %v1429 = vadd.f32 %v1122, %v1369
        %v1430 = vadd.f32 %v1123, %v1372
        %v1431 = vadd.f32 %v1124, %v1377
        %v1432 = vadd.f32 %v1125, %v1380
        %v1433 = vadd.f32 %v1126, %v1385
        %v1434 = vadd.f32 %v1127, %v1388
        %v1435 = vadd.f32 %v1128, %v1393
        %v1436 = vadd.f32 %v1129, %v1396
        %v1437 = vadd.f32 %v1130, %v1401
        %v1438 = vadd.f32 %v1131, %v1404
        %v1439 = vld [vmem:[%s1132 + $0x1] sm:$0xff]
        %v1440 = vld [vmem:[%s1132 + $0x9] sm:$0xff]
        %v1441 = vld [vmem:[%s1132 + $0x19] sm:$0xff]
        %v1442 = vld [vmem:[%s1132 + $0x21] sm:$0xff]
        %v1443 = vld [vmem:[%s1132 + $0x31] sm:$0xff]
        %v1444 = vld [vmem:[%s1132 + $0x39] sm:$0xff]
        %v1445 = vld [vmem:[%s1132 + $0x49] sm:$0xff]
        %v1446 = vld [vmem:[%s1132 + $0x51] sm:$0xff]
        %v1447 = vld [vmem:[%s1132 + $0x61] sm:$0xff]
        %v1448 = vld [vmem:[%s1132 + $0x69] sm:$0xff]
        %v1449 = vld [vmem:[%s1132 + $0x79] sm:$0xff]
        %v1450 = vld [vmem:[%s1132 + $0x81] sm:$0xff]
        %v1451 = vld [vmem:[%s1132 + $0x91] sm:$0xff]
        %v1452 = vld [vmem:[%s1132 + $0x99] sm:$0xff]
        %v1453 = vld [vmem:[%s1132 + $0xa9] sm:$0xff]
        %v1454 = vld [vmem:[%s1132 + $0xb1] sm:$0xff]
        %v1455 = vld [vmem:[%s1132 + $0xc1] sm:$0xff]
        %v1456 = vld [vmem:[%s1132 + $0xc9] sm:$0xff]
        %v1457 = vld [vmem:[%s1132 + $0xd9] sm:$0xff]
        %v1458 = vld [vmem:[%s1132 + $0xe1] sm:$0xff]
        %v1459 = vld [vmem:[%s1132 + $0xf1] sm:$0xff]
        %v1460 = vld [vmem:[%s1132 + $0xf9] sm:$0xff]
        %v1461 = vld [vmem:[%s1132 + $0x109] sm:$0xff]
        %v1462 = vld [vmem:[%s1132 + $0x111] sm:$0xff]
        %v1463 = vld [vmem:[%s1132 + $0x121] sm:$0xff]
        %v1464 = vld [vmem:[%s1132 + $0x129] sm:$0xff]
        %v1465 = vld [vmem:[%s1132 + $0x139] sm:$0xff]
        %v1466 = vld [vmem:[%s1132 + $0x141] sm:$0xff]
        %v1467 = vld [vmem:[%s1132 + $0x151] sm:$0xff]
        %v1468 = vld [vmem:[%s1132 + $0x159] sm:$0xff]
        %v1469 = vld [vmem:[%s1132 + $0x169] sm:$0xff]
        %v1470 = vld [vmem:[%s1132 + $0x171] sm:$0xff]
        %v1471 = vpack.c.bf16 %v1440, %v1439
        %v1472 = vpack.c.bf16 %v1442, %v1441
        %v1473 = vpack.c.bf16 %v1444, %v1443
        %v1474 = vpack.c.bf16 %v1446, %v1445
        %v1475 = vpack.c.bf16 %v1448, %v1447
        %v1476 = vpack.c.bf16 %v1450, %v1449
        %v1477 = vpack.c.bf16 %v1452, %v1451
        %v1478 = vpack.c.bf16 %v1454, %v1453
        %v1479 = vpack.c.bf16 %v1456, %v1455
        %v1480 = vpack.c.bf16 %v1458, %v1457
        %v1481 = vpack.c.bf16 %v1460, %v1459
        %v1482 = vpack.c.bf16 %v1462, %v1461
        %v1483 = vpack.c.bf16 %v1464, %v1463
        %v1484 = vpack.c.bf16 %v1466, %v1465
        %v1485 = vpack.c.bf16 %v1468, %v1467
        %v1486 = vpack.c.bf16 %v1470, %v1469
        %s1487 = scalar_lea.vmem %s1, 64
        %v1488 = vld [vmem:[%s1487] sm:$0xf]
        %v1489 = vld [vmem:[%s1487 + $0x4] sm:$0xf]
        %v1490 = vld [vmem:[%s1487 + $0x8] sm:$0xf]
        %v1491 = vld [vmem:[%s1487 + $0xc] sm:$0xf]
        %v1496 = vunpack.c.l.b16 %v1488
        %v1497 = vunpack.c.l.b16 %v1489
        %v1498 = vunpack.c.l.b16 %v1490
        %v1499 = vunpack.c.l.b16 %v1491
        %v1500 = vpack.c.b16 %v1497, %v1496
        %v1501 = vpack.c.b16 %v1499, %v1498
        %v1505 = vsel %vm395, %v1471, 0
        %v1508 = vsel %vm395, %v1472, 0
        %v1511 = vsel %vm395, %v1473, 0
        %v1514 = vsel %vm395, %v1474, 0
        %v1517 = vsel %vm395, %v1475, 0
        %v1520 = vsel %vm395, %v1476, 0
        %v1523 = vsel %vm395, %v1477, 0
        %v1526 = vsel %vm395, %v1478, 0
        %v1529 = vsel %vm395, %v1479, 0
        %v1532 = vsel %vm395, %v1480, 0
        %v1535 = vsel %vm395, %v1481, 0
        %v1538 = vsel %vm395, %v1482, 0
        %v1541 = vsel %vm395, %v1483, 0
        %v1544 = vsel %vm395, %v1484, 0
        %v1547 = vsel %vm395, %v1485, 0
        %v1550 = vsel %vm395, %v1486, 0
        %1552 = vmatprep.subr.bf16.mxu0 0
        %1553 = vmatpush1.bf16.msra.mxu0 %v1500
        %1554 = vmatprep.subr.bf16.mxu0 0
        %1555 = vmatpush1.bf16.msra.mxu0 %v1501
        %1556 = vmatprep.subr.bf16.mxu0 0
        %1557 = vmatpush1.bf16.msra.mxu0 0
        %1558 = vmatprep.subr.bf16.mxu0 0
        %1559 = vmatpush1.bf16.msra.mxu0 0
        %1560 = vmatprep.subr.bf16.mxu0 0
        %1561 = vmatpush1.bf16.msra.mxu0 0
        %1562 = vmatprep.subr.bf16.mxu0 0
        %1563 = vmatpush1.bf16.msra.mxu0 0
        %1564 = vmatprep.subr.bf16.mxu0 0
        %1565 = vmatpush1.bf16.msra.mxu0 0
        %1566 = vmatprep.subr.bf16.mxu0 0
        %1567 = vmatpush1.bf16.msra.mxu0 0
        %1568 = vmatprep.subr.bf16.mxu0 0
        %1569 = vmatpush1.bf16.msra.mxu0 0
        %1570 = vmatprep.subr.bf16.mxu0 0
        %1571 = vmatpush1.bf16.msra.mxu0 0
        %1572 = vmatprep.subr.bf16.mxu0 0
        %1573 = vmatpush1.bf16.msra.mxu0 0
        %1574 = vmatprep.subr.bf16.mxu0 0
        %1575 = vmatpush1.bf16.msra.mxu0 0
        %1576 = vmatprep.subr.bf16.mxu0 0
        %1577 = vmatpush1.bf16.msra.mxu0 0
        %1578 = vmatprep.subr.bf16.mxu0 0
        %1579 = vmatpush1.bf16.msra.mxu0 0
        %1580 = vmatprep.subr.bf16.mxu0 0
        %1581 = vmatpush1.bf16.msra.mxu0 0
        %1582 = vmatprep.subr.bf16.mxu0 0
        %1583 = vmatpush1.bf16.msra.mxu0 0
        %1584 = vmatprep.mubr.bf16.mxu0 0
        %1585 = vmatmul.mubr.bf16.gmra.mrb[0].mxu0 %v1505
        %v1586 = vpop.f32.mrb[0].mxu0
        %v1587 = vadd.f32 0.0, %v1586
        %v1588 = vpop.f32.mrb[0].mxu0
        %v1589 = vpop.f32.mrb[0].mxu0
        %v1590 = vadd.f32 0.0, %v1589
        %v1591 = vpop.f32.mrb[0].mxu0
        %1592 = vmatprep.mubr.bf16.mxu0 0
        %1593 = vmatmul.mubr.bf16.gmra.mrb[0].mxu0 %v1508
        %v1594 = vpop.f32.mrb[0].mxu0
        %v1595 = vadd.f32 0.0, %v1594
        %v1596 = vpop.f32.mrb[0].mxu0
        %v1597 = vpop.f32.mrb[0].mxu0
        %v1598 = vadd.f32 0.0, %v1597
        %v1599 = vpop.f32.mrb[0].mxu0
        %1600 = vmatprep.mubr.bf16.mxu0 0
        %1601 = vmatmul.mubr.bf16.gmra.mrb[0].mxu0 %v1511
        %v1602 = vpop.f32.mrb[0].mxu0
        %v1603 = vadd.f32 0.0, %v1602
        %v1604 = vpop.f32.mrb[0].mxu0
        %v1605 = vpop.f32.mrb[0].mxu0
        %v1606 = vadd.f32 0.0, %v1605
        %v1607 = vpop.f32.mrb[0].mxu0
        %1608 = vmatprep.mubr.bf16.mxu0 0
        %1609 = vmatmul.mubr.bf16.gmra.mrb[0].mxu0 %v1514
        %v1610 = vpop.f32.mrb[0].mxu0
        %v1611 = vadd.f32 0.0, %v1610
        %v1612 = vpop.f32.mrb[0].mxu0
        %v1613 = vpop.f32.mrb[0].mxu0
        %v1614 = vadd.f32 0.0, %v1613
        %v1615 = vpop.f32.mrb[0].mxu0
        %1616 = vmatprep.mubr.bf16.mxu0 0
        %1617 = vmatmul.mubr.bf16.gmra.mrb[0].mxu0 %v1517
        %v1618 = vpop.f32.mrb[0].mxu0
        %v1619 = vadd.f32 0.0, %v1618
        %v1620 = vpop.f32.mrb[0].mxu0
        %v1621 = vpop.f32.mrb[0].mxu0
        %v1622 = vadd.f32 0.0, %v1621
        %v1623 = vpop.f32.mrb[0].mxu0
        %1624 = vmatprep.mubr.bf16.mxu0 0
        %1625 = vmatmul.mubr.bf16.gmra.mrb[0].mxu0 %v1520
        %v1626 = vpop.f32.mrb[0].mxu0
        %v1627 = vadd.f32 0.0, %v1626
        %v1628 = vpop.f32.mrb[0].mxu0
        %v1629 = vpop.f32.mrb[0].mxu0
        %v1630 = vadd.f32 0.0, %v1629
        %v1631 = vpop.f32.mrb[0].mxu0
        %1632 = vmatprep.mubr.bf16.mxu0 0
        %1633 = vmatmul.mubr.bf16.gmra.mrb[0].mxu0 %v1523
        %v1634 = vpop.f32.mrb[0].mxu0
        %v1635 = vadd.f32 0.0, %v1634
        %v1636 = vpop.f32.mrb[0].mxu0
        %v1637 = vpop.f32.mrb[0].mxu0
        %v1638 = vadd.f32 0.0, %v1637
        %v1639 = vpop.f32.mrb[0].mxu0
        %1640 = vmatprep.mubr.bf16.mxu0 0
        %1641 = vmatmul.mubr.bf16.gmra.mrb[0].mxu0 %v1526
        %v1642 = vpop.f32.mrb[0].mxu0
        %v1643 = vadd.f32 0.0, %v1642
        %v1644 = vpop.f32.mrb[0].mxu0
        %v1645 = vpop.f32.mrb[0].mxu0
        %v1646 = vadd.f32 0.0, %v1645
        %v1647 = vpop.f32.mrb[0].mxu0
        %1648 = vmatprep.mubr.bf16.mxu0 0
        %1649 = vmatmul.mubr.bf16.gmra.mrb[0].mxu0 %v1529
        %v1650 = vpop.f32.mrb[0].mxu0
        %v1651 = vadd.f32 0.0, %v1650
        %v1652 = vpop.f32.mrb[0].mxu0
        %v1653 = vpop.f32.mrb[0].mxu0
        %v1654 = vadd.f32 0.0, %v1653
        %v1655 = vpop.f32.mrb[0].mxu0
        %1656 = vmatprep.mubr.bf16.mxu0 0
        %1657 = vmatmul.mubr.bf16.gmra.mrb[0].mxu0 %v1532
        %v1658 = vpop.f32.mrb[0].mxu0
        %v1659 = vadd.f32 0.0, %v1658
        %v1660 = vpop.f32.mrb[0].mxu0
        %v1661 = vpop.f32.mrb[0].mxu0
        %v1662 = vadd.f32 0.0, %v1661
        %v1663 = vpop.f32.mrb[0].mxu0
        %1664 = vmatprep.mubr.bf16.mxu0 0
        %1665 = vmatmul.mubr.bf16.gmra.mrb[0].mxu0 %v1535
        %v1666 = vpop.f32.mrb[0].mxu0
        %v1667 = vadd.f32 0.0, %v1666
        %v1668 = vpop.f32.mrb[0].mxu0
        %v1669 = vpop.f32.mrb[0].mxu0
        %v1670 = vadd.f32 0.0, %v1669
        %v1671 = vpop.f32.mrb[0].mxu0
        %1672 = vmatprep.mubr.bf16.mxu0 0
        %1673 = vmatmul.mubr.bf16.gmra.mrb[0].mxu0 %v1538
        %v1674 = vpop.f32.mrb[0].mxu0
        %v1675 = vadd.f32 0.0, %v1674
        %v1676 = vpop.f32.mrb[0].mxu0
        %v1677 = vpop.f32.mrb[0].mxu0
        %v1678 = vadd.f32 0.0, %v1677
        %v1679 = vpop.f32.mrb[0].mxu0
        %1680 = vmatprep.mubr.bf16.mxu0 0
        %1681 = vmatmul.mubr.bf16.gmra.mrb[0].mxu0 %v1541
        %v1682 = vpop.f32.mrb[0].mxu0
        %v1683 = vadd.f32 0.0, %v1682
        %v1684 = vpop.f32.mrb[0].mxu0
        %v1685 = vpop.f32.mrb[0].mxu0
        %v1686 = vadd.f32 0.0, %v1685
        %v1687 = vpop.f32.mrb[0].mxu0
        %1688 = vmatprep.mubr.bf16.mxu0 0
        %1689 = vmatmul.mubr.bf16.gmra.mrb[0].mxu0 %v1544
        %v1690 = vpop.f32.mrb[0].mxu0
        %v1691 = vadd.f32 0.0, %v1690
        %v1692 = vpop.f32.mrb[0].mxu0
        %v1693 = vpop.f32.mrb[0].mxu0
        %v1694 = vadd.f32 0.0, %v1693
        %v1695 = vpop.f32.mrb[0].mxu0
        %1696 = vmatprep.mubr.bf16.mxu0 0
        %1697 = vmatmul.mubr.bf16.gmra.mrb[0].mxu0 %v1547
        %v1698 = vpop.f32.mrb[0].mxu0
        %v1699 = vadd.f32 0.0, %v1698
        %v1700 = vpop.f32.mrb[0].mxu0
        %v1701 = vpop.f32.mrb[0].mxu0
        %v1702 = vadd.f32 0.0, %v1701
        %v1703 = vpop.f32.mrb[0].mxu0
        %1704 = vmatprep.mubr.bf16.mxu0 0
        %1705 = vmatmul.mubr.bf16.gmra.mrb[0].mxu0 %v1550
        %v1706 = vpop.f32.mrb[0].mxu0
        %v1707 = vadd.f32 0.0, %v1706
        %v1708 = vpop.f32.mrb[0].mxu0
        %v1709 = vpop.f32.mrb[0].mxu0
        %v1710 = vadd.f32 0.0, %v1709
        %v1711 = vpop.f32.mrb[0].mxu0
        %1712 = vdwg.mxu0
        %v1713 = vadd.f32 %v1407, %v1587
        %v1714 = vadd.f32 %v1408, %v1590
        %v1715 = vadd.f32 %v1409, %v1595
        %v1716 = vadd.f32 %v1410, %v1598
        %v1717 = vadd.f32 %v1411, %v1603
        %v1718 = vadd.f32 %v1412, %v1606
        %v1719 = vadd.f32 %v1413, %v1611
        %v1720 = vadd.f32 %v1414, %v1614
        %v1721 = vadd.f32 %v1415, %v1619
        %v1722 = vadd.f32 %v1416, %v1622
        %v1723 = vadd.f32 %v1417, %v1627
        %v1724 = vadd.f32 %v1418, %v1630
        %v1725 = vadd.f32 %v1419, %v1635
        %v1726 = vadd.f32 %v1420, %v1638
        %v1727 = vadd.f32 %v1421, %v1643
        %v1728 = vadd.f32 %v1422, %v1646
        %v1729 = vadd.f32 %v1423, %v1651
        %v1730 = vadd.f32 %v1424, %v1654
        %v1731 = vadd.f32 %v1425, %v1659
        %v1732 = vadd.f32 %v1426, %v1662
        %v1733 = vadd.f32 %v1427, %v1667
        %v1734 = vadd.f32 %v1428, %v1670
        %v1735 = vadd.f32 %v1429, %v1675
        %v1736 = vadd.f32 %v1430, %v1678
        %v1737 = vadd.f32 %v1431, %v1683
        %v1738 = vadd.f32 %v1432, %v1686
        %v1739 = vadd.f32 %v1433, %v1691
        %v1740 = vadd.f32 %v1434, %v1694
        %v1741 = vadd.f32 %v1435, %v1699
        %v1742 = vadd.f32 %v1436, %v1702
        %v1743 = vadd.f32 %v1437, %v1707
        %v1744 = vadd.f32 %v1438, %v1710
        %v1745 = vld [vmem:[%s1132 + $0x2] sm:$0xff]
        %v1746 = vld [vmem:[%s1132 + $0xa] sm:$0xff]
        %v1747 = vld [vmem:[%s1132 + $0x1a] sm:$0xff]
        %v1748 = vld [vmem:[%s1132 + $0x22] sm:$0xff]
        %v1749 = vld [vmem:[%s1132 + $0x32] sm:$0xff]
        %v1750 = vld [vmem:[%s1132 + $0x3a] sm:$0xff]
        %v1751 = vld [vmem:[%s1132 + $0x4a] sm:$0xff]
        %v1752 = vld [vmem:[%s1132 + $0x52] sm:$0xff]
        %v1753 = vld [vmem:[%s1132 + $0x62] sm:$0xff]
        %v1754 = vld [vmem:[%s1132 + $0x6a] sm:$0xff]
        %v1755 = vld [vmem:[%s1132 + $0x7a] sm:$0xff]
        %v1756 = vld [vmem:[%s1132 + $0x82] sm:$0xff]
        %v1757 = vld [vmem:[%s1132 + $0x92] sm:$0xff]
        %v1758 = vld [vmem:[%s1132 + $0x9a] sm:$0xff]
        %v1759 = vld [vmem:[%s1132 + $0xaa] sm:$0xff]
        %v1760 = vld [vmem:[%s1132 + $0xb2] sm:$0xff]
        %v1761 = vld [vmem:[%s1132 + $0xc2] sm:$0xff]
        %v1762 = vld [vmem:[%s1132 + $0xca] sm:$0xff]
        %v1763 = vld [vmem:[%s1132 + $0xda] sm:$0xff]
        %v1764 = vld [vmem:[%s1132 + $0xe2] sm:$0xff]
        %v1765 = vld [vmem:[%s1132 + $0xf2] sm:$0xff]
        %v1766 = vld [vmem:[%s1132 + $0xfa] sm:$0xff]
        %v1767 = vld [vmem:[%s1132 + $0x10a] sm:$0xff]
        %v1768 = vld [vmem:[%s1132 + $0x112] sm:$0xff]
        %v1769 = vld [vmem:[%s1132 + $0x122] sm:$0xff]
        %v1770 = vld [vmem:[%s1132 + $0x12a] sm:$0xff]
        %v1771 = vld [vmem:[%s1132 + $0x13a] sm:$0xff]
        %v1772 = vld [vmem:[%s1132 + $0x142] sm:$0xff]
        %v1773 = vld [vmem:[%s1132 + $0x152] sm:$0xff]
        %v1774 = vld [vmem:[%s1132 + $0x15a] sm:$0xff]
        %v1775 = vld [vmem:[%s1132 + $0x16a] sm:$0xff]
        %v1776 = vld [vmem:[%s1132 + $0x172] sm:$0xff]
        %v1777 = vpack.c.bf16 %v1746, %v1745
        %v1778 = vpack.c.bf16 %v1748, %v1747
        %v1779 = vpack.c.bf16 %v1750, %v1749
        %v1780 = vpack.c.bf16 %v1752, %v1751
        %v1781 = vpack.c.bf16 %v1754, %v1753
        %v1782 = vpack.c.bf16 %v1756, %v1755
        %v1783 = vpack.c.bf16 %v1758, %v1757
        %v1784 = vpack.c.bf16 %v1760, %v1759
        %v1785 = vpack.c.bf16 %v1762, %v1761
        %v1786 = vpack.c.bf16 %v1764, %v1763
        %v1787 = vpack.c.bf16 %v1766, %v1765
        %v1788 = vpack.c.bf16 %v1768, %v1767
        %v1789 = vpack.c.bf16 %v1770, %v1769
        %v1790 = vpack.c.bf16 %v1772, %v1771
        %v1791 = vpack.c.bf16 %v1774, %v1773
        %v1792 = vpack.c.bf16 %v1776, %v1775
        %s1793 = scalar_lea.vmem %s1, 80
        %v1794 = vld [vmem:[%s1793] sm:$0xf]
        %v1795 = vld [vmem:[%s1793 + $0x4] sm:$0xf]
        %v1796 = vld [vmem:[%s1793 + $0x8] sm:$0xf]
        %v1797 = vld [vmem:[%s1793 + $0xc] sm:$0xf]
        %v1802 = vunpack.c.l.b16 %v1794
        %v1803 = vunpack.c.l.b16 %v1795
        %v1804 = vunpack.c.l.b16 %v1796
        %v1805 = vunpack.c.l.b16 %v1797
        %v1806 = vpack.c.b16 %v1803, %v1802
        %v1807 = vpack.c.b16 %v1805, %v1804
        %v1811 = vsel %vm395, %v1777, 0
        %v1814 = vsel %vm395, %v1778, 0
        %v1817 = vsel %vm395, %v1779, 0
        %v1820 = vsel %vm395, %v1780, 0
        %v1823 = vsel %vm395, %v1781, 0
        %v1826 = vsel %vm395, %v1782, 0
        %v1829 = vsel %vm395, %v1783, 0
        %v1832 = vsel %vm395, %v1784, 0
        %v1835 = vsel %vm395, %v1785, 0
        %v1838 = vsel %vm395, %v1786, 0
        %v1841 = vsel %vm395, %v1787, 0
        %v1844 = vsel %vm395, %v1788, 0
        %v1847 = vsel %vm395, %v1789, 0
        %v1850 = vsel %vm395, %v1790, 0
        %v1853 = vsel %vm395, %v1791, 0
        %v1856 = vsel %vm395, %v1792, 0
        %1858 = vmatprep.subr.bf16.mxu0 0
        %1859 = vmatpush1.bf16.msra.mxu0 %v1806
        %1860 = vmatprep.subr.bf16.mxu0 0
        %1861 = vmatpush1.bf16.msra.mxu0 %v1807
        %1862 = vmatprep.subr.bf16.mxu0 0
        %1863 = vmatpush1.bf16.msra.mxu0 0
        %1864 = vmatprep.subr.bf16.mxu0 0
        %1865 = vmatpush1.bf16.msra.mxu0 0
        %1866 = vmatprep.subr.bf16.mxu0 0
        %1867 = vmatpush1.bf16.msra.mxu0 0
        %1868 = vmatprep.subr.bf16.mxu0 0
        %1869 = vmatpush1.bf16.msra.mxu0 0
        %1870 = vmatprep.subr.bf16.mxu0 0
        %1871 = vmatpush1.bf16.msra.mxu0 0
        %1872 = vmatprep.subr.bf16.mxu0 0
        %1873 = vmatpush1.bf16.msra.mxu0 0
        %1874 = vmatprep.subr.bf16.mxu0 0
        %1875 = vmatpush1.bf16.msra.mxu0 0
        %1876 = vmatprep.subr.bf16.mxu0 0
        %1877 = vmatpush1.bf16.msra.mxu0 0
        %1878 = vmatprep.subr.bf16.mxu0 0
        %1879 = vmatpush1.bf16.msra.mxu0 0
        %1880 = vmatprep.subr.bf16.mxu0 0
        %1881 = vmatpush1.bf16.msra.mxu0 0
        %1882 = vmatprep.subr.bf16.mxu0 0
        %1883 = vmatpush1.bf16.msra.mxu0 0
        %1884 = vmatprep.subr.bf16.mxu0 0
        %1885 = vmatpush1.bf16.msra.mxu0 0
        %1886 = vmatprep.subr.bf16.mxu0 0
        %1887 = vmatpush1.bf16.msra.mxu0 0
        %1888 = vmatprep.subr.bf16.mxu0 0
        %1889 = vmatpush1.bf16.msra.mxu0 0
        %1890 = vmatprep.mubr.bf16.mxu0 0
        %1891 = vmatmul.mubr.bf16.gmra.mrb[0].mxu0 %v1811
        %v1892 = vpop.f32.mrb[0].mxu0
        %v1893 = vadd.f32 0.0, %v1892
        %v1894 = vpop.f32.mrb[0].mxu0
        %v1895 = vpop.f32.mrb[0].mxu0
        %v1896 = vadd.f32 0.0, %v1895
        %v1897 = vpop.f32.mrb[0].mxu0
        %1898 = vmatprep.mubr.bf16.mxu0 0
        %1899 = vmatmul.mubr.bf16.gmra.mrb[0].mxu0 %v1814
        %v1900 = vpop.f32.mrb[0].mxu0
        %v1901 = vadd.f32 0.0, %v1900
        %v1902 = vpop.f32.mrb[0].mxu0
        %v1903 = vpop.f32.mrb[0].mxu0
        %v1904 = vadd.f32 0.0, %v1903
        %v1905 = vpop.f32.mrb[0].mxu0
        %1906 = vmatprep.mubr.bf16.mxu0 0
        %1907 = vmatmul.mubr.bf16.gmra.mrb[0].mxu0 %v1817
        %v1908 = vpop.f32.mrb[0].mxu0
        %v1909 = vadd.f32 0.0, %v1908
        %v1910 = vpop.f32.mrb[0].mxu0
        %v1911 = vpop.f32.mrb[0].mxu0
        %v1912 = vadd.f32 0.0, %v1911
        %v1913 = vpop.f32.mrb[0].mxu0
        %1914 = vmatprep.mubr.bf16.mxu0 0
        %1915 = vmatmul.mubr.bf16.gmra.mrb[0].mxu0 %v1820
        %v1916 = vpop.f32.mrb[0].mxu0
        %v1917 = vadd.f32 0.0, %v1916
        %v1918 = vpop.f32.mrb[0].mxu0
        %v1919 = vpop.f32.mrb[0].mxu0
        %v1920 = vadd.f32 0.0, %v1919
        %v1921 = vpop.f32.mrb[0].mxu0
        %1922 = vmatprep.mubr.bf16.mxu0 0
        %1923 = vmatmul.mubr.bf16.gmra.mrb[0].mxu0 %v1823
        %v1924 = vpop.f32.mrb[0].mxu0
        %v1925 = vadd.f32 0.0, %v1924
        %v1926 = vpop.f32.mrb[0].mxu0
        %v1927 = vpop.f32.mrb[0].mxu0
        %v1928 = vadd.f32 0.0, %v1927
        %v1929 = vpop.f32.mrb[0].mxu0
        %1930 = vmatprep.mubr.bf16.mxu0 0
        %1931 = vmatmul.mubr.bf16.gmra.mrb[0].mxu0 %v1826
        %v1932 = vpop.f32.mrb[0].mxu0
        %v1933 = vadd.f32 0.0, %v1932
        %v1934 = vpop.f32.mrb[0].mxu0
        %v1935 = vpop.f32.mrb[0].mxu0
        %v1936 = vadd.f32 0.0, %v1935
        %v1937 = vpop.f32.mrb[0].mxu0
        %1938 = vmatprep.mubr.bf16.mxu0 0
        %1939 = vmatmul.mubr.bf16.gmra.mrb[0].mxu0 %v1829
        %v1940 = vpop.f32.mrb[0].mxu0
        %v1941 = vadd.f32 0.0, %v1940
        %v1942 = vpop.f32.mrb[0].mxu0
        %v1943 = vpop.f32.mrb[0].mxu0
        %v1944 = vadd.f32 0.0, %v1943
        %v1945 = vpop.f32.mrb[0].mxu0
        %1946 = vmatprep.mubr.bf16.mxu0 0
        %1947 = vmatmul.mubr.bf16.gmra.mrb[0].mxu0 %v1832
        %v1948 = vpop.f32.mrb[0].mxu0
        %v1949 = vadd.f32 0.0, %v1948
        %v1950 = vpop.f32.mrb[0].mxu0
        %v1951 = vpop.f32.mrb[0].mxu0
        %v1952 = vadd.f32 0.0, %v1951
        %v1953 = vpop.f32.mrb[0].mxu0
        %1954 = vmatprep.mubr.bf16.mxu0 0
        %1955 = vmatmul.mubr.bf16.gmra.mrb[0].mxu0 %v1835
        %v1956 = vpop.f32.mrb[0].mxu0
        %v1957 = vadd.f32 0.0, %v1956
        %v1958 = vpop.f32.mrb[0].mxu0
        %v1959 = vpop.f32.mrb[0].mxu0
        %v1960 = vadd.f32 0.0, %v1959
        %v1961 = vpop.f32.mrb[0].mxu0
        %1962 = vmatprep.mubr.bf16.mxu0 0
        %1963 = vmatmul.mubr.bf16.gmra.mrb[0].mxu0 %v1838
        %v1964 = vpop.f32.mrb[0].mxu0
        %v1965 = vadd.f32 0.0, %v1964
        %v1966 = vpop.f32.mrb[0].mxu0
        %v1967 = vpop.f32.mrb[0].mxu0
        %v1968 = vadd.f32 0.0, %v1967
        %v1969 = vpop.f32.mrb[0].mxu0
        %1970 = vmatprep.mubr.bf16.mxu0 0
        %1971 = vmatmul.mubr.bf16.gmra.mrb[0].mxu0 %v1841
        %v1972 = vpop.f32.mrb[0].mxu0
        %v1973 = vadd.f32 0.0, %v1972
        %v1974 = vpop.f32.mrb[0].mxu0
        %v1975 = vpop.f32.mrb[0].mxu0
        %v1976 = vadd.f32 0.0, %v1975
        %v1977 = vpop.f32.mrb[0].mxu0
        %1978 = vmatprep.mubr.bf16.mxu0 0
        %1979 = vmatmul.mubr.bf16.gmra.mrb[0].mxu0 %v1844
        %v1980 = vpop.f32.mrb[0].mxu0
        %v1981 = vadd.f32 0.0, %v1980
        %v1982 = vpop.f32.mrb[0].mxu0
        %v1983 = vpop.f32.mrb[0].mxu0
        %v1984 = vadd.f32 0.0, %v1983
        %v1985 = vpop.f32.mrb[0].mxu0
        %1986 = vmatprep.mubr.bf16.mxu0 0
        %1987 = vmatmul.mubr.bf16.gmra.mrb[0].mxu0 %v1847
        %v1988 = vpop.f32.mrb[0].mxu0
        %v1989 = vadd.f32 0.0, %v1988
        %v1990 = vpop.f32.mrb[0].mxu0
        %v1991 = vpop.f32.mrb[0].mxu0
        %v1992 = vadd.f32 0.0, %v1991
        %v1993 = vpop.f32.mrb[0].mxu0
        %1994 = vmatprep.mubr.bf16.mxu0 0
        %1995 = vmatmul.mubr.bf16.gmra.mrb[0].mxu0 %v1850
        %v1996 = vpop.f32.mrb[0].mxu0
        %v1997 = vadd.f32 0.0, %v1996
        %v1998 = vpop.f32.mrb[0].mxu0
        %v1999 = vpop.f32.mrb[0].mxu0
        %v2000 = vadd.f32 0.0, %v1999
        %v2001 = vpop.f32.mrb[0].mxu0
        %2002 = vmatprep.mubr.bf16.mxu0 0
        %2003 = vmatmul.mubr.bf16.gmra.mrb[0].mxu0 %v1853
        %v2004 = vpop.f32.mrb[0].mxu0
        %v2005 = vadd.f32 0.0, %v2004
        %v2006 = vpop.f32.mrb[0].mxu0
        %v2007 = vpop.f32.mrb[0].mxu0
        %v2008 = vadd.f32 0.0, %v2007
        %v2009 = vpop.f32.mrb[0].mxu0
        %2010 = vmatprep.mubr.bf16.mxu0 0
        %2011 = vmatmul.mubr.bf16.gmra.mrb[0].mxu0 %v1856
        %v2012 = vpop.f32.mrb[0].mxu0
        %v2013 = vadd.f32 0.0, %v2012
        %v2014 = vpop.f32.mrb[0].mxu0
        %v2015 = vpop.f32.mrb[0].mxu0
        %v2016 = vadd.f32 0.0, %v2015
        %v2017 = vpop.f32.mrb[0].mxu0
        %2018 = vdwg.mxu0
        %v2019 = vadd.f32 %v1713, %v1893
        %v2020 = vadd.f32 %v1714, %v1896
        %v2021 = vadd.f32 %v1715, %v1901
        %v2022 = vadd.f32 %v1716, %v1904
        %v2023 = vadd.f32 %v1717, %v1909
        %v2024 = vadd.f32 %v1718, %v1912
        %v2025 = vadd.f32 %v1719, %v1917
        %v2026 = vadd.f32 %v1720, %v1920
        %v2027 = vadd.f32 %v1721, %v1925
        %v2028 = vadd.f32 %v1722, %v1928
        %v2029 = vadd.f32 %v1723, %v1933
        %v2030 = vadd.f32 %v1724, %v1936
        %v2031 = vadd.f32 %v1725, %v1941
        %v2032 = vadd.f32 %v1726, %v1944
        %v2033 = vadd.f32 %v1727, %v1949
        %v2034 = vadd.f32 %v1728, %v1952
        %v2035 = vadd.f32 %v1729, %v1957
        %v2036 = vadd.f32 %v1730, %v1960
        %v2037 = vadd.f32 %v1731, %v1965
        %v2038 = vadd.f32 %v1732, %v1968
        %v2039 = vadd.f32 %v1733, %v1973
        %v2040 = vadd.f32 %v1734, %v1976
        %v2041 = vadd.f32 %v1735, %v1981
        %v2042 = vadd.f32 %v1736, %v1984
        %v2043 = vadd.f32 %v1737, %v1989
        %v2044 = vadd.f32 %v1738, %v1992
        %v2045 = vadd.f32 %v1739, %v1997
        %v2046 = vadd.f32 %v1740, %v2000
        %v2047 = vadd.f32 %v1741, %v2005
        %v2048 = vadd.f32 %v1742, %v2008
        %v2049 = vadd.f32 %v1743, %v2013
        %v2050 = vadd.f32 %v1744, %v2016
        %s2051 = scalar_lea.vmem %s276, 48
        %v2052 = vld [vmem:[%s2051] sm:$0xff]
        %v2053 = vld [vmem:[%s2051 + $0x8] sm:$0xff]
        %v2054 = vld [vmem:[%s2051 + $0x18] sm:$0xff]
        %v2055 = vld [vmem:[%s2051 + $0x20] sm:$0xff]
        %v2056 = vld [vmem:[%s2051 + $0x30] sm:$0xff]
        %v2057 = vld [vmem:[%s2051 + $0x38] sm:$0xff]
        %v2058 = vld [vmem:[%s2051 + $0x48] sm:$0xff]
        %v2059 = vld [vmem:[%s2051 + $0x50] sm:$0xff]
        %v2060 = vld [vmem:[%s2051 + $0x60] sm:$0xff]
        %v2061 = vld [vmem:[%s2051 + $0x68] sm:$0xff]
        %v2062 = vld [vmem:[%s2051 + $0x78] sm:$0xff]
        %v2063 = vld [vmem:[%s2051 + $0x80] sm:$0xff]
        %v2064 = vld [vmem:[%s2051 + $0x90] sm:$0xff]
        %v2065 = vld [vmem:[%s2051 + $0x98] sm:$0xff]
        %v2066 = vld [vmem:[%s2051 + $0xa8] sm:$0xff]
        %v2067 = vld [vmem:[%s2051 + $0xb0] sm:$0xff]
        %v2068 = vld [vmem:[%s2051 + $0xc0] sm:$0xff]
        %v2069 = vld [vmem:[%s2051 + $0xc8] sm:$0xff]
        %v2070 = vld [vmem:[%s2051 + $0xd8] sm:$0xff]
        %v2071 = vld [vmem:[%s2051 + $0xe0] sm:$0xff]
        %v2072 = vld [vmem:[%s2051 + $0xf0] sm:$0xff]
        %v2073 = vld [vmem:[%s2051 + $0xf8] sm:$0xff]
        %v2074 = vld [vmem:[%s2051 + $0x108] sm:$0xff]
        %v2075 = vld [vmem:[%s2051 + $0x110] sm:$0xff]
        %v2076 = vld [vmem:[%s2051 + $0x120] sm:$0xff]
        %v2077 = vld [vmem:[%s2051 + $0x128] sm:$0xff]
        %v2078 = vld [vmem:[%s2051 + $0x138] sm:$0xff]
        %v2079 = vld [vmem:[%s2051 + $0x140] sm:$0xff]
        %v2080 = vld [vmem:[%s2051 + $0x150] sm:$0xff]
        %v2081 = vld [vmem:[%s2051 + $0x158] sm:$0xff]
        %v2082 = vld [vmem:[%s2051 + $0x168] sm:$0xff]
        %v2083 = vld [vmem:[%s2051 + $0x170] sm:$0xff]
        %v2084 = vpack.c.bf16 %v2053, %v2052
        %v2085 = vpack.c.bf16 %v2055, %v2054
        %v2086 = vpack.c.bf16 %v2057, %v2056
        %v2087 = vpack.c.bf16 %v2059, %v2058
        %v2088 = vpack.c.bf16 %v2061, %v2060
        %v2089 = vpack.c.bf16 %v2063, %v2062
        %v2090 = vpack.c.bf16 %v2065, %v2064
        %v2091 = vpack.c.bf16 %v2067, %v2066
        %v2092 = vpack.c.bf16 %v2069, %v2068
        %v2093 = vpack.c.bf16 %v2071, %v2070
        %v2094 = vpack.c.bf16 %v2073, %v2072
        %v2095 = vpack.c.bf16 %v2075, %v2074
        %v2096 = vpack.c.bf16 %v2077, %v2076
        %v2097 = vpack.c.bf16 %v2079, %v2078
        %v2098 = vpack.c.bf16 %v2081, %v2080
        %v2099 = vpack.c.bf16 %v2083, %v2082
        %s2100 = scalar_lea.vmem %s1, 96
        %v2101 = vld [vmem:[%s2100] sm:$0xf]
        %v2102 = vld [vmem:[%s2100 + $0x4] sm:$0xf]
        %v2103 = vld [vmem:[%s2100 + $0x8] sm:$0xf]
        %v2104 = vld [vmem:[%s2100 + $0xc] sm:$0xf]
        %v2109 = vunpack.c.l.b16 %v2101
        %v2110 = vunpack.c.l.b16 %v2102
        %v2111 = vunpack.c.l.b16 %v2103
        %v2112 = vunpack.c.l.b16 %v2104
        %v2113 = vpack.c.b16 %v2110, %v2109
        %v2114 = vpack.c.b16 %v2112, %v2111
        %v2118 = vsel %vm395, %v2084, 0
        %v2121 = vsel %vm395, %v2085, 0
        %v2124 = vsel %vm395, %v2086, 0
        %v2127 = vsel %vm395, %v2087, 0
        %v2130 = vsel %vm395, %v2088, 0
        %v2133 = vsel %vm395, %v2089, 0
        %v2136 = vsel %vm395, %v2090, 0
        %v2139 = vsel %vm395, %v2091, 0
        %v2142 = vsel %vm395, %v2092, 0
        %v2145 = vsel %vm395, %v2093, 0
        %v2148 = vsel %vm395, %v2094, 0
        %v2151 = vsel %vm395, %v2095, 0
        %v2154 = vsel %vm395, %v2096, 0
        %v2157 = vsel %vm395, %v2097, 0
        %v2160 = vsel %vm395, %v2098, 0
        %v2163 = vsel %vm395, %v2099, 0
        %2165 = vmatprep.subr.bf16.mxu0 0
        %2166 = vmatpush1.bf16.msra.mxu0 %v2113
        %2167 = vmatprep.subr.bf16.mxu0 0
        %2168 = vmatpush1.bf16.msra.mxu0 %v2114
        %2169 = vmatprep.subr.bf16.mxu0 0
        %2170 = vmatpush1.bf16.msra.mxu0 0
        %2171 = vmatprep.subr.bf16.mxu0 0
        %2172 = vmatpush1.bf16.msra.mxu0 0
        %2173 = vmatprep.subr.bf16.mxu0 0
        %2174 = vmatpush1.bf16.msra.mxu0 0
        %2175 = vmatprep.subr.bf16.mxu0 0
        %2176 = vmatpush1.bf16.msra.mxu0 0
        %2177 = vmatprep.subr.bf16.mxu0 0
        %2178 = vmatpush1.bf16.msra.mxu0 0
        %2179 = vmatprep.subr.bf16.mxu0 0
        %2180 = vmatpush1.bf16.msra.mxu0 0
        %2181 = vmatprep.subr.bf16.mxu0 0
        %2182 = vmatpush1.bf16.msra.mxu0 0
        %2183 = vmatprep.subr.bf16.mxu0 0
        %2184 = vmatpush1.bf16.msra.mxu0 0
        %2185 = vmatprep.subr.bf16.mxu0 0
        %2186 = vmatpush1.bf16.msra.mxu0 0
        %2187 = vmatprep.subr.bf16.mxu0 0
        %2188 = vmatpush1.bf16.msra.mxu0 0
        %2189 = vmatprep.subr.bf16.mxu0 0
        %2190 = vmatpush1.bf16.msra.mxu0 0
        %2191 = vmatprep.subr.bf16.mxu0 0
        %2192 = vmatpush1.bf16.msra.mxu0 0
        %2193 = vmatprep.subr.bf16.mxu0 0
        %2194 = vmatpush1.bf16.msra.mxu0 0
        %2195 = vmatprep.subr.bf16.mxu0 0
        %2196 = vmatpush1.bf16.msra.mxu0 0
        %2197 = vmatprep.mubr.bf16.mxu0 0
        %2198 = vmatmul.mubr.bf16.gmra.mrb[0].mxu0 %v2118
        %v2199 = vpop.f32.mrb[0].mxu0
        %v2200 = vadd.f32 0.0, %v2199
        %v2201 = vpop.f32.mrb[0].mxu0
        %v2202 = vpop.f32.mrb[0].mxu0
        %v2203 = vadd.f32 0.0, %v2202
        %v2204 = vpop.f32.mrb[0].mxu0
        %2205 = vmatprep.mubr.bf16.mxu0 0
        %2206 = vmatmul.mubr.bf16.gmra.mrb[0].mxu0 %v2121
        %v2207 = vpop.f32.mrb[0].mxu0
        %v2208 = vadd.f32 0.0, %v2207
        %v2209 = vpop.f32.mrb[0].mxu0
        %v2210 = vpop.f32.mrb[0].mxu0
        %v2211 = vadd.f32 0.0, %v2210
        %v2212 = vpop.f32.mrb[0].mxu0
        %2213 = vmatprep.mubr.bf16.mxu0 0
        %2214 = vmatmul.mubr.bf16.gmra.mrb[0].mxu0 %v2124
        %v2215 = vpop.f32.mrb[0].mxu0
        %v2216 = vadd.f32 0.0, %v2215
        %v2217 = vpop.f32.mrb[0].mxu0
        %v2218 = vpop.f32.mrb[0].mxu0
        %v2219 = vadd.f32 0.0, %v2218
        %v2220 = vpop.f32.mrb[0].mxu0
        %2221 = vmatprep.mubr.bf16.mxu0 0
        %2222 = vmatmul.mubr.bf16.gmra.mrb[0].mxu0 %v2127
        %v2223 = vpop.f32.mrb[0].mxu0
        %v2224 = vadd.f32 0.0, %v2223
        %v2225 = vpop.f32.mrb[0].mxu0
        %v2226 = vpop.f32.mrb[0].mxu0
        %v2227 = vadd.f32 0.0, %v2226
        %v2228 = vpop.f32.mrb[0].mxu0
        %2229 = vmatprep.mubr.bf16.mxu0 0
        %2230 = vmatmul.mubr.bf16.gmra.mrb[0].mxu0 %v2130
        %v2231 = vpop.f32.mrb[0].mxu0
        %v2232 = vadd.f32 0.0, %v2231
        %v2233 = vpop.f32.mrb[0].mxu0
        %v2234 = vpop.f32.mrb[0].mxu0
        %v2235 = vadd.f32 0.0, %v2234
        %v2236 = vpop.f32.mrb[0].mxu0
        %2237 = vmatprep.mubr.bf16.mxu0 0
        %2238 = vmatmul.mubr.bf16.gmra.mrb[0].mxu0 %v2133
        %v2239 = vpop.f32.mrb[0].mxu0
        %v2240 = vadd.f32 0.0, %v2239
        %v2241 = vpop.f32.mrb[0].mxu0
        %v2242 = vpop.f32.mrb[0].mxu0
        %v2243 = vadd.f32 0.0, %v2242
        %v2244 = vpop.f32.mrb[0].mxu0
        %2245 = vmatprep.mubr.bf16.mxu0 0
        %2246 = vmatmul.mubr.bf16.gmra.mrb[0].mxu0 %v2136
        %v2247 = vpop.f32.mrb[0].mxu0
        %v2248 = vadd.f32 0.0, %v2247
        %v2249 = vpop.f32.mrb[0].mxu0
        %v2250 = vpop.f32.mrb[0].mxu0
        %v2251 = vadd.f32 0.0, %v2250
        %v2252 = vpop.f32.mrb[0].mxu0
        %2253 = vmatprep.mubr.bf16.mxu0 0
        %2254 = vmatmul.mubr.bf16.gmra.mrb[0].mxu0 %v2139
        %v2255 = vpop.f32.mrb[0].mxu0
        %v2256 = vadd.f32 0.0, %v2255
        %v2257 = vpop.f32.mrb[0].mxu0
        %v2258 = vpop.f32.mrb[0].mxu0
        %v2259 = vadd.f32 0.0, %v2258
        %v2260 = vpop.f32.mrb[0].mxu0
        %2261 = vmatprep.mubr.bf16.mxu0 0
        %2262 = vmatmul.mubr.bf16.gmra.mrb[0].mxu0 %v2142
        %v2263 = vpop.f32.mrb[0].mxu0
        %v2264 = vadd.f32 0.0, %v2263
        %v2265 = vpop.f32.mrb[0].mxu0
        %v2266 = vpop.f32.mrb[0].mxu0
        %v2267 = vadd.f32 0.0, %v2266
        %v2268 = vpop.f32.mrb[0].mxu0
        %2269 = vmatprep.mubr.bf16.mxu0 0
        %2270 = vmatmul.mubr.bf16.gmra.mrb[0].mxu0 %v2145
        %v2271 = vpop.f32.mrb[0].mxu0
        %v2272 = vadd.f32 0.0, %v2271
        %v2273 = vpop.f32.mrb[0].mxu0
        %v2274 = vpop.f32.mrb[0].mxu0
        %v2275 = vadd.f32 0.0, %v2274
        %v2276 = vpop.f32.mrb[0].mxu0
        %2277 = vmatprep.mubr.bf16.mxu0 0
        %2278 = vmatmul.mubr.bf16.gmra.mrb[0].mxu0 %v2148
        %v2279 = vpop.f32.mrb[0].mxu0
        %v2280 = vadd.f32 0.0, %v2279
        %v2281 = vpop.f32.mrb[0].mxu0
        %v2282 = vpop.f32.mrb[0].mxu0
        %v2283 = vadd.f32 0.0, %v2282
        %v2284 = vpop.f32.mrb[0].mxu0
        %2285 = vmatprep.mubr.bf16.mxu0 0
        %2286 = vmatmul.mubr.bf16.gmra.mrb[0].mxu0 %v2151
        %v2287 = vpop.f32.mrb[0].mxu0
        %v2288 = vadd.f32 0.0, %v2287
        %v2289 = vpop.f32.mrb[0].mxu0
        %v2290 = vpop.f32.mrb[0].mxu0
        %v2291 = vadd.f32 0.0, %v2290
        %v2292 = vpop.f32.mrb[0].mxu0
        %2293 = vmatprep.mubr.bf16.mxu0 0
        %2294 = vmatmul.mubr.bf16.gmra.mrb[0].mxu0 %v2154
        %v2295 = vpop.f32.mrb[0].mxu0
        %v2296 = vadd.f32 0.0, %v2295
        %v2297 = vpop.f32.mrb[0].mxu0
        %v2298 = vpop.f32.mrb[0].mxu0
        %v2299 = vadd.f32 0.0, %v2298
        %v2300 = vpop.f32.mrb[0].mxu0
        %2301 = vmatprep.mubr.bf16.mxu0 0
        %2302 = vmatmul.mubr.bf16.gmra.mrb[0].mxu0 %v2157
        %v2303 = vpop.f32.mrb[0].mxu0
        %v2304 = vadd.f32 0.0, %v2303
        %v2305 = vpop.f32.mrb[0].mxu0
        %v2306 = vpop.f32.mrb[0].mxu0
        %v2307 = vadd.f32 0.0, %v2306
        %v2308 = vpop.f32.mrb[0].mxu0
        %2309 = vmatprep.mubr.bf16.mxu0 0
        %2310 = vmatmul.mubr.bf16.gmra.mrb[0].mxu0 %v2160
        %v2311 = vpop.f32.mrb[0].mxu0
        %v2312 = vadd.f32 0.0, %v2311
        %v2313 = vpop.f32.mrb[0].mxu0
        %v2314 = vpop.f32.mrb[0].mxu0
        %v2315 = vadd.f32 0.0, %v2314
        %v2316 = vpop.f32.mrb[0].mxu0
        %2317 = vmatprep.mubr.bf16.mxu0 0
        %2318 = vmatmul.mubr.bf16.gmra.mrb[0].mxu0 %v2163
        %v2319 = vpop.f32.mrb[0].mxu0
        %v2320 = vadd.f32 0.0, %v2319
        %v2321 = vpop.f32.mrb[0].mxu0
        %v2322 = vpop.f32.mrb[0].mxu0
        %v2323 = vadd.f32 0.0, %v2322
        %v2324 = vpop.f32.mrb[0].mxu0
        %2325 = vdwg.mxu0
        %v2326 = vadd.f32 %v2019, %v2200
        %v2327 = vadd.f32 %v2020, %v2203
        %v2328 = vadd.f32 %v2021, %v2208
        %v2329 = vadd.f32 %v2022, %v2211
        %v2330 = vadd.f32 %v2023, %v2216
        %v2331 = vadd.f32 %v2024, %v2219
        %v2332 = vadd.f32 %v2025, %v2224
        %v2333 = vadd.f32 %v2026, %v2227
        %v2334 = vadd.f32 %v2027, %v2232
        %v2335 = vadd.f32 %v2028, %v2235
        %v2336 = vadd.f32 %v2029, %v2240
        %v2337 = vadd.f32 %v2030, %v2243
        %v2338 = vadd.f32 %v2031, %v2248
        %v2339 = vadd.f32 %v2032, %v2251
        %v2340 = vadd.f32 %v2033, %v2256
        %v2341 = vadd.f32 %v2034, %v2259
        %v2342 = vadd.f32 %v2035, %v2264
        %v2343 = vadd.f32 %v2036, %v2267
        %v2344 = vadd.f32 %v2037, %v2272
        %v2345 = vadd.f32 %v2038, %v2275
        %v2346 = vadd.f32 %v2039, %v2280
        %v2347 = vadd.f32 %v2040, %v2283
        %v2348 = vadd.f32 %v2041, %v2288
        %v2349 = vadd.f32 %v2042, %v2291
        %v2350 = vadd.f32 %v2043, %v2296
        %v2351 = vadd.f32 %v2044, %v2299
        %v2352 = vadd.f32 %v2045, %v2304
        %v2353 = vadd.f32 %v2046, %v2307
        %v2354 = vadd.f32 %v2047, %v2312
        %v2355 = vadd.f32 %v2048, %v2315
        %v2356 = vadd.f32 %v2049, %v2320
        %v2357 = vadd.f32 %v2050, %v2323
        %v2358 = vld [vmem:[%s2051 + $0x1] sm:$0xff]
        %v2359 = vld [vmem:[%s2051 + $0x9] sm:$0xff]
        %v2360 = vld [vmem:[%s2051 + $0x19] sm:$0xff]
        %v2361 = vld [vmem:[%s2051 + $0x21] sm:$0xff]
        %v2362 = vld [vmem:[%s2051 + $0x31] sm:$0xff]
        %v2363 = vld [vmem:[%s2051 + $0x39] sm:$0xff]
        %v2364 = vld [vmem:[%s2051 + $0x49] sm:$0xff]
        %v2365 = vld [vmem:[%s2051 + $0x51] sm:$0xff]
        %v2366 = vld [vmem:[%s2051 + $0x61] sm:$0xff]
        %v2367 = vld [vmem:[%s2051 + $0x69] sm:$0xff]
        %v2368 = vld [vmem:[%s2051 + $0x79] sm:$0xff]
        %v2369 = vld [vmem:[%s2051 + $0x81] sm:$0xff]
        %v2370 = vld [vmem:[%s2051 + $0x91] sm:$0xff]
        %v2371 = vld [vmem:[%s2051 + $0x99] sm:$0xff]
        %v2372 = vld [vmem:[%s2051 + $0xa9] sm:$0xff]
        %v2373 = vld [vmem:[%s2051 + $0xb1] sm:$0xff]
        %v2374 = vld [vmem:[%s2051 + $0xc1] sm:$0xff]
        %v2375 = vld [vmem:[%s2051 + $0xc9] sm:$0xff]
        %v2376 = vld [vmem:[%s2051 + $0xd9] sm:$0xff]
        %v2377 = vld [vmem:[%s2051 + $0xe1] sm:$0xff]
        %v2378 = vld [vmem:[%s2051 + $0xf1] sm:$0xff]
        %v2379 = vld [vmem:[%s2051 + $0xf9] sm:$0xff]
        %v2380 = vld [vmem:[%s2051 + $0x109] sm:$0xff]
        %v2381 = vld [vmem:[%s2051 + $0x111] sm:$0xff]
        %v2382 = vld [vmem:[%s2051 + $0x121] sm:$0xff]
        %v2383 = vld [vmem:[%s2051 + $0x129] sm:$0xff]
        %v2384 = vld [vmem:[%s2051 + $0x139] sm:$0xff]
        %v2385 = vld [vmem:[%s2051 + $0x141] sm:$0xff]
        %v2386 = vld [vmem:[%s2051 + $0x151] sm:$0xff]
        %v2387 = vld [vmem:[%s2051 + $0x159] sm:$0xff]
        %v2388 = vld [vmem:[%s2051 + $0x169] sm:$0xff]
        %v2389 = vld [vmem:[%s2051 + $0x171] sm:$0xff]
        %v2390 = vpack.c.bf16 %v2359, %v2358
        %v2391 = vpack.c.bf16 %v2361, %v2360
        %v2392 = vpack.c.bf16 %v2363, %v2362
        %v2393 = vpack.c.bf16 %v2365, %v2364
        %v2394 = vpack.c.bf16 %v2367, %v2366
        %v2395 = vpack.c.bf16 %v2369, %v2368
        %v2396 = vpack.c.bf16 %v2371, %v2370
        %v2397 = vpack.c.bf16 %v2373, %v2372
        %v2398 = vpack.c.bf16 %v2375, %v2374
        %v2399 = vpack.c.bf16 %v2377, %v2376
        %v2400 = vpack.c.bf16 %v2379, %v2378
        %v2401 = vpack.c.bf16 %v2381, %v2380
        %v2402 = vpack.c.bf16 %v2383, %v2382
        %v2403 = vpack.c.bf16 %v2385, %v2384
        %v2404 = vpack.c.bf16 %v2387, %v2386
        %v2405 = vpack.c.bf16 %v2389, %v2388
        %s2406 = scalar_lea.vmem %s1, 112
        %v2407 = vld [vmem:[%s2406] sm:$0xf]
        %v2408 = vld [vmem:[%s2406 + $0x4] sm:$0xf]
        %v2409 = vld [vmem:[%s2406 + $0x8] sm:$0xf]
        %v2410 = vld [vmem:[%s2406 + $0xc] sm:$0xf]
        %v2415 = vunpack.c.l.b16 %v2407
        %v2416 = vunpack.c.l.b16 %v2408
        %v2417 = vunpack.c.l.b16 %v2409
        %v2418 = vunpack.c.l.b16 %v2410
        %v2419 = vpack.c.b16 %v2416, %v2415
        %v2420 = vpack.c.b16 %v2418, %v2417
        %v2424 = vsel %vm395, %v2390, 0
        %v2427 = vsel %vm395, %v2391, 0
        %v2430 = vsel %vm395, %v2392, 0
        %v2433 = vsel %vm395, %v2393, 0
        %v2436 = vsel %vm395, %v2394, 0
        %v2439 = vsel %vm395, %v2395, 0
        %v2442 = vsel %vm395, %v2396, 0
        %v2445 = vsel %vm395, %v2397, 0
        %v2448 = vsel %vm395, %v2398, 0
        %v2451 = vsel %vm395, %v2399, 0
        %v2454 = vsel %vm395, %v2400, 0
        %v2457 = vsel %vm395, %v2401, 0
        %v2460 = vsel %vm395, %v2402, 0
        %v2463 = vsel %vm395, %v2403, 0
        %v2466 = vsel %vm395, %v2404, 0
        %v2469 = vsel %vm395, %v2405, 0
        %2471 = vmatprep.subr.bf16.mxu0 0
        %2472 = vmatpush1.bf16.msra.mxu0 %v2419
        %2473 = vmatprep.subr.bf16.mxu0 0
        %2474 = vmatpush1.bf16.msra.mxu0 %v2420
        %2475 = vmatprep.subr.bf16.mxu0 0
        %2476 = vmatpush1.bf16.msra.mxu0 0
        %2477 = vmatprep.subr.bf16.mxu0 0
        %2478 = vmatpush1.bf16.msra.mxu0 0
        %2479 = vmatprep.subr.bf16.mxu0 0
        %2480 = vmatpush1.bf16.msra.mxu0 0
        %2481 = vmatprep.subr.bf16.mxu0 0
        %2482 = vmatpush1.bf16.msra.mxu0 0
        %2483 = vmatprep.subr.bf16.mxu0 0
        %2484 = vmatpush1.bf16.msra.mxu0 0
        %2485 = vmatprep.subr.bf16.mxu0 0
        %2486 = vmatpush1.bf16.msra.mxu0 0
        %2487 = vmatprep.subr.bf16.mxu0 0
        %2488 = vmatpush1.bf16.msra.mxu0 0
        %2489 = vmatprep.subr.bf16.mxu0 0
        %2490 = vmatpush1.bf16.msra.mxu0 0
        %2491 = vmatprep.subr.bf16.mxu0 0
        %2492 = vmatpush1.bf16.msra.mxu0 0
        %2493 = vmatprep.subr.bf16.mxu0 0
        %2494 = vmatpush1.bf16.msra.mxu0 0
        %2495 = vmatprep.subr.bf16.mxu0 0
        %2496 = vmatpush1.bf16.msra.mxu0 0
        %2497 = vmatprep.subr.bf16.mxu0 0
        %2498 = vmatpush1.bf16.msra.mxu0 0
        %2499 = vmatprep.subr.bf16.mxu0 0
        %2500 = vmatpush1.bf16.msra.mxu0 0
        %2501 = vmatprep.subr.bf16.mxu0 0
        %2502 = vmatpush1.bf16.msra.mxu0 0
        %2503 = vmatprep.mubr.bf16.mxu0 0
        %2504 = vmatmul.mubr.bf16.gmra.mrb[0].mxu0 %v2424
        %v2505 = vpop.f32.mrb[0].mxu0
        %v2506 = vadd.f32 0.0, %v2505
        %v2507 = vpop.f32.mrb[0].mxu0
        %v2508 = vpop.f32.mrb[0].mxu0
        %v2509 = vadd.f32 0.0, %v2508
        %v2510 = vpop.f32.mrb[0].mxu0
        %2511 = vmatprep.mubr.bf16.mxu0 0
        %2512 = vmatmul.mubr.bf16.gmra.mrb[0].mxu0 %v2427
        %v2513 = vpop.f32.mrb[0].mxu0
        %v2514 = vadd.f32 0.0, %v2513
        %v2515 = vpop.f32.mrb[0].mxu0
        %v2516 = vpop.f32.mrb[0].mxu0
        %v2517 = vadd.f32 0.0, %v2516
        %v2518 = vpop.f32.mrb[0].mxu0
        %2519 = vmatprep.mubr.bf16.mxu0 0
        %2520 = vmatmul.mubr.bf16.gmra.mrb[0].mxu0 %v2430
        %v2521 = vpop.f32.mrb[0].mxu0
        %v2522 = vadd.f32 0.0, %v2521
        %v2523 = vpop.f32.mrb[0].mxu0
        %v2524 = vpop.f32.mrb[0].mxu0
        %v2525 = vadd.f32 0.0, %v2524
        %v2526 = vpop.f32.mrb[0].mxu0
        %2527 = vmatprep.mubr.bf16.mxu0 0
        %2528 = vmatmul.mubr.bf16.gmra.mrb[0].mxu0 %v2433
        %v2529 = vpop.f32.mrb[0].mxu0
        %v2530 = vadd.f32 0.0, %v2529
        %v2531 = vpop.f32.mrb[0].mxu0
        %v2532 = vpop.f32.mrb[0].mxu0
        %v2533 = vadd.f32 0.0, %v2532
        %v2534 = vpop.f32.mrb[0].mxu0
        %2535 = vmatprep.mubr.bf16.mxu0 0
        %2536 = vmatmul.mubr.bf16.gmra.mrb[0].mxu0 %v2436
        %v2537 = vpop.f32.mrb[0].mxu0
        %v2538 = vadd.f32 0.0, %v2537
        %v2539 = vpop.f32.mrb[0].mxu0
        %v2540 = vpop.f32.mrb[0].mxu0
        %v2541 = vadd.f32 0.0, %v2540
        %v2542 = vpop.f32.mrb[0].mxu0
        %2543 = vmatprep.mubr.bf16.mxu0 0
        %2544 = vmatmul.mubr.bf16.gmra.mrb[0].mxu0 %v2439
        %v2545 = vpop.f32.mrb[0].mxu0
        %v2546 = vadd.f32 0.0, %v2545
        %v2547 = vpop.f32.mrb[0].mxu0
        %v2548 = vpop.f32.mrb[0].mxu0
        %v2549 = vadd.f32 0.0, %v2548
        %v2550 = vpop.f32.mrb[0].mxu0
        %2551 = vmatprep.mubr.bf16.mxu0 0
        %2552 = vmatmul.mubr.bf16.gmra.mrb[0].mxu0 %v2442
        %v2553 = vpop.f32.mrb[0].mxu0
        %v2554 = vadd.f32 0.0, %v2553
        %v2555 = vpop.f32.mrb[0].mxu0
        %v2556 = vpop.f32.mrb[0].mxu0
        %v2557 = vadd.f32 0.0, %v2556
        %v2558 = vpop.f32.mrb[0].mxu0
        %2559 = vmatprep.mubr.bf16.mxu0 0
        %2560 = vmatmul.mubr.bf16.gmra.mrb[0].mxu0 %v2445
        %v2561 = vpop.f32.mrb[0].mxu0
        %v2562 = vadd.f32 0.0, %v2561
        %v2563 = vpop.f32.mrb[0].mxu0
        %v2564 = vpop.f32.mrb[0].mxu0
        %v2565 = vadd.f32 0.0, %v2564
        %v2566 = vpop.f32.mrb[0].mxu0
        %2567 = vmatprep.mubr.bf16.mxu0 0
        %2568 = vmatmul.mubr.bf16.gmra.mrb[0].mxu0 %v2448
        %v2569 = vpop.f32.mrb[0].mxu0
        %v2570 = vadd.f32 0.0, %v2569
        %v2571 = vpop.f32.mrb[0].mxu0
        %v2572 = vpop.f32.mrb[0].mxu0
        %v2573 = vadd.f32 0.0, %v2572
        %v2574 = vpop.f32.mrb[0].mxu0
        %2575 = vmatprep.mubr.bf16.mxu0 0
        %2576 = vmatmul.mubr.bf16.gmra.mrb[0].mxu0 %v2451
        %v2577 = vpop.f32.mrb[0].mxu0
        %v2578 = vadd.f32 0.0, %v2577
        %v2579 = vpop.f32.mrb[0].mxu0
        %v2580 = vpop.f32.mrb[0].mxu0
        %v2581 = vadd.f32 0.0, %v2580
        %v2582 = vpop.f32.mrb[0].mxu0
        %2583 = vmatprep.mubr.bf16.mxu0 0
        %2584 = vmatmul.mubr.bf16.gmra.mrb[0].mxu0 %v2454
        %v2585 = vpop.f32.mrb[0].mxu0
        %v2586 = vadd.f32 0.0, %v2585
        %v2587 = vpop.f32.mrb[0].mxu0
        %v2588 = vpop.f32.mrb[0].mxu0
        %v2589 = vadd.f32 0.0, %v2588
        %v2590 = vpop.f32.mrb[0].mxu0
        %2591 = vmatprep.mubr.bf16.mxu0 0
        %2592 = vmatmul.mubr.bf16.gmra.mrb[0].mxu0 %v2457
        %v2593 = vpop.f32.mrb[0].mxu0
        %v2594 = vadd.f32 0.0, %v2593
        %v2595 = vpop.f32.mrb[0].mxu0
        %v2596 = vpop.f32.mrb[0].mxu0
        %v2597 = vadd.f32 0.0, %v2596
        %v2598 = vpop.f32.mrb[0].mxu0
        %2599 = vmatprep.mubr.bf16.mxu0 0
        %2600 = vmatmul.mubr.bf16.gmra.mrb[0].mxu0 %v2460
        %v2601 = vpop.f32.mrb[0].mxu0
        %v2602 = vadd.f32 0.0, %v2601
        %v2603 = vpop.f32.mrb[0].mxu0
        %v2604 = vpop.f32.mrb[0].mxu0
        %v2605 = vadd.f32 0.0, %v2604
        %v2606 = vpop.f32.mrb[0].mxu0
        %2607 = vmatprep.mubr.bf16.mxu0 0
        %2608 = vmatmul.mubr.bf16.gmra.mrb[0].mxu0 %v2463
        %v2609 = vpop.f32.mrb[0].mxu0
        %v2610 = vadd.f32 0.0, %v2609
        %v2611 = vpop.f32.mrb[0].mxu0
        %v2612 = vpop.f32.mrb[0].mxu0
        %v2613 = vadd.f32 0.0, %v2612
        %v2614 = vpop.f32.mrb[0].mxu0
        %2615 = vmatprep.mubr.bf16.mxu0 0
        %2616 = vmatmul.mubr.bf16.gmra.mrb[0].mxu0 %v2466
        %v2617 = vpop.f32.mrb[0].mxu0
        %v2618 = vadd.f32 0.0, %v2617
        %v2619 = vpop.f32.mrb[0].mxu0
        %v2620 = vpop.f32.mrb[0].mxu0
        %v2621 = vadd.f32 0.0, %v2620
        %v2622 = vpop.f32.mrb[0].mxu0
        %2623 = vmatprep.mubr.bf16.mxu0 0
        %2624 = vmatmul.mubr.bf16.gmra.mrb[0].mxu0 %v2469
        %v2625 = vpop.f32.mrb[0].mxu0
        %v2626 = vadd.f32 0.0, %v2625
        %v2627 = vpop.f32.mrb[0].mxu0
        %v2628 = vpop.f32.mrb[0].mxu0
        %v2629 = vadd.f32 0.0, %v2628
        %v2630 = vpop.f32.mrb[0].mxu0
        %2631 = vdwg.mxu0
        %v2632 = vadd.f32 %v2326, %v2506
        %v2633 = vadd.f32 %v2327, %v2509
        %v2634 = vadd.f32 %v2328, %v2514
        %v2635 = vadd.f32 %v2329, %v2517
        %v2636 = vadd.f32 %v2330, %v2522
        %v2637 = vadd.f32 %v2331, %v2525
        %v2638 = vadd.f32 %v2332, %v2530
        %v2639 = vadd.f32 %v2333, %v2533
        %v2640 = vadd.f32 %v2334, %v2538
        %v2641 = vadd.f32 %v2335, %v2541
        %v2642 = vadd.f32 %v2336, %v2546
        %v2643 = vadd.f32 %v2337, %v2549
        %v2644 = vadd.f32 %v2338, %v2554
        %v2645 = vadd.f32 %v2339, %v2557
        %v2646 = vadd.f32 %v2340, %v2562
        %v2647 = vadd.f32 %v2341, %v2565
        %v2648 = vadd.f32 %v2342, %v2570
        %v2649 = vadd.f32 %v2343, %v2573
        %v2650 = vadd.f32 %v2344, %v2578
        %v2651 = vadd.f32 %v2345, %v2581
        %v2652 = vadd.f32 %v2346, %v2586
        %v2653 = vadd.f32 %v2347, %v2589
        %v2654 = vadd.f32 %v2348, %v2594
        %v2655 = vadd.f32 %v2349, %v2597
        %v2656 = vadd.f32 %v2350, %v2602
        %v2657 = vadd.f32 %v2351, %v2605
        %v2658 = vadd.f32 %v2352, %v2610
        %v2659 = vadd.f32 %v2353, %v2613
        %v2660 = vadd.f32 %v2354, %v2618
        %v2661 = vadd.f32 %v2355, %v2621
        %v2662 = vadd.f32 %v2356, %v2626
        %v2663 = vadd.f32 %v2357, %v2629
        %v2664 = vld [vmem:[%s2051 + $0x2] sm:$0xff]
        %v2665 = vld [vmem:[%s2051 + $0xa] sm:$0xff]
        %v2666 = vld [vmem:[%s2051 + $0x1a] sm:$0xff]
        %v2667 = vld [vmem:[%s2051 + $0x22] sm:$0xff]
        %v2668 = vld [vmem:[%s2051 + $0x32] sm:$0xff]
        %v2669 = vld [vmem:[%s2051 + $0x3a] sm:$0xff]
        %v2670 = vld [vmem:[%s2051 + $0x4a] sm:$0xff]
        %v2671 = vld [vmem:[%s2051 + $0x52] sm:$0xff]
        %v2672 = vld [vmem:[%s2051 + $0x62] sm:$0xff]
        %v2673 = vld [vmem:[%s2051 + $0x6a] sm:$0xff]
        %v2674 = vld [vmem:[%s2051 + $0x7a] sm:$0xff]
        %v2675 = vld [vmem:[%s2051 + $0x82] sm:$0xff]
        %v2676 = vld [vmem:[%s2051 + $0x92] sm:$0xff]
        %v2677 = vld [vmem:[%s2051 + $0x9a] sm:$0xff]
        %v2678 = vld [vmem:[%s2051 + $0xaa] sm:$0xff]
        %v2679 = vld [vmem:[%s2051 + $0xb2] sm:$0xff]
        %v2680 = vld [vmem:[%s2051 + $0xc2] sm:$0xff]
        %v2681 = vld [vmem:[%s2051 + $0xca] sm:$0xff]
        %v2682 = vld [vmem:[%s2051 + $0xda] sm:$0xff]
        %v2683 = vld [vmem:[%s2051 + $0xe2] sm:$0xff]
        %v2684 = vld [vmem:[%s2051 + $0xf2] sm:$0xff]
        %v2685 = vld [vmem:[%s2051 + $0xfa] sm:$0xff]
        %v2686 = vld [vmem:[%s2051 + $0x10a] sm:$0xff]
        %v2687 = vld [vmem:[%s2051 + $0x112] sm:$0xff]
        %v2688 = vld [vmem:[%s2051 + $0x122] sm:$0xff]
        %v2689 = vld [vmem:[%s2051 + $0x12a] sm:$0xff]
        %v2690 = vld [vmem:[%s2051 + $0x13a] sm:$0xff]
        %v2691 = vld [vmem:[%s2051 + $0x142] sm:$0xff]
        %v2692 = vld [vmem:[%s2051 + $0x152] sm:$0xff]
        %v2693 = vld [vmem:[%s2051 + $0x15a] sm:$0xff]
        %v2694 = vld [vmem:[%s2051 + $0x16a] sm:$0xff]
        %v2695 = vld [vmem:[%s2051 + $0x172] sm:$0xff]
        %v2696 = vpack.c.bf16 %v2665, %v2664
        %v2697 = vpack.c.bf16 %v2667, %v2666
        %v2698 = vpack.c.bf16 %v2669, %v2668
        %v2699 = vpack.c.bf16 %v2671, %v2670
        %v2700 = vpack.c.bf16 %v2673, %v2672
        %v2701 = vpack.c.bf16 %v2675, %v2674
        %v2702 = vpack.c.bf16 %v2677, %v2676
        %v2703 = vpack.c.bf16 %v2679, %v2678
        %v2704 = vpack.c.bf16 %v2681, %v2680
        %v2705 = vpack.c.bf16 %v2683, %v2682
        %v2706 = vpack.c.bf16 %v2685, %v2684
        %v2707 = vpack.c.bf16 %v2687, %v2686
        %v2708 = vpack.c.bf16 %v2689, %v2688
        %v2709 = vpack.c.bf16 %v2691, %v2690
        %v2710 = vpack.c.bf16 %v2693, %v2692
        %v2711 = vpack.c.bf16 %v2695, %v2694
        %s2712 = scalar_lea.vmem %s1, 128
        %v2713 = vld [vmem:[%s2712] sm:$0xf]
        %v2714 = vld [vmem:[%s2712 + $0x4] sm:$0xf]
        %v2715 = vld [vmem:[%s2712 + $0x8] sm:$0xf]
        %v2716 = vld [vmem:[%s2712 + $0xc] sm:$0xf]
        %v2721 = vunpack.c.l.b16 %v2713
        %v2722 = vunpack.c.l.b16 %v2714
        %v2723 = vunpack.c.l.b16 %v2715
        %v2724 = vunpack.c.l.b16 %v2716
        %v2725 = vpack.c.b16 %v2722, %v2721
        %v2726 = vpack.c.b16 %v2724, %v2723
        %v2730 = vsel %vm395, %v2696, 0
        %v2733 = vsel %vm395, %v2697, 0
        %v2736 = vsel %vm395, %v2698, 0
        %v2739 = vsel %vm395, %v2699, 0
        %v2742 = vsel %vm395, %v2700, 0
        %v2745 = vsel %vm395, %v2701, 0
        %v2748 = vsel %vm395, %v2702, 0
        %v2751 = vsel %vm395, %v2703, 0
        %v2754 = vsel %vm395, %v2704, 0
        %v2757 = vsel %vm395, %v2705, 0
        %v2760 = vsel %vm395, %v2706, 0
        %v2763 = vsel %vm395, %v2707, 0
        %v2766 = vsel %vm395, %v2708, 0
        %v2769 = vsel %vm395, %v2709, 0
        %v2772 = vsel %vm395, %v2710, 0
        %v2775 = vsel %vm395, %v2711, 0
        %2777 = vmatprep.subr.bf16.mxu0 0
        %2778 = vmatpush1.bf16.msra.mxu0 %v2725
        %2779 = vmatprep.subr.bf16.mxu0 0
        %2780 = vmatpush1.bf16.msra.mxu0 %v2726
        %2781 = vmatprep.subr.bf16.mxu0 0
        %2782 = vmatpush1.bf16.msra.mxu0 0
        %2783 = vmatprep.subr.bf16.mxu0 0
        %2784 = vmatpush1.bf16.msra.mxu0 0
        %2785 = vmatprep.subr.bf16.mxu0 0
        %2786 = vmatpush1.bf16.msra.mxu0 0
        %2787 = vmatprep.subr.bf16.mxu0 0
        %2788 = vmatpush1.bf16.msra.mxu0 0
        %2789 = vmatprep.subr.bf16.mxu0 0
        %2790 = vmatpush1.bf16.msra.mxu0 0
        %2791 = vmatprep.subr.bf16.mxu0 0
        %2792 = vmatpush1.bf16.msra.mxu0 0
        %2793 = vmatprep.subr.bf16.mxu0 0
        %2794 = vmatpush1.bf16.msra.mxu0 0
        %2795 = vmatprep.subr.bf16.mxu0 0
        %2796 = vmatpush1.bf16.msra.mxu0 0
        %2797 = vmatprep.subr.bf16.mxu0 0
        %2798 = vmatpush1.bf16.msra.mxu0 0
        %2799 = vmatprep.subr.bf16.mxu0 0
        %2800 = vmatpush1.bf16.msra.mxu0 0
        %2801 = vmatprep.subr.bf16.mxu0 0
        %2802 = vmatpush1.bf16.msra.mxu0 0
        %2803 = vmatprep.subr.bf16.mxu0 0
        %2804 = vmatpush1.bf16.msra.mxu0 0
        %2805 = vmatprep.subr.bf16.mxu0 0
        %2806 = vmatpush1.bf16.msra.mxu0 0
        %2807 = vmatprep.subr.bf16.mxu0 0
        %2808 = vmatpush1.bf16.msra.mxu0 0
        %2809 = vmatprep.mubr.bf16.mxu0 0
        %2810 = vmatmul.mubr.bf16.gmra.mrb[0].mxu0 %v2730
        %v2811 = vpop.f32.mrb[0].mxu0
        %v2812 = vadd.f32 0.0, %v2811
        %v2813 = vpop.f32.mrb[0].mxu0
        %v2814 = vpop.f32.mrb[0].mxu0
        %v2815 = vadd.f32 0.0, %v2814
        %v2816 = vpop.f32.mrb[0].mxu0
        %2817 = vmatprep.mubr.bf16.mxu0 0
        %2818 = vmatmul.mubr.bf16.gmra.mrb[0].mxu0 %v2733
        %v2819 = vpop.f32.mrb[0].mxu0
        %v2820 = vadd.f32 0.0, %v2819
        %v2821 = vpop.f32.mrb[0].mxu0
        %v2822 = vpop.f32.mrb[0].mxu0
        %v2823 = vadd.f32 0.0, %v2822
        %v2824 = vpop.f32.mrb[0].mxu0
        %2825 = vmatprep.mubr.bf16.mxu0 0
        %2826 = vmatmul.mubr.bf16.gmra.mrb[0].mxu0 %v2736
        %v2827 = vpop.f32.mrb[0].mxu0
        %v2828 = vadd.f32 0.0, %v2827
        %v2829 = vpop.f32.mrb[0].mxu0
        %v2830 = vpop.f32.mrb[0].mxu0
        %v2831 = vadd.f32 0.0, %v2830
        %v2832 = vpop.f32.mrb[0].mxu0
        %2833 = vmatprep.mubr.bf16.mxu0 0
        %2834 = vmatmul.mubr.bf16.gmra.mrb[0].mxu0 %v2739
        %v2835 = vpop.f32.mrb[0].mxu0
        %v2836 = vadd.f32 0.0, %v2835
        %v2837 = vpop.f32.mrb[0].mxu0
        %v2838 = vpop.f32.mrb[0].mxu0
        %v2839 = vadd.f32 0.0, %v2838
        %v2840 = vpop.f32.mrb[0].mxu0
        %2841 = vmatprep.mubr.bf16.mxu0 0
        %2842 = vmatmul.mubr.bf16.gmra.mrb[0].mxu0 %v2742
        %v2843 = vpop.f32.mrb[0].mxu0
        %v2844 = vadd.f32 0.0, %v2843
        %v2845 = vpop.f32.mrb[0].mxu0
        %v2846 = vpop.f32.mrb[0].mxu0
        %v2847 = vadd.f32 0.0, %v2846
        %v2848 = vpop.f32.mrb[0].mxu0
        %2849 = vmatprep.mubr.bf16.mxu0 0
        %2850 = vmatmul.mubr.bf16.gmra.mrb[0].mxu0 %v2745
        %v2851 = vpop.f32.mrb[0].mxu0
        %v2852 = vadd.f32 0.0, %v2851
        %v2853 = vpop.f32.mrb[0].mxu0
        %v2854 = vpop.f32.mrb[0].mxu0
        %v2855 = vadd.f32 0.0, %v2854
        %v2856 = vpop.f32.mrb[0].mxu0
        %2857 = vmatprep.mubr.bf16.mxu0 0
        %2858 = vmatmul.mubr.bf16.gmra.mrb[0].mxu0 %v2748
        %v2859 = vpop.f32.mrb[0].mxu0
        %v2860 = vadd.f32 0.0, %v2859
        %v2861 = vpop.f32.mrb[0].mxu0
        %v2862 = vpop.f32.mrb[0].mxu0
        %v2863 = vadd.f32 0.0, %v2862
        %v2864 = vpop.f32.mrb[0].mxu0
        %2865 = vmatprep.mubr.bf16.mxu0 0
        %2866 = vmatmul.mubr.bf16.gmra.mrb[0].mxu0 %v2751
        %v2867 = vpop.f32.mrb[0].mxu0
        %v2868 = vadd.f32 0.0, %v2867
        %v2869 = vpop.f32.mrb[0].mxu0
        %v2870 = vpop.f32.mrb[0].mxu0
        %v2871 = vadd.f32 0.0, %v2870
        %v2872 = vpop.f32.mrb[0].mxu0
        %2873 = vmatprep.mubr.bf16.mxu0 0
        %2874 = vmatmul.mubr.bf16.gmra.mrb[0].mxu0 %v2754
        %v2875 = vpop.f32.mrb[0].mxu0
        %v2876 = vadd.f32 0.0, %v2875
        %v2877 = vpop.f32.mrb[0].mxu0
        %v2878 = vpop.f32.mrb[0].mxu0
        %v2879 = vadd.f32 0.0, %v2878
        %v2880 = vpop.f32.mrb[0].mxu0
        %2881 = vmatprep.mubr.bf16.mxu0 0
        %2882 = vmatmul.mubr.bf16.gmra.mrb[0].mxu0 %v2757
        %v2883 = vpop.f32.mrb[0].mxu0
        %v2884 = vadd.f32 0.0, %v2883
        %v2885 = vpop.f32.mrb[0].mxu0
        %v2886 = vpop.f32.mrb[0].mxu0
        %v2887 = vadd.f32 0.0, %v2886
        %v2888 = vpop.f32.mrb[0].mxu0
        %2889 = vmatprep.mubr.bf16.mxu0 0
        %2890 = vmatmul.mubr.bf16.gmra.mrb[0].mxu0 %v2760
        %v2891 = vpop.f32.mrb[0].mxu0
        %v2892 = vadd.f32 0.0, %v2891
        %v2893 = vpop.f32.mrb[0].mxu0
        %v2894 = vpop.f32.mrb[0].mxu0
        %v2895 = vadd.f32 0.0, %v2894
        %v2896 = vpop.f32.mrb[0].mxu0
        %2897 = vmatprep.mubr.bf16.mxu0 0
        %2898 = vmatmul.mubr.bf16.gmra.mrb[0].mxu0 %v2763
        %v2899 = vpop.f32.mrb[0].mxu0
        %v2900 = vadd.f32 0.0, %v2899
        %v2901 = vpop.f32.mrb[0].mxu0
        %v2902 = vpop.f32.mrb[0].mxu0
        %v2903 = vadd.f32 0.0, %v2902
        %v2904 = vpop.f32.mrb[0].mxu0
        %2905 = vmatprep.mubr.bf16.mxu0 0
        %2906 = vmatmul.mubr.bf16.gmra.mrb[0].mxu0 %v2766
        %v2907 = vpop.f32.mrb[0].mxu0
        %v2908 = vadd.f32 0.0, %v2907
        %v2909 = vpop.f32.mrb[0].mxu0
        %v2910 = vpop.f32.mrb[0].mxu0
        %v2911 = vadd.f32 0.0, %v2910
        %v2912 = vpop.f32.mrb[0].mxu0
        %2913 = vmatprep.mubr.bf16.mxu0 0
        %2914 = vmatmul.mubr.bf16.gmra.mrb[0].mxu0 %v2769
        %v2915 = vpop.f32.mrb[0].mxu0
        %v2916 = vadd.f32 0.0, %v2915
        %v2917 = vpop.f32.mrb[0].mxu0
        %v2918 = vpop.f32.mrb[0].mxu0
        %v2919 = vadd.f32 0.0, %v2918
        %v2920 = vpop.f32.mrb[0].mxu0
        %2921 = vmatprep.mubr.bf16.mxu0 0
        %2922 = vmatmul.mubr.bf16.gmra.mrb[0].mxu0 %v2772
        %v2923 = vpop.f32.mrb[0].mxu0
        %v2924 = vadd.f32 0.0, %v2923
        %v2925 = vpop.f32.mrb[0].mxu0
        %v2926 = vpop.f32.mrb[0].mxu0
        %v2927 = vadd.f32 0.0, %v2926
        %v2928 = vpop.f32.mrb[0].mxu0
        %2929 = vmatprep.mubr.bf16.mxu0 0
        %2930 = vmatmul.mubr.bf16.gmra.mrb[0].mxu0 %v2775
        %v2931 = vpop.f32.mrb[0].mxu0
        %v2932 = vadd.f32 0.0, %v2931
        %v2933 = vpop.f32.mrb[0].mxu0
        %v2934 = vpop.f32.mrb[0].mxu0
        %v2935 = vadd.f32 0.0, %v2934
        %v2936 = vpop.f32.mrb[0].mxu0
        %2937 = vdwg.mxu0
        %v2938 = vadd.f32 %v2632, %v2812
        %v2939 = vadd.f32 %v2633, %v2815
        %v2940 = vadd.f32 %v2634, %v2820
        %v2941 = vadd.f32 %v2635, %v2823
        %v2942 = vadd.f32 %v2636, %v2828
        %v2943 = vadd.f32 %v2637, %v2831
        %v2944 = vadd.f32 %v2638, %v2836
        %v2945 = vadd.f32 %v2639, %v2839
        %v2946 = vadd.f32 %v2640, %v2844
        %v2947 = vadd.f32 %v2641, %v2847
        %v2948 = vadd.f32 %v2642, %v2852
        %v2949 = vadd.f32 %v2643, %v2855
        %v2950 = vadd.f32 %v2644, %v2860
        %v2951 = vadd.f32 %v2645, %v2863
        %v2952 = vadd.f32 %v2646, %v2868
        %v2953 = vadd.f32 %v2647, %v2871
        %v2954 = vadd.f32 %v2648, %v2876
        %v2955 = vadd.f32 %v2649, %v2879
        %v2956 = vadd.f32 %v2650, %v2884
        %v2957 = vadd.f32 %v2651, %v2887
        %v2958 = vadd.f32 %v2652, %v2892
        %v2959 = vadd.f32 %v2653, %v2895
        %v2960 = vadd.f32 %v2654, %v2900
        %v2961 = vadd.f32 %v2655, %v2903
        %v2962 = vadd.f32 %v2656, %v2908
        %v2963 = vadd.f32 %v2657, %v2911
        %v2964 = vadd.f32 %v2658, %v2916
        %v2965 = vadd.f32 %v2659, %v2919
        %v2966 = vadd.f32 %v2660, %v2924
        %v2967 = vadd.f32 %v2661, %v2927
        %v2968 = vadd.f32 %v2662, %v2932
        %v2969 = vadd.f32 %v2663, %v2935
        %v2970 = vld [vmem:[%s2] sm:$0x1]
        %v2972 = vlaneseq
        %v2973 = vshrl.u32 %v2972, 7
        %v2974 = vsub.s32 0, %v2973
        %v2975 = vrot.slane %v2970, %v2974
        %v2977 = vmul.f32 %v2938, %v2975
        %v2978 = vmul.f32 %v2939, %v2975
        %v2979 = vmul.f32 %v2940, %v2975
        %v2980 = vmul.f32 %v2941, %v2975
        %v2981 = vmul.f32 %v2942, %v2975
        %v2982 = vmul.f32 %v2943, %v2975
        %v2983 = vmul.f32 %v2944, %v2975
        %v2984 = vmul.f32 %v2945, %v2975
        %v2985 = vmul.f32 %v2946, %v2975
        %v2986 = vmul.f32 %v2947, %v2975
        %v2987 = vmul.f32 %v2948, %v2975
        %v2988 = vmul.f32 %v2949, %v2975
        %v2989 = vmul.f32 %v2950, %v2975
        %v2990 = vmul.f32 %v2951, %v2975
        %v2991 = vmul.f32 %v2952, %v2975
        %v2992 = vmul.f32 %v2953, %v2975
        %v2993 = vmul.f32 %v2954, %v2975
        %v2994 = vmul.f32 %v2955, %v2975
        %v2995 = vmul.f32 %v2956, %v2975
        %v2996 = vmul.f32 %v2957, %v2975
        %v2997 = vmul.f32 %v2958, %v2975
        %v2998 = vmul.f32 %v2959, %v2975
        %v2999 = vmul.f32 %v2960, %v2975
        %v3000 = vmul.f32 %v2961, %v2975
        %v3001 = vmul.f32 %v2962, %v2975
        %v3002 = vmul.f32 %v2963, %v2975
        %v3003 = vmul.f32 %v2964, %v2975
        %v3004 = vmul.f32 %v2965, %v2975
        %v3005 = vmul.f32 %v2966, %v2975
        %v3006 = vmul.f32 %v2967, %v2975
        %v3007 = vmul.f32 %v2968, %v2975
        %v3008 = vmul.f32 %v2969, %v2975
        %v3009 = vld [vmem:[%s3] sm:$0x1]
        %v3011 = vlaneseq
        %v3012 = vshrl.u32 %v3011, 7
        %v3013 = vsub.s32 0, %v3012
        %v3014 = vrot.slane %v3009, %v3013
        %v3016 = vadd.f32 %v2977, %v3014
        %v3017 = vadd.f32 %v2978, %v3014
        %v3018 = vadd.f32 %v2979, %v3014
        %v3019 = vadd.f32 %v2980, %v3014
        %v3020 = vadd.f32 %v2981, %v3014
        %v3021 = vadd.f32 %v2982, %v3014
        %v3022 = vadd.f32 %v2983, %v3014
        %v3023 = vadd.f32 %v2984, %v3014
        %v3024 = vadd.f32 %v2985, %v3014
        %v3025 = vadd.f32 %v2986, %v3014
        %v3026 = vadd.f32 %v2987, %v3014
        %v3027 = vadd.f32 %v2988, %v3014
        %v3028 = vadd.f32 %v2989, %v3014
        %v3029 = vadd.f32 %v2990, %v3014
        %v3030 = vadd.f32 %v2991, %v3014
        %v3031 = vadd.f32 %v2992, %v3014
        %v3032 = vadd.f32 %v2993, %v3014
        %v3033 = vadd.f32 %v2994, %v3014
        %v3034 = vadd.f32 %v2995, %v3014
        %v3035 = vadd.f32 %v2996, %v3014
        %v3036 = vadd.f32 %v2997, %v3014
        %v3037 = vadd.f32 %v2998, %v3014
        %v3038 = vadd.f32 %v2999, %v3014
        %v3039 = vadd.f32 %v3000, %v3014
        %v3040 = vadd.f32 %v3001, %v3014
        %v3041 = vadd.f32 %v3002, %v3014
        %v3042 = vadd.f32 %v3003, %v3014
        %v3043 = vadd.f32 %v3004, %v3014
        %v3044 = vadd.f32 %v3005, %v3014
        %v3045 = vadd.f32 %v3006, %v3014
        %v3046 = vadd.f32 %v3007, %v3014
        %v3047 = vadd.f32 %v3008, %v3014
        %v3048 = vmax.f32 %v3016, 0.0
        %v3049 = vmax.f32 %v3017, 0.0
        %v3050 = vmax.f32 %v3018, 0.0
        %v3051 = vmax.f32 %v3019, 0.0
        %v3052 = vmax.f32 %v3020, 0.0
        %v3053 = vmax.f32 %v3021, 0.0
        %v3054 = vmax.f32 %v3022, 0.0
        %v3055 = vmax.f32 %v3023, 0.0
        %v3056 = vmax.f32 %v3024, 0.0
        %v3057 = vmax.f32 %v3025, 0.0
        %v3058 = vmax.f32 %v3026, 0.0
        %v3059 = vmax.f32 %v3027, 0.0
        %v3060 = vmax.f32 %v3028, 0.0
        %v3061 = vmax.f32 %v3029, 0.0
        %v3062 = vmax.f32 %v3030, 0.0
        %v3063 = vmax.f32 %v3031, 0.0
        %v3064 = vmax.f32 %v3032, 0.0
        %v3065 = vmax.f32 %v3033, 0.0
        %v3066 = vmax.f32 %v3034, 0.0
        %v3067 = vmax.f32 %v3035, 0.0
        %v3068 = vmax.f32 %v3036, 0.0
        %v3069 = vmax.f32 %v3037, 0.0
        %v3070 = vmax.f32 %v3038, 0.0
        %v3071 = vmax.f32 %v3039, 0.0
        %v3072 = vmax.f32 %v3040, 0.0
        %v3073 = vmax.f32 %v3041, 0.0
        %v3074 = vmax.f32 %v3042, 0.0
        %v3075 = vmax.f32 %v3043, 0.0
        %v3076 = vmax.f32 %v3044, 0.0
        %v3077 = vmax.f32 %v3045, 0.0
        %v3078 = vmax.f32 %v3046, 0.0
        %v3079 = vmax.f32 %v3047, 0.0
        %vm3080 = vcmask 257024
        %3081 = vst.msk [vmem:[#allocation2] sm:$0xf] %vm3080, 0
        %3082 = vst.msk [vmem:[#allocation2 + $0x4] sm:$0xf] %vm3080, 0
        %vm3083 = vcmask 253952
        %3084 = vst.msk [vmem:[#allocation2 + $0x8] sm:$0x1] %vm3083, 0
        %3085 = vst.msk [vmem:[#allocation2 + $0xc] sm:$0xf] %vm3080, 0
        %3086 = vst.msk [vmem:[#allocation2 + $0x10] sm:$0xf] %vm3080, 0
        %3087 = vst.msk [vmem:[#allocation2 + $0x14] sm:$0x1] %vm3083, 0
        %3088 = vst.msk [vmem:[#allocation2 + $0x18] sm:$0xf] %vm3080, 0
        %3089 = vst.msk [vmem:[#allocation2 + $0x1c] sm:$0xf] %vm3080, 0
        %3090 = vst.msk [vmem:[#allocation2 + $0x20] sm:$0x1] %vm3083, 0
        %3091 = vst.msk [vmem:[#allocation2 + $0x24] sm:$0xf] %vm3080, 0
        %3092 = vst.msk [vmem:[#allocation2 + $0x28] sm:$0xf] %vm3080, 0
        %3093 = vst.msk [vmem:[#allocation2 + $0x2c] sm:$0x1] %vm3083, 0
        %3094 = vst.msk [vmem:[#allocation2 + $0x30] sm:$0xf] %vm3080, 0
        %3095 = vst.msk [vmem:[#allocation2 + $0x34] sm:$0xf] %vm3080, 0
        %3096 = vst.msk [vmem:[#allocation2 + $0x38] sm:$0x1] %vm3083, 0
        %3097 = vst.msk [vmem:[#allocation2 + $0x3c] sm:$0xf] %vm3080, 0
        %3098 = vst.msk [vmem:[#allocation2 + $0x40] sm:$0xf] %vm3080, 0
        %3099 = vst.msk [vmem:[#allocation2 + $0x44] sm:$0x1] %vm3083, 0
        %3100 = vst.msk [vmem:[#allocation2 + $0x48] sm:$0xf] %vm3080, 0
        %3101 = vst.msk [vmem:[#allocation2 + $0x4c] sm:$0xf] %vm3080, 0
        %3102 = vst.msk [vmem:[#allocation2 + $0x50] sm:$0x1] %vm3083, 0
        %3103 = vst.msk [vmem:[#allocation2 + $0x54] sm:$0xf] %vm3080, 0
        %3104 = vst.msk [vmem:[#allocation2 + $0x58] sm:$0xf] %vm3080, 0
        %3105 = vst.msk [vmem:[#allocation2 + $0x5c] sm:$0x1] %vm3083, 0
        %3106 = vst.msk [vmem:[#allocation2 + $0x60] sm:$0xf] %vm3080, 0
        %3107 = vst.msk [vmem:[#allocation2 + $0x64] sm:$0xf] %vm3080, 0
        %3108 = vst.msk [vmem:[#allocation2 + $0x68] sm:$0x1] %vm3083, 0
        %3109 = vst.msk [vmem:[#allocation2 + $0x6c] sm:$0xf] %vm3080, 0
        %3110 = vst.msk [vmem:[#allocation2 + $0x70] sm:$0xf] %vm3080, 0
        %3111 = vst.msk [vmem:[#allocation2 + $0x74] sm:$0x1] %vm3083, 0
        %3112 = vst.msk [vmem:[#allocation2 + $0x78] sm:$0xf] %vm3080, 0
        %3113 = vst.msk [vmem:[#allocation2 + $0x7c] sm:$0xf] %vm3080, 0
        %3114 = vst.msk [vmem:[#allocation2 + $0x80] sm:$0x1] %vm3083, 0
        %3115 = vst.msk [vmem:[#allocation2 + $0x84] sm:$0xf] %vm3080, 0
        %3116 = vst.msk [vmem:[#allocation2 + $0x88] sm:$0xf] %vm3080, 0
        %3117 = vst.msk [vmem:[#allocation2 + $0x8c] sm:$0x1] %vm3083, 0
        %3118 = vst.msk [vmem:[#allocation2 + $0x90] sm:$0xf] %vm3080, 0
        %3119 = vst.msk [vmem:[#allocation2 + $0x94] sm:$0xf] %vm3080, 0
        %3120 = vst.msk [vmem:[#allocation2 + $0x98] sm:$0x1] %vm3083, 0
        %3121 = vst.msk [vmem:[#allocation2 + $0x9c] sm:$0xf] %vm3080, 0
        %3122 = vst.msk [vmem:[#allocation2 + $0xa0] sm:$0xf] %vm3080, 0
        %3123 = vst.msk [vmem:[#allocation2 + $0xa4] sm:$0x1] %vm3083, 0
        %3124 = vst.msk [vmem:[#allocation2 + $0xa8] sm:$0xf] %vm3080, 0
        %3125 = vst.msk [vmem:[#allocation2 + $0xac] sm:$0xf] %vm3080, 0
        %3126 = vst.msk [vmem:[#allocation2 + $0xb0] sm:$0x1] %vm3083, 0
        %3127 = vst.msk [vmem:[#allocation2 + $0xb4] sm:$0xf] %vm3080, 0
        %3128 = vst.msk [vmem:[#allocation2 + $0xb8] sm:$0xf] %vm3080, 0
        %3129 = vst.msk [vmem:[#allocation2 + $0xbc] sm:$0x1] %vm3083, 0
        %3130 = vst.msk [vmem:[#allocation2 + $0xc0] sm:$0xf] %vm3080, 0
        %3131 = vst.msk [vmem:[#allocation2 + $0xc4] sm:$0xf] %vm3080, 0
        %3132 = vst.msk [vmem:[#allocation2 + $0xc8] sm:$0x1] %vm3083, 0
        %3133 = vst.msk [vmem:[#allocation2 + $0xcc] sm:$0xf] %vm3080, 0
        %3134 = vst.msk [vmem:[#allocation2 + $0xd0] sm:$0xf] %vm3080, 0
        %3135 = vst.msk [vmem:[#allocation2 + $0xd4] sm:$0x1] %vm3083, 0
        %v3136 = vpack.c.bf16 %v3049, %v3048
        %v3137 = vpack.c.bf16 %v3051, %v3050
        %v3138 = vpack.c.bf16 %v3053, %v3052
        %v3139 = vpack.c.bf16 %v3055, %v3054
        %v3140 = vpack.c.bf16 %v3057, %v3056
        %v3141 = vpack.c.bf16 %v3059, %v3058
        %v3142 = vpack.c.bf16 %v3061, %v3060
        %v3143 = vpack.c.bf16 %v3063, %v3062
        %v3144 = vpack.c.bf16 %v3065, %v3064
        %v3145 = vpack.c.bf16 %v3067, %v3066
        %v3146 = vpack.c.bf16 %v3069, %v3068
        %v3147 = vpack.c.bf16 %v3071, %v3070
        %v3148 = vpack.c.bf16 %v3073, %v3072
        %v3149 = vpack.c.bf16 %v3075, %v3074
        %v3150 = vpack.c.bf16 %v3077, %v3076
        %v3151 = vpack.c.bf16 %v3079, %v3078
        %v3168 = vunpack.c.l.b16 %v3136
        %v3169 = vunpack.c.h.b16 %v3136
        %v3170 = vunpack.c.l.b16 %v3137
        %v3171 = vunpack.c.h.b16 %v3137
        %v3172 = vunpack.c.l.b16 %v3138
        %v3173 = vunpack.c.h.b16 %v3138
        %v3174 = vunpack.c.l.b16 %v3139
        %v3175 = vunpack.c.h.b16 %v3139
        %v3176 = vunpack.c.l.b16 %v3140
        %v3177 = vunpack.c.h.b16 %v3140
        %v3178 = vunpack.c.l.b16 %v3141
        %v3179 = vunpack.c.h.b16 %v3141
        %v3180 = vunpack.c.l.b16 %v3142
        %v3181 = vunpack.c.h.b16 %v3142
        %v3182 = vunpack.c.l.b16 %v3143
        %v3183 = vunpack.c.h.b16 %v3143
        %v3184 = vunpack.c.l.b16 %v3144
        %v3185 = vunpack.c.h.b16 %v3144
        %v3186 = vunpack.c.l.b16 %v3145
        %v3187 = vunpack.c.h.b16 %v3145
        %v3188 = vunpack.c.l.b16 %v3146
        %v3189 = vunpack.c.h.b16 %v3146
        %v3190 = vunpack.c.l.b16 %v3147
        %v3191 = vunpack.c.h.b16 %v3147
        %v3192 = vunpack.c.l.b16 %v3148
        %v3193 = vunpack.c.h.b16 %v3148
        %v3194 = vunpack.c.l.b16 %v3149
        %v3195 = vunpack.c.h.b16 %v3149
        %v3196 = vunpack.c.l.b16 %v3150
        %v3197 = vunpack.c.h.b16 %v3150
        %v3198 = vunpack.c.l.b16 %v3151
        %v3199 = vunpack.c.h.b16 %v3151
        %v3200 = vpack.c.b16 %v3168, %v3168
        %v3201 = vpack.c.b16 %v3169, %v3169
        %v3202 = vpack.c.b16 %v3170, %v3170
        %v3203 = vpack.c.b16 %v3171, %v3171
        %v3204 = vpack.c.b16 %v3172, %v3172
        %v3205 = vpack.c.b16 %v3173, %v3173
        %v3206 = vpack.c.b16 %v3174, %v3174
        %v3207 = vpack.c.b16 %v3175, %v3175
        %v3208 = vpack.c.b16 %v3176, %v3176
        %v3209 = vpack.c.b16 %v3177, %v3177
        %v3210 = vpack.c.b16 %v3178, %v3178
        %v3211 = vpack.c.b16 %v3179, %v3179
        %v3212 = vpack.c.b16 %v3180, %v3180
        %v3213 = vpack.c.b16 %v3181, %v3181
        %v3214 = vpack.c.b16 %v3182, %v3182
        %v3215 = vpack.c.b16 %v3183, %v3183
        %v3216 = vpack.c.b16 %v3184, %v3184
        %v3217 = vpack.c.b16 %v3185, %v3185
        %v3218 = vpack.c.b16 %v3186, %v3186
        %v3219 = vpack.c.b16 %v3187, %v3187
        %v3220 = vpack.c.b16 %v3188, %v3188
        %v3221 = vpack.c.b16 %v3189, %v3189
        %v3222 = vpack.c.b16 %v3190, %v3190
        %v3223 = vpack.c.b16 %v3191, %v3191
        %v3224 = vpack.c.b16 %v3192, %v3192
        %v3225 = vpack.c.b16 %v3193, %v3193
        %v3226 = vpack.c.b16 %v3194, %v3194
        %v3227 = vpack.c.b16 %v3195, %v3195
        %v3228 = vpack.c.b16 %v3196, %v3196
        %v3229 = vpack.c.b16 %v3197, %v3197
        %v3230 = vpack.c.b16 %v3198, %v3198
        %v3231 = vpack.c.b16 %v3199, %v3199
        %vm3232 = vsmask.f32 256
        %vm3233 = vsmask.f32 4368
        %vm3234 = vmor %vm3232, %vm3233
        %v3236 = vshrl.u32 %v3200, 16
        %v3238 = vrot.slane %v3236, 7
        %v3239 = vshll.u32 %v3200, 16
        %v3241 = vor.u32 %v3238, %v3239
        %v3242 = vrot.slane %v3238, 4
        %v3244 = vshrl.u32 %v3201, 16
        %v3246 = vrot.slane %v3244, 7
        %v3247 = vshll.u32 %v3201, 16
        %v3249 = vor.u32 %v3246, %v3247
        %v3250 = vsel %vm3234, %v3242, %v3249
        %v3251 = vrot.slane %v3246, 4
        %v3253 = vshrl.u32 %v3202, 16
        %v3255 = vrot.slane %v3253, 7
        %v3256 = vshll.u32 %v3202, 16
        %v3258 = vor.u32 %v3255, %v3256
        %v3259 = vrot.slane %v3255, 4
        %v3261 = vshrl.u32 %v3203, 16
        %v3263 = vrot.slane %v3261, 7
        %v3264 = vshll.u32 %v3203, 16
        %v3266 = vor.u32 %v3263, %v3264
        %v3267 = vsel %vm3234, %v3259, %v3266
        %v3268 = vrot.slane %v3263, 4
        %v3270 = vshrl.u32 %v3204, 16
        %v3272 = vrot.slane %v3270, 7
        %v3273 = vshll.u32 %v3204, 16
        %v3275 = vor.u32 %v3272, %v3273
        %v3276 = vrot.slane %v3272, 4
        %v3278 = vshrl.u32 %v3205, 16
        %v3280 = vrot.slane %v3278, 7
        %v3281 = vshll.u32 %v3205, 16
        %v3283 = vor.u32 %v3280, %v3281
        %v3284 = vsel %vm3234, %v3276, %v3283
        %v3285 = vrot.slane %v3280, 4
        %v3287 = vshrl.u32 %v3206, 16
        %v3289 = vrot.slane %v3287, 7
        %v3290 = vshll.u32 %v3206, 16
        %v3292 = vor.u32 %v3289, %v3290
        %v3293 = vrot.slane %v3289, 4
        %v3295 = vshrl.u32 %v3207, 16
        %v3297 = vrot.slane %v3295, 7
        %v3298 = vshll.u32 %v3207, 16
        %v3300 = vor.u32 %v3297, %v3298
        %v3301 = vsel %vm3234, %v3293, %v3300
        %v3302 = vrot.slane %v3297, 4
        %v3304 = vshrl.u32 %v3208, 16
        %v3306 = vrot.slane %v3304, 7
        %v3307 = vshll.u32 %v3208, 16
        %v3309 = vor.u32 %v3306, %v3307
        %v3310 = vrot.slane %v3306, 4
        %v3312 = vshrl.u32 %v3209, 16
        %v3314 = vrot.slane %v3312, 7
        %v3315 = vshll.u32 %v3209, 16
        %v3317 = vor.u32 %v3314, %v3315
        %v3318 = vsel %vm3234, %v3310, %v3317
        %v3319 = vrot.slane %v3314, 4
        %v3321 = vshrl.u32 %v3210, 16
        %v3323 = vrot.slane %v3321, 7
        %v3324 = vshll.u32 %v3210, 16
        %v3326 = vor.u32 %v3323, %v3324
        %v3327 = vrot.slane %v3323, 4
        %v3329 = vshrl.u32 %v3211, 16
        %v3331 = vrot.slane %v3329, 7
        %v3332 = vshll.u32 %v3211, 16
        %v3334 = vor.u32 %v3331, %v3332
        %v3335 = vsel %vm3234, %v3327, %v3334
        %v3336 = vrot.slane %v3331, 4
        %v3338 = vshrl.u32 %v3212, 16
        %v3340 = vrot.slane %v3338, 7
        %v3341 = vshll.u32 %v3212, 16
        %v3343 = vor.u32 %v3340, %v3341
        %v3344 = vrot.slane %v3340, 4
        %v3346 = vshrl.u32 %v3213, 16
        %v3348 = vrot.slane %v3346, 7
        %v3349 = vshll.u32 %v3213, 16
        %v3351 = vor.u32 %v3348, %v3349
        %v3352 = vsel %vm3234, %v3344, %v3351
        %v3353 = vrot.slane %v3348, 4
        %v3355 = vshrl.u32 %v3214, 16
        %v3357 = vrot.slane %v3355, 7
        %v3358 = vshll.u32 %v3214, 16
        %v3360 = vor.u32 %v3357, %v3358
        %v3361 = vrot.slane %v3357, 4
        %v3363 = vshrl.u32 %v3215, 16
        %v3365 = vrot.slane %v3363, 7
        %v3366 = vshll.u32 %v3215, 16
        %v3368 = vor.u32 %v3365, %v3366
        %v3369 = vsel %vm3234, %v3361, %v3368
        %v3370 = vrot.slane %v3365, 4
        %v3372 = vshrl.u32 %v3216, 16
        %v3374 = vrot.slane %v3372, 7
        %v3375 = vshll.u32 %v3216, 16
        %v3377 = vor.u32 %v3374, %v3375
        %v3378 = vrot.slane %v3374, 4
        %v3380 = vshrl.u32 %v3217, 16
        %v3382 = vrot.slane %v3380, 7
        %v3383 = vshll.u32 %v3217, 16
        %v3385 = vor.u32 %v3382, %v3383
        %v3386 = vsel %vm3234, %v3378, %v3385
        %v3387 = vrot.slane %v3382, 4
        %v3389 = vshrl.u32 %v3218, 16
        %v3391 = vrot.slane %v3389, 7
        %v3392 = vshll.u32 %v3218, 16
        %v3394 = vor.u32 %v3391, %v3392
        %v3395 = vrot.slane %v3391, 4
        %v3397 = vshrl.u32 %v3219, 16
        %v3399 = vrot.slane %v3397, 7
        %v3400 = vshll.u32 %v3219, 16
        %v3402 = vor.u32 %v3399, %v3400
        %v3403 = vsel %vm3234, %v3395, %v3402
        %v3404 = vrot.slane %v3399, 4
        %v3406 = vshrl.u32 %v3220, 16
        %v3408 = vrot.slane %v3406, 7
        %v3409 = vshll.u32 %v3220, 16
        %v3411 = vor.u32 %v3408, %v3409
        %v3412 = vrot.slane %v3408, 4
        %v3414 = vshrl.u32 %v3221, 16
        %v3416 = vrot.slane %v3414, 7
        %v3417 = vshll.u32 %v3221, 16
        %v3419 = vor.u32 %v3416, %v3417
        %v3420 = vsel %vm3234, %v3412, %v3419
        %v3421 = vrot.slane %v3416, 4
        %v3423 = vshrl.u32 %v3222, 16
        %v3425 = vrot.slane %v3423, 7
        %v3426 = vshll.u32 %v3222, 16
        %v3428 = vor.u32 %v3425, %v3426
        %v3429 = vrot.slane %v3425, 4
        %v3431 = vshrl.u32 %v3223, 16
        %v3433 = vrot.slane %v3431, 7
        %v3434 = vshll.u32 %v3223, 16
        %v3436 = vor.u32 %v3433, %v3434
        %v3437 = vsel %vm3234, %v3429, %v3436
        %v3438 = vrot.slane %v3433, 4
        %v3440 = vshrl.u32 %v3224, 16
        %v3442 = vrot.slane %v3440, 7
        %v3443 = vshll.u32 %v3224, 16
        %v3445 = vor.u32 %v3442, %v3443
        %v3446 = vrot.slane %v3442, 4
        %v3448 = vshrl.u32 %v3225, 16
        %v3450 = vrot.slane %v3448, 7
        %v3451 = vshll.u32 %v3225, 16
        %v3453 = vor.u32 %v3450, %v3451
        %v3454 = vsel %vm3234, %v3446, %v3453
        %v3455 = vrot.slane %v3450, 4
        %v3457 = vshrl.u32 %v3226, 16
        %v3459 = vrot.slane %v3457, 7
        %v3460 = vshll.u32 %v3226, 16
        %v3462 = vor.u32 %v3459, %v3460
        %v3463 = vrot.slane %v3459, 4
        %v3465 = vshrl.u32 %v3227, 16
        %v3467 = vrot.slane %v3465, 7
        %v3468 = vshll.u32 %v3227, 16
        %v3470 = vor.u32 %v3467, %v3468
        %v3471 = vsel %vm3234, %v3463, %v3470
        %v3472 = vrot.slane %v3467, 4
        %v3474 = vshrl.u32 %v3228, 16
        %v3476 = vrot.slane %v3474, 7
        %v3477 = vshll.u32 %v3228, 16
        %v3479 = vor.u32 %v3476, %v3477
        %v3480 = vrot.slane %v3476, 4
        %v3482 = vshrl.u32 %v3229, 16
        %v3484 = vrot.slane %v3482, 7
        %v3485 = vshll.u32 %v3229, 16
        %v3487 = vor.u32 %v3484, %v3485
        %v3488 = vsel %vm3234, %v3480, %v3487
        %v3489 = vrot.slane %v3484, 4
        %v3491 = vshrl.u32 %v3230, 16
        %v3493 = vrot.slane %v3491, 7
        %v3494 = vshll.u32 %v3230, 16
        %v3496 = vor.u32 %v3493, %v3494
        %v3497 = vrot.slane %v3493, 4
        %v3499 = vshrl.u32 %v3231, 16
        %v3501 = vrot.slane %v3499, 7
        %v3502 = vshll.u32 %v3231, 16
        %v3504 = vor.u32 %v3501, %v3502
        %v3505 = vsel %vm3234, %v3497, %v3504
        %v3506 = vrot.slane %v3501, 4
        %s3555 = scalar_lea.vmem [#allocation2], 12
        %vm3556 = vcmask 257024
        %vm3557 = vsmask.f32 7938
        %vm3558 = vmand %vm3556, %vm3557
        %v3559 = vld [vmem:[%s3555] sm:$0xf]
        %v3560 = vsel %vm3558, %v3241, %v3559
        %3561 = vst [vmem:[%s3555] sm:$0xf] %v3560
        %3562 = vst.msk [vmem:[%s3555 + $0x4] sm:$0xf] %vm3080, %v3250
        %vm3563 = vcmask 253952
        %vm3564 = vmand %vm3563, %vm3232
        %v3565 = vld [vmem:[%s3555 + $0x8] sm:$0x1]
        %v3566 = vsel %vm3564, %v3251, %v3565
        %3567 = vst [vmem:[%s3555 + $0x8] sm:$0x1] %v3566
        %v3568 = vld [vmem:[%s3555 + $0xc] sm:$0xf]
        %v3569 = vsel %vm3558, %v3258, %v3568
        %3570 = vst [vmem:[%s3555 + $0xc] sm:$0xf] %v3569
        %3571 = vst.msk [vmem:[%s3555 + $0x10] sm:$0xf] %vm3080, %v3267
        %v3572 = vld [vmem:[%s3555 + $0x14] sm:$0x1]
        %v3573 = vsel %vm3564, %v3268, %v3572
        %3574 = vst [vmem:[%s3555 + $0x14] sm:$0x1] %v3573
        %v3575 = vld [vmem:[%s3555 + $0x18] sm:$0xf]
        %v3576 = vsel %vm3558, %v3275, %v3575
        %3577 = vst [vmem:[%s3555 + $0x18] sm:$0xf] %v3576
        %3578 = vst.msk [vmem:[%s3555 + $0x1c] sm:$0xf] %vm3080, %v3284
        %v3579 = vld [vmem:[%s3555 + $0x20] sm:$0x1]
        %v3580 = vsel %vm3564, %v3285, %v3579
        %3581 = vst [vmem:[%s3555 + $0x20] sm:$0x1] %v3580
        %v3582 = vld [vmem:[%s3555 + $0x24] sm:$0xf]
        %v3583 = vsel %vm3558, %v3292, %v3582
        %3584 = vst [vmem:[%s3555 + $0x24] sm:$0xf] %v3583
        %3585 = vst.msk [vmem:[%s3555 + $0x28] sm:$0xf] %vm3080, %v3301
        %v3586 = vld [vmem:[%s3555 + $0x2c] sm:$0x1]
        %v3587 = vsel %vm3564, %v3302, %v3586
        %3588 = vst [vmem:[%s3555 + $0x2c] sm:$0x1] %v3587
        %v3589 = vld [vmem:[%s3555 + $0x30] sm:$0xf]
        %v3590 = vsel %vm3558, %v3309, %v3589
        %3591 = vst [vmem:[%s3555 + $0x30] sm:$0xf] %v3590
        %3592 = vst.msk [vmem:[%s3555 + $0x34] sm:$0xf] %vm3080, %v3318
        %v3593 = vld [vmem:[%s3555 + $0x38] sm:$0x1]
        %v3594 = vsel %vm3564, %v3319, %v3593
        %3595 = vst [vmem:[%s3555 + $0x38] sm:$0x1] %v3594
        %v3596 = vld [vmem:[%s3555 + $0x3c] sm:$0xf]
        %v3597 = vsel %vm3558, %v3326, %v3596
        %3598 = vst [vmem:[%s3555 + $0x3c] sm:$0xf] %v3597
        %3599 = vst.msk [vmem:[%s3555 + $0x40] sm:$0xf] %vm3080, %v3335
        %v3600 = vld [vmem:[%s3555 + $0x44] sm:$0x1]
        %v3601 = vsel %vm3564, %v3336, %v3600
        %3602 = vst [vmem:[%s3555 + $0x44] sm:$0x1] %v3601
        %v3603 = vld [vmem:[%s3555 + $0x48] sm:$0xf]
        %v3604 = vsel %vm3558, %v3343, %v3603
        %3605 = vst [vmem:[%s3555 + $0x48] sm:$0xf] %v3604
        %3606 = vst.msk [vmem:[%s3555 + $0x4c] sm:$0xf] %vm3080, %v3352
        %v3607 = vld [vmem:[%s3555 + $0x50] sm:$0x1]
        %v3608 = vsel %vm3564, %v3353, %v3607
        %3609 = vst [vmem:[%s3555 + $0x50] sm:$0x1] %v3608
        %v3610 = vld [vmem:[%s3555 + $0x54] sm:$0xf]
        %v3611 = vsel %vm3558, %v3360, %v3610
        %3612 = vst [vmem:[%s3555 + $0x54] sm:$0xf] %v3611
        %3613 = vst.msk [vmem:[%s3555 + $0x58] sm:$0xf] %vm3080, %v3369
        %v3614 = vld [vmem:[%s3555 + $0x5c] sm:$0x1]
        %v3615 = vsel %vm3564, %v3370, %v3614
        %3616 = vst [vmem:[%s3555 + $0x5c] sm:$0x1] %v3615
        %v3617 = vld [vmem:[%s3555 + $0x60] sm:$0xf]
        %v3618 = vsel %vm3558, %v3377, %v3617
        %3619 = vst [vmem:[%s3555 + $0x60] sm:$0xf] %v3618
        %3620 = vst.msk [vmem:[%s3555 + $0x64] sm:$0xf] %vm3080, %v3386
        %v3621 = vld [vmem:[%s3555 + $0x68] sm:$0x1]
        %v3622 = vsel %vm3564, %v3387, %v3621
        %3623 = vst [vmem:[%s3555 + $0x68] sm:$0x1] %v3622
        %v3624 = vld [vmem:[%s3555 + $0x6c] sm:$0xf]
        %v3625 = vsel %vm3558, %v3394, %v3624
        %3626 = vst [vmem:[%s3555 + $0x6c] sm:$0xf] %v3625
        %3627 = vst.msk [vmem:[%s3555 + $0x70] sm:$0xf] %vm3080, %v3403
        %v3628 = vld [vmem:[%s3555 + $0x74] sm:$0x1]
        %v3629 = vsel %vm3564, %v3404, %v3628
        %3630 = vst [vmem:[%s3555 + $0x74] sm:$0x1] %v3629
        %v3631 = vld [vmem:[%s3555 + $0x78] sm:$0xf]
        %v3632 = vsel %vm3558, %v3411, %v3631
        %3633 = vst [vmem:[%s3555 + $0x78] sm:$0xf] %v3632
        %3634 = vst.msk [vmem:[%s3555 + $0x7c] sm:$0xf] %vm3080, %v3420
        %v3635 = vld [vmem:[%s3555 + $0x80] sm:$0x1]
        %v3636 = vsel %vm3564, %v3421, %v3635
        %3637 = vst [vmem:[%s3555 + $0x80] sm:$0x1] %v3636
        %v3638 = vld [vmem:[%s3555 + $0x84] sm:$0xf]
        %v3639 = vsel %vm3558, %v3428, %v3638
        %3640 = vst [vmem:[%s3555 + $0x84] sm:$0xf] %v3639
        %3641 = vst.msk [vmem:[%s3555 + $0x88] sm:$0xf] %vm3080, %v3437
        %v3642 = vld [vmem:[%s3555 + $0x8c] sm:$0x1]
        %v3643 = vsel %vm3564, %v3438, %v3642
        %3644 = vst [vmem:[%s3555 + $0x8c] sm:$0x1] %v3643
        %v3645 = vld [vmem:[%s3555 + $0x90] sm:$0xf]
        %v3646 = vsel %vm3558, %v3445, %v3645
        %3647 = vst [vmem:[%s3555 + $0x90] sm:$0xf] %v3646
        %3648 = vst.msk [vmem:[%s3555 + $0x94] sm:$0xf] %vm3080, %v3454
        %v3649 = vld [vmem:[%s3555 + $0x98] sm:$0x1]
        %v3650 = vsel %vm3564, %v3455, %v3649
        %3651 = vst [vmem:[%s3555 + $0x98] sm:$0x1] %v3650
        %v3652 = vld [vmem:[%s3555 + $0x9c] sm:$0xf]
        %v3653 = vsel %vm3558, %v3462, %v3652
        %3654 = vst [vmem:[%s3555 + $0x9c] sm:$0xf] %v3653
        %3655 = vst.msk [vmem:[%s3555 + $0xa0] sm:$0xf] %vm3080, %v3471
        %v3656 = vld [vmem:[%s3555 + $0xa4] sm:$0x1]
        %v3657 = vsel %vm3564, %v3472, %v3656
        %3658 = vst [vmem:[%s3555 + $0xa4] sm:$0x1] %v3657
        %v3659 = vld [vmem:[%s3555 + $0xa8] sm:$0xf]
        %v3660 = vsel %vm3558, %v3479, %v3659
        %3661 = vst [vmem:[%s3555 + $0xa8] sm:$0xf] %v3660
        %3662 = vst.msk [vmem:[%s3555 + $0xac] sm:$0xf] %vm3080, %v3488
        %v3663 = vld [vmem:[%s3555 + $0xb0] sm:$0x1]
        %v3664 = vsel %vm3564, %v3489, %v3663
        %3665 = vst [vmem:[%s3555 + $0xb0] sm:$0x1] %v3664
        %v3666 = vld [vmem:[%s3555 + $0xb4] sm:$0xf]
        %v3667 = vsel %vm3558, %v3496, %v3666
        %3668 = vst [vmem:[%s3555 + $0xb4] sm:$0xf] %v3667
        %3669 = vst.msk [vmem:[%s3555 + $0xb8] sm:$0xf] %vm3080, %v3505
        %v3670 = vld [vmem:[%s3555 + $0xbc] sm:$0x1]
        %v3671 = vsel %vm3564, %v3506, %v3670
        %3672 = vst [vmem:[%s3555 + $0xbc] sm:$0x1] %v3671
        %v3673 = vld [vmem:[#allocation2] sm:$0xf]
        %v3674 = vld [vmem:[#allocation2 + $0x4] sm:$0xf]
        %v3675 = vld [vmem:[#allocation2 + $0xc] sm:$0xf]
        %v3676 = vld [vmem:[#allocation2 + $0x10] sm:$0xf]
        %v3677 = vld [vmem:[#allocation2 + $0x18] sm:$0xf]
        %v3678 = vld [vmem:[#allocation2 + $0x1c] sm:$0xf]
        %v3679 = vld [vmem:[#allocation2 + $0x24] sm:$0xf]
        %v3680 = vld [vmem:[#allocation2 + $0x28] sm:$0xf]
        %v3681 = vld [vmem:[#allocation2 + $0x30] sm:$0xf]
        %v3682 = vld [vmem:[#allocation2 + $0x34] sm:$0xf]
        %v3683 = vld [vmem:[#allocation2 + $0x3c] sm:$0xf]
        %v3684 = vld [vmem:[#allocation2 + $0x40] sm:$0xf]
        %v3685 = vld [vmem:[#allocation2 + $0x48] sm:$0xf]
        %v3686 = vld [vmem:[#allocation2 + $0x4c] sm:$0xf]
        %v3687 = vld [vmem:[#allocation2 + $0x54] sm:$0xf]
        %v3688 = vld [vmem:[#allocation2 + $0x58] sm:$0xf]
        %v3689 = vld [vmem:[#allocation2 + $0x60] sm:$0xf]
        %v3690 = vld [vmem:[#allocation2 + $0x64] sm:$0xf]
        %v3691 = vld [vmem:[#allocation2 + $0x6c] sm:$0xf]
        %v3692 = vld [vmem:[#allocation2 + $0x70] sm:$0xf]
        %v3693 = vld [vmem:[#allocation2 + $0x78] sm:$0xf]
        %v3694 = vld [vmem:[#allocation2 + $0x7c] sm:$0xf]
        %v3695 = vld [vmem:[#allocation2 + $0x84] sm:$0xf]
        %v3696 = vld [vmem:[#allocation2 + $0x88] sm:$0xf]
        %v3697 = vld [vmem:[#allocation2 + $0x90] sm:$0xf]
        %v3698 = vld [vmem:[#allocation2 + $0x94] sm:$0xf]
        %v3699 = vld [vmem:[#allocation2 + $0x9c] sm:$0xf]
        %v3700 = vld [vmem:[#allocation2 + $0xa0] sm:$0xf]
        %v3701 = vld [vmem:[#allocation2 + $0xa8] sm:$0xf]
        %v3702 = vld [vmem:[#allocation2 + $0xac] sm:$0xf]
        %v3703 = vld [vmem:[#allocation2 + $0xb4] sm:$0xf]
        %v3704 = vld [vmem:[#allocation2 + $0xb8] sm:$0xf]
        %v3705 = vld [vmem:[%s4] sm:$0xf]
        %v3706 = vld [vmem:[%s4 + $0x4] sm:$0xf]
        %v3707 = vld [vmem:[%s4 + $0x8] sm:$0xf]
        %v3708 = vld [vmem:[%s4 + $0xc] sm:$0xf]
        %v3709 = vld [vmem:[#allocation2 + $0x8] sm:$0x1]
        %v3710 = vld [vmem:[#allocation2 + $0x14] sm:$0x1]
        %v3711 = vld [vmem:[#allocation2 + $0x20] sm:$0x1]
        %v3712 = vld [vmem:[#allocation2 + $0x2c] sm:$0x1]
        %v3713 = vld [vmem:[#allocation2 + $0x38] sm:$0x1]
        %v3714 = vld [vmem:[#allocation2 + $0x44] sm:$0x1]
        %v3715 = vld [vmem:[#allocation2 + $0x50] sm:$0x1]
        %v3716 = vld [vmem:[#allocation2 + $0x5c] sm:$0x1]
        %v3717 = vld [vmem:[#allocation2 + $0x68] sm:$0x1]
        %v3718 = vld [vmem:[#allocation2 + $0x74] sm:$0x1]
        %v3719 = vld [vmem:[#allocation2 + $0x80] sm:$0x1]
        %v3720 = vld [vmem:[#allocation2 + $0x8c] sm:$0x1]
        %v3721 = vld [vmem:[#allocation2 + $0x98] sm:$0x1]
        %v3722 = vld [vmem:[#allocation2 + $0xa4] sm:$0x1]
        %v3723 = vld [vmem:[#allocation2 + $0xb0] sm:$0x1]
        %v3724 = vld [vmem:[#allocation2 + $0xbc] sm:$0x1]
        %vm3725 = vsmask.f32 3328
        %vm3726 = vsmask.f32 7440
        %vm3727 = vmor %vm3725, %vm3726
        %v3729 = vshrl.u32 %v3673, 16
        %v3731 = vrot.slane %v3729, 4
        %v3732 = vshll.u32 %v3673, 16
        %v3734 = vrot.slane %v3732, 5
        %v3735 = vor.u32 %v3731, %v3734
        %v3736 = vrot.slane %v3735, 4
        %v3738 = vshll.u32 %v3674, 16
        %v3740 = vrot.slane %v3738, 5
        %v3741 = vsel %vm3727, %v3736, %v3740
        %v3742 = vshrl.u32 %v3674, 16
        %v3744 = vrot.slane %v3742, 4
        %v3745 = vor.u32 %v3744, %v3740
        %v3746 = vrot.slane %v3745, 4
        %v3748 = vshll.u32 %v3709, 16
        %v3750 = vrot.slane %v3748, 5
        %v3751 = vsel %vm3727, %v3746, %v3750
        %v3753 = vshrl.u32 %v3675, 16
        %v3755 = vrot.slane %v3753, 4
        %v3756 = vshll.u32 %v3675, 16
        %v3758 = vrot.slane %v3756, 5
        %v3759 = vor.u32 %v3755, %v3758
        %v3760 = vrot.slane %v3759, 4
        %v3762 = vshll.u32 %v3676, 16
        %v3764 = vrot.slane %v3762, 5
        %v3765 = vsel %vm3727, %v3760, %v3764
        %v3766 = vshrl.u32 %v3676, 16
        %v3768 = vrot.slane %v3766, 4
        %v3769 = vor.u32 %v3768, %v3764
        %v3770 = vrot.slane %v3769, 4
        %v3772 = vshll.u32 %v3710, 16
        %v3774 = vrot.slane %v3772, 5
        %v3775 = vsel %vm3727, %v3770, %v3774
        %v3777 = vshrl.u32 %v3677, 16
        %v3779 = vrot.slane %v3777, 4
        %v3780 = vshll.u32 %v3677, 16
        %v3782 = vrot.slane %v3780, 5
        %v3783 = vor.u32 %v3779, %v3782
        %v3784 = vrot.slane %v3783, 4
        %v3786 = vshll.u32 %v3678, 16
        %v3788 = vrot.slane %v3786, 5
        %v3789 = vsel %vm3727, %v3784, %v3788
        %v3790 = vshrl.u32 %v3678, 16
        %v3792 = vrot.slane %v3790, 4
        %v3793 = vor.u32 %v3792, %v3788
        %v3794 = vrot.slane %v3793, 4
        %v3796 = vshll.u32 %v3711, 16
        %v3798 = vrot.slane %v3796, 5
        %v3799 = vsel %vm3727, %v3794, %v3798
        %v3801 = vshrl.u32 %v3679, 16
        %v3803 = vrot.slane %v3801, 4
        %v3804 = vshll.u32 %v3679, 16
        %v3806 = vrot.slane %v3804, 5
        %v3807 = vor.u32 %v3803, %v3806
        %v3808 = vrot.slane %v3807, 4
        %v3810 = vshll.u32 %v3680, 16
        %v3812 = vrot.slane %v3810, 5
        %v3813 = vsel %vm3727, %v3808, %v3812
        %v3814 = vshrl.u32 %v3680, 16
        %v3816 = vrot.slane %v3814, 4
        %v3817 = vor.u32 %v3816, %v3812
        %v3818 = vrot.slane %v3817, 4
        %v3820 = vshll.u32 %v3712, 16
        %v3822 = vrot.slane %v3820, 5
        %v3823 = vsel %vm3727, %v3818, %v3822
        %v3825 = vshrl.u32 %v3681, 16
        %v3827 = vrot.slane %v3825, 4
        %v3828 = vshll.u32 %v3681, 16
        %v3830 = vrot.slane %v3828, 5
        %v3831 = vor.u32 %v3827, %v3830
        %v3832 = vrot.slane %v3831, 4
        %v3834 = vshll.u32 %v3682, 16
        %v3836 = vrot.slane %v3834, 5
        %v3837 = vsel %vm3727, %v3832, %v3836
        %v3838 = vshrl.u32 %v3682, 16
        %v3840 = vrot.slane %v3838, 4
        %v3841 = vor.u32 %v3840, %v3836
        %v3842 = vrot.slane %v3841, 4
        %v3844 = vshll.u32 %v3713, 16
        %v3846 = vrot.slane %v3844, 5
        %v3847 = vsel %vm3727, %v3842, %v3846
        %v3849 = vshrl.u32 %v3683, 16
        %v3851 = vrot.slane %v3849, 4
        %v3852 = vshll.u32 %v3683, 16
        %v3854 = vrot.slane %v3852, 5
        %v3855 = vor.u32 %v3851, %v3854
        %v3856 = vrot.slane %v3855, 4
        %v3858 = vshll.u32 %v3684, 16
        %v3860 = vrot.slane %v3858, 5
        %v3861 = vsel %vm3727, %v3856, %v3860
        %v3862 = vshrl.u32 %v3684, 16
        %v3864 = vrot.slane %v3862, 4
        %v3865 = vor.u32 %v3864, %v3860
        %v3866 = vrot.slane %v3865, 4
        %v3868 = vshll.u32 %v3714, 16
        %v3870 = vrot.slane %v3868, 5
        %v3871 = vsel %vm3727, %v3866, %v3870
        %v3873 = vshrl.u32 %v3685, 16
        %v3875 = vrot.slane %v3873, 4
        %v3876 = vshll.u32 %v3685, 16
        %v3878 = vrot.slane %v3876, 5
        %v3879 = vor.u32 %v3875, %v3878
        %v3880 = vrot.slane %v3879, 4
        %v3882 = vshll.u32 %v3686, 16
        %v3884 = vrot.slane %v3882, 5
        %v3885 = vsel %vm3727, %v3880, %v3884
        %v3886 = vshrl.u32 %v3686, 16
        %v3888 = vrot.slane %v3886, 4
        %v3889 = vor.u32 %v3888, %v3884
        %v3890 = vrot.slane %v3889, 4
        %v3892 = vshll.u32 %v3715, 16
        %v3894 = vrot.slane %v3892, 5
        %v3895 = vsel %vm3727, %v3890, %v3894
        %v3897 = vshrl.u32 %v3687, 16
        %v3899 = vrot.slane %v3897, 4
        %v3900 = vshll.u32 %v3687, 16
        %v3902 = vrot.slane %v3900, 5
        %v3903 = vor.u32 %v3899, %v3902
        %v3904 = vrot.slane %v3903, 4
        %v3906 = vshll.u32 %v3688, 16
        %v3908 = vrot.slane %v3906, 5
        %v3909 = vsel %vm3727, %v3904, %v3908
        %v3910 = vshrl.u32 %v3688, 16
        %v3912 = vrot.slane %v3910, 4
        %v3913 = vor.u32 %v3912, %v3908
        %v3914 = vrot.slane %v3913, 4
        %v3916 = vshll.u32 %v3716, 16
        %v3918 = vrot.slane %v3916, 5
        %v3919 = vsel %vm3727, %v3914, %v3918
        %v3921 = vshrl.u32 %v3689, 16
        %v3923 = vrot.slane %v3921, 4
        %v3924 = vshll.u32 %v3689, 16
        %v3926 = vrot.slane %v3924, 5
        %v3927 = vor.u32 %v3923, %v3926
        %v3928 = vrot.slane %v3927, 4
        %v3930 = vshll.u32 %v3690, 16
        %v3932 = vrot.slane %v3930, 5
        %v3933 = vsel %vm3727, %v3928, %v3932
        %v3934 = vshrl.u32 %v3690, 16
        %v3936 = vrot.slane %v3934, 4
        %v3937 = vor.u32 %v3936, %v3932
        %v3938 = vrot.slane %v3937, 4
        %v3940 = vshll.u32 %v3717, 16
        %v3942 = vrot.slane %v3940, 5
        %v3943 = vsel %vm3727, %v3938, %v3942
        %v3945 = vshrl.u32 %v3691, 16
        %v3947 = vrot.slane %v3945, 4
        %v3948 = vshll.u32 %v3691, 16
        %v3950 = vrot.slane %v3948, 5
        %v3951 = vor.u32 %v3947, %v3950
        %v3952 = vrot.slane %v3951, 4
        %v3954 = vshll.u32 %v3692, 16
        %v3956 = vrot.slane %v3954, 5
        %v3957 = vsel %vm3727, %v3952, %v3956
        %v3958 = vshrl.u32 %v3692, 16
        %v3960 = vrot.slane %v3958, 4
        %v3961 = vor.u32 %v3960, %v3956
        %v3962 = vrot.slane %v3961, 4
        %v3964 = vshll.u32 %v3718, 16
        %v3966 = vrot.slane %v3964, 5
        %v3967 = vsel %vm3727, %v3962, %v3966
        %v3969 = vshrl.u32 %v3693, 16
        %v3971 = vrot.slane %v3969, 4
        %v3972 = vshll.u32 %v3693, 16
        %v3974 = vrot.slane %v3972, 5
        %v3975 = vor.u32 %v3971, %v3974
        %v3976 = vrot.slane %v3975, 4
        %v3978 = vshll.u32 %v3694, 16
        %v3980 = vrot.slane %v3978, 5
        %v3981 = vsel %vm3727, %v3976, %v3980
        %v3982 = vshrl.u32 %v3694, 16
        %v3984 = vrot.slane %v3982, 4
        %v3985 = vor.u32 %v3984, %v3980
        %v3986 = vrot.slane %v3985, 4
        %v3988 = vshll.u32 %v3719, 16
        %v3990 = vrot.slane %v3988, 5
        %v3991 = vsel %vm3727, %v3986, %v3990
        %v3993 = vshrl.u32 %v3695, 16
        %v3995 = vrot.slane %v3993, 4
        %v3996 = vshll.u32 %v3695, 16
        %v3998 = vrot.slane %v3996, 5
        %v3999 = vor.u32 %v3995, %v3998
        %v4000 = vrot.slane %v3999, 4
        %v4002 = vshll.u32 %v3696, 16
        %v4004 = vrot.slane %v4002, 5
        %v4005 = vsel %vm3727, %v4000, %v4004
        %v4006 = vshrl.u32 %v3696, 16
        %v4008 = vrot.slane %v4006, 4
        %v4009 = vor.u32 %v4008, %v4004
        %v4010 = vrot.slane %v4009, 4
        %v4012 = vshll.u32 %v3720, 16
        %v4014 = vrot.slane %v4012, 5
        %v4015 = vsel %vm3727, %v4010, %v4014
        %v4017 = vshrl.u32 %v3697, 16
        %v4019 = vrot.slane %v4017, 4
        %v4020 = vshll.u32 %v3697, 16
        %v4022 = vrot.slane %v4020, 5
        %v4023 = vor.u32 %v4019, %v4022
        %v4024 = vrot.slane %v4023, 4
        %v4026 = vshll.u32 %v3698, 16
        %v4028 = vrot.slane %v4026, 5
        %v4029 = vsel %vm3727, %v4024, %v4028
        %v4030 = vshrl.u32 %v3698, 16
        %v4032 = vrot.slane %v4030, 4
        %v4033 = vor.u32 %v4032, %v4028
        %v4034 = vrot.slane %v4033, 4
        %v4036 = vshll.u32 %v3721, 16
        %v4038 = vrot.slane %v4036, 5
        %v4039 = vsel %vm3727, %v4034, %v4038
        %v4041 = vshrl.u32 %v3699, 16
        %v4043 = vrot.slane %v4041, 4
        %v4044 = vshll.u32 %v3699, 16
        %v4046 = vrot.slane %v4044, 5
        %v4047 = vor.u32 %v4043, %v4046
        %v4048 = vrot.slane %v4047, 4
        %v4050 = vshll.u32 %v3700, 16
        %v4052 = vrot.slane %v4050, 5
        %v4053 = vsel %vm3727, %v4048, %v4052
        %v4054 = vshrl.u32 %v3700, 16
        %v4056 = vrot.slane %v4054, 4
        %v4057 = vor.u32 %v4056, %v4052
        %v4058 = vrot.slane %v4057, 4
        %v4060 = vshll.u32 %v3722, 16
        %v4062 = vrot.slane %v4060, 5
        %v4063 = vsel %vm3727, %v4058, %v4062
        %v4065 = vshrl.u32 %v3701, 16
        %v4067 = vrot.slane %v4065, 4
        %v4068 = vshll.u32 %v3701, 16
        %v4070 = vrot.slane %v4068, 5
        %v4071 = vor.u32 %v4067, %v4070
        %v4072 = vrot.slane %v4071, 4
        %v4074 = vshll.u32 %v3702, 16
        %v4076 = vrot.slane %v4074, 5
        %v4077 = vsel %vm3727, %v4072, %v4076
        %v4078 = vshrl.u32 %v3702, 16
        %v4080 = vrot.slane %v4078, 4
        %v4081 = vor.u32 %v4080, %v4076
        %v4082 = vrot.slane %v4081, 4
        %v4084 = vshll.u32 %v3723, 16
        %v4086 = vrot.slane %v4084, 5
        %v4087 = vsel %vm3727, %v4082, %v4086
        %v4089 = vshrl.u32 %v3703, 16
        %v4091 = vrot.slane %v4089, 4
        %v4092 = vshll.u32 %v3703, 16
        %v4094 = vrot.slane %v4092, 5
        %v4095 = vor.u32 %v4091, %v4094
        %v4096 = vrot.slane %v4095, 4
        %v4098 = vshll.u32 %v3704, 16
        %v4100 = vrot.slane %v4098, 5
        %v4101 = vsel %vm3727, %v4096, %v4100
        %v4102 = vshrl.u32 %v3704, 16
        %v4104 = vrot.slane %v4102, 4
        %v4105 = vor.u32 %v4104, %v4100
        %v4106 = vrot.slane %v4105, 4
        %v4108 = vshll.u32 %v3724, 16
        %v4110 = vrot.slane %v4108, 5
        %v4111 = vsel %vm3727, %v4106, %v4110
        %s4112 = scalar_lea.vmem %s4, 16
        %v4113 = vld [vmem:[%s4112] sm:$0xf]
        %v4114 = vld [vmem:[%s4112 + $0x4] sm:$0xf]
        %v4115 = vld [vmem:[%s4112 + $0x8] sm:$0xf]
        %v4116 = vld [vmem:[%s4112 + $0xc] sm:$0xf]
        %v4117 = vunpack.c.l.b16 %v3741
        %v4118 = vunpack.c.l.b16 %v3751
        %v4119 = vunpack.c.l.b16 %v3765
        %v4120 = vunpack.c.l.b16 %v3775
        %v4121 = vunpack.c.l.b16 %v3789
        %v4122 = vunpack.c.l.b16 %v3799
        %v4123 = vunpack.c.l.b16 %v3813
        %v4124 = vunpack.c.l.b16 %v3823
        %v4125 = vunpack.c.l.b16 %v3837
        %v4126 = vunpack.c.l.b16 %v3847
        %v4127 = vunpack.c.l.b16 %v3861
        %v4128 = vunpack.c.l.b16 %v3871
        %v4129 = vunpack.c.l.b16 %v3885
        %v4130 = vunpack.c.l.b16 %v3895
        %v4131 = vunpack.c.l.b16 %v3909
        %v4132 = vunpack.c.l.b16 %v3919
        %v4133 = vunpack.c.l.b16 %v3933
        %v4134 = vunpack.c.l.b16 %v3943
        %v4135 = vunpack.c.l.b16 %v3957
        %v4136 = vunpack.c.l.b16 %v3967
        %v4137 = vunpack.c.l.b16 %v3981
        %v4138 = vunpack.c.l.b16 %v3991
        %v4139 = vunpack.c.l.b16 %v4005
        %v4140 = vunpack.c.l.b16 %v4015
        %v4141 = vunpack.c.l.b16 %v4029
        %v4142 = vunpack.c.l.b16 %v4039
        %v4143 = vunpack.c.l.b16 %v4053
        %v4144 = vunpack.c.l.b16 %v4063
        %v4145 = vunpack.c.l.b16 %v4077
        %v4146 = vunpack.c.l.b16 %v4087
        %v4147 = vunpack.c.l.b16 %v4101
        %v4148 = vunpack.c.l.b16 %v4111
        %v4149 = vpack.c.b16 %v4118, %v4117
        %v4150 = vpack.c.b16 %v4120, %v4119
        %v4151 = vpack.c.b16 %v4122, %v4121
        %v4152 = vpack.c.b16 %v4124, %v4123
        %v4153 = vpack.c.b16 %v4126, %v4125
        %v4154 = vpack.c.b16 %v4128, %v4127
        %v4155 = vpack.c.b16 %v4130, %v4129
        %v4156 = vpack.c.b16 %v4132, %v4131
        %v4157 = vpack.c.b16 %v4134, %v4133
        %v4158 = vpack.c.b16 %v4136, %v4135
        %v4159 = vpack.c.b16 %v4138, %v4137
        %v4160 = vpack.c.b16 %v4140, %v4139
        %v4161 = vpack.c.b16 %v4142, %v4141
        %v4162 = vpack.c.b16 %v4144, %v4143
        %v4163 = vpack.c.b16 %v4146, %v4145
        %v4164 = vpack.c.b16 %v4148, %v4147
        %v4169 = vunpack.c.l.b16 %v4113
        %v4170 = vunpack.c.l.b16 %v4114
        %v4171 = vunpack.c.l.b16 %v4115
        %v4172 = vunpack.c.l.b16 %v4116
        %v4173 = vpack.c.b16 %v4170, %v4169
        %v4174 = vpack.c.b16 %v4172, %v4171
        %v4178 = vsel %vm395, %v4149, 0
        %v4181 = vsel %vm395, %v4150, 0
        %v4184 = vsel %vm395, %v4151, 0
        %v4187 = vsel %vm395, %v4152, 0
        %v4190 = vsel %vm395, %v4153, 0
        %v4193 = vsel %vm395, %v4154, 0
        %v4196 = vsel %vm395, %v4155, 0
        %v4199 = vsel %vm395, %v4156, 0
        %v4202 = vsel %vm395, %v4157, 0
        %v4205 = vsel %vm395, %v4158, 0
        %v4208 = vsel %vm395, %v4159, 0
        %v4211 = vsel %vm395, %v4160, 0
        %v4214 = vsel %vm395, %v4161, 0
        %v4217 = vsel %vm395, %v4162, 0
        %v4220 = vsel %vm395, %v4163, 0
        %v4223 = vsel %vm395, %v4164, 0
        %4225 = vmatprep.subr.bf16.mxu0 0
        %4226 = vmatpush1.bf16.msra.mxu0 %v4173
        %4227 = vmatprep.subr.bf16.mxu0 0
        %4228 = vmatpush1.bf16.msra.mxu0 %v4174
        %4229 = vmatprep.subr.bf16.mxu0 0
        %4230 = vmatpush1.bf16.msra.mxu0 0
        %4231 = vmatprep.subr.bf16.mxu0 0
        %4232 = vmatpush1.bf16.msra.mxu0 0
        %4233 = vmatprep.subr.bf16.mxu0 0
        %4234 = vmatpush1.bf16.msra.mxu0 0
        %4235 = vmatprep.subr.bf16.mxu0 0
        %4236 = vmatpush1.bf16.msra.mxu0 0
        %4237 = vmatprep.subr.bf16.mxu0 0
        %4238 = vmatpush1.bf16.msra.mxu0 0
        %4239 = vmatprep.subr.bf16.mxu0 0
        %4240 = vmatpush1.bf16.msra.mxu0 0
        %4241 = vmatprep.subr.bf16.mxu0 0
        %4242 = vmatpush1.bf16.msra.mxu0 0
        %4243 = vmatprep.subr.bf16.mxu0 0
        %4244 = vmatpush1.bf16.msra.mxu0 0
        %4245 = vmatprep.subr.bf16.mxu0 0
        %4246 = vmatpush1.bf16.msra.mxu0 0
        %4247 = vmatprep.subr.bf16.mxu0 0
        %4248 = vmatpush1.bf16.msra.mxu0 0
        %4249 = vmatprep.subr.bf16.mxu0 0
        %4250 = vmatpush1.bf16.msra.mxu0 0
        %4251 = vmatprep.subr.bf16.mxu0 0
        %4252 = vmatpush1.bf16.msra.mxu0 0
        %4253 = vmatprep.subr.bf16.mxu0 0
        %4254 = vmatpush1.bf16.msra.mxu0 0
        %4255 = vmatprep.subr.bf16.mxu0 0
        %4256 = vmatpush1.bf16.msra.mxu0 0
        %4257 = vmatprep.mubr.bf16.mxu0 0
        %4258 = vmatmul.mubr.bf16.gmra.mrb[0].mxu0 %v4178
        %v4259 = vpop.f32.mrb[0].mxu0
        %v4260 = vadd.f32 0.0, %v4259
        %v4261 = vpop.f32.mrb[0].mxu0
        %v4262 = vpop.f32.mrb[0].mxu0
        %v4263 = vadd.f32 0.0, %v4262
        %v4264 = vpop.f32.mrb[0].mxu0
        %4265 = vmatprep.mubr.bf16.mxu0 0
        %4266 = vmatmul.mubr.bf16.gmra.mrb[0].mxu0 %v4181
        %v4267 = vpop.f32.mrb[0].mxu0
        %v4268 = vadd.f32 0.0, %v4267
        %v4269 = vpop.f32.mrb[0].mxu0
        %v4270 = vpop.f32.mrb[0].mxu0
        %v4271 = vadd.f32 0.0, %v4270
        %v4272 = vpop.f32.mrb[0].mxu0
        %4273 = vmatprep.mubr.bf16.mxu0 0
        %4274 = vmatmul.mubr.bf16.gmra.mrb[0].mxu0 %v4184
        %v4275 = vpop.f32.mrb[0].mxu0
        %v4276 = vadd.f32 0.0, %v4275
        %v4277 = vpop.f32.mrb[0].mxu0
        %v4278 = vpop.f32.mrb[0].mxu0
        %v4279 = vadd.f32 0.0, %v4278
        %v4280 = vpop.f32.mrb[0].mxu0
        %4281 = vmatprep.mubr.bf16.mxu0 0
        %4282 = vmatmul.mubr.bf16.gmra.mrb[0].mxu0 %v4187
        %v4283 = vpop.f32.mrb[0].mxu0
        %v4284 = vadd.f32 0.0, %v4283
        %v4285 = vpop.f32.mrb[0].mxu0
        %v4286 = vpop.f32.mrb[0].mxu0
        %v4287 = vadd.f32 0.0, %v4286
        %v4288 = vpop.f32.mrb[0].mxu0
        %4289 = vmatprep.mubr.bf16.mxu0 0
        %4290 = vmatmul.mubr.bf16.gmra.mrb[0].mxu0 %v4190
        %v4291 = vpop.f32.mrb[0].mxu0
        %v4292 = vadd.f32 0.0, %v4291
        %v4293 = vpop.f32.mrb[0].mxu0
        %v4294 = vpop.f32.mrb[0].mxu0
        %v4295 = vadd.f32 0.0, %v4294
        %v4296 = vpop.f32.mrb[0].mxu0
        %4297 = vmatprep.mubr.bf16.mxu0 0
        %4298 = vmatmul.mubr.bf16.gmra.mrb[0].mxu0 %v4193
        %v4299 = vpop.f32.mrb[0].mxu0
        %v4300 = vadd.f32 0.0, %v4299
        %v4301 = vpop.f32.mrb[0].mxu0
        %v4302 = vpop.f32.mrb[0].mxu0
        %v4303 = vadd.f32 0.0, %v4302
        %v4304 = vpop.f32.mrb[0].mxu0
        %4305 = vmatprep.mubr.bf16.mxu0 0
        %4306 = vmatmul.mubr.bf16.gmra.mrb[0].mxu0 %v4196
        %v4307 = vpop.f32.mrb[0].mxu0
        %v4308 = vadd.f32 0.0, %v4307
        %v4309 = vpop.f32.mrb[0].mxu0
        %v4310 = vpop.f32.mrb[0].mxu0
        %v4311 = vadd.f32 0.0, %v4310
        %v4312 = vpop.f32.mrb[0].mxu0
        %4313 = vmatprep.mubr.bf16.mxu0 0
        %4314 = vmatmul.mubr.bf16.gmra.mrb[0].mxu0 %v4199
        %v4315 = vpop.f32.mrb[0].mxu0
        %v4316 = vadd.f32 0.0, %v4315
        %v4317 = vpop.f32.mrb[0].mxu0
        %v4318 = vpop.f32.mrb[0].mxu0
        %v4319 = vadd.f32 0.0, %v4318
        %v4320 = vpop.f32.mrb[0].mxu0
        %4321 = vmatprep.mubr.bf16.mxu0 0
        %4322 = vmatmul.mubr.bf16.gmra.mrb[0].mxu0 %v4202
        %v4323 = vpop.f32.mrb[0].mxu0
        %v4324 = vadd.f32 0.0, %v4323
        %v4325 = vpop.f32.mrb[0].mxu0
        %v4326 = vpop.f32.mrb[0].mxu0
        %v4327 = vadd.f32 0.0, %v4326
        %v4328 = vpop.f32.mrb[0].mxu0
        %4329 = vmatprep.mubr.bf16.mxu0 0
        %4330 = vmatmul.mubr.bf16.gmra.mrb[0].mxu0 %v4205
        %v4331 = vpop.f32.mrb[0].mxu0
        %v4332 = vadd.f32 0.0, %v4331
        %v4333 = vpop.f32.mrb[0].mxu0
        %v4334 = vpop.f32.mrb[0].mxu0
        %v4335 = vadd.f32 0.0, %v4334
        %v4336 = vpop.f32.mrb[0].mxu0
        %4337 = vmatprep.mubr.bf16.mxu0 0
        %4338 = vmatmul.mubr.bf16.gmra.mrb[0].mxu0 %v4208
        %v4339 = vpop.f32.mrb[0].mxu0
        %v4340 = vadd.f32 0.0, %v4339
        %v4341 = vpop.f32.mrb[0].mxu0
        %v4342 = vpop.f32.mrb[0].mxu0
        %v4343 = vadd.f32 0.0, %v4342
        %v4344 = vpop.f32.mrb[0].mxu0
        %4345 = vmatprep.mubr.bf16.mxu0 0
        %4346 = vmatmul.mubr.bf16.gmra.mrb[0].mxu0 %v4211
        %v4347 = vpop.f32.mrb[0].mxu0
        %v4348 = vadd.f32 0.0, %v4347
        %v4349 = vpop.f32.mrb[0].mxu0
        %v4350 = vpop.f32.mrb[0].mxu0
        %v4351 = vadd.f32 0.0, %v4350
        %v4352 = vpop.f32.mrb[0].mxu0
        %4353 = vmatprep.mubr.bf16.mxu0 0
        %4354 = vmatmul.mubr.bf16.gmra.mrb[0].mxu0 %v4214
        %v4355 = vpop.f32.mrb[0].mxu0
        %v4356 = vadd.f32 0.0, %v4355
        %v4357 = vpop.f32.mrb[0].mxu0
        %v4358 = vpop.f32.mrb[0].mxu0
        %v4359 = vadd.f32 0.0, %v4358
        %v4360 = vpop.f32.mrb[0].mxu0
        %4361 = vmatprep.mubr.bf16.mxu0 0
        %4362 = vmatmul.mubr.bf16.gmra.mrb[0].mxu0 %v4217
        %v4363 = vpop.f32.mrb[0].mxu0
        %v4364 = vadd.f32 0.0, %v4363
        %v4365 = vpop.f32.mrb[0].mxu0
        %v4366 = vpop.f32.mrb[0].mxu0
        %v4367 = vadd.f32 0.0, %v4366
        %v4368 = vpop.f32.mrb[0].mxu0
        %4369 = vmatprep.mubr.bf16.mxu0 0
        %4370 = vmatmul.mubr.bf16.gmra.mrb[0].mxu0 %v4220
        %v4371 = vpop.f32.mrb[0].mxu0
        %v4372 = vadd.f32 0.0, %v4371
        %v4373 = vpop.f32.mrb[0].mxu0
        %v4374 = vpop.f32.mrb[0].mxu0
        %v4375 = vadd.f32 0.0, %v4374
        %v4376 = vpop.f32.mrb[0].mxu0
        %4377 = vmatprep.mubr.bf16.mxu0 0
        %4378 = vmatmul.mubr.bf16.gmra.mrb[0].mxu0 %v4223
        %v4379 = vpop.f32.mrb[0].mxu0
        %v4380 = vadd.f32 0.0, %v4379
        %v4381 = vpop.f32.mrb[0].mxu0
        %v4382 = vpop.f32.mrb[0].mxu0
        %v4383 = vadd.f32 0.0, %v4382
        %v4384 = vpop.f32.mrb[0].mxu0
        %4385 = vdwg.mxu0
        %v4418 = vunpack.c.l.b16 %v3673
        %v4419 = vunpack.c.l.b16 %v3674
        %v4420 = vunpack.c.l.b16 %v3675
        %v4421 = vunpack.c.l.b16 %v3676
        %v4422 = vunpack.c.l.b16 %v3677
        %v4423 = vunpack.c.l.b16 %v3678
        %v4424 = vunpack.c.l.b16 %v3679
        %v4425 = vunpack.c.l.b16 %v3680
        %v4426 = vunpack.c.l.b16 %v3681
        %v4427 = vunpack.c.l.b16 %v3682
        %v4428 = vunpack.c.l.b16 %v3683
        %v4429 = vunpack.c.l.b16 %v3684
        %v4430 = vunpack.c.l.b16 %v3685
        %v4431 = vunpack.c.l.b16 %v3686
        %v4432 = vunpack.c.l.b16 %v3687
        %v4433 = vunpack.c.l.b16 %v3688
        %v4434 = vunpack.c.l.b16 %v3689
        %v4435 = vunpack.c.l.b16 %v3690
        %v4436 = vunpack.c.l.b16 %v3691
        %v4437 = vunpack.c.l.b16 %v3692
        %v4438 = vunpack.c.l.b16 %v3693
        %v4439 = vunpack.c.l.b16 %v3694
        %v4440 = vunpack.c.l.b16 %v3695
        %v4441 = vunpack.c.l.b16 %v3696
        %v4442 = vunpack.c.l.b16 %v3697
        %v4443 = vunpack.c.l.b16 %v3698
        %v4444 = vunpack.c.l.b16 %v3699
        %v4445 = vunpack.c.l.b16 %v3700
        %v4446 = vunpack.c.l.b16 %v3701
        %v4447 = vunpack.c.l.b16 %v3702
        %v4448 = vunpack.c.l.b16 %v3703
        %v4449 = vunpack.c.l.b16 %v3704
        %v4450 = vpack.c.b16 %v4419, %v4418
        %v4451 = vpack.c.b16 %v4421, %v4420
        %v4452 = vpack.c.b16 %v4423, %v4422
        %v4453 = vpack.c.b16 %v4425, %v4424
        %v4454 = vpack.c.b16 %v4427, %v4426
        %v4455 = vpack.c.b16 %v4429, %v4428
        %v4456 = vpack.c.b16 %v4431, %v4430
        %v4457 = vpack.c.b16 %v4433, %v4432
        %v4458 = vpack.c.b16 %v4435, %v4434
        %v4459 = vpack.c.b16 %v4437, %v4436
        %v4460 = vpack.c.b16 %v4439, %v4438
        %v4461 = vpack.c.b16 %v4441, %v4440
        %v4462 = vpack.c.b16 %v4443, %v4442
        %v4463 = vpack.c.b16 %v4445, %v4444
        %v4464 = vpack.c.b16 %v4447, %v4446
        %v4465 = vpack.c.b16 %v4449, %v4448
        %v4470 = vunpack.c.l.b16 %v3705
        %v4471 = vunpack.c.l.b16 %v3706
        %v4472 = vunpack.c.l.b16 %v3707
        %v4473 = vunpack.c.l.b16 %v3708
        %v4474 = vpack.c.b16 %v4471, %v4470
        %v4475 = vpack.c.b16 %v4473, %v4472
        %v4479 = vsel %vm395, %v4450, 0
        %v4482 = vsel %vm395, %v4451, 0
        %v4485 = vsel %vm395, %v4452, 0
        %v4488 = vsel %vm395, %v4453, 0
        %v4491 = vsel %vm395, %v4454, 0
        %v4494 = vsel %vm395, %v4455, 0
        %v4497 = vsel %vm395, %v4456, 0
        %v4500 = vsel %vm395, %v4457, 0
        %v4503 = vsel %vm395, %v4458, 0
        %v4506 = vsel %vm395, %v4459, 0
        %v4509 = vsel %vm395, %v4460, 0
        %v4512 = vsel %vm395, %v4461, 0
        %v4515 = vsel %vm395, %v4462, 0
        %v4518 = vsel %vm395, %v4463, 0
        %v4521 = vsel %vm395, %v4464, 0
        %v4524 = vsel %vm395, %v4465, 0
        %4526 = vmatprep.subr.bf16.mxu0 0
        %4527 = vmatpush1.bf16.msra.mxu0 %v4474
        %4528 = vmatprep.subr.bf16.mxu0 0
        %4529 = vmatpush1.bf16.msra.mxu0 %v4475
        %4530 = vmatprep.subr.bf16.mxu0 0
        %4531 = vmatpush1.bf16.msra.mxu0 0
        %4532 = vmatprep.subr.bf16.mxu0 0
        %4533 = vmatpush1.bf16.msra.mxu0 0
        %4534 = vmatprep.subr.bf16.mxu0 0
        %4535 = vmatpush1.bf16.msra.mxu0 0
        %4536 = vmatprep.subr.bf16.mxu0 0
        %4537 = vmatpush1.bf16.msra.mxu0 0
        %4538 = vmatprep.subr.bf16.mxu0 0
        %4539 = vmatpush1.bf16.msra.mxu0 0
        %4540 = vmatprep.subr.bf16.mxu0 0
        %4541 = vmatpush1.bf16.msra.mxu0 0
        %4542 = vmatprep.subr.bf16.mxu0 0
        %4543 = vmatpush1.bf16.msra.mxu0 0
        %4544 = vmatprep.subr.bf16.mxu0 0
        %4545 = vmatpush1.bf16.msra.mxu0 0
        %4546 = vmatprep.subr.bf16.mxu0 0
        %4547 = vmatpush1.bf16.msra.mxu0 0
        %4548 = vmatprep.subr.bf16.mxu0 0
        %4549 = vmatpush1.bf16.msra.mxu0 0
        %4550 = vmatprep.subr.bf16.mxu0 0
        %4551 = vmatpush1.bf16.msra.mxu0 0
        %4552 = vmatprep.subr.bf16.mxu0 0
        %4553 = vmatpush1.bf16.msra.mxu0 0
        %4554 = vmatprep.subr.bf16.mxu0 0
        %4555 = vmatpush1.bf16.msra.mxu0 0
        %4556 = vmatprep.subr.bf16.mxu0 0
        %4557 = vmatpush1.bf16.msra.mxu0 0
        %4558 = vmatprep.mubr.bf16.mxu0 0
        %4559 = vmatmul.mubr.bf16.gmra.mrb[0].mxu0 %v4479
        %v4560 = vpop.f32.mrb[0].mxu0
        %v4561 = vadd.f32 %v4260, %v4560
        %v4562 = vpop.f32.mrb[0].mxu0
        %v4563 = vpop.f32.mrb[0].mxu0
        %v4564 = vadd.f32 %v4263, %v4563
        %v4565 = vpop.f32.mrb[0].mxu0
        %4566 = vmatprep.mubr.bf16.mxu0 0
        %4567 = vmatmul.mubr.bf16.gmra.mrb[0].mxu0 %v4482
        %v4568 = vpop.f32.mrb[0].mxu0
        %v4569 = vadd.f32 %v4268, %v4568
        %v4570 = vpop.f32.mrb[0].mxu0
        %v4571 = vpop.f32.mrb[0].mxu0
        %v4572 = vadd.f32 %v4271, %v4571
        %v4573 = vpop.f32.mrb[0].mxu0
        %4574 = vmatprep.mubr.bf16.mxu0 0
        %4575 = vmatmul.mubr.bf16.gmra.mrb[0].mxu0 %v4485
        %v4576 = vpop.f32.mrb[0].mxu0
        %v4577 = vadd.f32 %v4276, %v4576
        %v4578 = vpop.f32.mrb[0].mxu0
        %v4579 = vpop.f32.mrb[0].mxu0
        %v4580 = vadd.f32 %v4279, %v4579
        %v4581 = vpop.f32.mrb[0].mxu0
        %4582 = vmatprep.mubr.bf16.mxu0 0
        %4583 = vmatmul.mubr.bf16.gmra.mrb[0].mxu0 %v4488
        %v4584 = vpop.f32.mrb[0].mxu0
        %v4585 = vadd.f32 %v4284, %v4584
        %v4586 = vpop.f32.mrb[0].mxu0
        %v4587 = vpop.f32.mrb[0].mxu0
        %v4588 = vadd.f32 %v4287, %v4587
        %v4589 = vpop.f32.mrb[0].mxu0
        %4590 = vmatprep.mubr.bf16.mxu0 0
        %4591 = vmatmul.mubr.bf16.gmra.mrb[0].mxu0 %v4491
        %v4592 = vpop.f32.mrb[0].mxu0
        %v4593 = vadd.f32 %v4292, %v4592
        %v4594 = vpop.f32.mrb[0].mxu0
        %v4595 = vpop.f32.mrb[0].mxu0
        %v4596 = vadd.f32 %v4295, %v4595
        %v4597 = vpop.f32.mrb[0].mxu0
        %4598 = vmatprep.mubr.bf16.mxu0 0
        %4599 = vmatmul.mubr.bf16.gmra.mrb[0].mxu0 %v4494
        %v4600 = vpop.f32.mrb[0].mxu0
        %v4601 = vadd.f32 %v4300, %v4600
        %v4602 = vpop.f32.mrb[0].mxu0
        %v4603 = vpop.f32.mrb[0].mxu0
        %v4604 = vadd.f32 %v4303, %v4603
        %v4605 = vpop.f32.mrb[0].mxu0
        %4606 = vmatprep.mubr.bf16.mxu0 0
        %4607 = vmatmul.mubr.bf16.gmra.mrb[0].mxu0 %v4497
        %v4608 = vpop.f32.mrb[0].mxu0
        %v4609 = vadd.f32 %v4308, %v4608
        %v4610 = vpop.f32.mrb[0].mxu0
        %v4611 = vpop.f32.mrb[0].mxu0
        %v4612 = vadd.f32 %v4311, %v4611
        %v4613 = vpop.f32.mrb[0].mxu0
        %4614 = vmatprep.mubr.bf16.mxu0 0
        %4615 = vmatmul.mubr.bf16.gmra.mrb[0].mxu0 %v4500
        %v4616 = vpop.f32.mrb[0].mxu0
        %v4617 = vadd.f32 %v4316, %v4616
        %v4618 = vpop.f32.mrb[0].mxu0
        %v4619 = vpop.f32.mrb[0].mxu0
        %v4620 = vadd.f32 %v4319, %v4619
        %v4621 = vpop.f32.mrb[0].mxu0
        %4622 = vmatprep.mubr.bf16.mxu0 0
        %4623 = vmatmul.mubr.bf16.gmra.mrb[0].mxu0 %v4503
        %v4624 = vpop.f32.mrb[0].mxu0
        %v4625 = vadd.f32 %v4324, %v4624
        %v4626 = vpop.f32.mrb[0].mxu0
        %v4627 = vpop.f32.mrb[0].mxu0
        %v4628 = vadd.f32 %v4327, %v4627
        %v4629 = vpop.f32.mrb[0].mxu0
        %4630 = vmatprep.mubr.bf16.mxu0 0
        %4631 = vmatmul.mubr.bf16.gmra.mrb[0].mxu0 %v4506
        %v4632 = vpop.f32.mrb[0].mxu0
        %v4633 = vadd.f32 %v4332, %v4632
        %v4634 = vpop.f32.mrb[0].mxu0
        %v4635 = vpop.f32.mrb[0].mxu0
        %v4636 = vadd.f32 %v4335, %v4635
        %v4637 = vpop.f32.mrb[0].mxu0
        %4638 = vmatprep.mubr.bf16.mxu0 0
        %4639 = vmatmul.mubr.bf16.gmra.mrb[0].mxu0 %v4509
        %v4640 = vpop.f32.mrb[0].mxu0
        %v4641 = vadd.f32 %v4340, %v4640
        %v4642 = vpop.f32.mrb[0].mxu0
        %v4643 = vpop.f32.mrb[0].mxu0
        %v4644 = vadd.f32 %v4343, %v4643
        %v4645 = vpop.f32.mrb[0].mxu0
        %4646 = vmatprep.mubr.bf16.mxu0 0
        %4647 = vmatmul.mubr.bf16.gmra.mrb[0].mxu0 %v4512
        %v4648 = vpop.f32.mrb[0].mxu0
        %v4649 = vadd.f32 %v4348, %v4648
        %v4650 = vpop.f32.mrb[0].mxu0
        %v4651 = vpop.f32.mrb[0].mxu0
        %v4652 = vadd.f32 %v4351, %v4651
        %v4653 = vpop.f32.mrb[0].mxu0
        %4654 = vmatprep.mubr.bf16.mxu0 0
        %4655 = vmatmul.mubr.bf16.gmra.mrb[0].mxu0 %v4515
        %v4656 = vpop.f32.mrb[0].mxu0
        %v4657 = vadd.f32 %v4356, %v4656
        %v4658 = vpop.f32.mrb[0].mxu0
        %v4659 = vpop.f32.mrb[0].mxu0
        %v4660 = vadd.f32 %v4359, %v4659
        %v4661 = vpop.f32.mrb[0].mxu0
        %4662 = vmatprep.mubr.bf16.mxu0 0
        %4663 = vmatmul.mubr.bf16.gmra.mrb[0].mxu0 %v4518
        %v4664 = vpop.f32.mrb[0].mxu0
        %v4665 = vadd.f32 %v4364, %v4664
        %v4666 = vpop.f32.mrb[0].mxu0
        %v4667 = vpop.f32.mrb[0].mxu0
        %v4668 = vadd.f32 %v4367, %v4667
        %v4669 = vpop.f32.mrb[0].mxu0
        %4670 = vmatprep.mubr.bf16.mxu0 0
        %4671 = vmatmul.mubr.bf16.gmra.mrb[0].mxu0 %v4521
        %v4672 = vpop.f32.mrb[0].mxu0
        %v4673 = vadd.f32 %v4372, %v4672
        %v4674 = vpop.f32.mrb[0].mxu0
        %v4675 = vpop.f32.mrb[0].mxu0
        %v4676 = vadd.f32 %v4375, %v4675
        %v4677 = vpop.f32.mrb[0].mxu0
        %4678 = vmatprep.mubr.bf16.mxu0 0
        %4679 = vmatmul.mubr.bf16.gmra.mrb[0].mxu0 %v4524
        %v4680 = vpop.f32.mrb[0].mxu0
        %v4681 = vadd.f32 %v4380, %v4680
        %v4682 = vpop.f32.mrb[0].mxu0
        %v4683 = vpop.f32.mrb[0].mxu0
        %v4684 = vadd.f32 %v4383, %v4683
        %v4685 = vpop.f32.mrb[0].mxu0
        %4686 = vdwg.mxu0
        %v4687 = vld [vmem:[#allocation2] sm:$0xe]
        %v4688 = vld [vmem:[#allocation2 + $0xc] sm:$0xe]
        %v4689 = vld [vmem:[#allocation2 + $0x18] sm:$0xe]
        %v4690 = vld [vmem:[#allocation2 + $0x24] sm:$0xe]
        %v4691 = vld [vmem:[#allocation2 + $0x30] sm:$0xe]
        %v4692 = vld [vmem:[#allocation2 + $0x3c] sm:$0xe]
        %v4693 = vld [vmem:[#allocation2 + $0x48] sm:$0xe]
        %v4694 = vld [vmem:[#allocation2 + $0x54] sm:$0xe]
        %v4695 = vld [vmem:[#allocation2 + $0x60] sm:$0xe]
        %v4696 = vld [vmem:[#allocation2 + $0x6c] sm:$0xe]
        %v4697 = vld [vmem:[#allocation2 + $0x78] sm:$0xe]
        %v4698 = vld [vmem:[#allocation2 + $0x84] sm:$0xe]
        %v4699 = vld [vmem:[#allocation2 + $0x90] sm:$0xe]
        %v4700 = vld [vmem:[#allocation2 + $0x9c] sm:$0xe]
        %v4701 = vld [vmem:[#allocation2 + $0xa8] sm:$0xe]
        %v4702 = vld [vmem:[#allocation2 + $0xb4] sm:$0xe]
        %vm4735 = vcmask 1042432
        %vm4736 = vcmask 1046532
        %vm4737 = vmor %vm4735, %vm4736
        %v4738 = vrot.slane %v4687, 5
        %v4739 = vrot.slane %v4738, 4
        %v4740 = vrot.slane %v3674, 5
        %v4741 = vsel %vm4737, %v4739, %v4740
        %v4742 = vrot.slane %v4740, 4
        %v4743 = vrot.slane %v3709, 5
        %v4744 = vsel %vm4737, %v4742, %v4743
        %v4745 = vrot.slane %v4688, 5
        %v4746 = vrot.slane %v4745, 4
        %v4747 = vrot.slane %v3676, 5
        %v4748 = vsel %vm4737, %v4746, %v4747
        %v4749 = vrot.slane %v4747, 4
        %v4750 = vrot.slane %v3710, 5
        %v4751 = vsel %vm4737, %v4749, %v4750
        %v4752 = vrot.slane %v4689, 5
        %v4753 = vrot.slane %v4752, 4
        %v4754 = vrot.slane %v3678, 5
        %v4755 = vsel %vm4737, %v4753, %v4754
        %v4756 = vrot.slane %v4754, 4
        %v4757 = vrot.slane %v3711, 5
        %v4758 = vsel %vm4737, %v4756, %v4757
        %v4759 = vrot.slane %v4690, 5
        %v4760 = vrot.slane %v4759, 4
        %v4761 = vrot.slane %v3680, 5
        %v4762 = vsel %vm4737, %v4760, %v4761
        %v4763 = vrot.slane %v4761, 4
        %v4764 = vrot.slane %v3712, 5
        %v4765 = vsel %vm4737, %v4763, %v4764
        %v4766 = vrot.slane %v4691, 5
        %v4767 = vrot.slane %v4766, 4
        %v4768 = vrot.slane %v3682, 5
        %v4769 = vsel %vm4737, %v4767, %v4768
        %v4770 = vrot.slane %v4768, 4
        %v4771 = vrot.slane %v3713, 5
        %v4772 = vsel %vm4737, %v4770, %v4771
        %v4773 = vrot.slane %v4692, 5
        %v4774 = vrot.slane %v4773, 4
        %v4775 = vrot.slane %v3684, 5
        %v4776 = vsel %vm4737, %v4774, %v4775
        %v4777 = vrot.slane %v4775, 4
        %v4778 = vrot.slane %v3714, 5
        %v4779 = vsel %vm4737, %v4777, %v4778
        %v4780 = vrot.slane %v4693, 5
        %v4781 = vrot.slane %v4780, 4
        %v4782 = vrot.slane %v3686, 5
        %v4783 = vsel %vm4737, %v4781, %v4782
        %v4784 = vrot.slane %v4782, 4
        %v4785 = vrot.slane %v3715, 5
        %v4786 = vsel %vm4737, %v4784, %v4785
        %v4787 = vrot.slane %v4694, 5
        %v4788 = vrot.slane %v4787, 4
        %v4789 = vrot.slane %v3688, 5
        %v4790 = vsel %vm4737, %v4788, %v4789
        %v4791 = vrot.slane %v4789, 4
        %v4792 = vrot.slane %v3716, 5
        %v4793 = vsel %vm4737, %v4791, %v4792
        %v4794 = vrot.slane %v4695, 5
        %v4795 = vrot.slane %v4794, 4
        %v4796 = vrot.slane %v3690, 5
        %v4797 = vsel %vm4737, %v4795, %v4796
        %v4798 = vrot.slane %v4796, 4
        %v4799 = vrot.slane %v3717, 5
        %v4800 = vsel %vm4737, %v4798, %v4799
        %v4801 = vrot.slane %v4696, 5
        %v4802 = vrot.slane %v4801, 4
        %v4803 = vrot.slane %v3692, 5
        %v4804 = vsel %vm4737, %v4802, %v4803
        %v4805 = vrot.slane %v4803, 4
        %v4806 = vrot.slane %v3718, 5
        %v4807 = vsel %vm4737, %v4805, %v4806
        %v4808 = vrot.slane %v4697, 5
        %v4809 = vrot.slane %v4808, 4
        %v4810 = vrot.slane %v3694, 5
        %v4811 = vsel %vm4737, %v4809, %v4810
        %v4812 = vrot.slane %v4810, 4
        %v4813 = vrot.slane %v3719, 5
        %v4814 = vsel %vm4737, %v4812, %v4813
        %v4815 = vrot.slane %v4698, 5
        %v4816 = vrot.slane %v4815, 4
        %v4817 = vrot.slane %v3696, 5
        %v4818 = vsel %vm4737, %v4816, %v4817
        %v4819 = vrot.slane %v4817, 4
        %v4820 = vrot.slane %v3720, 5
        %v4821 = vsel %vm4737, %v4819, %v4820
        %v4822 = vrot.slane %v4699, 5
        %v4823 = vrot.slane %v4822, 4
        %v4824 = vrot.slane %v3698, 5
        %v4825 = vsel %vm4737, %v4823, %v4824
        %v4826 = vrot.slane %v4824, 4
        %v4827 = vrot.slane %v3721, 5
        %v4828 = vsel %vm4737, %v4826, %v4827
        %v4829 = vrot.slane %v4700, 5
        %v4830 = vrot.slane %v4829, 4
        %v4831 = vrot.slane %v3700, 5
        %v4832 = vsel %vm4737, %v4830, %v4831
        %v4833 = vrot.slane %v4831, 4
        %v4834 = vrot.slane %v3722, 5
        %v4835 = vsel %vm4737, %v4833, %v4834
        %v4836 = vrot.slane %v4701, 5
        %v4837 = vrot.slane %v4836, 4
        %v4838 = vrot.slane %v3702, 5
        %v4839 = vsel %vm4737, %v4837, %v4838
        %v4840 = vrot.slane %v4838, 4
        %v4841 = vrot.slane %v3723, 5
        %v4842 = vsel %vm4737, %v4840, %v4841
        %v4843 = vrot.slane %v4702, 5
        %v4844 = vrot.slane %v4843, 4
        %v4845 = vrot.slane %v3704, 5
        %v4846 = vsel %vm4737, %v4844, %v4845
        %v4847 = vrot.slane %v4845, 4
        %v4848 = vrot.slane %v3724, 5
        %v4849 = vsel %vm4737, %v4847, %v4848
        %s4850 = scalar_lea.vmem %s4, 32
        %v4851 = vld [vmem:[%s4850] sm:$0xf]
        %v4852 = vld [vmem:[%s4850 + $0x4] sm:$0xf]
        %v4853 = vld [vmem:[%s4850 + $0x8] sm:$0xf]
        %v4854 = vld [vmem:[%s4850 + $0xc] sm:$0xf]
        %v4855 = vunpack.c.l.b16 %v4741
        %v4856 = vunpack.c.l.b16 %v4744
        %v4857 = vunpack.c.l.b16 %v4748
        %v4858 = vunpack.c.l.b16 %v4751
        %v4859 = vunpack.c.l.b16 %v4755
        %v4860 = vunpack.c.l.b16 %v4758
        %v4861 = vunpack.c.l.b16 %v4762
        %v4862 = vunpack.c.l.b16 %v4765
        %v4863 = vunpack.c.l.b16 %v4769
        %v4864 = vunpack.c.l.b16 %v4772
        %v4865 = vunpack.c.l.b16 %v4776
        %v4866 = vunpack.c.l.b16 %v4779
        %v4867 = vunpack.c.l.b16 %v4783
        %v4868 = vunpack.c.l.b16 %v4786
        %v4869 = vunpack.c.l.b16 %v4790
        %v4870 = vunpack.c.l.b16 %v4793
        %v4871 = vunpack.c.l.b16 %v4797
        %v4872 = vunpack.c.l.b16 %v4800
        %v4873 = vunpack.c.l.b16 %v4804
        %v4874 = vunpack.c.l.b16 %v4807
        %v4875 = vunpack.c.l.b16 %v4811
        %v4876 = vunpack.c.l.b16 %v4814
        %v4877 = vunpack.c.l.b16 %v4818
        %v4878 = vunpack.c.l.b16 %v4821
        %v4879 = vunpack.c.l.b16 %v4825
        %v4880 = vunpack.c.l.b16 %v4828
        %v4881 = vunpack.c.l.b16 %v4832
        %v4882 = vunpack.c.l.b16 %v4835
        %v4883 = vunpack.c.l.b16 %v4839
        %v4884 = vunpack.c.l.b16 %v4842
        %v4885 = vunpack.c.l.b16 %v4846
        %v4886 = vunpack.c.l.b16 %v4849
        %v4887 = vpack.c.b16 %v4856, %v4855
        %v4888 = vpack.c.b16 %v4858, %v4857
        %v4889 = vpack.c.b16 %v4860, %v4859
        %v4890 = vpack.c.b16 %v4862, %v4861
        %v4891 = vpack.c.b16 %v4864, %v4863
        %v4892 = vpack.c.b16 %v4866, %v4865
        %v4893 = vpack.c.b16 %v4868, %v4867
        %v4894 = vpack.c.b16 %v4870, %v4869
        %v4895 = vpack.c.b16 %v4872, %v4871
        %v4896 = vpack.c.b16 %v4874, %v4873
        %v4897 = vpack.c.b16 %v4876, %v4875
        %v4898 = vpack.c.b16 %v4878, %v4877
        %v4899 = vpack.c.b16 %v4880, %v4879
        %v4900 = vpack.c.b16 %v4882, %v4881
        %v4901 = vpack.c.b16 %v4884, %v4883
        %v4902 = vpack.c.b16 %v4886, %v4885
        %v4907 = vunpack.c.l.b16 %v4851
        %v4908 = vunpack.c.l.b16 %v4852
        %v4909 = vunpack.c.l.b16 %v4853
        %v4910 = vunpack.c.l.b16 %v4854
        %v4911 = vpack.c.b16 %v4908, %v4907
        %v4912 = vpack.c.b16 %v4910, %v4909
        %v4916 = vsel %vm395, %v4887, 0
        %v4919 = vsel %vm395, %v4888, 0
        %v4922 = vsel %vm395, %v4889, 0
        %v4925 = vsel %vm395, %v4890, 0
        %v4928 = vsel %vm395, %v4891, 0
        %v4931 = vsel %vm395, %v4892, 0
        %v4934 = vsel %vm395, %v4893, 0
        %v4937 = vsel %vm395, %v4894, 0
        %v4940 = vsel %vm395, %v4895, 0
        %v4943 = vsel %vm395, %v4896, 0
        %v4946 = vsel %vm395, %v4897, 0
        %v4949 = vsel %vm395, %v4898, 0
        %v4952 = vsel %vm395, %v4899, 0
        %v4955 = vsel %vm395, %v4900, 0
        %v4958 = vsel %vm395, %v4901, 0
        %v4961 = vsel %vm395, %v4902, 0
        %4963 = vmatprep.subr.bf16.mxu0 0
        %4964 = vmatpush1.bf16.msra.mxu0 %v4911
        %4965 = vmatprep.subr.bf16.mxu0 0
        %4966 = vmatpush1.bf16.msra.mxu0 %v4912
        %4967 = vmatprep.subr.bf16.mxu0 0
        %4968 = vmatpush1.bf16.msra.mxu0 0
        %4969 = vmatprep.subr.bf16.mxu0 0
        %4970 = vmatpush1.bf16.msra.mxu0 0
        %4971 = vmatprep.subr.bf16.mxu0 0
        %4972 = vmatpush1.bf16.msra.mxu0 0
        %4973 = vmatprep.subr.bf16.mxu0 0
        %4974 = vmatpush1.bf16.msra.mxu0 0
        %4975 = vmatprep.subr.bf16.mxu0 0
        %4976 = vmatpush1.bf16.msra.mxu0 0
        %4977 = vmatprep.subr.bf16.mxu0 0
        %4978 = vmatpush1.bf16.msra.mxu0 0
        %4979 = vmatprep.subr.bf16.mxu0 0
        %4980 = vmatpush1.bf16.msra.mxu0 0
        %4981 = vmatprep.subr.bf16.mxu0 0
        %4982 = vmatpush1.bf16.msra.mxu0 0
        %4983 = vmatprep.subr.bf16.mxu0 0
        %4984 = vmatpush1.bf16.msra.mxu0 0
        %4985 = vmatprep.subr.bf16.mxu0 0
        %4986 = vmatpush1.bf16.msra.mxu0 0
        %4987 = vmatprep.subr.bf16.mxu0 0
        %4988 = vmatpush1.bf16.msra.mxu0 0
        %4989 = vmatprep.subr.bf16.mxu0 0
        %4990 = vmatpush1.bf16.msra.mxu0 0
        %4991 = vmatprep.subr.bf16.mxu0 0
        %4992 = vmatpush1.bf16.msra.mxu0 0
        %4993 = vmatprep.subr.bf16.mxu0 0
        %4994 = vmatpush1.bf16.msra.mxu0 0
        %4995 = vmatprep.mubr.bf16.mxu0 0
        %4996 = vmatmul.mubr.bf16.gmra.mrb[0].mxu0 %v4916
        %v4997 = vpop.f32.mrb[0].mxu0
        %v4998 = vadd.f32 0.0, %v4997
        %v4999 = vpop.f32.mrb[0].mxu0
        %v5000 = vpop.f32.mrb[0].mxu0
        %v5001 = vadd.f32 0.0, %v5000
        %v5002 = vpop.f32.mrb[0].mxu0
        %5003 = vmatprep.mubr.bf16.mxu0 0
        %5004 = vmatmul.mubr.bf16.gmra.mrb[0].mxu0 %v4919
        %v5005 = vpop.f32.mrb[0].mxu0
        %v5006 = vadd.f32 0.0, %v5005
        %v5007 = vpop.f32.mrb[0].mxu0
        %v5008 = vpop.f32.mrb[0].mxu0
        %v5009 = vadd.f32 0.0, %v5008
        %v5010 = vpop.f32.mrb[0].mxu0
        %5011 = vmatprep.mubr.bf16.mxu0 0
        %5012 = vmatmul.mubr.bf16.gmra.mrb[0].mxu0 %v4922
        %v5013 = vpop.f32.mrb[0].mxu0
        %v5014 = vadd.f32 0.0, %v5013
        %v5015 = vpop.f32.mrb[0].mxu0
        %v5016 = vpop.f32.mrb[0].mxu0
        %v5017 = vadd.f32 0.0, %v5016
        %v5018 = vpop.f32.mrb[0].mxu0
        %5019 = vmatprep.mubr.bf16.mxu0 0
        %5020 = vmatmul.mubr.bf16.gmra.mrb[0].mxu0 %v4925
        %v5021 = vpop.f32.mrb[0].mxu0
        %v5022 = vadd.f32 0.0, %v5021
        %v5023 = vpop.f32.mrb[0].mxu0
        %v5024 = vpop.f32.mrb[0].mxu0
        %v5025 = vadd.f32 0.0, %v5024
        %v5026 = vpop.f32.mrb[0].mxu0
        %5027 = vmatprep.mubr.bf16.mxu0 0
        %5028 = vmatmul.mubr.bf16.gmra.mrb[0].mxu0 %v4928
        %v5029 = vpop.f32.mrb[0].mxu0
        %v5030 = vadd.f32 0.0, %v5029
        %v5031 = vpop.f32.mrb[0].mxu0
        %v5032 = vpop.f32.mrb[0].mxu0
        %v5033 = vadd.f32 0.0, %v5032
        %v5034 = vpop.f32.mrb[0].mxu0
        %5035 = vmatprep.mubr.bf16.mxu0 0
        %5036 = vmatmul.mubr.bf16.gmra.mrb[0].mxu0 %v4931
        %v5037 = vpop.f32.mrb[0].mxu0
        %v5038 = vadd.f32 0.0, %v5037
        %v5039 = vpop.f32.mrb[0].mxu0
        %v5040 = vpop.f32.mrb[0].mxu0
        %v5041 = vadd.f32 0.0, %v5040
        %v5042 = vpop.f32.mrb[0].mxu0
        %5043 = vmatprep.mubr.bf16.mxu0 0
        %5044 = vmatmul.mubr.bf16.gmra.mrb[0].mxu0 %v4934
        %v5045 = vpop.f32.mrb[0].mxu0
        %v5046 = vadd.f32 0.0, %v5045
        %v5047 = vpop.f32.mrb[0].mxu0
        %v5048 = vpop.f32.mrb[0].mxu0
        %v5049 = vadd.f32 0.0, %v5048
        %v5050 = vpop.f32.mrb[0].mxu0
        %5051 = vmatprep.mubr.bf16.mxu0 0
        %5052 = vmatmul.mubr.bf16.gmra.mrb[0].mxu0 %v4937
        %v5053 = vpop.f32.mrb[0].mxu0
        %v5054 = vadd.f32 0.0, %v5053
        %v5055 = vpop.f32.mrb[0].mxu0
        %v5056 = vpop.f32.mrb[0].mxu0
        %v5057 = vadd.f32 0.0, %v5056
        %v5058 = vpop.f32.mrb[0].mxu0
        %5059 = vmatprep.mubr.bf16.mxu0 0
        %5060 = vmatmul.mubr.bf16.gmra.mrb[0].mxu0 %v4940
        %v5061 = vpop.f32.mrb[0].mxu0
        %v5062 = vadd.f32 0.0, %v5061
        %v5063 = vpop.f32.mrb[0].mxu0
        %v5064 = vpop.f32.mrb[0].mxu0
        %v5065 = vadd.f32 0.0, %v5064
        %v5066 = vpop.f32.mrb[0].mxu0
        %5067 = vmatprep.mubr.bf16.mxu0 0
        %5068 = vmatmul.mubr.bf16.gmra.mrb[0].mxu0 %v4943
        %v5069 = vpop.f32.mrb[0].mxu0
        %v5070 = vadd.f32 0.0, %v5069
        %v5071 = vpop.f32.mrb[0].mxu0
        %v5072 = vpop.f32.mrb[0].mxu0
        %v5073 = vadd.f32 0.0, %v5072
        %v5074 = vpop.f32.mrb[0].mxu0
        %5075 = vmatprep.mubr.bf16.mxu0 0
        %5076 = vmatmul.mubr.bf16.gmra.mrb[0].mxu0 %v4946
        %v5077 = vpop.f32.mrb[0].mxu0
        %v5078 = vadd.f32 0.0, %v5077
        %v5079 = vpop.f32.mrb[0].mxu0
        %v5080 = vpop.f32.mrb[0].mxu0
        %v5081 = vadd.f32 0.0, %v5080
        %v5082 = vpop.f32.mrb[0].mxu0
        %5083 = vmatprep.mubr.bf16.mxu0 0
        %5084 = vmatmul.mubr.bf16.gmra.mrb[0].mxu0 %v4949
        %v5085 = vpop.f32.mrb[0].mxu0
        %v5086 = vadd.f32 0.0, %v5085
        %v5087 = vpop.f32.mrb[0].mxu0
        %v5088 = vpop.f32.mrb[0].mxu0
        %v5089 = vadd.f32 0.0, %v5088
        %v5090 = vpop.f32.mrb[0].mxu0
        %5091 = vmatprep.mubr.bf16.mxu0 0
        %5092 = vmatmul.mubr.bf16.gmra.mrb[0].mxu0 %v4952
        %v5093 = vpop.f32.mrb[0].mxu0
        %v5094 = vadd.f32 0.0, %v5093
        %v5095 = vpop.f32.mrb[0].mxu0
        %v5096 = vpop.f32.mrb[0].mxu0
        %v5097 = vadd.f32 0.0, %v5096
        %v5098 = vpop.f32.mrb[0].mxu0
        %5099 = vmatprep.mubr.bf16.mxu0 0
        %5100 = vmatmul.mubr.bf16.gmra.mrb[0].mxu0 %v4955
        %v5101 = vpop.f32.mrb[0].mxu0
        %v5102 = vadd.f32 0.0, %v5101
        %v5103 = vpop.f32.mrb[0].mxu0
        %v5104 = vpop.f32.mrb[0].mxu0
        %v5105 = vadd.f32 0.0, %v5104
        %v5106 = vpop.f32.mrb[0].mxu0
        %5107 = vmatprep.mubr.bf16.mxu0 0
        %5108 = vmatmul.mubr.bf16.gmra.mrb[0].mxu0 %v4958
        %v5109 = vpop.f32.mrb[0].mxu0
        %v5110 = vadd.f32 0.0, %v5109
        %v5111 = vpop.f32.mrb[0].mxu0
        %v5112 = vpop.f32.mrb[0].mxu0
        %v5113 = vadd.f32 0.0, %v5112
        %v5114 = vpop.f32.mrb[0].mxu0
        %5115 = vmatprep.mubr.bf16.mxu0 0
        %5116 = vmatmul.mubr.bf16.gmra.mrb[0].mxu0 %v4961
        %v5117 = vpop.f32.mrb[0].mxu0
        %v5118 = vadd.f32 0.0, %v5117
        %v5119 = vpop.f32.mrb[0].mxu0
        %v5120 = vpop.f32.mrb[0].mxu0
        %v5121 = vadd.f32 0.0, %v5120
        %v5122 = vpop.f32.mrb[0].mxu0
        %5123 = vdwg.mxu0
        %v5124 = vadd.f32 %v4561, %v4998
        %v5125 = vadd.f32 %v4564, %v5001
        %v5126 = vadd.f32 %v4569, %v5006
        %v5127 = vadd.f32 %v4572, %v5009
        %v5128 = vadd.f32 %v4577, %v5014
        %v5129 = vadd.f32 %v4580, %v5017
        %v5130 = vadd.f32 %v4585, %v5022
        %v5131 = vadd.f32 %v4588, %v5025
        %v5132 = vadd.f32 %v4593, %v5030
        %v5133 = vadd.f32 %v4596, %v5033
        %v5134 = vadd.f32 %v4601, %v5038
        %v5135 = vadd.f32 %v4604, %v5041
        %v5136 = vadd.f32 %v4609, %v5046
        %v5137 = vadd.f32 %v4612, %v5049
        %v5138 = vadd.f32 %v4617, %v5054
        %v5139 = vadd.f32 %v4620, %v5057
        %v5140 = vadd.f32 %v4625, %v5062
        %v5141 = vadd.f32 %v4628, %v5065
        %v5142 = vadd.f32 %v4633, %v5070
        %v5143 = vadd.f32 %v4636, %v5073
        %v5144 = vadd.f32 %v4641, %v5078
        %v5145 = vadd.f32 %v4644, %v5081
        %v5146 = vadd.f32 %v4649, %v5086
        %v5147 = vadd.f32 %v4652, %v5089
        %v5148 = vadd.f32 %v4657, %v5094
        %v5149 = vadd.f32 %v4660, %v5097
        %v5150 = vadd.f32 %v4665, %v5102
        %v5151 = vadd.f32 %v4668, %v5105
        %v5152 = vadd.f32 %v4673, %v5110
        %v5153 = vadd.f32 %v4676, %v5113
        %v5154 = vadd.f32 %v4681, %v5118
        %v5155 = vadd.f32 %v4684, %v5121
        %v5156 = vld [vmem:[%s3555] sm:$0xf]
        %v5157 = vld [vmem:[%s3555 + $0x4] sm:$0xf]
        %v5158 = vld [vmem:[%s3555 + $0xc] sm:$0xf]
        %v5159 = vld [vmem:[%s3555 + $0x10] sm:$0xf]
        %v5160 = vld [vmem:[%s3555 + $0x18] sm:$0xf]
        %v5161 = vld [vmem:[%s3555 + $0x1c] sm:$0xf]
        %v5162 = vld [vmem:[%s3555 + $0x24] sm:$0xf]
        %v5163 = vld [vmem:[%s3555 + $0x28] sm:$0xf]
        %v5164 = vld [vmem:[%s3555 + $0x30] sm:$0xf]
        %v5165 = vld [vmem:[%s3555 + $0x34] sm:$0xf]
        %v5166 = vld [vmem:[%s3555 + $0x3c] sm:$0xf]
        %v5167 = vld [vmem:[%s3555 + $0x40] sm:$0xf]
        %v5168 = vld [vmem:[%s3555 + $0x48] sm:$0xf]
        %v5169 = vld [vmem:[%s3555 + $0x4c] sm:$0xf]
        %v5170 = vld [vmem:[%s3555 + $0x54] sm:$0xf]
        %v5171 = vld [vmem:[%s3555 + $0x58] sm:$0xf]
        %v5172 = vld [vmem:[%s3555 + $0x60] sm:$0xf]
        %v5173 = vld [vmem:[%s3555 + $0x64] sm:$0xf]
        %v5174 = vld [vmem:[%s3555 + $0x6c] sm:$0xf]
        %v5175 = vld [vmem:[%s3555 + $0x70] sm:$0xf]
        %v5176 = vld [vmem:[%s3555 + $0x78] sm:$0xf]
        %v5177 = vld [vmem:[%s3555 + $0x7c] sm:$0xf]
        %v5178 = vld [vmem:[%s3555 + $0x84] sm:$0xf]
        %v5179 = vld [vmem:[%s3555 + $0x88] sm:$0xf]
        %v5180 = vld [vmem:[%s3555 + $0x90] sm:$0xf]
        %v5181 = vld [vmem:[%s3555 + $0x94] sm:$0xf]
        %v5182 = vld [vmem:[%s3555 + $0x9c] sm:$0xf]
        %v5183 = vld [vmem:[%s3555 + $0xa0] sm:$0xf]
        %v5184 = vld [vmem:[%s3555 + $0xa8] sm:$0xf]
        %v5185 = vld [vmem:[%s3555 + $0xac] sm:$0xf]
        %v5186 = vld [vmem:[%s3555 + $0xb4] sm:$0xf]
        %v5187 = vld [vmem:[%s3555 + $0xb8] sm:$0xf]
        %s5188 = scalar_lea.vmem %s4, 48
        %v5189 = vld [vmem:[%s5188] sm:$0xf]
        %v5190 = vld [vmem:[%s5188 + $0x4] sm:$0xf]
        %v5191 = vld [vmem:[%s5188 + $0x8] sm:$0xf]
        %v5192 = vld [vmem:[%s5188 + $0xc] sm:$0xf]
        %v5225 = vunpack.c.l.b16 %v5156
        %v5226 = vunpack.c.l.b16 %v5157
        %v5227 = vunpack.c.l.b16 %v5158
        %v5228 = vunpack.c.l.b16 %v5159
        %v5229 = vunpack.c.l.b16 %v5160
        %v5230 = vunpack.c.l.b16 %v5161
        %v5231 = vunpack.c.l.b16 %v5162
        %v5232 = vunpack.c.l.b16 %v5163
        %v5233 = vunpack.c.l.b16 %v5164
        %v5234 = vunpack.c.l.b16 %v5165
        %v5235 = vunpack.c.l.b16 %v5166
        %v5236 = vunpack.c.l.b16 %v5167
        %v5237 = vunpack.c.l.b16 %v5168
        %v5238 = vunpack.c.l.b16 %v5169
        %v5239 = vunpack.c.l.b16 %v5170
        %v5240 = vunpack.c.l.b16 %v5171
        %v5241 = vunpack.c.l.b16 %v5172
        %v5242 = vunpack.c.l.b16 %v5173
        %v5243 = vunpack.c.l.b16 %v5174
        %v5244 = vunpack.c.l.b16 %v5175
        %v5245 = vunpack.c.l.b16 %v5176
        %v5246 = vunpack.c.l.b16 %v5177
        %v5247 = vunpack.c.l.b16 %v5178
        %v5248 = vunpack.c.l.b16 %v5179
        %v5249 = vunpack.c.l.b16 %v5180
        %v5250 = vunpack.c.l.b16 %v5181
        %v5251 = vunpack.c.l.b16 %v5182
        %v5252 = vunpack.c.l.b16 %v5183
        %v5253 = vunpack.c.l.b16 %v5184
        %v5254 = vunpack.c.l.b16 %v5185
        %v5255 = vunpack.c.l.b16 %v5186
        %v5256 = vunpack.c.l.b16 %v5187
        %v5257 = vpack.c.b16 %v5226, %v5225
        %v5258 = vpack.c.b16 %v5228, %v5227
        %v5259 = vpack.c.b16 %v5230, %v5229
        %v5260 = vpack.c.b16 %v5232, %v5231
        %v5261 = vpack.c.b16 %v5234, %v5233
        %v5262 = vpack.c.b16 %v5236, %v5235
        %v5263 = vpack.c.b16 %v5238, %v5237
        %v5264 = vpack.c.b16 %v5240, %v5239
        %v5265 = vpack.c.b16 %v5242, %v5241
        %v5266 = vpack.c.b16 %v5244, %v5243
        %v5267 = vpack.c.b16 %v5246, %v5245
        %v5268 = vpack.c.b16 %v5248, %v5247
        %v5269 = vpack.c.b16 %v5250, %v5249
        %v5270 = vpack.c.b16 %v5252, %v5251
        %v5271 = vpack.c.b16 %v5254, %v5253
        %v5272 = vpack.c.b16 %v5256, %v5255
        %v5277 = vunpack.c.l.b16 %v5189
        %v5278 = vunpack.c.l.b16 %v5190
        %v5279 = vunpack.c.l.b16 %v5191
        %v5280 = vunpack.c.l.b16 %v5192
        %v5281 = vpack.c.b16 %v5278, %v5277
        %v5282 = vpack.c.b16 %v5280, %v5279
        %v5286 = vsel %vm395, %v5257, 0
        %v5289 = vsel %vm395, %v5258, 0
        %v5292 = vsel %vm395, %v5259, 0
        %v5295 = vsel %vm395, %v5260, 0
        %v5298 = vsel %vm395, %v5261, 0
        %v5301 = vsel %vm395, %v5262, 0
        %v5304 = vsel %vm395, %v5263, 0
        %v5307 = vsel %vm395, %v5264, 0
        %v5310 = vsel %vm395, %v5265, 0
        %v5313 = vsel %vm395, %v5266, 0
        %v5316 = vsel %vm395, %v5267, 0
        %v5319 = vsel %vm395, %v5268, 0
        %v5322 = vsel %vm395, %v5269, 0
        %v5325 = vsel %vm395, %v5270, 0
        %v5328 = vsel %vm395, %v5271, 0
        %v5331 = vsel %vm395, %v5272, 0
        %5333 = vmatprep.subr.bf16.mxu0 0
        %5334 = vmatpush1.bf16.msra.mxu0 %v5281
        %5335 = vmatprep.subr.bf16.mxu0 0
        %5336 = vmatpush1.bf16.msra.mxu0 %v5282
        %5337 = vmatprep.subr.bf16.mxu0 0
        %5338 = vmatpush1.bf16.msra.mxu0 0
        %5339 = vmatprep.subr.bf16.mxu0 0
        %5340 = vmatpush1.bf16.msra.mxu0 0
        %5341 = vmatprep.subr.bf16.mxu0 0
        %5342 = vmatpush1.bf16.msra.mxu0 0
        %5343 = vmatprep.subr.bf16.mxu0 0
        %5344 = vmatpush1.bf16.msra.mxu0 0
        %5345 = vmatprep.subr.bf16.mxu0 0
        %5346 = vmatpush1.bf16.msra.mxu0 0
        %5347 = vmatprep.subr.bf16.mxu0 0
        %5348 = vmatpush1.bf16.msra.mxu0 0
        %5349 = vmatprep.subr.bf16.mxu0 0
        %5350 = vmatpush1.bf16.msra.mxu0 0
        %5351 = vmatprep.subr.bf16.mxu0 0
        %5352 = vmatpush1.bf16.msra.mxu0 0
        %5353 = vmatprep.subr.bf16.mxu0 0
        %5354 = vmatpush1.bf16.msra.mxu0 0
        %5355 = vmatprep.subr.bf16.mxu0 0
        %5356 = vmatpush1.bf16.msra.mxu0 0
        %5357 = vmatprep.subr.bf16.mxu0 0
        %5358 = vmatpush1.bf16.msra.mxu0 0
        %5359 = vmatprep.subr.bf16.mxu0 0
        %5360 = vmatpush1.bf16.msra.mxu0 0
        %5361 = vmatprep.subr.bf16.mxu0 0
        %5362 = vmatpush1.bf16.msra.mxu0 0
        %5363 = vmatprep.subr.bf16.mxu0 0
        %5364 = vmatpush1.bf16.msra.mxu0 0
        %5365 = vmatprep.mubr.bf16.mxu0 0
        %5366 = vmatmul.mubr.bf16.gmra.mrb[0].mxu0 %v5286
        %v5367 = vpop.f32.mrb[0].mxu0
        %v5368 = vadd.f32 0.0, %v5367
        %v5369 = vpop.f32.mrb[0].mxu0
        %v5370 = vpop.f32.mrb[0].mxu0
        %v5371 = vadd.f32 0.0, %v5370
        %v5372 = vpop.f32.mrb[0].mxu0
        %5373 = vmatprep.mubr.bf16.mxu0 0
        %5374 = vmatmul.mubr.bf16.gmra.mrb[0].mxu0 %v5289
        %v5375 = vpop.f32.mrb[0].mxu0
        %v5376 = vadd.f32 0.0, %v5375
        %v5377 = vpop.f32.mrb[0].mxu0
        %v5378 = vpop.f32.mrb[0].mxu0
        %v5379 = vadd.f32 0.0, %v5378
        %v5380 = vpop.f32.mrb[0].mxu0
        %5381 = vmatprep.mubr.bf16.mxu0 0
        %5382 = vmatmul.mubr.bf16.gmra.mrb[0].mxu0 %v5292
        %v5383 = vpop.f32.mrb[0].mxu0
        %v5384 = vadd.f32 0.0, %v5383
        %v5385 = vpop.f32.mrb[0].mxu0
        %v5386 = vpop.f32.mrb[0].mxu0
        %v5387 = vadd.f32 0.0, %v5386
        %v5388 = vpop.f32.mrb[0].mxu0
        %5389 = vmatprep.mubr.bf16.mxu0 0
        %5390 = vmatmul.mubr.bf16.gmra.mrb[0].mxu0 %v5295
        %v5391 = vpop.f32.mrb[0].mxu0
        %v5392 = vadd.f32 0.0, %v5391
        %v5393 = vpop.f32.mrb[0].mxu0
        %v5394 = vpop.f32.mrb[0].mxu0
        %v5395 = vadd.f32 0.0, %v5394
        %v5396 = vpop.f32.mrb[0].mxu0
        %5397 = vmatprep.mubr.bf16.mxu0 0
        %5398 = vmatmul.mubr.bf16.gmra.mrb[0].mxu0 %v5298
        %v5399 = vpop.f32.mrb[0].mxu0
        %v5400 = vadd.f32 0.0, %v5399
        %v5401 = vpop.f32.mrb[0].mxu0
        %v5402 = vpop.f32.mrb[0].mxu0
        %v5403 = vadd.f32 0.0, %v5402
        %v5404 = vpop.f32.mrb[0].mxu0
        %5405 = vmatprep.mubr.bf16.mxu0 0
        %5406 = vmatmul.mubr.bf16.gmra.mrb[0].mxu0 %v5301
        %v5407 = vpop.f32.mrb[0].mxu0
        %v5408 = vadd.f32 0.0, %v5407
        %v5409 = vpop.f32.mrb[0].mxu0
        %v5410 = vpop.f32.mrb[0].mxu0
        %v5411 = vadd.f32 0.0, %v5410
        %v5412 = vpop.f32.mrb[0].mxu0
        %5413 = vmatprep.mubr.bf16.mxu0 0
        %5414 = vmatmul.mubr.bf16.gmra.mrb[0].mxu0 %v5304
        %v5415 = vpop.f32.mrb[0].mxu0
        %v5416 = vadd.f32 0.0, %v5415
        %v5417 = vpop.f32.mrb[0].mxu0
        %v5418 = vpop.f32.mrb[0].mxu0
        %v5419 = vadd.f32 0.0, %v5418
        %v5420 = vpop.f32.mrb[0].mxu0
        %5421 = vmatprep.mubr.bf16.mxu0 0
        %5422 = vmatmul.mubr.bf16.gmra.mrb[0].mxu0 %v5307
        %v5423 = vpop.f32.mrb[0].mxu0
        %v5424 = vadd.f32 0.0, %v5423
        %v5425 = vpop.f32.mrb[0].mxu0
        %v5426 = vpop.f32.mrb[0].mxu0
        %v5427 = vadd.f32 0.0, %v5426
        %v5428 = vpop.f32.mrb[0].mxu0
        %5429 = vmatprep.mubr.bf16.mxu0 0
        %5430 = vmatmul.mubr.bf16.gmra.mrb[0].mxu0 %v5310
        %v5431 = vpop.f32.mrb[0].mxu0
        %v5432 = vadd.f32 0.0, %v5431
        %v5433 = vpop.f32.mrb[0].mxu0
        %v5434 = vpop.f32.mrb[0].mxu0
        %v5435 = vadd.f32 0.0, %v5434
        %v5436 = vpop.f32.mrb[0].mxu0
        %5437 = vmatprep.mubr.bf16.mxu0 0
        %5438 = vmatmul.mubr.bf16.gmra.mrb[0].mxu0 %v5313
        %v5439 = vpop.f32.mrb[0].mxu0
        %v5440 = vadd.f32 0.0, %v5439
        %v5441 = vpop.f32.mrb[0].mxu0
        %v5442 = vpop.f32.mrb[0].mxu0
        %v5443 = vadd.f32 0.0, %v5442
        %v5444 = vpop.f32.mrb[0].mxu0
        %5445 = vmatprep.mubr.bf16.mxu0 0
        %5446 = vmatmul.mubr.bf16.gmra.mrb[0].mxu0 %v5316
        %v5447 = vpop.f32.mrb[0].mxu0
        %v5448 = vadd.f32 0.0, %v5447
        %v5449 = vpop.f32.mrb[0].mxu0
        %v5450 = vpop.f32.mrb[0].mxu0
        %v5451 = vadd.f32 0.0, %v5450
        %v5452 = vpop.f32.mrb[0].mxu0
        %5453 = vmatprep.mubr.bf16.mxu0 0
        %5454 = vmatmul.mubr.bf16.gmra.mrb[0].mxu0 %v5319
        %v5455 = vpop.f32.mrb[0].mxu0
        %v5456 = vadd.f32 0.0, %v5455
        %v5457 = vpop.f32.mrb[0].mxu0
        %v5458 = vpop.f32.mrb[0].mxu0
        %v5459 = vadd.f32 0.0, %v5458
        %v5460 = vpop.f32.mrb[0].mxu0
        %5461 = vmatprep.mubr.bf16.mxu0 0
        %5462 = vmatmul.mubr.bf16.gmra.mrb[0].mxu0 %v5322
        %v5463 = vpop.f32.mrb[0].mxu0
        %v5464 = vadd.f32 0.0, %v5463
        %v5465 = vpop.f32.mrb[0].mxu0
        %v5466 = vpop.f32.mrb[0].mxu0
        %v5467 = vadd.f32 0.0, %v5466
        %v5468 = vpop.f32.mrb[0].mxu0
        %5469 = vmatprep.mubr.bf16.mxu0 0
        %5470 = vmatmul.mubr.bf16.gmra.mrb[0].mxu0 %v5325
        %v5471 = vpop.f32.mrb[0].mxu0
        %v5472 = vadd.f32 0.0, %v5471
        %v5473 = vpop.f32.mrb[0].mxu0
        %v5474 = vpop.f32.mrb[0].mxu0
        %v5475 = vadd.f32 0.0, %v5474
        %v5476 = vpop.f32.mrb[0].mxu0
        %5477 = vmatprep.mubr.bf16.mxu0 0
        %5478 = vmatmul.mubr.bf16.gmra.mrb[0].mxu0 %v5328
        %v5479 = vpop.f32.mrb[0].mxu0
        %v5480 = vadd.f32 0.0, %v5479
        %v5481 = vpop.f32.mrb[0].mxu0
        %v5482 = vpop.f32.mrb[0].mxu0
        %v5483 = vadd.f32 0.0, %v5482
        %v5484 = vpop.f32.mrb[0].mxu0
        %5485 = vmatprep.mubr.bf16.mxu0 0
        %5486 = vmatmul.mubr.bf16.gmra.mrb[0].mxu0 %v5331
        %v5487 = vpop.f32.mrb[0].mxu0
        %v5488 = vadd.f32 0.0, %v5487
        %v5489 = vpop.f32.mrb[0].mxu0
        %v5490 = vpop.f32.mrb[0].mxu0
        %v5491 = vadd.f32 0.0, %v5490
        %v5492 = vpop.f32.mrb[0].mxu0
        %5493 = vdwg.mxu0
        %v5494 = vadd.f32 %v5124, %v5368
        %v5495 = vadd.f32 %v5125, %v5371
        %v5496 = vadd.f32 %v5126, %v5376
        %v5497 = vadd.f32 %v5127, %v5379
        %v5498 = vadd.f32 %v5128, %v5384
        %v5499 = vadd.f32 %v5129, %v5387
        %v5500 = vadd.f32 %v5130, %v5392
        %v5501 = vadd.f32 %v5131, %v5395
        %v5502 = vadd.f32 %v5132, %v5400
        %v5503 = vadd.f32 %v5133, %v5403
        %v5504 = vadd.f32 %v5134, %v5408
        %v5505 = vadd.f32 %v5135, %v5411
        %v5506 = vadd.f32 %v5136, %v5416
        %v5507 = vadd.f32 %v5137, %v5419
        %v5508 = vadd.f32 %v5138, %v5424
        %v5509 = vadd.f32 %v5139, %v5427
        %v5510 = vadd.f32 %v5140, %v5432
        %v5511 = vadd.f32 %v5141, %v5435
        %v5512 = vadd.f32 %v5142, %v5440
        %v5513 = vadd.f32 %v5143, %v5443
        %v5514 = vadd.f32 %v5144, %v5448
        %v5515 = vadd.f32 %v5145, %v5451
        %v5516 = vadd.f32 %v5146, %v5456
        %v5517 = vadd.f32 %v5147, %v5459
        %v5518 = vadd.f32 %v5148, %v5464
        %v5519 = vadd.f32 %v5149, %v5467
        %v5520 = vadd.f32 %v5150, %v5472
        %v5521 = vadd.f32 %v5151, %v5475
        %v5522 = vadd.f32 %v5152, %v5480
        %v5523 = vadd.f32 %v5153, %v5483
        %v5524 = vadd.f32 %v5154, %v5488
        %v5525 = vadd.f32 %v5155, %v5491
        %v5526 = vld [vmem:[%s3555] sm:$0xf]
        %v5527 = vld [vmem:[%s3555 + $0x4] sm:$0xf]
        %v5528 = vld [vmem:[%s3555 + $0x8] sm:$0x1]
        %v5529 = vld [vmem:[%s3555 + $0xc] sm:$0xf]
        %v5530 = vld [vmem:[%s3555 + $0x10] sm:$0xf]
        %v5531 = vld [vmem:[%s3555 + $0x14] sm:$0x1]
        %v5532 = vld [vmem:[%s3555 + $0x18] sm:$0xf]
        %v5533 = vld [vmem:[%s3555 + $0x1c] sm:$0xf]
        %v5534 = vld [vmem:[%s3555 + $0x20] sm:$0x1]
        %v5535 = vld [vmem:[%s3555 + $0x24] sm:$0xf]
        %v5536 = vld [vmem:[%s3555 + $0x28] sm:$0xf]
        %v5537 = vld [vmem:[%s3555 + $0x2c] sm:$0x1]
        %v5538 = vld [vmem:[%s3555 + $0x30] sm:$0xf]
        %v5539 = vld [vmem:[%s3555 + $0x34] sm:$0xf]
        %v5540 = vld [vmem:[%s3555 + $0x38] sm:$0x1]
        %v5541 = vld [vmem:[%s3555 + $0x3c] sm:$0xf]
        %v5542 = vld [vmem:[%s3555 + $0x40] sm:$0xf]
        %v5543 = vld [vmem:[%s3555 + $0x44] sm:$0x1]
        %v5544 = vld [vmem:[%s3555 + $0x48] sm:$0xf]
        %v5545 = vld [vmem:[%s3555 + $0x4c] sm:$0xf]
        %v5546 = vld [vmem:[%s3555 + $0x50] sm:$0x1]
        %v5547 = vld [vmem:[%s3555 + $0x54] sm:$0xf]
        %v5548 = vld [vmem:[%s3555 + $0x58] sm:$0xf]
        %v5549 = vld [vmem:[%s3555 + $0x5c] sm:$0x1]
        %v5550 = vld [vmem:[%s3555 + $0x60] sm:$0xf]
        %v5551 = vld [vmem:[%s3555 + $0x64] sm:$0xf]
        %v5552 = vld [vmem:[%s3555 + $0x68] sm:$0x1]
        %v5553 = vld [vmem:[%s3555 + $0x6c] sm:$0xf]
        %v5554 = vld [vmem:[%s3555 + $0x70] sm:$0xf]
        %v5555 = vld [vmem:[%s3555 + $0x74] sm:$0x1]
        %v5556 = vld [vmem:[%s3555 + $0x78] sm:$0xf]
        %v5557 = vld [vmem:[%s3555 + $0x7c] sm:$0xf]
        %v5558 = vld [vmem:[%s3555 + $0x80] sm:$0x1]
        %v5559 = vld [vmem:[%s3555 + $0x84] sm:$0xf]
        %v5560 = vld [vmem:[%s3555 + $0x88] sm:$0xf]
        %v5561 = vld [vmem:[%s3555 + $0x8c] sm:$0x1]
        %v5562 = vld [vmem:[%s3555 + $0x90] sm:$0xf]
        %v5563 = vld [vmem:[%s3555 + $0x94] sm:$0xf]
        %v5564 = vld [vmem:[%s3555 + $0x98] sm:$0x1]
        %v5565 = vld [vmem:[%s3555 + $0x9c] sm:$0xf]
        %v5566 = vld [vmem:[%s3555 + $0xa0] sm:$0xf]
        %v5567 = vld [vmem:[%s3555 + $0xa4] sm:$0x1]
        %v5568 = vld [vmem:[%s3555 + $0xa8] sm:$0xf]
        %v5569 = vld [vmem:[%s3555 + $0xac] sm:$0xf]
        %v5570 = vld [vmem:[%s3555 + $0xb0] sm:$0x1]
        %v5571 = vld [vmem:[%s3555 + $0xb4] sm:$0xf]
        %v5572 = vld [vmem:[%s3555 + $0xb8] sm:$0xf]
        %v5573 = vld [vmem:[%s3555 + $0xbc] sm:$0x1]
        %v5575 = vshrl.u32 %v5526, 16
        %v5577 = vrot.slane %v5575, 4
        %v5578 = vshll.u32 %v5526, 16
        %v5580 = vrot.slane %v5578, 5
        %v5581 = vor.u32 %v5577, %v5580
        %v5582 = vrot.slane %v5581, 4
        %v5584 = vshll.u32 %v5527, 16
        %v5586 = vrot.slane %v5584, 5
        %v5587 = vsel %vm3727, %v5582, %v5586
        %v5588 = vshrl.u32 %v5527, 16
        %v5590 = vrot.slane %v5588, 4
        %v5591 = vor.u32 %v5590, %v5586
        %v5592 = vrot.slane %v5591, 4
        %v5594 = vshll.u32 %v5528, 16
        %v5596 = vrot.slane %v5594, 5
        %v5597 = vsel %vm3727, %v5592, %v5596
        %v5599 = vshrl.u32 %v5529, 16
        %v5601 = vrot.slane %v5599, 4
        %v5602 = vshll.u32 %v5529, 16
        %v5604 = vrot.slane %v5602, 5
        %v5605 = vor.u32 %v5601, %v5604
        %v5606 = vrot.slane %v5605, 4
        %v5608 = vshll.u32 %v5530, 16
        %v5610 = vrot.slane %v5608, 5
        %v5611 = vsel %vm3727, %v5606, %v5610
        %v5612 = vshrl.u32 %v5530, 16
        %v5614 = vrot.slane %v5612, 4
        %v5615 = vor.u32 %v5614, %v5610
        %v5616 = vrot.slane %v5615, 4
        %v5618 = vshll.u32 %v5531, 16
        %v5620 = vrot.slane %v5618, 5
        %v5621 = vsel %vm3727, %v5616, %v5620
        %v5623 = vshrl.u32 %v5532, 16
        %v5625 = vrot.slane %v5623, 4
        %v5626 = vshll.u32 %v5532, 16
        %v5628 = vrot.slane %v5626, 5
        %v5629 = vor.u32 %v5625, %v5628
        %v5630 = vrot.slane %v5629, 4
        %v5632 = vshll.u32 %v5533, 16
        %v5634 = vrot.slane %v5632, 5
        %v5635 = vsel %vm3727, %v5630, %v5634
        %v5636 = vshrl.u32 %v5533, 16
        %v5638 = vrot.slane %v5636, 4
        %v5639 = vor.u32 %v5638, %v5634
        %v5640 = vrot.slane %v5639, 4
        %v5642 = vshll.u32 %v5534, 16
        %v5644 = vrot.slane %v5642, 5
        %v5645 = vsel %vm3727, %v5640, %v5644
        %v5647 = vshrl.u32 %v5535, 16
        %v5649 = vrot.slane %v5647, 4
        %v5650 = vshll.u32 %v5535, 16
        %v5652 = vrot.slane %v5650, 5
        %v5653 = vor.u32 %v5649, %v5652
        %v5654 = vrot.slane %v5653, 4
        %v5656 = vshll.u32 %v5536, 16
        %v5658 = vrot.slane %v5656, 5
        %v5659 = vsel %vm3727, %v5654, %v5658
        %v5660 = vshrl.u32 %v5536, 16
        %v5662 = vrot.slane %v5660, 4
        %v5663 = vor.u32 %v5662, %v5658
        %v5664 = vrot.slane %v5663, 4
        %v5666 = vshll.u32 %v5537, 16
        %v5668 = vrot.slane %v5666, 5
        %v5669 = vsel %vm3727, %v5664, %v5668
        %v5671 = vshrl.u32 %v5538, 16
        %v5673 = vrot.slane %v5671, 4
        %v5674 = vshll.u32 %v5538, 16
        %v5676 = vrot.slane %v5674, 5
        %v5677 = vor.u32 %v5673, %v5676
        %v5678 = vrot.slane %v5677, 4
        %v5680 = vshll.u32 %v5539, 16
        %v5682 = vrot.slane %v5680, 5
        %v5683 = vsel %vm3727, %v5678, %v5682
        %v5684 = vshrl.u32 %v5539, 16
        %v5686 = vrot.slane %v5684, 4
        %v5687 = vor.u32 %v5686, %v5682
        %v5688 = vrot.slane %v5687, 4
        %v5690 = vshll.u32 %v5540, 16
        %v5692 = vrot.slane %v5690, 5
        %v5693 = vsel %vm3727, %v5688, %v5692
        %v5695 = vshrl.u32 %v5541, 16
        %v5697 = vrot.slane %v5695, 4
        %v5698 = vshll.u32 %v5541, 16
        %v5700 = vrot.slane %v5698, 5
        %v5701 = vor.u32 %v5697, %v5700
        %v5702 = vrot.slane %v5701, 4
        %v5704 = vshll.u32 %v5542, 16
        %v5706 = vrot.slane %v5704, 5
        %v5707 = vsel %vm3727, %v5702, %v5706
        %v5708 = vshrl.u32 %v5542, 16
        %v5710 = vrot.slane %v5708, 4
        %v5711 = vor.u32 %v5710, %v5706
        %v5712 = vrot.slane %v5711, 4
        %v5714 = vshll.u32 %v5543, 16
        %v5716 = vrot.slane %v5714, 5
        %v5717 = vsel %vm3727, %v5712, %v5716
        %v5719 = vshrl.u32 %v5544, 16
        %v5721 = vrot.slane %v5719, 4
        %v5722 = vshll.u32 %v5544, 16
        %v5724 = vrot.slane %v5722, 5
        %v5725 = vor.u32 %v5721, %v5724
        %v5726 = vrot.slane %v5725, 4
        %v5728 = vshll.u32 %v5545, 16
        %v5730 = vrot.slane %v5728, 5
        %v5731 = vsel %vm3727, %v5726, %v5730
        %v5732 = vshrl.u32 %v5545, 16
        %v5734 = vrot.slane %v5732, 4
        %v5735 = vor.u32 %v5734, %v5730
        %v5736 = vrot.slane %v5735, 4
        %v5738 = vshll.u32 %v5546, 16
        %v5740 = vrot.slane %v5738, 5
        %v5741 = vsel %vm3727, %v5736, %v5740
        %v5743 = vshrl.u32 %v5547, 16
        %v5745 = vrot.slane %v5743, 4
        %v5746 = vshll.u32 %v5547, 16
        %v5748 = vrot.slane %v5746, 5
        %v5749 = vor.u32 %v5745, %v5748
        %v5750 = vrot.slane %v5749, 4
        %v5752 = vshll.u32 %v5548, 16
        %v5754 = vrot.slane %v5752, 5
        %v5755 = vsel %vm3727, %v5750, %v5754
        %v5756 = vshrl.u32 %v5548, 16
        %v5758 = vrot.slane %v5756, 4
        %v5759 = vor.u32 %v5758, %v5754
        %v5760 = vrot.slane %v5759, 4
        %v5762 = vshll.u32 %v5549, 16
        %v5764 = vrot.slane %v5762, 5
        %v5765 = vsel %vm3727, %v5760, %v5764
        %v5767 = vshrl.u32 %v5550, 16
        %v5769 = vrot.slane %v5767, 4
        %v5770 = vshll.u32 %v5550, 16
        %v5772 = vrot.slane %v5770, 5
        %v5773 = vor.u32 %v5769, %v5772
        %v5774 = vrot.slane %v5773, 4
        %v5776 = vshll.u32 %v5551, 16
        %v5778 = vrot.slane %v5776, 5
        %v5779 = vsel %vm3727, %v5774, %v5778
        %v5780 = vshrl.u32 %v5551, 16
        %v5782 = vrot.slane %v5780, 4
        %v5783 = vor.u32 %v5782, %v5778
        %v5784 = vrot.slane %v5783, 4
        %v5786 = vshll.u32 %v5552, 16
        %v5788 = vrot.slane %v5786, 5
        %v5789 = vsel %vm3727, %v5784, %v5788
        %v5791 = vshrl.u32 %v5553, 16
        %v5793 = vrot.slane %v5791, 4
        %v5794 = vshll.u32 %v5553, 16
        %v5796 = vrot.slane %v5794, 5
        %v5797 = vor.u32 %v5793, %v5796
        %v5798 = vrot.slane %v5797, 4
        %v5800 = vshll.u32 %v5554, 16
        %v5802 = vrot.slane %v5800, 5
        %v5803 = vsel %vm3727, %v5798, %v5802
        %v5804 = vshrl.u32 %v5554, 16
        %v5806 = vrot.slane %v5804, 4
        %v5807 = vor.u32 %v5806, %v5802
        %v5808 = vrot.slane %v5807, 4
        %v5810 = vshll.u32 %v5555, 16
        %v5812 = vrot.slane %v5810, 5
        %v5813 = vsel %vm3727, %v5808, %v5812
        %v5815 = vshrl.u32 %v5556, 16
        %v5817 = vrot.slane %v5815, 4
        %v5818 = vshll.u32 %v5556, 16
        %v5820 = vrot.slane %v5818, 5
        %v5821 = vor.u32 %v5817, %v5820
        %v5822 = vrot.slane %v5821, 4
        %v5824 = vshll.u32 %v5557, 16
        %v5826 = vrot.slane %v5824, 5
        %v5827 = vsel %vm3727, %v5822, %v5826
        %v5828 = vshrl.u32 %v5557, 16
        %v5830 = vrot.slane %v5828, 4
        %v5831 = vor.u32 %v5830, %v5826
        %v5832 = vrot.slane %v5831, 4
        %v5834 = vshll.u32 %v5558, 16
        %v5836 = vrot.slane %v5834, 5
        %v5837 = vsel %vm3727, %v5832, %v5836
        %v5839 = vshrl.u32 %v5559, 16
        %v5841 = vrot.slane %v5839, 4
        %v5842 = vshll.u32 %v5559, 16
        %v5844 = vrot.slane %v5842, 5
        %v5845 = vor.u32 %v5841, %v5844
        %v5846 = vrot.slane %v5845, 4
        %v5848 = vshll.u32 %v5560, 16
        %v5850 = vrot.slane %v5848, 5
        %v5851 = vsel %vm3727, %v5846, %v5850
        %v5852 = vshrl.u32 %v5560, 16
        %v5854 = vrot.slane %v5852, 4
        %v5855 = vor.u32 %v5854, %v5850
        %v5856 = vrot.slane %v5855, 4
        %v5858 = vshll.u32 %v5561, 16
        %v5860 = vrot.slane %v5858, 5
        %v5861 = vsel %vm3727, %v5856, %v5860
        %v5863 = vshrl.u32 %v5562, 16
        %v5865 = vrot.slane %v5863, 4
        %v5866 = vshll.u32 %v5562, 16
        %v5868 = vrot.slane %v5866, 5
        %v5869 = vor.u32 %v5865, %v5868
        %v5870 = vrot.slane %v5869, 4
        %v5872 = vshll.u32 %v5563, 16
        %v5874 = vrot.slane %v5872, 5
        %v5875 = vsel %vm3727, %v5870, %v5874
        %v5876 = vshrl.u32 %v5563, 16
        %v5878 = vrot.slane %v5876, 4
        %v5879 = vor.u32 %v5878, %v5874
        %v5880 = vrot.slane %v5879, 4
        %v5882 = vshll.u32 %v5564, 16
        %v5884 = vrot.slane %v5882, 5
        %v5885 = vsel %vm3727, %v5880, %v5884
        %v5887 = vshrl.u32 %v5565, 16
        %v5889 = vrot.slane %v5887, 4
        %v5890 = vshll.u32 %v5565, 16
        %v5892 = vrot.slane %v5890, 5
        %v5893 = vor.u32 %v5889, %v5892
        %v5894 = vrot.slane %v5893, 4
        %v5896 = vshll.u32 %v5566, 16
        %v5898 = vrot.slane %v5896, 5
        %v5899 = vsel %vm3727, %v5894, %v5898
        %v5900 = vshrl.u32 %v5566, 16
        %v5902 = vrot.slane %v5900, 4
        %v5903 = vor.u32 %v5902, %v5898
        %v5904 = vrot.slane %v5903, 4
        %v5906 = vshll.u32 %v5567, 16
        %v5908 = vrot.slane %v5906, 5
        %v5909 = vsel %vm3727, %v5904, %v5908
        %v5911 = vshrl.u32 %v5568, 16
        %v5913 = vrot.slane %v5911, 4
        %v5914 = vshll.u32 %v5568, 16
        %v5916 = vrot.slane %v5914, 5
        %v5917 = vor.u32 %v5913, %v5916
        %v5918 = vrot.slane %v5917, 4
        %v5920 = vshll.u32 %v5569, 16
        %v5922 = vrot.slane %v5920, 5
        %v5923 = vsel %vm3727, %v5918, %v5922
        %v5924 = vshrl.u32 %v5569, 16
        %v5926 = vrot.slane %v5924, 4
        %v5927 = vor.u32 %v5926, %v5922
        %v5928 = vrot.slane %v5927, 4
        %v5930 = vshll.u32 %v5570, 16
        %v5932 = vrot.slane %v5930, 5
        %v5933 = vsel %vm3727, %v5928, %v5932
        %v5935 = vshrl.u32 %v5571, 16
        %v5937 = vrot.slane %v5935, 4
        %v5938 = vshll.u32 %v5571, 16
        %v5940 = vrot.slane %v5938, 5
        %v5941 = vor.u32 %v5937, %v5940
        %v5942 = vrot.slane %v5941, 4
        %v5944 = vshll.u32 %v5572, 16
        %v5946 = vrot.slane %v5944, 5
        %v5947 = vsel %vm3727, %v5942, %v5946
        %v5948 = vshrl.u32 %v5572, 16
        %v5950 = vrot.slane %v5948, 4
        %v5951 = vor.u32 %v5950, %v5946
        %v5952 = vrot.slane %v5951, 4
        %v5954 = vshll.u32 %v5573, 16
        %v5956 = vrot.slane %v5954, 5
        %v5957 = vsel %vm3727, %v5952, %v5956
        %s5958 = scalar_lea.vmem %s4, 64
        %v5959 = vld [vmem:[%s5958] sm:$0xf]
        %v5960 = vld [vmem:[%s5958 + $0x4] sm:$0xf]
        %v5961 = vld [vmem:[%s5958 + $0x8] sm:$0xf]
        %v5962 = vld [vmem:[%s5958 + $0xc] sm:$0xf]
        %v5963 = vunpack.c.l.b16 %v5587
        %v5964 = vunpack.c.l.b16 %v5597
        %v5965 = vunpack.c.l.b16 %v5611
        %v5966 = vunpack.c.l.b16 %v5621
        %v5967 = vunpack.c.l.b16 %v5635
        %v5968 = vunpack.c.l.b16 %v5645
        %v5969 = vunpack.c.l.b16 %v5659
        %v5970 = vunpack.c.l.b16 %v5669
        %v5971 = vunpack.c.l.b16 %v5683
        %v5972 = vunpack.c.l.b16 %v5693
        %v5973 = vunpack.c.l.b16 %v5707
        %v5974 = vunpack.c.l.b16 %v5717
        %v5975 = vunpack.c.l.b16 %v5731
        %v5976 = vunpack.c.l.b16 %v5741
        %v5977 = vunpack.c.l.b16 %v5755
        %v5978 = vunpack.c.l.b16 %v5765
        %v5979 = vunpack.c.l.b16 %v5779
        %v5980 = vunpack.c.l.b16 %v5789
        %v5981 = vunpack.c.l.b16 %v5803
        %v5982 = vunpack.c.l.b16 %v5813
        %v5983 = vunpack.c.l.b16 %v5827
        %v5984 = vunpack.c.l.b16 %v5837
        %v5985 = vunpack.c.l.b16 %v5851
        %v5986 = vunpack.c.l.b16 %v5861
        %v5987 = vunpack.c.l.b16 %v5875
        %v5988 = vunpack.c.l.b16 %v5885
        %v5989 = vunpack.c.l.b16 %v5899
        %v5990 = vunpack.c.l.b16 %v5909
        %v5991 = vunpack.c.l.b16 %v5923
        %v5992 = vunpack.c.l.b16 %v5933
        %v5993 = vunpack.c.l.b16 %v5947
        %v5994 = vunpack.c.l.b16 %v5957
        %v5995 = vpack.c.b16 %v5964, %v5963
        %v5996 = vpack.c.b16 %v5966, %v5965
        %v5997 = vpack.c.b16 %v5968, %v5967
        %v5998 = vpack.c.b16 %v5970, %v5969
        %v5999 = vpack.c.b16 %v5972, %v5971
        %v6000 = vpack.c.b16 %v5974, %v5973
        %v6001 = vpack.c.b16 %v5976, %v5975
        %v6002 = vpack.c.b16 %v5978, %v5977
        %v6003 = vpack.c.b16 %v5980, %v5979
        %v6004 = vpack.c.b16 %v5982, %v5981
        %v6005 = vpack.c.b16 %v5984, %v5983
        %v6006 = vpack.c.b16 %v5986, %v5985
        %v6007 = vpack.c.b16 %v5988, %v5987
        %v6008 = vpack.c.b16 %v5990, %v5989
        %v6009 = vpack.c.b16 %v5992, %v5991
        %v6010 = vpack.c.b16 %v5994, %v5993
        %v6015 = vunpack.c.l.b16 %v5959
        %v6016 = vunpack.c.l.b16 %v5960
        %v6017 = vunpack.c.l.b16 %v5961
        %v6018 = vunpack.c.l.b16 %v5962
        %v6019 = vpack.c.b16 %v6016, %v6015
        %v6020 = vpack.c.b16 %v6018, %v6017
        %v6024 = vsel %vm395, %v5995, 0
        %v6027 = vsel %vm395, %v5996, 0
        %v6030 = vsel %vm395, %v5997, 0
        %v6033 = vsel %vm395, %v5998, 0
        %v6036 = vsel %vm395, %v5999, 0
        %v6039 = vsel %vm395, %v6000, 0
        %v6042 = vsel %vm395, %v6001, 0
        %v6045 = vsel %vm395, %v6002, 0
        %v6048 = vsel %vm395, %v6003, 0
        %v6051 = vsel %vm395, %v6004, 0
        %v6054 = vsel %vm395, %v6005, 0
        %v6057 = vsel %vm395, %v6006, 0
        %v6060 = vsel %vm395, %v6007, 0
        %v6063 = vsel %vm395, %v6008, 0
        %v6066 = vsel %vm395, %v6009, 0
        %v6069 = vsel %vm395, %v6010, 0
        %6071 = vmatprep.subr.bf16.mxu0 0
        %6072 = vmatpush1.bf16.msra.mxu0 %v6019
        %6073 = vmatprep.subr.bf16.mxu0 0
        %6074 = vmatpush1.bf16.msra.mxu0 %v6020
        %6075 = vmatprep.subr.bf16.mxu0 0
        %6076 = vmatpush1.bf16.msra.mxu0 0
        %6077 = vmatprep.subr.bf16.mxu0 0
        %6078 = vmatpush1.bf16.msra.mxu0 0
        %6079 = vmatprep.subr.bf16.mxu0 0
        %6080 = vmatpush1.bf16.msra.mxu0 0
        %6081 = vmatprep.subr.bf16.mxu0 0
        %6082 = vmatpush1.bf16.msra.mxu0 0
        %6083 = vmatprep.subr.bf16.mxu0 0
        %6084 = vmatpush1.bf16.msra.mxu0 0
        %6085 = vmatprep.subr.bf16.mxu0 0
        %6086 = vmatpush1.bf16.msra.mxu0 0
        %6087 = vmatprep.subr.bf16.mxu0 0
        %6088 = vmatpush1.bf16.msra.mxu0 0
        %6089 = vmatprep.subr.bf16.mxu0 0
        %6090 = vmatpush1.bf16.msra.mxu0 0
        %6091 = vmatprep.subr.bf16.mxu0 0
        %6092 = vmatpush1.bf16.msra.mxu0 0
        %6093 = vmatprep.subr.bf16.mxu0 0
        %6094 = vmatpush1.bf16.msra.mxu0 0
        %6095 = vmatprep.subr.bf16.mxu0 0
        %6096 = vmatpush1.bf16.msra.mxu0 0
        %6097 = vmatprep.subr.bf16.mxu0 0
        %6098 = vmatpush1.bf16.msra.mxu0 0
        %6099 = vmatprep.subr.bf16.mxu0 0
        %6100 = vmatpush1.bf16.msra.mxu0 0
        %6101 = vmatprep.subr.bf16.mxu0 0
        %6102 = vmatpush1.bf16.msra.mxu0 0
        %6103 = vmatprep.mubr.bf16.mxu0 0
        %6104 = vmatmul.mubr.bf16.gmra.mrb[0].mxu0 %v6024
        %v6105 = vpop.f32.mrb[0].mxu0
        %v6106 = vadd.f32 0.0, %v6105
        %v6107 = vpop.f32.mrb[0].mxu0
        %v6108 = vpop.f32.mrb[0].mxu0
        %v6109 = vadd.f32 0.0, %v6108
        %v6110 = vpop.f32.mrb[0].mxu0
        %6111 = vmatprep.mubr.bf16.mxu0 0
        %6112 = vmatmul.mubr.bf16.gmra.mrb[0].mxu0 %v6027
        %v6113 = vpop.f32.mrb[0].mxu0
        %v6114 = vadd.f32 0.0, %v6113
        %v6115 = vpop.f32.mrb[0].mxu0
        %v6116 = vpop.f32.mrb[0].mxu0
        %v6117 = vadd.f32 0.0, %v6116
        %v6118 = vpop.f32.mrb[0].mxu0
        %6119 = vmatprep.mubr.bf16.mxu0 0
        %6120 = vmatmul.mubr.bf16.gmra.mrb[0].mxu0 %v6030
        %v6121 = vpop.f32.mrb[0].mxu0
        %v6122 = vadd.f32 0.0, %v6121
        %v6123 = vpop.f32.mrb[0].mxu0
        %v6124 = vpop.f32.mrb[0].mxu0
        %v6125 = vadd.f32 0.0, %v6124
        %v6126 = vpop.f32.mrb[0].mxu0
        %6127 = vmatprep.mubr.bf16.mxu0 0
        %6128 = vmatmul.mubr.bf16.gmra.mrb[0].mxu0 %v6033
        %v6129 = vpop.f32.mrb[0].mxu0
        %v6130 = vadd.f32 0.0, %v6129
        %v6131 = vpop.f32.mrb[0].mxu0
        %v6132 = vpop.f32.mrb[0].mxu0
        %v6133 = vadd.f32 0.0, %v6132
        %v6134 = vpop.f32.mrb[0].mxu0
        %6135 = vmatprep.mubr.bf16.mxu0 0
        %6136 = vmatmul.mubr.bf16.gmra.mrb[0].mxu0 %v6036
        %v6137 = vpop.f32.mrb[0].mxu0
        %v6138 = vadd.f32 0.0, %v6137
        %v6139 = vpop.f32.mrb[0].mxu0
        %v6140 = vpop.f32.mrb[0].mxu0
        %v6141 = vadd.f32 0.0, %v6140
        %v6142 = vpop.f32.mrb[0].mxu0
        %6143 = vmatprep.mubr.bf16.mxu0 0
        %6144 = vmatmul.mubr.bf16.gmra.mrb[0].mxu0 %v6039
        %v6145 = vpop.f32.mrb[0].mxu0
        %v6146 = vadd.f32 0.0, %v6145
        %v6147 = vpop.f32.mrb[0].mxu0
        %v6148 = vpop.f32.mrb[0].mxu0
        %v6149 = vadd.f32 0.0, %v6148
        %v6150 = vpop.f32.mrb[0].mxu0
        %6151 = vmatprep.mubr.bf16.mxu0 0
        %6152 = vmatmul.mubr.bf16.gmra.mrb[0].mxu0 %v6042
        %v6153 = vpop.f32.mrb[0].mxu0
        %v6154 = vadd.f32 0.0, %v6153
        %v6155 = vpop.f32.mrb[0].mxu0
        %v6156 = vpop.f32.mrb[0].mxu0
        %v6157 = vadd.f32 0.0, %v6156
        %v6158 = vpop.f32.mrb[0].mxu0
        %6159 = vmatprep.mubr.bf16.mxu0 0
        %6160 = vmatmul.mubr.bf16.gmra.mrb[0].mxu0 %v6045
        %v6161 = vpop.f32.mrb[0].mxu0
        %v6162 = vadd.f32 0.0, %v6161
        %v6163 = vpop.f32.mrb[0].mxu0
        %v6164 = vpop.f32.mrb[0].mxu0
        %v6165 = vadd.f32 0.0, %v6164
        %v6166 = vpop.f32.mrb[0].mxu0
        %6167 = vmatprep.mubr.bf16.mxu0 0
        %6168 = vmatmul.mubr.bf16.gmra.mrb[0].mxu0 %v6048
        %v6169 = vpop.f32.mrb[0].mxu0
        %v6170 = vadd.f32 0.0, %v6169
        %v6171 = vpop.f32.mrb[0].mxu0
        %v6172 = vpop.f32.mrb[0].mxu0
        %v6173 = vadd.f32 0.0, %v6172
        %v6174 = vpop.f32.mrb[0].mxu0
        %6175 = vmatprep.mubr.bf16.mxu0 0
        %6176 = vmatmul.mubr.bf16.gmra.mrb[0].mxu0 %v6051
        %v6177 = vpop.f32.mrb[0].mxu0
        %v6178 = vadd.f32 0.0, %v6177
        %v6179 = vpop.f32.mrb[0].mxu0
        %v6180 = vpop.f32.mrb[0].mxu0
        %v6181 = vadd.f32 0.0, %v6180
        %v6182 = vpop.f32.mrb[0].mxu0
        %6183 = vmatprep.mubr.bf16.mxu0 0
        %6184 = vmatmul.mubr.bf16.gmra.mrb[0].mxu0 %v6054
        %v6185 = vpop.f32.mrb[0].mxu0
        %v6186 = vadd.f32 0.0, %v6185
        %v6187 = vpop.f32.mrb[0].mxu0
        %v6188 = vpop.f32.mrb[0].mxu0
        %v6189 = vadd.f32 0.0, %v6188
        %v6190 = vpop.f32.mrb[0].mxu0
        %6191 = vmatprep.mubr.bf16.mxu0 0
        %6192 = vmatmul.mubr.bf16.gmra.mrb[0].mxu0 %v6057
        %v6193 = vpop.f32.mrb[0].mxu0
        %v6194 = vadd.f32 0.0, %v6193
        %v6195 = vpop.f32.mrb[0].mxu0
        %v6196 = vpop.f32.mrb[0].mxu0
        %v6197 = vadd.f32 0.0, %v6196
        %v6198 = vpop.f32.mrb[0].mxu0
        %6199 = vmatprep.mubr.bf16.mxu0 0
        %6200 = vmatmul.mubr.bf16.gmra.mrb[0].mxu0 %v6060
        %v6201 = vpop.f32.mrb[0].mxu0
        %v6202 = vadd.f32 0.0, %v6201
        %v6203 = vpop.f32.mrb[0].mxu0
        %v6204 = vpop.f32.mrb[0].mxu0
        %v6205 = vadd.f32 0.0, %v6204
        %v6206 = vpop.f32.mrb[0].mxu0
        %6207 = vmatprep.mubr.bf16.mxu0 0
        %6208 = vmatmul.mubr.bf16.gmra.mrb[0].mxu0 %v6063
        %v6209 = vpop.f32.mrb[0].mxu0
        %v6210 = vadd.f32 0.0, %v6209
        %v6211 = vpop.f32.mrb[0].mxu0
        %v6212 = vpop.f32.mrb[0].mxu0
        %v6213 = vadd.f32 0.0, %v6212
        %v6214 = vpop.f32.mrb[0].mxu0
        %6215 = vmatprep.mubr.bf16.mxu0 0
        %6216 = vmatmul.mubr.bf16.gmra.mrb[0].mxu0 %v6066
        %v6217 = vpop.f32.mrb[0].mxu0
        %v6218 = vadd.f32 0.0, %v6217
        %v6219 = vpop.f32.mrb[0].mxu0
        %v6220 = vpop.f32.mrb[0].mxu0
        %v6221 = vadd.f32 0.0, %v6220
        %v6222 = vpop.f32.mrb[0].mxu0
        %6223 = vmatprep.mubr.bf16.mxu0 0
        %6224 = vmatmul.mubr.bf16.gmra.mrb[0].mxu0 %v6069
        %v6225 = vpop.f32.mrb[0].mxu0
        %v6226 = vadd.f32 0.0, %v6225
        %v6227 = vpop.f32.mrb[0].mxu0
        %v6228 = vpop.f32.mrb[0].mxu0
        %v6229 = vadd.f32 0.0, %v6228
        %v6230 = vpop.f32.mrb[0].mxu0
        %6231 = vdwg.mxu0
        %v6232 = vadd.f32 %v5494, %v6106
        %v6233 = vadd.f32 %v5495, %v6109
        %v6234 = vadd.f32 %v5496, %v6114
        %v6235 = vadd.f32 %v5497, %v6117
        %v6236 = vadd.f32 %v5498, %v6122
        %v6237 = vadd.f32 %v5499, %v6125
        %v6238 = vadd.f32 %v5500, %v6130
        %v6239 = vadd.f32 %v5501, %v6133
        %v6240 = vadd.f32 %v5502, %v6138
        %v6241 = vadd.f32 %v5503, %v6141
        %v6242 = vadd.f32 %v5504, %v6146
        %v6243 = vadd.f32 %v5505, %v6149
        %v6244 = vadd.f32 %v5506, %v6154
        %v6245 = vadd.f32 %v5507, %v6157
        %v6246 = vadd.f32 %v5508, %v6162
        %v6247 = vadd.f32 %v5509, %v6165
        %v6248 = vadd.f32 %v5510, %v6170
        %v6249 = vadd.f32 %v5511, %v6173
        %v6250 = vadd.f32 %v5512, %v6178
        %v6251 = vadd.f32 %v5513, %v6181
        %v6252 = vadd.f32 %v5514, %v6186
        %v6253 = vadd.f32 %v5515, %v6189
        %v6254 = vadd.f32 %v5516, %v6194
        %v6255 = vadd.f32 %v5517, %v6197
        %v6256 = vadd.f32 %v5518, %v6202
        %v6257 = vadd.f32 %v5519, %v6205
        %v6258 = vadd.f32 %v5520, %v6210
        %v6259 = vadd.f32 %v5521, %v6213
        %v6260 = vadd.f32 %v5522, %v6218
        %v6261 = vadd.f32 %v5523, %v6221
        %v6262 = vadd.f32 %v5524, %v6226
        %v6263 = vadd.f32 %v5525, %v6229
        %v6264 = vld [vmem:[%s3555] sm:$0xe]
        %v6265 = vld [vmem:[%s3555 + $0xc] sm:$0xe]
        %v6266 = vld [vmem:[%s3555 + $0x18] sm:$0xe]
        %v6267 = vld [vmem:[%s3555 + $0x24] sm:$0xe]
        %v6268 = vld [vmem:[%s3555 + $0x30] sm:$0xe]
        %v6269 = vld [vmem:[%s3555 + $0x3c] sm:$0xe]
        %v6270 = vld [vmem:[%s3555 + $0x48] sm:$0xe]
        %v6271 = vld [vmem:[%s3555 + $0x54] sm:$0xe]
        %v6272 = vld [vmem:[%s3555 + $0x60] sm:$0xe]
        %v6273 = vld [vmem:[%s3555 + $0x6c] sm:$0xe]
        %v6274 = vld [vmem:[%s3555 + $0x78] sm:$0xe]
        %v6275 = vld [vmem:[%s3555 + $0x84] sm:$0xe]
        %v6276 = vld [vmem:[%s3555 + $0x90] sm:$0xe]
        %v6277 = vld [vmem:[%s3555 + $0x9c] sm:$0xe]
        %v6278 = vld [vmem:[%s3555 + $0xa8] sm:$0xe]
        %v6279 = vld [vmem:[%s3555 + $0xb4] sm:$0xe]
        %v6328 = vrot.slane %v6264, 5
        %v6329 = vrot.slane %v6328, 4
        %v6330 = vrot.slane %v5527, 5
        %v6331 = vsel %vm4737, %v6329, %v6330
        %v6332 = vrot.slane %v6330, 4
        %v6333 = vrot.slane %v5528, 5
        %v6334 = vsel %vm4737, %v6332, %v6333
        %v6335 = vrot.slane %v6265, 5
        %v6336 = vrot.slane %v6335, 4
        %v6337 = vrot.slane %v5530, 5
        %v6338 = vsel %vm4737, %v6336, %v6337
        %v6339 = vrot.slane %v6337, 4
        %v6340 = vrot.slane %v5531, 5
        %v6341 = vsel %vm4737, %v6339, %v6340
        %v6342 = vrot.slane %v6266, 5
        %v6343 = vrot.slane %v6342, 4
        %v6344 = vrot.slane %v5533, 5
        %v6345 = vsel %vm4737, %v6343, %v6344
        %v6346 = vrot.slane %v6344, 4
        %v6347 = vrot.slane %v5534, 5
        %v6348 = vsel %vm4737, %v6346, %v6347
        %v6349 = vrot.slane %v6267, 5
        %v6350 = vrot.slane %v6349, 4
        %v6351 = vrot.slane %v5536, 5
        %v6352 = vsel %vm4737, %v6350, %v6351
        %v6353 = vrot.slane %v6351, 4
        %v6354 = vrot.slane %v5537, 5
        %v6355 = vsel %vm4737, %v6353, %v6354
        %v6356 = vrot.slane %v6268, 5
        %v6357 = vrot.slane %v6356, 4
        %v6358 = vrot.slane %v5539, 5
        %v6359 = vsel %vm4737, %v6357, %v6358
        %v6360 = vrot.slane %v6358, 4
        %v6361 = vrot.slane %v5540, 5
        %v6362 = vsel %vm4737, %v6360, %v6361
        %v6363 = vrot.slane %v6269, 5
        %v6364 = vrot.slane %v6363, 4
        %v6365 = vrot.slane %v5542, 5
        %v6366 = vsel %vm4737, %v6364, %v6365
        %v6367 = vrot.slane %v6365, 4
        %v6368 = vrot.slane %v5543, 5
        %v6369 = vsel %vm4737, %v6367, %v6368
        %v6370 = vrot.slane %v6270, 5
        %v6371 = vrot.slane %v6370, 4
        %v6372 = vrot.slane %v5545, 5
        %v6373 = vsel %vm4737, %v6371, %v6372
        %v6374 = vrot.slane %v6372, 4
        %v6375 = vrot.slane %v5546, 5
        %v6376 = vsel %vm4737, %v6374, %v6375
        %v6377 = vrot.slane %v6271, 5
        %v6378 = vrot.slane %v6377, 4
        %v6379 = vrot.slane %v5548, 5
        %v6380 = vsel %vm4737, %v6378, %v6379
        %v6381 = vrot.slane %v6379, 4
        %v6382 = vrot.slane %v5549, 5
        %v6383 = vsel %vm4737, %v6381, %v6382
        %v6384 = vrot.slane %v6272, 5
        %v6385 = vrot.slane %v6384, 4
        %v6386 = vrot.slane %v5551, 5
        %v6387 = vsel %vm4737, %v6385, %v6386
        %v6388 = vrot.slane %v6386, 4
        %v6389 = vrot.slane %v5552, 5
        %v6390 = vsel %vm4737, %v6388, %v6389
        %v6391 = vrot.slane %v6273, 5
        %v6392 = vrot.slane %v6391, 4
        %v6393 = vrot.slane %v5554, 5
        %v6394 = vsel %vm4737, %v6392, %v6393
        %v6395 = vrot.slane %v6393, 4
        %v6396 = vrot.slane %v5555, 5
        %v6397 = vsel %vm4737, %v6395, %v6396
        %v6398 = vrot.slane %v6274, 5
        %v6399 = vrot.slane %v6398, 4
        %v6400 = vrot.slane %v5557, 5
        %v6401 = vsel %vm4737, %v6399, %v6400
        %v6402 = vrot.slane %v6400, 4
        %v6403 = vrot.slane %v5558, 5
        %v6404 = vsel %vm4737, %v6402, %v6403
        %v6405 = vrot.slane %v6275, 5
        %v6406 = vrot.slane %v6405, 4
        %v6407 = vrot.slane %v5560, 5
        %v6408 = vsel %vm4737, %v6406, %v6407
        %v6409 = vrot.slane %v6407, 4
        %v6410 = vrot.slane %v5561, 5
        %v6411 = vsel %vm4737, %v6409, %v6410
        %v6412 = vrot.slane %v6276, 5
        %v6413 = vrot.slane %v6412, 4
        %v6414 = vrot.slane %v5563, 5
        %v6415 = vsel %vm4737, %v6413, %v6414
        %v6416 = vrot.slane %v6414, 4
        %v6417 = vrot.slane %v5564, 5
        %v6418 = vsel %vm4737, %v6416, %v6417
        %v6419 = vrot.slane %v6277, 5
        %v6420 = vrot.slane %v6419, 4
        %v6421 = vrot.slane %v5566, 5
        %v6422 = vsel %vm4737, %v6420, %v6421
        %v6423 = vrot.slane %v6421, 4
        %v6424 = vrot.slane %v5567, 5
        %v6425 = vsel %vm4737, %v6423, %v6424
        %v6426 = vrot.slane %v6278, 5
        %v6427 = vrot.slane %v6426, 4
        %v6428 = vrot.slane %v5569, 5
        %v6429 = vsel %vm4737, %v6427, %v6428
        %v6430 = vrot.slane %v6428, 4
        %v6431 = vrot.slane %v5570, 5
        %v6432 = vsel %vm4737, %v6430, %v6431
        %v6433 = vrot.slane %v6279, 5
        %v6434 = vrot.slane %v6433, 4
        %v6435 = vrot.slane %v5572, 5
        %v6436 = vsel %vm4737, %v6434, %v6435
        %v6437 = vrot.slane %v6435, 4
        %v6438 = vrot.slane %v5573, 5
        %v6439 = vsel %vm4737, %v6437, %v6438
        %s6440 = scalar_lea.vmem %s4, 80
        %v6441 = vld [vmem:[%s6440] sm:$0xf]
        %v6442 = vld [vmem:[%s6440 + $0x4] sm:$0xf]
        %v6443 = vld [vmem:[%s6440 + $0x8] sm:$0xf]
        %v6444 = vld [vmem:[%s6440 + $0xc] sm:$0xf]
        %v6445 = vunpack.c.l.b16 %v6331
        %v6446 = vunpack.c.l.b16 %v6334
        %v6447 = vunpack.c.l.b16 %v6338
        %v6448 = vunpack.c.l.b16 %v6341
        %v6449 = vunpack.c.l.b16 %v6345
        %v6450 = vunpack.c.l.b16 %v6348
        %v6451 = vunpack.c.l.b16 %v6352
        %v6452 = vunpack.c.l.b16 %v6355
        %v6453 = vunpack.c.l.b16 %v6359
        %v6454 = vunpack.c.l.b16 %v6362
        %v6455 = vunpack.c.l.b16 %v6366
        %v6456 = vunpack.c.l.b16 %v6369
        %v6457 = vunpack.c.l.b16 %v6373
        %v6458 = vunpack.c.l.b16 %v6376
        %v6459 = vunpack.c.l.b16 %v6380
        %v6460 = vunpack.c.l.b16 %v6383
        %v6461 = vunpack.c.l.b16 %v6387
        %v6462 = vunpack.c.l.b16 %v6390
        %v6463 = vunpack.c.l.b16 %v6394
        %v6464 = vunpack.c.l.b16 %v6397
        %v6465 = vunpack.c.l.b16 %v6401
        %v6466 = vunpack.c.l.b16 %v6404
        %v6467 = vunpack.c.l.b16 %v6408
        %v6468 = vunpack.c.l.b16 %v6411
        %v6469 = vunpack.c.l.b16 %v6415
        %v6470 = vunpack.c.l.b16 %v6418
        %v6471 = vunpack.c.l.b16 %v6422
        %v6472 = vunpack.c.l.b16 %v6425
        %v6473 = vunpack.c.l.b16 %v6429
        %v6474 = vunpack.c.l.b16 %v6432
        %v6475 = vunpack.c.l.b16 %v6436
        %v6476 = vunpack.c.l.b16 %v6439
        %v6477 = vpack.c.b16 %v6446, %v6445
        %v6478 = vpack.c.b16 %v6448, %v6447
        %v6479 = vpack.c.b16 %v6450, %v6449
        %v6480 = vpack.c.b16 %v6452, %v6451
        %v6481 = vpack.c.b16 %v6454, %v6453
        %v6482 = vpack.c.b16 %v6456, %v6455
        %v6483 = vpack.c.b16 %v6458, %v6457
        %v6484 = vpack.c.b16 %v6460, %v6459
        %v6485 = vpack.c.b16 %v6462, %v6461
        %v6486 = vpack.c.b16 %v6464, %v6463
        %v6487 = vpack.c.b16 %v6466, %v6465
        %v6488 = vpack.c.b16 %v6468, %v6467
        %v6489 = vpack.c.b16 %v6470, %v6469
        %v6490 = vpack.c.b16 %v6472, %v6471
        %v6491 = vpack.c.b16 %v6474, %v6473
        %v6492 = vpack.c.b16 %v6476, %v6475
        %v6497 = vunpack.c.l.b16 %v6441
        %v6498 = vunpack.c.l.b16 %v6442
        %v6499 = vunpack.c.l.b16 %v6443
        %v6500 = vunpack.c.l.b16 %v6444
        %v6501 = vpack.c.b16 %v6498, %v6497
        %v6502 = vpack.c.b16 %v6500, %v6499
        %v6506 = vsel %vm395, %v6477, 0
        %v6509 = vsel %vm395, %v6478, 0
        %v6512 = vsel %vm395, %v6479, 0
        %v6515 = vsel %vm395, %v6480, 0
        %v6518 = vsel %vm395, %v6481, 0
        %v6521 = vsel %vm395, %v6482, 0
        %v6524 = vsel %vm395, %v6483, 0
        %v6527 = vsel %vm395, %v6484, 0
        %v6530 = vsel %vm395, %v6485, 0
        %v6533 = vsel %vm395, %v6486, 0
        %v6536 = vsel %vm395, %v6487, 0
        %v6539 = vsel %vm395, %v6488, 0
        %v6542 = vsel %vm395, %v6489, 0
        %v6545 = vsel %vm395, %v6490, 0
        %v6548 = vsel %vm395, %v6491, 0
        %v6551 = vsel %vm395, %v6492, 0
        %6553 = vmatprep.subr.bf16.mxu0 0
        %6554 = vmatpush1.bf16.msra.mxu0 %v6501
        %6555 = vmatprep.subr.bf16.mxu0 0
        %6556 = vmatpush1.bf16.msra.mxu0 %v6502
        %6557 = vmatprep.subr.bf16.mxu0 0
        %6558 = vmatpush1.bf16.msra.mxu0 0
        %6559 = vmatprep.subr.bf16.mxu0 0
        %6560 = vmatpush1.bf16.msra.mxu0 0
        %6561 = vmatprep.subr.bf16.mxu0 0
        %6562 = vmatpush1.bf16.msra.mxu0 0
        %6563 = vmatprep.subr.bf16.mxu0 0
        %6564 = vmatpush1.bf16.msra.mxu0 0
        %6565 = vmatprep.subr.bf16.mxu0 0
        %6566 = vmatpush1.bf16.msra.mxu0 0
        %6567 = vmatprep.subr.bf16.mxu0 0
        %6568 = vmatpush1.bf16.msra.mxu0 0
        %6569 = vmatprep.subr.bf16.mxu0 0
        %6570 = vmatpush1.bf16.msra.mxu0 0
        %6571 = vmatprep.subr.bf16.mxu0 0
        %6572 = vmatpush1.bf16.msra.mxu0 0
        %6573 = vmatprep.subr.bf16.mxu0 0
        %6574 = vmatpush1.bf16.msra.mxu0 0
        %6575 = vmatprep.subr.bf16.mxu0 0
        %6576 = vmatpush1.bf16.msra.mxu0 0
        %6577 = vmatprep.subr.bf16.mxu0 0
        %6578 = vmatpush1.bf16.msra.mxu0 0
        %6579 = vmatprep.subr.bf16.mxu0 0
        %6580 = vmatpush1.bf16.msra.mxu0 0
        %6581 = vmatprep.subr.bf16.mxu0 0
        %6582 = vmatpush1.bf16.msra.mxu0 0
        %6583 = vmatprep.subr.bf16.mxu0 0
        %6584 = vmatpush1.bf16.msra.mxu0 0
        %6585 = vmatprep.mubr.bf16.mxu0 0
        %6586 = vmatmul.mubr.bf16.gmra.mrb[0].mxu0 %v6506
        %v6587 = vpop.f32.mrb[0].mxu0
        %v6588 = vadd.f32 0.0, %v6587
        %v6589 = vpop.f32.mrb[0].mxu0
        %v6590 = vpop.f32.mrb[0].mxu0
        %v6591 = vadd.f32 0.0, %v6590
        %v6592 = vpop.f32.mrb[0].mxu0
        %6593 = vmatprep.mubr.bf16.mxu0 0
        %6594 = vmatmul.mubr.bf16.gmra.mrb[0].mxu0 %v6509
        %v6595 = vpop.f32.mrb[0].mxu0
        %v6596 = vadd.f32 0.0, %v6595
        %v6597 = vpop.f32.mrb[0].mxu0
        %v6598 = vpop.f32.mrb[0].mxu0
        %v6599 = vadd.f32 0.0, %v6598
        %v6600 = vpop.f32.mrb[0].mxu0
        %6601 = vmatprep.mubr.bf16.mxu0 0
        %6602 = vmatmul.mubr.bf16.gmra.mrb[0].mxu0 %v6512
        %v6603 = vpop.f32.mrb[0].mxu0
        %v6604 = vadd.f32 0.0, %v6603
        %v6605 = vpop.f32.mrb[0].mxu0
        %v6606 = vpop.f32.mrb[0].mxu0
        %v6607 = vadd.f32 0.0, %v6606
        %v6608 = vpop.f32.mrb[0].mxu0
        %6609 = vmatprep.mubr.bf16.mxu0 0
        %6610 = vmatmul.mubr.bf16.gmra.mrb[0].mxu0 %v6515
        %v6611 = vpop.f32.mrb[0].mxu0
        %v6612 = vadd.f32 0.0, %v6611
        %v6613 = vpop.f32.mrb[0].mxu0
        %v6614 = vpop.f32.mrb[0].mxu0
        %v6615 = vadd.f32 0.0, %v6614
        %v6616 = vpop.f32.mrb[0].mxu0
        %6617 = vmatprep.mubr.bf16.mxu0 0
        %6618 = vmatmul.mubr.bf16.gmra.mrb[0].mxu0 %v6518
        %v6619 = vpop.f32.mrb[0].mxu0
        %v6620 = vadd.f32 0.0, %v6619
        %v6621 = vpop.f32.mrb[0].mxu0
        %v6622 = vpop.f32.mrb[0].mxu0
        %v6623 = vadd.f32 0.0, %v6622
        %v6624 = vpop.f32.mrb[0].mxu0
        %6625 = vmatprep.mubr.bf16.mxu0 0
        %6626 = vmatmul.mubr.bf16.gmra.mrb[0].mxu0 %v6521
        %v6627 = vpop.f32.mrb[0].mxu0
        %v6628 = vadd.f32 0.0, %v6627
        %v6629 = vpop.f32.mrb[0].mxu0
        %v6630 = vpop.f32.mrb[0].mxu0
        %v6631 = vadd.f32 0.0, %v6630
        %v6632 = vpop.f32.mrb[0].mxu0
        %6633 = vmatprep.mubr.bf16.mxu0 0
        %6634 = vmatmul.mubr.bf16.gmra.mrb[0].mxu0 %v6524
        %v6635 = vpop.f32.mrb[0].mxu0
        %v6636 = vadd.f32 0.0, %v6635
        %v6637 = vpop.f32.mrb[0].mxu0
        %v6638 = vpop.f32.mrb[0].mxu0
        %v6639 = vadd.f32 0.0, %v6638
        %v6640 = vpop.f32.mrb[0].mxu0
        %6641 = vmatprep.mubr.bf16.mxu0 0
        %6642 = vmatmul.mubr.bf16.gmra.mrb[0].mxu0 %v6527
        %v6643 = vpop.f32.mrb[0].mxu0
        %v6644 = vadd.f32 0.0, %v6643
        %v6645 = vpop.f32.mrb[0].mxu0
        %v6646 = vpop.f32.mrb[0].mxu0
        %v6647 = vadd.f32 0.0, %v6646
        %v6648 = vpop.f32.mrb[0].mxu0
        %6649 = vmatprep.mubr.bf16.mxu0 0
        %6650 = vmatmul.mubr.bf16.gmra.mrb[0].mxu0 %v6530
        %v6651 = vpop.f32.mrb[0].mxu0
        %v6652 = vadd.f32 0.0, %v6651
        %v6653 = vpop.f32.mrb[0].mxu0
        %v6654 = vpop.f32.mrb[0].mxu0
        %v6655 = vadd.f32 0.0, %v6654
        %v6656 = vpop.f32.mrb[0].mxu0
        %6657 = vmatprep.mubr.bf16.mxu0 0
        %6658 = vmatmul.mubr.bf16.gmra.mrb[0].mxu0 %v6533
        %v6659 = vpop.f32.mrb[0].mxu0
        %v6660 = vadd.f32 0.0, %v6659
        %v6661 = vpop.f32.mrb[0].mxu0
        %v6662 = vpop.f32.mrb[0].mxu0
        %v6663 = vadd.f32 0.0, %v6662
        %v6664 = vpop.f32.mrb[0].mxu0
        %6665 = vmatprep.mubr.bf16.mxu0 0
        %6666 = vmatmul.mubr.bf16.gmra.mrb[0].mxu0 %v6536
        %v6667 = vpop.f32.mrb[0].mxu0
        %v6668 = vadd.f32 0.0, %v6667
        %v6669 = vpop.f32.mrb[0].mxu0
        %v6670 = vpop.f32.mrb[0].mxu0
        %v6671 = vadd.f32 0.0, %v6670
        %v6672 = vpop.f32.mrb[0].mxu0
        %6673 = vmatprep.mubr.bf16.mxu0 0
        %6674 = vmatmul.mubr.bf16.gmra.mrb[0].mxu0 %v6539
        %v6675 = vpop.f32.mrb[0].mxu0
        %v6676 = vadd.f32 0.0, %v6675
        %v6677 = vpop.f32.mrb[0].mxu0
        %v6678 = vpop.f32.mrb[0].mxu0
        %v6679 = vadd.f32 0.0, %v6678
        %v6680 = vpop.f32.mrb[0].mxu0
        %6681 = vmatprep.mubr.bf16.mxu0 0
        %6682 = vmatmul.mubr.bf16.gmra.mrb[0].mxu0 %v6542
        %v6683 = vpop.f32.mrb[0].mxu0
        %v6684 = vadd.f32 0.0, %v6683
        %v6685 = vpop.f32.mrb[0].mxu0
        %v6686 = vpop.f32.mrb[0].mxu0
        %v6687 = vadd.f32 0.0, %v6686
        %v6688 = vpop.f32.mrb[0].mxu0
        %6689 = vmatprep.mubr.bf16.mxu0 0
        %6690 = vmatmul.mubr.bf16.gmra.mrb[0].mxu0 %v6545
        %v6691 = vpop.f32.mrb[0].mxu0
        %v6692 = vadd.f32 0.0, %v6691
        %v6693 = vpop.f32.mrb[0].mxu0
        %v6694 = vpop.f32.mrb[0].mxu0
        %v6695 = vadd.f32 0.0, %v6694
        %v6696 = vpop.f32.mrb[0].mxu0
        %6697 = vmatprep.mubr.bf16.mxu0 0
        %6698 = vmatmul.mubr.bf16.gmra.mrb[0].mxu0 %v6548
        %v6699 = vpop.f32.mrb[0].mxu0
        %v6700 = vadd.f32 0.0, %v6699
        %v6701 = vpop.f32.mrb[0].mxu0
        %v6702 = vpop.f32.mrb[0].mxu0
        %v6703 = vadd.f32 0.0, %v6702
        %v6704 = vpop.f32.mrb[0].mxu0
        %6705 = vmatprep.mubr.bf16.mxu0 0
        %6706 = vmatmul.mubr.bf16.gmra.mrb[0].mxu0 %v6551
        %v6707 = vpop.f32.mrb[0].mxu0
        %v6708 = vadd.f32 0.0, %v6707
        %v6709 = vpop.f32.mrb[0].mxu0
        %v6710 = vpop.f32.mrb[0].mxu0
        %v6711 = vadd.f32 0.0, %v6710
        %v6712 = vpop.f32.mrb[0].mxu0
        %6713 = vdwg.mxu0
        %v6714 = vadd.f32 %v6232, %v6588
        %v6715 = vadd.f32 %v6233, %v6591
        %v6716 = vadd.f32 %v6234, %v6596
        %v6717 = vadd.f32 %v6235, %v6599
        %v6718 = vadd.f32 %v6236, %v6604
        %v6719 = vadd.f32 %v6237, %v6607
        %v6720 = vadd.f32 %v6238, %v6612
        %v6721 = vadd.f32 %v6239, %v6615
        %v6722 = vadd.f32 %v6240, %v6620
        %v6723 = vadd.f32 %v6241, %v6623
        %v6724 = vadd.f32 %v6242, %v6628
        %v6725 = vadd.f32 %v6243, %v6631
        %v6726 = vadd.f32 %v6244, %v6636
        %v6727 = vadd.f32 %v6245, %v6639
        %v6728 = vadd.f32 %v6246, %v6644
        %v6729 = vadd.f32 %v6247, %v6647
        %v6730 = vadd.f32 %v6248, %v6652
        %v6731 = vadd.f32 %v6249, %v6655
        %v6732 = vadd.f32 %v6250, %v6660
        %v6733 = vadd.f32 %v6251, %v6663
        %v6734 = vadd.f32 %v6252, %v6668
        %v6735 = vadd.f32 %v6253, %v6671
        %v6736 = vadd.f32 %v6254, %v6676
        %v6737 = vadd.f32 %v6255, %v6679
        %v6738 = vadd.f32 %v6256, %v6684
        %v6739 = vadd.f32 %v6257, %v6687
        %v6740 = vadd.f32 %v6258, %v6692
        %v6741 = vadd.f32 %v6259, %v6695
        %v6742 = vadd.f32 %v6260, %v6700
        %v6743 = vadd.f32 %v6261, %v6703
        %v6744 = vadd.f32 %v6262, %v6708
        %v6745 = vadd.f32 %v6263, %v6711
        %s6746 = scalar_lea.vmem [#allocation2], 24
        %v6747 = vld [vmem:[%s6746] sm:$0xf]
        %v6748 = vld [vmem:[%s6746 + $0x4] sm:$0xf]
        %v6749 = vld [vmem:[%s6746 + $0xc] sm:$0xf]
        %v6750 = vld [vmem:[%s6746 + $0x10] sm:$0xf]
        %v6751 = vld [vmem:[%s6746 + $0x18] sm:$0xf]
        %v6752 = vld [vmem:[%s6746 + $0x1c] sm:$0xf]
        %v6753 = vld [vmem:[%s6746 + $0x24] sm:$0xf]
        %v6754 = vld [vmem:[%s6746 + $0x28] sm:$0xf]
        %v6755 = vld [vmem:[%s6746 + $0x30] sm:$0xf]
        %v6756 = vld [vmem:[%s6746 + $0x34] sm:$0xf]
        %v6757 = vld [vmem:[%s6746 + $0x3c] sm:$0xf]
        %v6758 = vld [vmem:[%s6746 + $0x40] sm:$0xf]
        %v6759 = vld [vmem:[%s6746 + $0x48] sm:$0xf]
        %v6760 = vld [vmem:[%s6746 + $0x4c] sm:$0xf]
        %v6761 = vld [vmem:[%s6746 + $0x54] sm:$0xf]
        %v6762 = vld [vmem:[%s6746 + $0x58] sm:$0xf]
        %v6763 = vld [vmem:[%s6746 + $0x60] sm:$0xf]
        %v6764 = vld [vmem:[%s6746 + $0x64] sm:$0xf]
        %v6765 = vld [vmem:[%s6746 + $0x6c] sm:$0xf]
        %v6766 = vld [vmem:[%s6746 + $0x70] sm:$0xf]
        %v6767 = vld [vmem:[%s6746 + $0x78] sm:$0xf]
        %v6768 = vld [vmem:[%s6746 + $0x7c] sm:$0xf]
        %v6769 = vld [vmem:[%s6746 + $0x84] sm:$0xf]
        %v6770 = vld [vmem:[%s6746 + $0x88] sm:$0xf]
        %v6771 = vld [vmem:[%s6746 + $0x90] sm:$0xf]
        %v6772 = vld [vmem:[%s6746 + $0x94] sm:$0xf]
        %v6773 = vld [vmem:[%s6746 + $0x9c] sm:$0xf]
        %v6774 = vld [vmem:[%s6746 + $0xa0] sm:$0xf]
        %v6775 = vld [vmem:[%s6746 + $0xa8] sm:$0xf]
        %v6776 = vld [vmem:[%s6746 + $0xac] sm:$0xf]
        %v6777 = vld [vmem:[%s6746 + $0xb4] sm:$0xf]
        %v6778 = vld [vmem:[%s6746 + $0xb8] sm:$0xf]
        %s6779 = scalar_lea.vmem %s4, 96
        %v6780 = vld [vmem:[%s6779] sm:$0xf]
        %v6781 = vld [vmem:[%s6779 + $0x4] sm:$0xf]
        %v6782 = vld [vmem:[%s6779 + $0x8] sm:$0xf]
        %v6783 = vld [vmem:[%s6779 + $0xc] sm:$0xf]
        %v6816 = vunpack.c.l.b16 %v6747
        %v6817 = vunpack.c.l.b16 %v6748
        %v6818 = vunpack.c.l.b16 %v6749
        %v6819 = vunpack.c.l.b16 %v6750
        %v6820 = vunpack.c.l.b16 %v6751
        %v6821 = vunpack.c.l.b16 %v6752
        %v6822 = vunpack.c.l.b16 %v6753
        %v6823 = vunpack.c.l.b16 %v6754
        %v6824 = vunpack.c.l.b16 %v6755
        %v6825 = vunpack.c.l.b16 %v6756
        %v6826 = vunpack.c.l.b16 %v6757
        %v6827 = vunpack.c.l.b16 %v6758
        %v6828 = vunpack.c.l.b16 %v6759
        %v6829 = vunpack.c.l.b16 %v6760
        %v6830 = vunpack.c.l.b16 %v6761
        %v6831 = vunpack.c.l.b16 %v6762
        %v6832 = vunpack.c.l.b16 %v6763
        %v6833 = vunpack.c.l.b16 %v6764
        %v6834 = vunpack.c.l.b16 %v6765
        %v6835 = vunpack.c.l.b16 %v6766
        %v6836 = vunpack.c.l.b16 %v6767
        %v6837 = vunpack.c.l.b16 %v6768
        %v6838 = vunpack.c.l.b16 %v6769
        %v6839 = vunpack.c.l.b16 %v6770
        %v6840 = vunpack.c.l.b16 %v6771
        %v6841 = vunpack.c.l.b16 %v6772
        %v6842 = vunpack.c.l.b16 %v6773
        %v6843 = vunpack.c.l.b16 %v6774
        %v6844 = vunpack.c.l.b16 %v6775
        %v6845 = vunpack.c.l.b16 %v6776
        %v6846 = vunpack.c.l.b16 %v6777
        %v6847 = vunpack.c.l.b16 %v6778
        %v6848 = vpack.c.b16 %v6817, %v6816
        %v6849 = vpack.c.b16 %v6819, %v6818
        %v6850 = vpack.c.b16 %v6821, %v6820
        %v6851 = vpack.c.b16 %v6823, %v6822
        %v6852 = vpack.c.b16 %v6825, %v6824
        %v6853 = vpack.c.b16 %v6827, %v6826
        %v6854 = vpack.c.b16 %v6829, %v6828
        %v6855 = vpack.c.b16 %v6831, %v6830
        %v6856 = vpack.c.b16 %v6833, %v6832
        %v6857 = vpack.c.b16 %v6835, %v6834
        %v6858 = vpack.c.b16 %v6837, %v6836
        %v6859 = vpack.c.b16 %v6839, %v6838
        %v6860 = vpack.c.b16 %v6841, %v6840
        %v6861 = vpack.c.b16 %v6843, %v6842
        %v6862 = vpack.c.b16 %v6845, %v6844
        %v6863 = vpack.c.b16 %v6847, %v6846
        %v6868 = vunpack.c.l.b16 %v6780
        %v6869 = vunpack.c.l.b16 %v6781
        %v6870 = vunpack.c.l.b16 %v6782
        %v6871 = vunpack.c.l.b16 %v6783
        %v6872 = vpack.c.b16 %v6869, %v6868
        %v6873 = vpack.c.b16 %v6871, %v6870
        %v6877 = vsel %vm395, %v6848, 0
        %v6880 = vsel %vm395, %v6849, 0
        %v6883 = vsel %vm395, %v6850, 0
        %v6886 = vsel %vm395, %v6851, 0
        %v6889 = vsel %vm395, %v6852, 0
        %v6892 = vsel %vm395, %v6853, 0
        %v6895 = vsel %vm395, %v6854, 0
        %v6898 = vsel %vm395, %v6855, 0
        %v6901 = vsel %vm395, %v6856, 0
        %v6904 = vsel %vm395, %v6857, 0
        %v6907 = vsel %vm395, %v6858, 0
        %v6910 = vsel %vm395, %v6859, 0
        %v6913 = vsel %vm395, %v6860, 0
        %v6916 = vsel %vm395, %v6861, 0
        %v6919 = vsel %vm395, %v6862, 0
        %v6922 = vsel %vm395, %v6863, 0
        %6924 = vmatprep.subr.bf16.mxu0 0
        %6925 = vmatpush1.bf16.msra.mxu0 %v6872
        %6926 = vmatprep.subr.bf16.mxu0 0
        %6927 = vmatpush1.bf16.msra.mxu0 %v6873
        %6928 = vmatprep.subr.bf16.mxu0 0
        %6929 = vmatpush1.bf16.msra.mxu0 0
        %6930 = vmatprep.subr.bf16.mxu0 0
        %6931 = vmatpush1.bf16.msra.mxu0 0
        %6932 = vmatprep.subr.bf16.mxu0 0
        %6933 = vmatpush1.bf16.msra.mxu0 0
        %6934 = vmatprep.subr.bf16.mxu0 0
        %6935 = vmatpush1.bf16.msra.mxu0 0
        %6936 = vmatprep.subr.bf16.mxu0 0
        %6937 = vmatpush1.bf16.msra.mxu0 0
        %6938 = vmatprep.subr.bf16.mxu0 0
        %6939 = vmatpush1.bf16.msra.mxu0 0
        %6940 = vmatprep.subr.bf16.mxu0 0
        %6941 = vmatpush1.bf16.msra.mxu0 0
        %6942 = vmatprep.subr.bf16.mxu0 0
        %6943 = vmatpush1.bf16.msra.mxu0 0
        %6944 = vmatprep.subr.bf16.mxu0 0
        %6945 = vmatpush1.bf16.msra.mxu0 0
        %6946 = vmatprep.subr.bf16.mxu0 0
        %6947 = vmatpush1.bf16.msra.mxu0 0
        %6948 = vmatprep.subr.bf16.mxu0 0
        %6949 = vmatpush1.bf16.msra.mxu0 0
        %6950 = vmatprep.subr.bf16.mxu0 0
        %6951 = vmatpush1.bf16.msra.mxu0 0
        %6952 = vmatprep.subr.bf16.mxu0 0
        %6953 = vmatpush1.bf16.msra.mxu0 0
        %6954 = vmatprep.subr.bf16.mxu0 0
        %6955 = vmatpush1.bf16.msra.mxu0 0
        %6956 = vmatprep.mubr.bf16.mxu0 0
        %6957 = vmatmul.mubr.bf16.gmra.mrb[0].mxu0 %v6877
        %v6958 = vpop.f32.mrb[0].mxu0
        %v6959 = vadd.f32 0.0, %v6958
        %v6960 = vpop.f32.mrb[0].mxu0
        %v6961 = vpop.f32.mrb[0].mxu0
        %v6962 = vadd.f32 0.0, %v6961
        %v6963 = vpop.f32.mrb[0].mxu0
        %6964 = vmatprep.mubr.bf16.mxu0 0
        %6965 = vmatmul.mubr.bf16.gmra.mrb[0].mxu0 %v6880
        %v6966 = vpop.f32.mrb[0].mxu0
        %v6967 = vadd.f32 0.0, %v6966
        %v6968 = vpop.f32.mrb[0].mxu0
        %v6969 = vpop.f32.mrb[0].mxu0
        %v6970 = vadd.f32 0.0, %v6969
        %v6971 = vpop.f32.mrb[0].mxu0
        %6972 = vmatprep.mubr.bf16.mxu0 0
        %6973 = vmatmul.mubr.bf16.gmra.mrb[0].mxu0 %v6883
        %v6974 = vpop.f32.mrb[0].mxu0
        %v6975 = vadd.f32 0.0, %v6974
        %v6976 = vpop.f32.mrb[0].mxu0
        %v6977 = vpop.f32.mrb[0].mxu0
        %v6978 = vadd.f32 0.0, %v6977
        %v6979 = vpop.f32.mrb[0].mxu0
        %6980 = vmatprep.mubr.bf16.mxu0 0
        %6981 = vmatmul.mubr.bf16.gmra.mrb[0].mxu0 %v6886
        %v6982 = vpop.f32.mrb[0].mxu0
        %v6983 = vadd.f32 0.0, %v6982
        %v6984 = vpop.f32.mrb[0].mxu0
        %v6985 = vpop.f32.mrb[0].mxu0
        %v6986 = vadd.f32 0.0, %v6985
        %v6987 = vpop.f32.mrb[0].mxu0
        %6988 = vmatprep.mubr.bf16.mxu0 0
        %6989 = vmatmul.mubr.bf16.gmra.mrb[0].mxu0 %v6889
        %v6990 = vpop.f32.mrb[0].mxu0
        %v6991 = vadd.f32 0.0, %v6990
        %v6992 = vpop.f32.mrb[0].mxu0
        %v6993 = vpop.f32.mrb[0].mxu0
        %v6994 = vadd.f32 0.0, %v6993
        %v6995 = vpop.f32.mrb[0].mxu0
        %6996 = vmatprep.mubr.bf16.mxu0 0
        %6997 = vmatmul.mubr.bf16.gmra.mrb[0].mxu0 %v6892
        %v6998 = vpop.f32.mrb[0].mxu0
        %v6999 = vadd.f32 0.0, %v6998
        %v7000 = vpop.f32.mrb[0].mxu0
        %v7001 = vpop.f32.mrb[0].mxu0
        %v7002 = vadd.f32 0.0, %v7001
        %v7003 = vpop.f32.mrb[0].mxu0
        %7004 = vmatprep.mubr.bf16.mxu0 0
        %7005 = vmatmul.mubr.bf16.gmra.mrb[0].mxu0 %v6895
        %v7006 = vpop.f32.mrb[0].mxu0
        %v7007 = vadd.f32 0.0, %v7006
        %v7008 = vpop.f32.mrb[0].mxu0
        %v7009 = vpop.f32.mrb[0].mxu0
        %v7010 = vadd.f32 0.0, %v7009
        %v7011 = vpop.f32.mrb[0].mxu0
        %7012 = vmatprep.mubr.bf16.mxu0 0
        %7013 = vmatmul.mubr.bf16.gmra.mrb[0].mxu0 %v6898
        %v7014 = vpop.f32.mrb[0].mxu0
        %v7015 = vadd.f32 0.0, %v7014
        %v7016 = vpop.f32.mrb[0].mxu0
        %v7017 = vpop.f32.mrb[0].mxu0
        %v7018 = vadd.f32 0.0, %v7017
        %v7019 = vpop.f32.mrb[0].mxu0
        %7020 = vmatprep.mubr.bf16.mxu0 0
        %7021 = vmatmul.mubr.bf16.gmra.mrb[0].mxu0 %v6901
        %v7022 = vpop.f32.mrb[0].mxu0
        %v7023 = vadd.f32 0.0, %v7022
        %v7024 = vpop.f32.mrb[0].mxu0
        %v7025 = vpop.f32.mrb[0].mxu0
        %v7026 = vadd.f32 0.0, %v7025
        %v7027 = vpop.f32.mrb[0].mxu0
        %7028 = vmatprep.mubr.bf16.mxu0 0
        %7029 = vmatmul.mubr.bf16.gmra.mrb[0].mxu0 %v6904
        %v7030 = vpop.f32.mrb[0].mxu0
        %v7031 = vadd.f32 0.0, %v7030
        %v7032 = vpop.f32.mrb[0].mxu0
        %v7033 = vpop.f32.mrb[0].mxu0
        %v7034 = vadd.f32 0.0, %v7033
        %v7035 = vpop.f32.mrb[0].mxu0
        %7036 = vmatprep.mubr.bf16.mxu0 0
        %7037 = vmatmul.mubr.bf16.gmra.mrb[0].mxu0 %v6907
        %v7038 = vpop.f32.mrb[0].mxu0
        %v7039 = vadd.f32 0.0, %v7038
        %v7040 = vpop.f32.mrb[0].mxu0
        %v7041 = vpop.f32.mrb[0].mxu0
        %v7042 = vadd.f32 0.0, %v7041
        %v7043 = vpop.f32.mrb[0].mxu0
        %7044 = vmatprep.mubr.bf16.mxu0 0
        %7045 = vmatmul.mubr.bf16.gmra.mrb[0].mxu0 %v6910
        %v7046 = vpop.f32.mrb[0].mxu0
        %v7047 = vadd.f32 0.0, %v7046
        %v7048 = vpop.f32.mrb[0].mxu0
        %v7049 = vpop.f32.mrb[0].mxu0
        %v7050 = vadd.f32 0.0, %v7049
        %v7051 = vpop.f32.mrb[0].mxu0
        %7052 = vmatprep.mubr.bf16.mxu0 0
        %7053 = vmatmul.mubr.bf16.gmra.mrb[0].mxu0 %v6913
        %v7054 = vpop.f32.mrb[0].mxu0
        %v7055 = vadd.f32 0.0, %v7054
        %v7056 = vpop.f32.mrb[0].mxu0
        %v7057 = vpop.f32.mrb[0].mxu0
        %v7058 = vadd.f32 0.0, %v7057
        %v7059 = vpop.f32.mrb[0].mxu0
        %7060 = vmatprep.mubr.bf16.mxu0 0
        %7061 = vmatmul.mubr.bf16.gmra.mrb[0].mxu0 %v6916
        %v7062 = vpop.f32.mrb[0].mxu0
        %v7063 = vadd.f32 0.0, %v7062
        %v7064 = vpop.f32.mrb[0].mxu0
        %v7065 = vpop.f32.mrb[0].mxu0
        %v7066 = vadd.f32 0.0, %v7065
        %v7067 = vpop.f32.mrb[0].mxu0
        %7068 = vmatprep.mubr.bf16.mxu0 0
        %7069 = vmatmul.mubr.bf16.gmra.mrb[0].mxu0 %v6919
        %v7070 = vpop.f32.mrb[0].mxu0
        %v7071 = vadd.f32 0.0, %v7070
        %v7072 = vpop.f32.mrb[0].mxu0
        %v7073 = vpop.f32.mrb[0].mxu0
        %v7074 = vadd.f32 0.0, %v7073
        %v7075 = vpop.f32.mrb[0].mxu0
        %7076 = vmatprep.mubr.bf16.mxu0 0
        %7077 = vmatmul.mubr.bf16.gmra.mrb[0].mxu0 %v6922
        %v7078 = vpop.f32.mrb[0].mxu0
        %v7079 = vadd.f32 0.0, %v7078
        %v7080 = vpop.f32.mrb[0].mxu0
        %v7081 = vpop.f32.mrb[0].mxu0
        %v7082 = vadd.f32 0.0, %v7081
        %v7083 = vpop.f32.mrb[0].mxu0
        %7084 = vdwg.mxu0
        %v7085 = vadd.f32 %v6714, %v6959
        %v7086 = vadd.f32 %v6715, %v6962
        %v7087 = vadd.f32 %v6716, %v6967
        %v7088 = vadd.f32 %v6717, %v6970
        %v7089 = vadd.f32 %v6718, %v6975
        %v7090 = vadd.f32 %v6719, %v6978
        %v7091 = vadd.f32 %v6720, %v6983
        %v7092 = vadd.f32 %v6721, %v6986
        %v7093 = vadd.f32 %v6722, %v6991
        %v7094 = vadd.f32 %v6723, %v6994
        %v7095 = vadd.f32 %v6724, %v6999
        %v7096 = vadd.f32 %v6725, %v7002
        %v7097 = vadd.f32 %v6726, %v7007
        %v7098 = vadd.f32 %v6727, %v7010
        %v7099 = vadd.f32 %v6728, %v7015
        %v7100 = vadd.f32 %v6729, %v7018
        %v7101 = vadd.f32 %v6730, %v7023
        %v7102 = vadd.f32 %v6731, %v7026
        %v7103 = vadd.f32 %v6732, %v7031
        %v7104 = vadd.f32 %v6733, %v7034
        %v7105 = vadd.f32 %v6734, %v7039
        %v7106 = vadd.f32 %v6735, %v7042
        %v7107 = vadd.f32 %v6736, %v7047
        %v7108 = vadd.f32 %v6737, %v7050
        %v7109 = vadd.f32 %v6738, %v7055
        %v7110 = vadd.f32 %v6739, %v7058
        %v7111 = vadd.f32 %v6740, %v7063
        %v7112 = vadd.f32 %v6741, %v7066
        %v7113 = vadd.f32 %v6742, %v7071
        %v7114 = vadd.f32 %v6743, %v7074
        %v7115 = vadd.f32 %v6744, %v7079
        %v7116 = vadd.f32 %v6745, %v7082
        %v7117 = vld [vmem:[%s6746] sm:$0xf]
        %v7118 = vld [vmem:[%s6746 + $0x4] sm:$0xf]
        %v7119 = vld [vmem:[%s6746 + $0x8] sm:$0x1]
        %v7120 = vld [vmem:[%s6746 + $0xc] sm:$0xf]
        %v7121 = vld [vmem:[%s6746 + $0x10] sm:$0xf]
        %v7122 = vld [vmem:[%s6746 + $0x14] sm:$0x1]
        %v7123 = vld [vmem:[%s6746 + $0x18] sm:$0xf]
        %v7124 = vld [vmem:[%s6746 + $0x1c] sm:$0xf]
        %v7125 = vld [vmem:[%s6746 + $0x20] sm:$0x1]
        %v7126 = vld [vmem:[%s6746 + $0x24] sm:$0xf]
        %v7127 = vld [vmem:[%s6746 + $0x28] sm:$0xf]
        %v7128 = vld [vmem:[%s6746 + $0x2c] sm:$0x1]
        %v7129 = vld [vmem:[%s6746 + $0x30] sm:$0xf]
        %v7130 = vld [vmem:[%s6746 + $0x34] sm:$0xf]
        %v7131 = vld [vmem:[%s6746 + $0x38] sm:$0x1]
        %v7132 = vld [vmem:[%s6746 + $0x3c] sm:$0xf]
        %v7133 = vld [vmem:[%s6746 + $0x40] sm:$0xf]
        %v7134 = vld [vmem:[%s6746 + $0x44] sm:$0x1]
        %v7135 = vld [vmem:[%s6746 + $0x48] sm:$0xf]
        %v7136 = vld [vmem:[%s6746 + $0x4c] sm:$0xf]
        %v7137 = vld [vmem:[%s6746 + $0x50] sm:$0x1]
        %v7138 = vld [vmem:[%s6746 + $0x54] sm:$0xf]
        %v7139 = vld [vmem:[%s6746 + $0x58] sm:$0xf]
        %v7140 = vld [vmem:[%s6746 + $0x5c] sm:$0x1]
        %v7141 = vld [vmem:[%s6746 + $0x60] sm:$0xf]
        %v7142 = vld [vmem:[%s6746 + $0x64] sm:$0xf]
        %v7143 = vld [vmem:[%s6746 + $0x68] sm:$0x1]
        %v7144 = vld [vmem:[%s6746 + $0x6c] sm:$0xf]
        %v7145 = vld [vmem:[%s6746 + $0x70] sm:$0xf]
        %v7146 = vld [vmem:[%s6746 + $0x74] sm:$0x1]
        %v7147 = vld [vmem:[%s6746 + $0x78] sm:$0xf]
        %v7148 = vld [vmem:[%s6746 + $0x7c] sm:$0xf]
        %v7149 = vld [vmem:[%s6746 + $0x80] sm:$0x1]
        %v7150 = vld [vmem:[%s6746 + $0x84] sm:$0xf]
        %v7151 = vld [vmem:[%s6746 + $0x88] sm:$0xf]
        %v7152 = vld [vmem:[%s6746 + $0x8c] sm:$0x1]
        %v7153 = vld [vmem:[%s6746 + $0x90] sm:$0xf]
        %v7154 = vld [vmem:[%s6746 + $0x94] sm:$0xf]
        %v7155 = vld [vmem:[%s6746 + $0x98] sm:$0x1]
        %v7156 = vld [vmem:[%s6746 + $0x9c] sm:$0xf]
        %v7157 = vld [vmem:[%s6746 + $0xa0] sm:$0xf]
        %v7158 = vld [vmem:[%s6746 + $0xa4] sm:$0x1]
        %v7159 = vld [vmem:[%s6746 + $0xa8] sm:$0xf]
        %v7160 = vld [vmem:[%s6746 + $0xac] sm:$0xf]
        %v7161 = vld [vmem:[%s6746 + $0xb0] sm:$0x1]
        %v7162 = vld [vmem:[%s6746 + $0xb4] sm:$0xf]
        %v7163 = vld [vmem:[%s6746 + $0xb8] sm:$0xf]
        %v7164 = vld [vmem:[%s6746 + $0xbc] sm:$0x1]
        %v7166 = vshrl.u32 %v7117, 16
        %v7168 = vrot.slane %v7166, 4
        %v7169 = vshll.u32 %v7117, 16
        %v7171 = vrot.slane %v7169, 5
        %v7172 = vor.u32 %v7168, %v7171
        %v7173 = vrot.slane %v7172, 4
        %v7175 = vshll.u32 %v7118, 16
        %v7177 = vrot.slane %v7175, 5
        %v7178 = vsel %vm3727, %v7173, %v7177
        %v7179 = vshrl.u32 %v7118, 16
        %v7181 = vrot.slane %v7179, 4
        %v7182 = vor.u32 %v7181, %v7177
        %v7183 = vrot.slane %v7182, 4
        %v7185 = vshll.u32 %v7119, 16
        %v7187 = vrot.slane %v7185, 5
        %v7188 = vsel %vm3727, %v7183, %v7187
        %v7190 = vshrl.u32 %v7120, 16
        %v7192 = vrot.slane %v7190, 4
        %v7193 = vshll.u32 %v7120, 16
        %v7195 = vrot.slane %v7193, 5
        %v7196 = vor.u32 %v7192, %v7195
        %v7197 = vrot.slane %v7196, 4
        %v7199 = vshll.u32 %v7121, 16
        %v7201 = vrot.slane %v7199, 5
        %v7202 = vsel %vm3727, %v7197, %v7201
        %v7203 = vshrl.u32 %v7121, 16
        %v7205 = vrot.slane %v7203, 4
        %v7206 = vor.u32 %v7205, %v7201
        %v7207 = vrot.slane %v7206, 4
        %v7209 = vshll.u32 %v7122, 16
        %v7211 = vrot.slane %v7209, 5
        %v7212 = vsel %vm3727, %v7207, %v7211
        %v7214 = vshrl.u32 %v7123, 16
        %v7216 = vrot.slane %v7214, 4
        %v7217 = vshll.u32 %v7123, 16
        %v7219 = vrot.slane %v7217, 5
        %v7220 = vor.u32 %v7216, %v7219
        %v7221 = vrot.slane %v7220, 4
        %v7223 = vshll.u32 %v7124, 16
        %v7225 = vrot.slane %v7223, 5
        %v7226 = vsel %vm3727, %v7221, %v7225
        %v7227 = vshrl.u32 %v7124, 16
        %v7229 = vrot.slane %v7227, 4
        %v7230 = vor.u32 %v7229, %v7225
        %v7231 = vrot.slane %v7230, 4
        %v7233 = vshll.u32 %v7125, 16
        %v7235 = vrot.slane %v7233, 5
        %v7236 = vsel %vm3727, %v7231, %v7235
        %v7238 = vshrl.u32 %v7126, 16
        %v7240 = vrot.slane %v7238, 4
        %v7241 = vshll.u32 %v7126, 16
        %v7243 = vrot.slane %v7241, 5
        %v7244 = vor.u32 %v7240, %v7243
        %v7245 = vrot.slane %v7244, 4
        %v7247 = vshll.u32 %v7127, 16
        %v7249 = vrot.slane %v7247, 5
        %v7250 = vsel %vm3727, %v7245, %v7249
        %v7251 = vshrl.u32 %v7127, 16
        %v7253 = vrot.slane %v7251, 4
        %v7254 = vor.u32 %v7253, %v7249
        %v7255 = vrot.slane %v7254, 4
        %v7257 = vshll.u32 %v7128, 16
        %v7259 = vrot.slane %v7257, 5
        %v7260 = vsel %vm3727, %v7255, %v7259
        %v7262 = vshrl.u32 %v7129, 16
        %v7264 = vrot.slane %v7262, 4
        %v7265 = vshll.u32 %v7129, 16
        %v7267 = vrot.slane %v7265, 5
        %v7268 = vor.u32 %v7264, %v7267
        %v7269 = vrot.slane %v7268, 4
        %v7271 = vshll.u32 %v7130, 16
        %v7273 = vrot.slane %v7271, 5
        %v7274 = vsel %vm3727, %v7269, %v7273
        %v7275 = vshrl.u32 %v7130, 16
        %v7277 = vrot.slane %v7275, 4
        %v7278 = vor.u32 %v7277, %v7273
        %v7279 = vrot.slane %v7278, 4
        %v7281 = vshll.u32 %v7131, 16
        %v7283 = vrot.slane %v7281, 5
        %v7284 = vsel %vm3727, %v7279, %v7283
        %v7286 = vshrl.u32 %v7132, 16
        %v7288 = vrot.slane %v7286, 4
        %v7289 = vshll.u32 %v7132, 16
        %v7291 = vrot.slane %v7289, 5
        %v7292 = vor.u32 %v7288, %v7291
        %v7293 = vrot.slane %v7292, 4
        %v7295 = vshll.u32 %v7133, 16
        %v7297 = vrot.slane %v7295, 5
        %v7298 = vsel %vm3727, %v7293, %v7297
        %v7299 = vshrl.u32 %v7133, 16
        %v7301 = vrot.slane %v7299, 4
        %v7302 = vor.u32 %v7301, %v7297
        %v7303 = vrot.slane %v7302, 4
        %v7305 = vshll.u32 %v7134, 16
        %v7307 = vrot.slane %v7305, 5
        %v7308 = vsel %vm3727, %v7303, %v7307
        %v7310 = vshrl.u32 %v7135, 16
        %v7312 = vrot.slane %v7310, 4
        %v7313 = vshll.u32 %v7135, 16
        %v7315 = vrot.slane %v7313, 5
        %v7316 = vor.u32 %v7312, %v7315
        %v7317 = vrot.slane %v7316, 4
        %v7319 = vshll.u32 %v7136, 16
        %v7321 = vrot.slane %v7319, 5
        %v7322 = vsel %vm3727, %v7317, %v7321
        %v7323 = vshrl.u32 %v7136, 16
        %v7325 = vrot.slane %v7323, 4
        %v7326 = vor.u32 %v7325, %v7321
        %v7327 = vrot.slane %v7326, 4
        %v7329 = vshll.u32 %v7137, 16
        %v7331 = vrot.slane %v7329, 5
        %v7332 = vsel %vm3727, %v7327, %v7331
        %v7334 = vshrl.u32 %v7138, 16
        %v7336 = vrot.slane %v7334, 4
        %v7337 = vshll.u32 %v7138, 16
        %v7339 = vrot.slane %v7337, 5
        %v7340 = vor.u32 %v7336, %v7339
        %v7341 = vrot.slane %v7340, 4
        %v7343 = vshll.u32 %v7139, 16
        %v7345 = vrot.slane %v7343, 5
        %v7346 = vsel %vm3727, %v7341, %v7345
        %v7347 = vshrl.u32 %v7139, 16
        %v7349 = vrot.slane %v7347, 4
        %v7350 = vor.u32 %v7349, %v7345
        %v7351 = vrot.slane %v7350, 4
        %v7353 = vshll.u32 %v7140, 16
        %v7355 = vrot.slane %v7353, 5
        %v7356 = vsel %vm3727, %v7351, %v7355
        %v7358 = vshrl.u32 %v7141, 16
        %v7360 = vrot.slane %v7358, 4
        %v7361 = vshll.u32 %v7141, 16
        %v7363 = vrot.slane %v7361, 5
        %v7364 = vor.u32 %v7360, %v7363
        %v7365 = vrot.slane %v7364, 4
        %v7367 = vshll.u32 %v7142, 16
        %v7369 = vrot.slane %v7367, 5
        %v7370 = vsel %vm3727, %v7365, %v7369
        %v7371 = vshrl.u32 %v7142, 16
        %v7373 = vrot.slane %v7371, 4
        %v7374 = vor.u32 %v7373, %v7369
        %v7375 = vrot.slane %v7374, 4
        %v7377 = vshll.u32 %v7143, 16
        %v7379 = vrot.slane %v7377, 5
        %v7380 = vsel %vm3727, %v7375, %v7379
        %v7382 = vshrl.u32 %v7144, 16
        %v7384 = vrot.slane %v7382, 4
        %v7385 = vshll.u32 %v7144, 16
        %v7387 = vrot.slane %v7385, 5
        %v7388 = vor.u32 %v7384, %v7387
        %v7389 = vrot.slane %v7388, 4
        %v7391 = vshll.u32 %v7145, 16
        %v7393 = vrot.slane %v7391, 5
        %v7394 = vsel %vm3727, %v7389, %v7393
        %v7395 = vshrl.u32 %v7145, 16
        %v7397 = vrot.slane %v7395, 4
        %v7398 = vor.u32 %v7397, %v7393
        %v7399 = vrot.slane %v7398, 4
        %v7401 = vshll.u32 %v7146, 16
        %v7403 = vrot.slane %v7401, 5
        %v7404 = vsel %vm3727, %v7399, %v7403
        %v7406 = vshrl.u32 %v7147, 16
        %v7408 = vrot.slane %v7406, 4
        %v7409 = vshll.u32 %v7147, 16
        %v7411 = vrot.slane %v7409, 5
        %v7412 = vor.u32 %v7408, %v7411
        %v7413 = vrot.slane %v7412, 4
        %v7415 = vshll.u32 %v7148, 16
        %v7417 = vrot.slane %v7415, 5
        %v7418 = vsel %vm3727, %v7413, %v7417
        %v7419 = vshrl.u32 %v7148, 16
        %v7421 = vrot.slane %v7419, 4
        %v7422 = vor.u32 %v7421, %v7417
        %v7423 = vrot.slane %v7422, 4
        %v7425 = vshll.u32 %v7149, 16
        %v7427 = vrot.slane %v7425, 5
        %v7428 = vsel %vm3727, %v7423, %v7427
        %v7430 = vshrl.u32 %v7150, 16
        %v7432 = vrot.slane %v7430, 4
        %v7433 = vshll.u32 %v7150, 16
        %v7435 = vrot.slane %v7433, 5
        %v7436 = vor.u32 %v7432, %v7435
        %v7437 = vrot.slane %v7436, 4
        %v7439 = vshll.u32 %v7151, 16
        %v7441 = vrot.slane %v7439, 5
        %v7442 = vsel %vm3727, %v7437, %v7441
        %v7443 = vshrl.u32 %v7151, 16
        %v7445 = vrot.slane %v7443, 4
        %v7446 = vor.u32 %v7445, %v7441
        %v7447 = vrot.slane %v7446, 4
        %v7449 = vshll.u32 %v7152, 16
        %v7451 = vrot.slane %v7449, 5
        %v7452 = vsel %vm3727, %v7447, %v7451
        %v7454 = vshrl.u32 %v7153, 16
        %v7456 = vrot.slane %v7454, 4
        %v7457 = vshll.u32 %v7153, 16
        %v7459 = vrot.slane %v7457, 5
        %v7460 = vor.u32 %v7456, %v7459
        %v7461 = vrot.slane %v7460, 4
        %v7463 = vshll.u32 %v7154, 16
        %v7465 = vrot.slane %v7463, 5
        %v7466 = vsel %vm3727, %v7461, %v7465
        %v7467 = vshrl.u32 %v7154, 16
        %v7469 = vrot.slane %v7467, 4
        %v7470 = vor.u32 %v7469, %v7465
        %v7471 = vrot.slane %v7470, 4
        %v7473 = vshll.u32 %v7155, 16
        %v7475 = vrot.slane %v7473, 5
        %v7476 = vsel %vm3727, %v7471, %v7475
        %v7478 = vshrl.u32 %v7156, 16
        %v7480 = vrot.slane %v7478, 4
        %v7481 = vshll.u32 %v7156, 16
        %v7483 = vrot.slane %v7481, 5
        %v7484 = vor.u32 %v7480, %v7483
        %v7485 = vrot.slane %v7484, 4
        %v7487 = vshll.u32 %v7157, 16
        %v7489 = vrot.slane %v7487, 5
        %v7490 = vsel %vm3727, %v7485, %v7489
        %v7491 = vshrl.u32 %v7157, 16
        %v7493 = vrot.slane %v7491, 4
        %v7494 = vor.u32 %v7493, %v7489
        %v7495 = vrot.slane %v7494, 4
        %v7497 = vshll.u32 %v7158, 16
        %v7499 = vrot.slane %v7497, 5
        %v7500 = vsel %vm3727, %v7495, %v7499
        %v7502 = vshrl.u32 %v7159, 16
        %v7504 = vrot.slane %v7502, 4
        %v7505 = vshll.u32 %v7159, 16
        %v7507 = vrot.slane %v7505, 5
        %v7508 = vor.u32 %v7504, %v7507
        %v7509 = vrot.slane %v7508, 4
        %v7511 = vshll.u32 %v7160, 16
        %v7513 = vrot.slane %v7511, 5
        %v7514 = vsel %vm3727, %v7509, %v7513
        %v7515 = vshrl.u32 %v7160, 16
        %v7517 = vrot.slane %v7515, 4
        %v7518 = vor.u32 %v7517, %v7513
        %v7519 = vrot.slane %v7518, 4
        %v7521 = vshll.u32 %v7161, 16
        %v7523 = vrot.slane %v7521, 5
        %v7524 = vsel %vm3727, %v7519, %v7523
        %v7526 = vshrl.u32 %v7162, 16
        %v7528 = vrot.slane %v7526, 4
        %v7529 = vshll.u32 %v7162, 16
        %v7531 = vrot.slane %v7529, 5
        %v7532 = vor.u32 %v7528, %v7531
        %v7533 = vrot.slane %v7532, 4
        %v7535 = vshll.u32 %v7163, 16
        %v7537 = vrot.slane %v7535, 5
        %v7538 = vsel %vm3727, %v7533, %v7537
        %v7539 = vshrl.u32 %v7163, 16
        %v7541 = vrot.slane %v7539, 4
        %v7542 = vor.u32 %v7541, %v7537
        %v7543 = vrot.slane %v7542, 4
        %v7545 = vshll.u32 %v7164, 16
        %v7547 = vrot.slane %v7545, 5
        %v7548 = vsel %vm3727, %v7543, %v7547
        %s7549 = scalar_lea.vmem %s4, 112
        %v7550 = vld [vmem:[%s7549] sm:$0xf]
        %v7551 = vld [vmem:[%s7549 + $0x4] sm:$0xf]
        %v7552 = vld [vmem:[%s7549 + $0x8] sm:$0xf]
        %v7553 = vld [vmem:[%s7549 + $0xc] sm:$0xf]
        %v7554 = vunpack.c.l.b16 %v7178
        %v7555 = vunpack.c.l.b16 %v7188
        %v7556 = vunpack.c.l.b16 %v7202
        %v7557 = vunpack.c.l.b16 %v7212
        %v7558 = vunpack.c.l.b16 %v7226
        %v7559 = vunpack.c.l.b16 %v7236
        %v7560 = vunpack.c.l.b16 %v7250
        %v7561 = vunpack.c.l.b16 %v7260
        %v7562 = vunpack.c.l.b16 %v7274
        %v7563 = vunpack.c.l.b16 %v7284
        %v7564 = vunpack.c.l.b16 %v7298
        %v7565 = vunpack.c.l.b16 %v7308
        %v7566 = vunpack.c.l.b16 %v7322
        %v7567 = vunpack.c.l.b16 %v7332
        %v7568 = vunpack.c.l.b16 %v7346
        %v7569 = vunpack.c.l.b16 %v7356
        %v7570 = vunpack.c.l.b16 %v7370
        %v7571 = vunpack.c.l.b16 %v7380
        %v7572 = vunpack.c.l.b16 %v7394
        %v7573 = vunpack.c.l.b16 %v7404
        %v7574 = vunpack.c.l.b16 %v7418
        %v7575 = vunpack.c.l.b16 %v7428
        %v7576 = vunpack.c.l.b16 %v7442
        %v7577 = vunpack.c.l.b16 %v7452
        %v7578 = vunpack.c.l.b16 %v7466
        %v7579 = vunpack.c.l.b16 %v7476
        %v7580 = vunpack.c.l.b16 %v7490
        %v7581 = vunpack.c.l.b16 %v7500
        %v7582 = vunpack.c.l.b16 %v7514
        %v7583 = vunpack.c.l.b16 %v7524
        %v7584 = vunpack.c.l.b16 %v7538
        %v7585 = vunpack.c.l.b16 %v7548
        %v7586 = vpack.c.b16 %v7555, %v7554
        %v7587 = vpack.c.b16 %v7557, %v7556
        %v7588 = vpack.c.b16 %v7559, %v7558
        %v7589 = vpack.c.b16 %v7561, %v7560
        %v7590 = vpack.c.b16 %v7563, %v7562
        %v7591 = vpack.c.b16 %v7565, %v7564
        %v7592 = vpack.c.b16 %v7567, %v7566
        %v7593 = vpack.c.b16 %v7569, %v7568
        %v7594 = vpack.c.b16 %v7571, %v7570
        %v7595 = vpack.c.b16 %v7573, %v7572
        %v7596 = vpack.c.b16 %v7575, %v7574
        %v7597 = vpack.c.b16 %v7577, %v7576
        %v7598 = vpack.c.b16 %v7579, %v7578
        %v7599 = vpack.c.b16 %v7581, %v7580
        %v7600 = vpack.c.b16 %v7583, %v7582
        %v7601 = vpack.c.b16 %v7585, %v7584
        %v7606 = vunpack.c.l.b16 %v7550
        %v7607 = vunpack.c.l.b16 %v7551
        %v7608 = vunpack.c.l.b16 %v7552
        %v7609 = vunpack.c.l.b16 %v7553
        %v7610 = vpack.c.b16 %v7607, %v7606
        %v7611 = vpack.c.b16 %v7609, %v7608
        %v7615 = vsel %vm395, %v7586, 0
        %v7618 = vsel %vm395, %v7587, 0
        %v7621 = vsel %vm395, %v7588, 0
        %v7624 = vsel %vm395, %v7589, 0
        %v7627 = vsel %vm395, %v7590, 0
        %v7630 = vsel %vm395, %v7591, 0
        %v7633 = vsel %vm395, %v7592, 0
        %v7636 = vsel %vm395, %v7593, 0
        %v7639 = vsel %vm395, %v7594, 0
        %v7642 = vsel %vm395, %v7595, 0
        %v7645 = vsel %vm395, %v7596, 0
        %v7648 = vsel %vm395, %v7597, 0
        %v7651 = vsel %vm395, %v7598, 0
        %v7654 = vsel %vm395, %v7599, 0
        %v7657 = vsel %vm395, %v7600, 0
        %v7660 = vsel %vm395, %v7601, 0
        %7662 = vmatprep.subr.bf16.mxu0 0
        %7663 = vmatpush1.bf16.msra.mxu0 %v7610
        %7664 = vmatprep.subr.bf16.mxu0 0
        %7665 = vmatpush1.bf16.msra.mxu0 %v7611
        %7666 = vmatprep.subr.bf16.mxu0 0
        %7667 = vmatpush1.bf16.msra.mxu0 0
        %7668 = vmatprep.subr.bf16.mxu0 0
        %7669 = vmatpush1.bf16.msra.mxu0 0
        %7670 = vmatprep.subr.bf16.mxu0 0
        %7671 = vmatpush1.bf16.msra.mxu0 0
        %7672 = vmatprep.subr.bf16.mxu0 0
        %7673 = vmatpush1.bf16.msra.mxu0 0
        %7674 = vmatprep.subr.bf16.mxu0 0
        %7675 = vmatpush1.bf16.msra.mxu0 0
        %7676 = vmatprep.subr.bf16.mxu0 0
        %7677 = vmatpush1.bf16.msra.mxu0 0
        %7678 = vmatprep.subr.bf16.mxu0 0
        %7679 = vmatpush1.bf16.msra.mxu0 0
        %7680 = vmatprep.subr.bf16.mxu0 0
        %7681 = vmatpush1.bf16.msra.mxu0 0
        %7682 = vmatprep.subr.bf16.mxu0 0
        %7683 = vmatpush1.bf16.msra.mxu0 0
        %7684 = vmatprep.subr.bf16.mxu0 0
        %7685 = vmatpush1.bf16.msra.mxu0 0
        %7686 = vmatprep.subr.bf16.mxu0 0
        %7687 = vmatpush1.bf16.msra.mxu0 0
        %7688 = vmatprep.subr.bf16.mxu0 0
        %7689 = vmatpush1.bf16.msra.mxu0 0
        %7690 = vmatprep.subr.bf16.mxu0 0
        %7691 = vmatpush1.bf16.msra.mxu0 0
        %7692 = vmatprep.subr.bf16.mxu0 0
        %7693 = vmatpush1.bf16.msra.mxu0 0
        %7694 = vmatprep.mubr.bf16.mxu0 0
        %7695 = vmatmul.mubr.bf16.gmra.mrb[0].mxu0 %v7615
        %v7696 = vpop.f32.mrb[0].mxu0
        %v7697 = vadd.f32 0.0, %v7696
        %v7698 = vpop.f32.mrb[0].mxu0
        %v7699 = vpop.f32.mrb[0].mxu0
        %v7700 = vadd.f32 0.0, %v7699
        %v7701 = vpop.f32.mrb[0].mxu0
        %7702 = vmatprep.mubr.bf16.mxu0 0
        %7703 = vmatmul.mubr.bf16.gmra.mrb[0].mxu0 %v7618
        %v7704 = vpop.f32.mrb[0].mxu0
        %v7705 = vadd.f32 0.0, %v7704
        %v7706 = vpop.f32.mrb[0].mxu0
        %v7707 = vpop.f32.mrb[0].mxu0
        %v7708 = vadd.f32 0.0, %v7707
        %v7709 = vpop.f32.mrb[0].mxu0
        %7710 = vmatprep.mubr.bf16.mxu0 0
        %7711 = vmatmul.mubr.bf16.gmra.mrb[0].mxu0 %v7621
        %v7712 = vpop.f32.mrb[0].mxu0
        %v7713 = vadd.f32 0.0, %v7712
        %v7714 = vpop.f32.mrb[0].mxu0
        %v7715 = vpop.f32.mrb[0].mxu0
        %v7716 = vadd.f32 0.0, %v7715
        %v7717 = vpop.f32.mrb[0].mxu0
        %7718 = vmatprep.mubr.bf16.mxu0 0
        %7719 = vmatmul.mubr.bf16.gmra.mrb[0].mxu0 %v7624
        %v7720 = vpop.f32.mrb[0].mxu0
        %v7721 = vadd.f32 0.0, %v7720
        %v7722 = vpop.f32.mrb[0].mxu0
        %v7723 = vpop.f32.mrb[0].mxu0
        %v7724 = vadd.f32 0.0, %v7723
        %v7725 = vpop.f32.mrb[0].mxu0
        %7726 = vmatprep.mubr.bf16.mxu0 0
        %7727 = vmatmul.mubr.bf16.gmra.mrb[0].mxu0 %v7627
        %v7728 = vpop.f32.mrb[0].mxu0
        %v7729 = vadd.f32 0.0, %v7728
        %v7730 = vpop.f32.mrb[0].mxu0
        %v7731 = vpop.f32.mrb[0].mxu0
        %v7732 = vadd.f32 0.0, %v7731
        %v7733 = vpop.f32.mrb[0].mxu0
        %7734 = vmatprep.mubr.bf16.mxu0 0
        %7735 = vmatmul.mubr.bf16.gmra.mrb[0].mxu0 %v7630
        %v7736 = vpop.f32.mrb[0].mxu0
        %v7737 = vadd.f32 0.0, %v7736
        %v7738 = vpop.f32.mrb[0].mxu0
        %v7739 = vpop.f32.mrb[0].mxu0
        %v7740 = vadd.f32 0.0, %v7739
        %v7741 = vpop.f32.mrb[0].mxu0
        %7742 = vmatprep.mubr.bf16.mxu0 0
        %7743 = vmatmul.mubr.bf16.gmra.mrb[0].mxu0 %v7633
        %v7744 = vpop.f32.mrb[0].mxu0
        %v7745 = vadd.f32 0.0, %v7744
        %v7746 = vpop.f32.mrb[0].mxu0
        %v7747 = vpop.f32.mrb[0].mxu0
        %v7748 = vadd.f32 0.0, %v7747
        %v7749 = vpop.f32.mrb[0].mxu0
        %7750 = vmatprep.mubr.bf16.mxu0 0
        %7751 = vmatmul.mubr.bf16.gmra.mrb[0].mxu0 %v7636
        %v7752 = vpop.f32.mrb[0].mxu0
        %v7753 = vadd.f32 0.0, %v7752
        %v7754 = vpop.f32.mrb[0].mxu0
        %v7755 = vpop.f32.mrb[0].mxu0
        %v7756 = vadd.f32 0.0, %v7755
        %v7757 = vpop.f32.mrb[0].mxu0
        %7758 = vmatprep.mubr.bf16.mxu0 0
        %7759 = vmatmul.mubr.bf16.gmra.mrb[0].mxu0 %v7639
        %v7760 = vpop.f32.mrb[0].mxu0
        %v7761 = vadd.f32 0.0, %v7760
        %v7762 = vpop.f32.mrb[0].mxu0
        %v7763 = vpop.f32.mrb[0].mxu0
        %v7764 = vadd.f32 0.0, %v7763
        %v7765 = vpop.f32.mrb[0].mxu0
        %7766 = vmatprep.mubr.bf16.mxu0 0
        %7767 = vmatmul.mubr.bf16.gmra.mrb[0].mxu0 %v7642
        %v7768 = vpop.f32.mrb[0].mxu0
        %v7769 = vadd.f32 0.0, %v7768
        %v7770 = vpop.f32.mrb[0].mxu0
        %v7771 = vpop.f32.mrb[0].mxu0
        %v7772 = vadd.f32 0.0, %v7771
        %v7773 = vpop.f32.mrb[0].mxu0
        %7774 = vmatprep.mubr.bf16.mxu0 0
        %7775 = vmatmul.mubr.bf16.gmra.mrb[0].mxu0 %v7645
        %v7776 = vpop.f32.mrb[0].mxu0
        %v7777 = vadd.f32 0.0, %v7776
        %v7778 = vpop.f32.mrb[0].mxu0
        %v7779 = vpop.f32.mrb[0].mxu0
        %v7780 = vadd.f32 0.0, %v7779
        %v7781 = vpop.f32.mrb[0].mxu0
        %7782 = vmatprep.mubr.bf16.mxu0 0
        %7783 = vmatmul.mubr.bf16.gmra.mrb[0].mxu0 %v7648
        %v7784 = vpop.f32.mrb[0].mxu0
        %v7785 = vadd.f32 0.0, %v7784
        %v7786 = vpop.f32.mrb[0].mxu0
        %v7787 = vpop.f32.mrb[0].mxu0
        %v7788 = vadd.f32 0.0, %v7787
        %v7789 = vpop.f32.mrb[0].mxu0
        %7790 = vmatprep.mubr.bf16.mxu0 0
        %7791 = vmatmul.mubr.bf16.gmra.mrb[0].mxu0 %v7651
        %v7792 = vpop.f32.mrb[0].mxu0
        %v7793 = vadd.f32 0.0, %v7792
        %v7794 = vpop.f32.mrb[0].mxu0
        %v7795 = vpop.f32.mrb[0].mxu0
        %v7796 = vadd.f32 0.0, %v7795
        %v7797 = vpop.f32.mrb[0].mxu0
        %7798 = vmatprep.mubr.bf16.mxu0 0
        %7799 = vmatmul.mubr.bf16.gmra.mrb[0].mxu0 %v7654
        %v7800 = vpop.f32.mrb[0].mxu0
        %v7801 = vadd.f32 0.0, %v7800
        %v7802 = vpop.f32.mrb[0].mxu0
        %v7803 = vpop.f32.mrb[0].mxu0
        %v7804 = vadd.f32 0.0, %v7803
        %v7805 = vpop.f32.mrb[0].mxu0
        %7806 = vmatprep.mubr.bf16.mxu0 0
        %7807 = vmatmul.mubr.bf16.gmra.mrb[0].mxu0 %v7657
        %v7808 = vpop.f32.mrb[0].mxu0
        %v7809 = vadd.f32 0.0, %v7808
        %v7810 = vpop.f32.mrb[0].mxu0
        %v7811 = vpop.f32.mrb[0].mxu0
        %v7812 = vadd.f32 0.0, %v7811
        %v7813 = vpop.f32.mrb[0].mxu0
        %7814 = vmatprep.mubr.bf16.mxu0 0
        %7815 = vmatmul.mubr.bf16.gmra.mrb[0].mxu0 %v7660
        %v7816 = vpop.f32.mrb[0].mxu0
        %v7817 = vadd.f32 0.0, %v7816
        %v7818 = vpop.f32.mrb[0].mxu0
        %v7819 = vpop.f32.mrb[0].mxu0
        %v7820 = vadd.f32 0.0, %v7819
        %v7821 = vpop.f32.mrb[0].mxu0
        %7822 = vdwg.mxu0
        %v7823 = vadd.f32 %v7085, %v7697
        %v7824 = vadd.f32 %v7086, %v7700
        %v7825 = vadd.f32 %v7087, %v7705
        %v7826 = vadd.f32 %v7088, %v7708
        %v7827 = vadd.f32 %v7089, %v7713
        %v7828 = vadd.f32 %v7090, %v7716
        %v7829 = vadd.f32 %v7091, %v7721
        %v7830 = vadd.f32 %v7092, %v7724
        %v7831 = vadd.f32 %v7093, %v7729
        %v7832 = vadd.f32 %v7094, %v7732
        %v7833 = vadd.f32 %v7095, %v7737
        %v7834 = vadd.f32 %v7096, %v7740
        %v7835 = vadd.f32 %v7097, %v7745
        %v7836 = vadd.f32 %v7098, %v7748
        %v7837 = vadd.f32 %v7099, %v7753
        %v7838 = vadd.f32 %v7100, %v7756
        %v7839 = vadd.f32 %v7101, %v7761
        %v7840 = vadd.f32 %v7102, %v7764
        %v7841 = vadd.f32 %v7103, %v7769
        %v7842 = vadd.f32 %v7104, %v7772
        %v7843 = vadd.f32 %v7105, %v7777
        %v7844 = vadd.f32 %v7106, %v7780
        %v7845 = vadd.f32 %v7107, %v7785
        %v7846 = vadd.f32 %v7108, %v7788
        %v7847 = vadd.f32 %v7109, %v7793
        %v7848 = vadd.f32 %v7110, %v7796
        %v7849 = vadd.f32 %v7111, %v7801
        %v7850 = vadd.f32 %v7112, %v7804
        %v7851 = vadd.f32 %v7113, %v7809
        %v7852 = vadd.f32 %v7114, %v7812
        %v7853 = vadd.f32 %v7115, %v7817
        %v7854 = vadd.f32 %v7116, %v7820
        %v7855 = vld [vmem:[%s6746] sm:$0xe]
        %v7856 = vld [vmem:[%s6746 + $0xc] sm:$0xe]
        %v7857 = vld [vmem:[%s6746 + $0x18] sm:$0xe]
        %v7858 = vld [vmem:[%s6746 + $0x24] sm:$0xe]
        %v7859 = vld [vmem:[%s6746 + $0x30] sm:$0xe]
        %v7860 = vld [vmem:[%s6746 + $0x3c] sm:$0xe]
        %v7861 = vld [vmem:[%s6746 + $0x48] sm:$0xe]
        %v7862 = vld [vmem:[%s6746 + $0x54] sm:$0xe]
        %v7863 = vld [vmem:[%s6746 + $0x60] sm:$0xe]
        %v7864 = vld [vmem:[%s6746 + $0x6c] sm:$0xe]
        %v7865 = vld [vmem:[%s6746 + $0x78] sm:$0xe]
        %v7866 = vld [vmem:[%s6746 + $0x84] sm:$0xe]
        %v7867 = vld [vmem:[%s6746 + $0x90] sm:$0xe]
        %v7868 = vld [vmem:[%s6746 + $0x9c] sm:$0xe]
        %v7869 = vld [vmem:[%s6746 + $0xa8] sm:$0xe]
        %v7870 = vld [vmem:[%s6746 + $0xb4] sm:$0xe]
        %v7919 = vrot.slane %v7855, 5
        %v7920 = vrot.slane %v7919, 4
        %v7921 = vrot.slane %v7118, 5
        %v7922 = vsel %vm4737, %v7920, %v7921
        %v7923 = vrot.slane %v7921, 4
        %v7924 = vrot.slane %v7119, 5
        %v7925 = vsel %vm4737, %v7923, %v7924
        %v7926 = vrot.slane %v7856, 5
        %v7927 = vrot.slane %v7926, 4
        %v7928 = vrot.slane %v7121, 5
        %v7929 = vsel %vm4737, %v7927, %v7928
        %v7930 = vrot.slane %v7928, 4
        %v7931 = vrot.slane %v7122, 5
        %v7932 = vsel %vm4737, %v7930, %v7931
        %v7933 = vrot.slane %v7857, 5
        %v7934 = vrot.slane %v7933, 4
        %v7935 = vrot.slane %v7124, 5
        %v7936 = vsel %vm4737, %v7934, %v7935
        %v7937 = vrot.slane %v7935, 4
        %v7938 = vrot.slane %v7125, 5
        %v7939 = vsel %vm4737, %v7937, %v7938
        %v7940 = vrot.slane %v7858, 5
        %v7941 = vrot.slane %v7940, 4
        %v7942 = vrot.slane %v7127, 5
        %v7943 = vsel %vm4737, %v7941, %v7942
        %v7944 = vrot.slane %v7942, 4
        %v7945 = vrot.slane %v7128, 5
        %v7946 = vsel %vm4737, %v7944, %v7945
        %v7947 = vrot.slane %v7859, 5
        %v7948 = vrot.slane %v7947, 4
        %v7949 = vrot.slane %v7130, 5
        %v7950 = vsel %vm4737, %v7948, %v7949
        %v7951 = vrot.slane %v7949, 4
        %v7952 = vrot.slane %v7131, 5
        %v7953 = vsel %vm4737, %v7951, %v7952
        %v7954 = vrot.slane %v7860, 5
        %v7955 = vrot.slane %v7954, 4
        %v7956 = vrot.slane %v7133, 5
        %v7957 = vsel %vm4737, %v7955, %v7956
        %v7958 = vrot.slane %v7956, 4
        %v7959 = vrot.slane %v7134, 5
        %v7960 = vsel %vm4737, %v7958, %v7959
        %v7961 = vrot.slane %v7861, 5
        %v7962 = vrot.slane %v7961, 4
        %v7963 = vrot.slane %v7136, 5
        %v7964 = vsel %vm4737, %v7962, %v7963
        %v7965 = vrot.slane %v7963, 4
        %v7966 = vrot.slane %v7137, 5
        %v7967 = vsel %vm4737, %v7965, %v7966
        %v7968 = vrot.slane %v7862, 5
        %v7969 = vrot.slane %v7968, 4
        %v7970 = vrot.slane %v7139, 5
        %v7971 = vsel %vm4737, %v7969, %v7970
        %v7972 = vrot.slane %v7970, 4
        %v7973 = vrot.slane %v7140, 5
        %v7974 = vsel %vm4737, %v7972, %v7973
        %v7975 = vrot.slane %v7863, 5
        %v7976 = vrot.slane %v7975, 4
        %v7977 = vrot.slane %v7142, 5
        %v7978 = vsel %vm4737, %v7976, %v7977
        %v7979 = vrot.slane %v7977, 4
        %v7980 = vrot.slane %v7143, 5
        %v7981 = vsel %vm4737, %v7979, %v7980
        %v7982 = vrot.slane %v7864, 5
        %v7983 = vrot.slane %v7982, 4
        %v7984 = vrot.slane %v7145, 5
        %v7985 = vsel %vm4737, %v7983, %v7984
        %v7986 = vrot.slane %v7984, 4
        %v7987 = vrot.slane %v7146, 5
        %v7988 = vsel %vm4737, %v7986, %v7987
        %v7989 = vrot.slane %v7865, 5
        %v7990 = vrot.slane %v7989, 4
        %v7991 = vrot.slane %v7148, 5
        %v7992 = vsel %vm4737, %v7990, %v7991
        %v7993 = vrot.slane %v7991, 4
        %v7994 = vrot.slane %v7149, 5
        %v7995 = vsel %vm4737, %v7993, %v7994
        %v7996 = vrot.slane %v7866, 5
        %v7997 = vrot.slane %v7996, 4
        %v7998 = vrot.slane %v7151, 5
        %v7999 = vsel %vm4737, %v7997, %v7998
        %v8000 = vrot.slane %v7998, 4
        %v8001 = vrot.slane %v7152, 5
        %v8002 = vsel %vm4737, %v8000, %v8001
        %v8003 = vrot.slane %v7867, 5
        %v8004 = vrot.slane %v8003, 4
        %v8005 = vrot.slane %v7154, 5
        %v8006 = vsel %vm4737, %v8004, %v8005
        %v8007 = vrot.slane %v8005, 4
        %v8008 = vrot.slane %v7155, 5
        %v8009 = vsel %vm4737, %v8007, %v8008
        %v8010 = vrot.slane %v7868, 5
        %v8011 = vrot.slane %v8010, 4
        %v8012 = vrot.slane %v7157, 5
        %v8013 = vsel %vm4737, %v8011, %v8012
        %v8014 = vrot.slane %v8012, 4
        %v8015 = vrot.slane %v7158, 5
        %v8016 = vsel %vm4737, %v8014, %v8015
        %v8017 = vrot.slane %v7869, 5
        %v8018 = vrot.slane %v8017, 4
        %v8019 = vrot.slane %v7160, 5
        %v8020 = vsel %vm4737, %v8018, %v8019
        %v8021 = vrot.slane %v8019, 4
        %v8022 = vrot.slane %v7161, 5
        %v8023 = vsel %vm4737, %v8021, %v8022
        %v8024 = vrot.slane %v7870, 5
        %v8025 = vrot.slane %v8024, 4
        %v8026 = vrot.slane %v7163, 5
        %v8027 = vsel %vm4737, %v8025, %v8026
        %v8028 = vrot.slane %v8026, 4
        %v8029 = vrot.slane %v7164, 5
        %v8030 = vsel %vm4737, %v8028, %v8029
        %s8031 = scalar_lea.vmem %s4, 128
        %v8032 = vld [vmem:[%s8031] sm:$0xf]
        %v8033 = vld [vmem:[%s8031 + $0x4] sm:$0xf]
        %v8034 = vld [vmem:[%s8031 + $0x8] sm:$0xf]
        %v8035 = vld [vmem:[%s8031 + $0xc] sm:$0xf]
        %v8036 = vunpack.c.l.b16 %v7922
        %v8037 = vunpack.c.l.b16 %v7925
        %v8038 = vunpack.c.l.b16 %v7929
        %v8039 = vunpack.c.l.b16 %v7932
        %v8040 = vunpack.c.l.b16 %v7936
        %v8041 = vunpack.c.l.b16 %v7939
        %v8042 = vunpack.c.l.b16 %v7943
        %v8043 = vunpack.c.l.b16 %v7946
        %v8044 = vunpack.c.l.b16 %v7950
        %v8045 = vunpack.c.l.b16 %v7953
        %v8046 = vunpack.c.l.b16 %v7957
        %v8047 = vunpack.c.l.b16 %v7960
        %v8048 = vunpack.c.l.b16 %v7964
        %v8049 = vunpack.c.l.b16 %v7967
        %v8050 = vunpack.c.l.b16 %v7971
        %v8051 = vunpack.c.l.b16 %v7974
        %v8052 = vunpack.c.l.b16 %v7978
        %v8053 = vunpack.c.l.b16 %v7981
        %v8054 = vunpack.c.l.b16 %v7985
        %v8055 = vunpack.c.l.b16 %v7988
        %v8056 = vunpack.c.l.b16 %v7992
        %v8057 = vunpack.c.l.b16 %v7995
        %v8058 = vunpack.c.l.b16 %v7999
        %v8059 = vunpack.c.l.b16 %v8002
        %v8060 = vunpack.c.l.b16 %v8006
        %v8061 = vunpack.c.l.b16 %v8009
        %v8062 = vunpack.c.l.b16 %v8013
        %v8063 = vunpack.c.l.b16 %v8016
        %v8064 = vunpack.c.l.b16 %v8020
        %v8065 = vunpack.c.l.b16 %v8023
        %v8066 = vunpack.c.l.b16 %v8027
        %v8067 = vunpack.c.l.b16 %v8030
        %v8068 = vpack.c.b16 %v8037, %v8036
        %v8069 = vpack.c.b16 %v8039, %v8038
        %v8070 = vpack.c.b16 %v8041, %v8040
        %v8071 = vpack.c.b16 %v8043, %v8042
        %v8072 = vpack.c.b16 %v8045, %v8044
        %v8073 = vpack.c.b16 %v8047, %v8046
        %v8074 = vpack.c.b16 %v8049, %v8048
        %v8075 = vpack.c.b16 %v8051, %v8050
        %v8076 = vpack.c.b16 %v8053, %v8052
        %v8077 = vpack.c.b16 %v8055, %v8054
        %v8078 = vpack.c.b16 %v8057, %v8056
        %v8079 = vpack.c.b16 %v8059, %v8058
        %v8080 = vpack.c.b16 %v8061, %v8060
        %v8081 = vpack.c.b16 %v8063, %v8062
        %v8082 = vpack.c.b16 %v8065, %v8064
        %v8083 = vpack.c.b16 %v8067, %v8066
        %v8088 = vunpack.c.l.b16 %v8032
        %v8089 = vunpack.c.l.b16 %v8033
        %v8090 = vunpack.c.l.b16 %v8034
        %v8091 = vunpack.c.l.b16 %v8035
        %v8092 = vpack.c.b16 %v8089, %v8088
        %v8093 = vpack.c.b16 %v8091, %v8090
        %v8097 = vsel %vm395, %v8068, 0
        %v8100 = vsel %vm395, %v8069, 0
        %v8103 = vsel %vm395, %v8070, 0
        %v8106 = vsel %vm395, %v8071, 0
        %v8109 = vsel %vm395, %v8072, 0
        %v8112 = vsel %vm395, %v8073, 0
        %v8115 = vsel %vm395, %v8074, 0
        %v8118 = vsel %vm395, %v8075, 0
        %v8121 = vsel %vm395, %v8076, 0
        %v8124 = vsel %vm395, %v8077, 0
        %v8127 = vsel %vm395, %v8078, 0
        %v8130 = vsel %vm395, %v8079, 0
        %v8133 = vsel %vm395, %v8080, 0
        %v8136 = vsel %vm395, %v8081, 0
        %v8139 = vsel %vm395, %v8082, 0
        %v8142 = vsel %vm395, %v8083, 0
        %8144 = vmatprep.subr.bf16.mxu0 0
        %8145 = vmatpush1.bf16.msra.mxu0 %v8092
        %8146 = vmatprep.subr.bf16.mxu0 0
        %8147 = vmatpush1.bf16.msra.mxu0 %v8093
        %8148 = vmatprep.subr.bf16.mxu0 0
        %8149 = vmatpush1.bf16.msra.mxu0 0
        %8150 = vmatprep.subr.bf16.mxu0 0
        %8151 = vmatpush1.bf16.msra.mxu0 0
        %8152 = vmatprep.subr.bf16.mxu0 0
        %8153 = vmatpush1.bf16.msra.mxu0 0
        %8154 = vmatprep.subr.bf16.mxu0 0
        %8155 = vmatpush1.bf16.msra.mxu0 0
        %8156 = vmatprep.subr.bf16.mxu0 0
        %8157 = vmatpush1.bf16.msra.mxu0 0
        %8158 = vmatprep.subr.bf16.mxu0 0
        %8159 = vmatpush1.bf16.msra.mxu0 0
        %8160 = vmatprep.subr.bf16.mxu0 0
        %8161 = vmatpush1.bf16.msra.mxu0 0
        %8162 = vmatprep.subr.bf16.mxu0 0
        %8163 = vmatpush1.bf16.msra.mxu0 0
        %8164 = vmatprep.subr.bf16.mxu0 0
        %8165 = vmatpush1.bf16.msra.mxu0 0
        %8166 = vmatprep.subr.bf16.mxu0 0
        %8167 = vmatpush1.bf16.msra.mxu0 0
        %8168 = vmatprep.subr.bf16.mxu0 0
        %8169 = vmatpush1.bf16.msra.mxu0 0
        %8170 = vmatprep.subr.bf16.mxu0 0
        %8171 = vmatpush1.bf16.msra.mxu0 0
        %8172 = vmatprep.subr.bf16.mxu0 0
        %8173 = vmatpush1.bf16.msra.mxu0 0
        %8174 = vmatprep.subr.bf16.mxu0 0
        %8175 = vmatpush1.bf16.msra.mxu0 0
        %8176 = vmatprep.mubr.bf16.mxu0 0
        %8177 = vmatmul.mubr.bf16.gmra.mrb[0].mxu0 %v8097
        %v8178 = vpop.f32.mrb[0].mxu0
        %v8179 = vadd.f32 0.0, %v8178
        %v8180 = vpop.f32.mrb[0].mxu0
        %v8181 = vpop.f32.mrb[0].mxu0
        %v8182 = vadd.f32 0.0, %v8181
        %v8183 = vpop.f32.mrb[0].mxu0
        %8184 = vmatprep.mubr.bf16.mxu0 0
        %8185 = vmatmul.mubr.bf16.gmra.mrb[0].mxu0 %v8100
        %v8186 = vpop.f32.mrb[0].mxu0
        %v8187 = vadd.f32 0.0, %v8186
        %v8188 = vpop.f32.mrb[0].mxu0
        %v8189 = vpop.f32.mrb[0].mxu0
        %v8190 = vadd.f32 0.0, %v8189
        %v8191 = vpop.f32.mrb[0].mxu0
        %8192 = vmatprep.mubr.bf16.mxu0 0
        %8193 = vmatmul.mubr.bf16.gmra.mrb[0].mxu0 %v8103
        %v8194 = vpop.f32.mrb[0].mxu0
        %v8195 = vadd.f32 0.0, %v8194
        %v8196 = vpop.f32.mrb[0].mxu0
        %v8197 = vpop.f32.mrb[0].mxu0
        %v8198 = vadd.f32 0.0, %v8197
        %v8199 = vpop.f32.mrb[0].mxu0
        %8200 = vmatprep.mubr.bf16.mxu0 0
        %8201 = vmatmul.mubr.bf16.gmra.mrb[0].mxu0 %v8106
        %v8202 = vpop.f32.mrb[0].mxu0
        %v8203 = vadd.f32 0.0, %v8202
        %v8204 = vpop.f32.mrb[0].mxu0
        %v8205 = vpop.f32.mrb[0].mxu0
        %v8206 = vadd.f32 0.0, %v8205
        %v8207 = vpop.f32.mrb[0].mxu0
        %8208 = vmatprep.mubr.bf16.mxu0 0
        %8209 = vmatmul.mubr.bf16.gmra.mrb[0].mxu0 %v8109
        %v8210 = vpop.f32.mrb[0].mxu0
        %v8211 = vadd.f32 0.0, %v8210
        %v8212 = vpop.f32.mrb[0].mxu0
        %v8213 = vpop.f32.mrb[0].mxu0
        %v8214 = vadd.f32 0.0, %v8213
        %v8215 = vpop.f32.mrb[0].mxu0
        %8216 = vmatprep.mubr.bf16.mxu0 0
        %8217 = vmatmul.mubr.bf16.gmra.mrb[0].mxu0 %v8112
        %v8218 = vpop.f32.mrb[0].mxu0
        %v8219 = vadd.f32 0.0, %v8218
        %v8220 = vpop.f32.mrb[0].mxu0
        %v8221 = vpop.f32.mrb[0].mxu0
        %v8222 = vadd.f32 0.0, %v8221
        %v8223 = vpop.f32.mrb[0].mxu0
        %8224 = vmatprep.mubr.bf16.mxu0 0
        %8225 = vmatmul.mubr.bf16.gmra.mrb[0].mxu0 %v8115
        %v8226 = vpop.f32.mrb[0].mxu0
        %v8227 = vadd.f32 0.0, %v8226
        %v8228 = vpop.f32.mrb[0].mxu0
        %v8229 = vpop.f32.mrb[0].mxu0
        %v8230 = vadd.f32 0.0, %v8229
        %v8231 = vpop.f32.mrb[0].mxu0
        %8232 = vmatprep.mubr.bf16.mxu0 0
        %8233 = vmatmul.mubr.bf16.gmra.mrb[0].mxu0 %v8118
        %v8234 = vpop.f32.mrb[0].mxu0
        %v8235 = vadd.f32 0.0, %v8234
        %v8236 = vpop.f32.mrb[0].mxu0
        %v8237 = vpop.f32.mrb[0].mxu0
        %v8238 = vadd.f32 0.0, %v8237
        %v8239 = vpop.f32.mrb[0].mxu0
        %8240 = vmatprep.mubr.bf16.mxu0 0
        %8241 = vmatmul.mubr.bf16.gmra.mrb[0].mxu0 %v8121
        %v8242 = vpop.f32.mrb[0].mxu0
        %v8243 = vadd.f32 0.0, %v8242
        %v8244 = vpop.f32.mrb[0].mxu0
        %v8245 = vpop.f32.mrb[0].mxu0
        %v8246 = vadd.f32 0.0, %v8245
        %v8247 = vpop.f32.mrb[0].mxu0
        %8248 = vmatprep.mubr.bf16.mxu0 0
        %8249 = vmatmul.mubr.bf16.gmra.mrb[0].mxu0 %v8124
        %v8250 = vpop.f32.mrb[0].mxu0
        %v8251 = vadd.f32 0.0, %v8250
        %v8252 = vpop.f32.mrb[0].mxu0
        %v8253 = vpop.f32.mrb[0].mxu0
        %v8254 = vadd.f32 0.0, %v8253
        %v8255 = vpop.f32.mrb[0].mxu0
        %8256 = vmatprep.mubr.bf16.mxu0 0
        %8257 = vmatmul.mubr.bf16.gmra.mrb[0].mxu0 %v8127
        %v8258 = vpop.f32.mrb[0].mxu0
        %v8259 = vadd.f32 0.0, %v8258
        %v8260 = vpop.f32.mrb[0].mxu0
        %v8261 = vpop.f32.mrb[0].mxu0
        %v8262 = vadd.f32 0.0, %v8261
        %v8263 = vpop.f32.mrb[0].mxu0
        %8264 = vmatprep.mubr.bf16.mxu0 0
        %8265 = vmatmul.mubr.bf16.gmra.mrb[0].mxu0 %v8130
        %v8266 = vpop.f32.mrb[0].mxu0
        %v8267 = vadd.f32 0.0, %v8266
        %v8268 = vpop.f32.mrb[0].mxu0
        %v8269 = vpop.f32.mrb[0].mxu0
        %v8270 = vadd.f32 0.0, %v8269
        %v8271 = vpop.f32.mrb[0].mxu0
        %8272 = vmatprep.mubr.bf16.mxu0 0
        %8273 = vmatmul.mubr.bf16.gmra.mrb[0].mxu0 %v8133
        %v8274 = vpop.f32.mrb[0].mxu0
        %v8275 = vadd.f32 0.0, %v8274
        %v8276 = vpop.f32.mrb[0].mxu0
        %v8277 = vpop.f32.mrb[0].mxu0
        %v8278 = vadd.f32 0.0, %v8277
        %v8279 = vpop.f32.mrb[0].mxu0
        %8280 = vmatprep.mubr.bf16.mxu0 0
        %8281 = vmatmul.mubr.bf16.gmra.mrb[0].mxu0 %v8136
        %v8282 = vpop.f32.mrb[0].mxu0
        %v8283 = vadd.f32 0.0, %v8282
        %v8284 = vpop.f32.mrb[0].mxu0
        %v8285 = vpop.f32.mrb[0].mxu0
        %v8286 = vadd.f32 0.0, %v8285
        %v8287 = vpop.f32.mrb[0].mxu0
        %8288 = vmatprep.mubr.bf16.mxu0 0
        %8289 = vmatmul.mubr.bf16.gmra.mrb[0].mxu0 %v8139
        %v8290 = vpop.f32.mrb[0].mxu0
        %v8291 = vadd.f32 0.0, %v8290
        %v8292 = vpop.f32.mrb[0].mxu0
        %v8293 = vpop.f32.mrb[0].mxu0
        %v8294 = vadd.f32 0.0, %v8293
        %v8295 = vpop.f32.mrb[0].mxu0
        %8296 = vmatprep.mubr.bf16.mxu0 0
        %8297 = vmatmul.mubr.bf16.gmra.mrb[0].mxu0 %v8142
        %v8298 = vpop.f32.mrb[0].mxu0
        %v8299 = vadd.f32 0.0, %v8298
        %v8300 = vpop.f32.mrb[0].mxu0
        %v8301 = vpop.f32.mrb[0].mxu0
        %v8302 = vadd.f32 0.0, %v8301
        %v8303 = vpop.f32.mrb[0].mxu0
        %8304 = vdwg.mxu0
        %v8305 = vadd.f32 %v7823, %v8179
        %v8306 = vadd.f32 %v7824, %v8182
        %v8307 = vadd.f32 %v7825, %v8187
        %v8308 = vadd.f32 %v7826, %v8190
        %v8309 = vadd.f32 %v7827, %v8195
        %v8310 = vadd.f32 %v7828, %v8198
        %v8311 = vadd.f32 %v7829, %v8203
        %v8312 = vadd.f32 %v7830, %v8206
        %v8313 = vadd.f32 %v7831, %v8211
        %v8314 = vadd.f32 %v7832, %v8214
        %v8315 = vadd.f32 %v7833, %v8219
        %v8316 = vadd.f32 %v7834, %v8222
        %v8317 = vadd.f32 %v7835, %v8227
        %v8318 = vadd.f32 %v7836, %v8230
        %v8319 = vadd.f32 %v7837, %v8235
        %v8320 = vadd.f32 %v7838, %v8238
        %v8321 = vadd.f32 %v7839, %v8243
        %v8322 = vadd.f32 %v7840, %v8246
        %v8323 = vadd.f32 %v7841, %v8251
        %v8324 = vadd.f32 %v7842, %v8254
        %v8325 = vadd.f32 %v7843, %v8259
        %v8326 = vadd.f32 %v7844, %v8262
        %v8327 = vadd.f32 %v7845, %v8267
        %v8328 = vadd.f32 %v7846, %v8270
        %v8329 = vadd.f32 %v7847, %v8275
        %v8330 = vadd.f32 %v7848, %v8278
        %v8331 = vadd.f32 %v7849, %v8283
        %v8332 = vadd.f32 %v7850, %v8286
        %v8333 = vadd.f32 %v7851, %v8291
        %v8334 = vadd.f32 %v7852, %v8294
        %v8335 = vadd.f32 %v7853, %v8299
        %v8336 = vadd.f32 %v7854, %v8302
        %v8337 = vld [vmem:[%s1132 + $0x1] sm:$0xff]
        %v8338 = vld [vmem:[%s1132 + $0x9] sm:$0xff]
        %v8339 = vld [vmem:[%s1132 + $0x19] sm:$0xff]
        %v8340 = vld [vmem:[%s1132 + $0x21] sm:$0xff]
        %v8341 = vld [vmem:[%s1132 + $0x31] sm:$0xff]
        %v8342 = vld [vmem:[%s1132 + $0x39] sm:$0xff]
        %v8343 = vld [vmem:[%s1132 + $0x49] sm:$0xff]
        %v8344 = vld [vmem:[%s1132 + $0x51] sm:$0xff]
        %v8345 = vld [vmem:[%s1132 + $0x61] sm:$0xff]
        %v8346 = vld [vmem:[%s1132 + $0x69] sm:$0xff]
        %v8347 = vld [vmem:[%s1132 + $0x79] sm:$0xff]
        %v8348 = vld [vmem:[%s1132 + $0x81] sm:$0xff]
        %v8349 = vld [vmem:[%s1132 + $0x91] sm:$0xff]
        %v8350 = vld [vmem:[%s1132 + $0x99] sm:$0xff]
        %v8351 = vld [vmem:[%s1132 + $0xa9] sm:$0xff]
        %v8352 = vld [vmem:[%s1132 + $0xb1] sm:$0xff]
        %v8353 = vld [vmem:[%s1132 + $0xc1] sm:$0xff]
        %v8354 = vld [vmem:[%s1132 + $0xc9] sm:$0xff]
        %v8355 = vld [vmem:[%s1132 + $0xd9] sm:$0xff]
        %v8356 = vld [vmem:[%s1132 + $0xe1] sm:$0xff]
        %v8357 = vld [vmem:[%s1132 + $0xf1] sm:$0xff]
        %v8358 = vld [vmem:[%s1132 + $0xf9] sm:$0xff]
        %v8359 = vld [vmem:[%s1132 + $0x109] sm:$0xff]
        %v8360 = vld [vmem:[%s1132 + $0x111] sm:$0xff]
        %v8361 = vld [vmem:[%s1132 + $0x121] sm:$0xff]
        %v8362 = vld [vmem:[%s1132 + $0x129] sm:$0xff]
        %v8363 = vld [vmem:[%s1132 + $0x139] sm:$0xff]
        %v8364 = vld [vmem:[%s1132 + $0x141] sm:$0xff]
        %v8365 = vld [vmem:[%s1132 + $0x151] sm:$0xff]
        %v8366 = vld [vmem:[%s1132 + $0x159] sm:$0xff]
        %v8367 = vld [vmem:[%s1132 + $0x169] sm:$0xff]
        %v8368 = vld [vmem:[%s1132 + $0x171] sm:$0xff]
        %v8369 = vld [vmem:[%s5] sm:$0x1]
        %v8371 = vlaneseq
        %v8372 = vshrl.u32 %v8371, 7
        %v8373 = vsub.s32 0, %v8372
        %v8374 = vrot.slane %v8369, %v8373
        %v8376 = vmul.f32 %v8305, %v8374
        %v8377 = vmul.f32 %v8306, %v8374
        %v8378 = vmul.f32 %v8307, %v8374
        %v8379 = vmul.f32 %v8308, %v8374
        %v8380 = vmul.f32 %v8309, %v8374
        %v8381 = vmul.f32 %v8310, %v8374
        %v8382 = vmul.f32 %v8311, %v8374
        %v8383 = vmul.f32 %v8312, %v8374
        %v8384 = vmul.f32 %v8313, %v8374
        %v8385 = vmul.f32 %v8314, %v8374
        %v8386 = vmul.f32 %v8315, %v8374
        %v8387 = vmul.f32 %v8316, %v8374
        %v8388 = vmul.f32 %v8317, %v8374
        %v8389 = vmul.f32 %v8318, %v8374
        %v8390 = vmul.f32 %v8319, %v8374
        %v8391 = vmul.f32 %v8320, %v8374
        %v8392 = vmul.f32 %v8321, %v8374
        %v8393 = vmul.f32 %v8322, %v8374
        %v8394 = vmul.f32 %v8323, %v8374
        %v8395 = vmul.f32 %v8324, %v8374
        %v8396 = vmul.f32 %v8325, %v8374
        %v8397 = vmul.f32 %v8326, %v8374
        %v8398 = vmul.f32 %v8327, %v8374
        %v8399 = vmul.f32 %v8328, %v8374
        %v8400 = vmul.f32 %v8329, %v8374
        %v8401 = vmul.f32 %v8330, %v8374
        %v8402 = vmul.f32 %v8331, %v8374
        %v8403 = vmul.f32 %v8332, %v8374
        %v8404 = vmul.f32 %v8333, %v8374
        %v8405 = vmul.f32 %v8334, %v8374
        %v8406 = vmul.f32 %v8335, %v8374
        %v8407 = vmul.f32 %v8336, %v8374
        %v8408 = vld [vmem:[%s6] sm:$0x1]
        %v8410 = vlaneseq
        %v8411 = vshrl.u32 %v8410, 7
        %v8412 = vsub.s32 0, %v8411
        %v8413 = vrot.slane %v8408, %v8412
        %v8415 = vadd.f32 %v8376, %v8413
        %v8416 = vadd.f32 %v8377, %v8413
        %v8417 = vadd.f32 %v8378, %v8413
        %v8418 = vadd.f32 %v8379, %v8413
        %v8419 = vadd.f32 %v8380, %v8413
        %v8420 = vadd.f32 %v8381, %v8413
        %v8421 = vadd.f32 %v8382, %v8413
        %v8422 = vadd.f32 %v8383, %v8413
        %v8423 = vadd.f32 %v8384, %v8413
        %v8424 = vadd.f32 %v8385, %v8413
        %v8425 = vadd.f32 %v8386, %v8413
        %v8426 = vadd.f32 %v8387, %v8413
        %v8427 = vadd.f32 %v8388, %v8413
        %v8428 = vadd.f32 %v8389, %v8413
        %v8429 = vadd.f32 %v8390, %v8413
        %v8430 = vadd.f32 %v8391, %v8413
        %v8431 = vadd.f32 %v8392, %v8413
        %v8432 = vadd.f32 %v8393, %v8413
        %v8433 = vadd.f32 %v8394, %v8413
        %v8434 = vadd.f32 %v8395, %v8413
        %v8435 = vadd.f32 %v8396, %v8413
        %v8436 = vadd.f32 %v8397, %v8413
        %v8437 = vadd.f32 %v8398, %v8413
        %v8438 = vadd.f32 %v8399, %v8413
        %v8439 = vadd.f32 %v8400, %v8413
        %v8440 = vadd.f32 %v8401, %v8413
        %v8441 = vadd.f32 %v8402, %v8413
        %v8442 = vadd.f32 %v8403, %v8413
        %v8443 = vadd.f32 %v8404, %v8413
        %v8444 = vadd.f32 %v8405, %v8413
        %v8445 = vadd.f32 %v8406, %v8413
        %v8446 = vadd.f32 %v8407, %v8413
        %v8447 = vadd.f32 %v8415, %v8337
        %v8448 = vadd.f32 %v8416, %v8338
        %v8449 = vadd.f32 %v8417, %v8339
        %v8450 = vadd.f32 %v8418, %v8340
        %v8451 = vadd.f32 %v8419, %v8341
        %v8452 = vadd.f32 %v8420, %v8342
        %v8453 = vadd.f32 %v8421, %v8343
        %v8454 = vadd.f32 %v8422, %v8344
        %v8455 = vadd.f32 %v8423, %v8345
        %v8456 = vadd.f32 %v8424, %v8346
        %v8457 = vadd.f32 %v8425, %v8347
        %v8458 = vadd.f32 %v8426, %v8348
        %v8459 = vadd.f32 %v8427, %v8349
        %v8460 = vadd.f32 %v8428, %v8350
        %v8461 = vadd.f32 %v8429, %v8351
        %v8462 = vadd.f32 %v8430, %v8352
        %v8463 = vadd.f32 %v8431, %v8353
        %v8464 = vadd.f32 %v8432, %v8354
        %v8465 = vadd.f32 %v8433, %v8355
        %v8466 = vadd.f32 %v8434, %v8356
        %v8467 = vadd.f32 %v8435, %v8357
        %v8468 = vadd.f32 %v8436, %v8358
        %v8469 = vadd.f32 %v8437, %v8359
        %v8470 = vadd.f32 %v8438, %v8360
        %v8471 = vadd.f32 %v8439, %v8361
        %v8472 = vadd.f32 %v8440, %v8362
        %v8473 = vadd.f32 %v8441, %v8363
        %v8474 = vadd.f32 %v8442, %v8364
        %v8475 = vadd.f32 %v8443, %v8365
        %v8476 = vadd.f32 %v8444, %v8366
        %v8477 = vadd.f32 %v8445, %v8367
        %v8478 = vadd.f32 %v8446, %v8368
        %v8479 = vmax.f32 %v8447, 0.0
        %v8480 = vmax.f32 %v8448, 0.0
        %v8481 = vmax.f32 %v8449, 0.0
        %v8482 = vmax.f32 %v8450, 0.0
        %v8483 = vmax.f32 %v8451, 0.0
        %v8484 = vmax.f32 %v8452, 0.0
        %v8485 = vmax.f32 %v8453, 0.0
        %v8486 = vmax.f32 %v8454, 0.0
        %v8487 = vmax.f32 %v8455, 0.0
        %v8488 = vmax.f32 %v8456, 0.0
        %v8489 = vmax.f32 %v8457, 0.0
        %v8490 = vmax.f32 %v8458, 0.0
        %v8491 = vmax.f32 %v8459, 0.0
        %v8492 = vmax.f32 %v8460, 0.0
        %v8493 = vmax.f32 %v8461, 0.0
        %v8494 = vmax.f32 %v8462, 0.0
        %v8495 = vmax.f32 %v8463, 0.0
        %v8496 = vmax.f32 %v8464, 0.0
        %v8497 = vmax.f32 %v8465, 0.0
        %v8498 = vmax.f32 %v8466, 0.0
        %v8499 = vmax.f32 %v8467, 0.0
        %v8500 = vmax.f32 %v8468, 0.0
        %v8501 = vmax.f32 %v8469, 0.0
        %v8502 = vmax.f32 %v8470, 0.0
        %v8503 = vmax.f32 %v8471, 0.0
        %v8504 = vmax.f32 %v8472, 0.0
        %v8505 = vmax.f32 %v8473, 0.0
        %v8506 = vmax.f32 %v8474, 0.0
        %v8507 = vmax.f32 %v8475, 0.0
        %v8508 = vmax.f32 %v8476, 0.0
        %v8509 = vmax.f32 %v8477, 0.0
        %v8510 = vmax.f32 %v8478, 0.0
        %8511 = vst.msk [vmem:[%s271] sm:$0xff] %vm395, %v8479
        %8512 = vst.msk [vmem:[%s271 + $0x8] sm:$0xff] %vm395, %v8480
        %8513 = vst.msk [vmem:[%s271 + $0x10] sm:$0xff] %vm395, %v8481
        %8514 = vst.msk [vmem:[%s271 + $0x18] sm:$0xff] %vm395, %v8482
        %8515 = vst.msk [vmem:[%s271 + $0x20] sm:$0xff] %vm395, %v8483
        %8516 = vst.msk [vmem:[%s271 + $0x28] sm:$0xff] %vm395, %v8484
        %8517 = vst.msk [vmem:[%s271 + $0x30] sm:$0xff] %vm395, %v8485
        %8518 = vst.msk [vmem:[%s271 + $0x38] sm:$0xff] %vm395, %v8486
        %8519 = vst.msk [vmem:[%s271 + $0x40] sm:$0xff] %vm395, %v8487
        %8520 = vst.msk [vmem:[%s271 + $0x48] sm:$0xff] %vm395, %v8488
        %8521 = vst.msk [vmem:[%s271 + $0x50] sm:$0xff] %vm395, %v8489
        %8522 = vst.msk [vmem:[%s271 + $0x58] sm:$0xff] %vm395, %v8490
        %8523 = vst.msk [vmem:[%s271 + $0x60] sm:$0xff] %vm395, %v8491
        %8524 = vst.msk [vmem:[%s271 + $0x68] sm:$0xff] %vm395, %v8492
        %8525 = vst.msk [vmem:[%s271 + $0x70] sm:$0xff] %vm395, %v8493
        %8526 = vst.msk [vmem:[%s271 + $0x78] sm:$0xff] %vm395, %v8494
        %8527 = vst.msk [vmem:[%s271 + $0x80] sm:$0xff] %vm395, %v8495
        %8528 = vst.msk [vmem:[%s271 + $0x88] sm:$0xff] %vm395, %v8496
        %8529 = vst.msk [vmem:[%s271 + $0x90] sm:$0xff] %vm395, %v8497
        %8530 = vst.msk [vmem:[%s271 + $0x98] sm:$0xff] %vm395, %v8498
        %8531 = vst.msk [vmem:[%s271 + $0xa0] sm:$0xff] %vm395, %v8499
        %8532 = vst.msk [vmem:[%s271 + $0xa8] sm:$0xff] %vm395, %v8500
        %8533 = vst.msk [vmem:[%s271 + $0xb0] sm:$0xff] %vm395, %v8501
        %8534 = vst.msk [vmem:[%s271 + $0xb8] sm:$0xff] %vm395, %v8502
        %8535 = vst.msk [vmem:[%s271 + $0xc0] sm:$0xff] %vm395, %v8503
        %8536 = vst.msk [vmem:[%s271 + $0xc8] sm:$0xff] %vm395, %v8504
        %8537 = vst.msk [vmem:[%s271 + $0xd0] sm:$0xff] %vm395, %v8505
        %8538 = vst.msk [vmem:[%s271 + $0xd8] sm:$0xff] %vm395, %v8506
        %8539 = vst.msk [vmem:[%s271 + $0xe0] sm:$0xff] %vm395, %v8507
        %8540 = vst.msk [vmem:[%s271 + $0xe8] sm:$0xff] %vm395, %v8508
        %8541 = vst.msk [vmem:[%s271 + $0xf0] sm:$0xff] %vm395, %v8509
        %8542 = vst.msk [vmem:[%s271 + $0xf8] sm:$0xff] %vm395, %v8510
        %s8543 = sand.u32 %s181, 1
        %s8544 = scalar_lea.sflag [#allocation4], %s8543
        %s8545 = sand.u32 %s181, 1
        %s8546 = smul.addr %s8545, 256
        %s8547 = scalar_lea.vmem [#allocation3], %s8546
        // Predicated region
        $region49: #{residual_block_forward.1} parent=47 // pred_check
          %p8548 = pneg %p191
        $region50: #{residual_block_forward.1} parent=47 // pred_check_branch
          %8550 = sbr.rel (%p8548) target = $region52
        $region51: #{residual_block_forward.1} parent=47 // pred_region
          %s8552 = ssub.s32 4096, 4096
          %8553 = vsyncadd %s8544, %s8552
          %s8554 = smul.addr %s21, 32
          %s8555 = smul.addr %s8554, 128
          %s8556 = scalar_lea.hbm %s7, %s8555
          %s8557 = sshll.u32 %s8547, 4
          %s8558 = int_to_ptr.vmem [resolvable:$true] %s8557
          %8563 = dma.vmem_to_hbm [thread:$0]  %s8558, 4096, %s8556, %s8544, 128, 128, 8
        $region52: #{residual_block_forward.1} parent=47 // pred_fallthru
          _
      $region48: #{residual_block_forward.1} parent=5 // pred_fallthru
        _
      %p8564 = scmp.le.s32.totalorder 2, %s16
      // Predicated region
      $region53: #{residual_block_forward.1} parent=5 // pred_check
        %p8565 = pneg %p8564
      $region54: #{residual_block_forward.1} parent=5 // pred_check_branch
        %8567 = sbr.rel (%p8565) target = $region56
      $region55: #{residual_block_forward.1} parent=5 // pred_region
        %s8568 = ssub.s32 %s16, 2
        // Predicated region
        $region57: #{residual_block_forward.1} parent=55 // pred_check
          %p8569 = pneg %p197
        $region58: #{residual_block_forward.1} parent=55 // pred_check_branch
          %8571 = sbr.rel (%p8569) target = $region60
        $region59: #{residual_block_forward.1} parent=55 // pred_region
          %s8572 = sand.u32 %s182, 1
          %s8573 = scalar_lea.sflag [#allocation4], %s8572
          %s8574 = sand.u32 %s182, 1
          %s8575 = smul.addr %s8574, 256
          %s8576 = scalar_lea.vmem [#allocation3], %s8575
          %8577 = dma.done %s8573, 4096
        $region60: #{residual_block_forward.1} parent=55 // pred_fallthru
          _
      $region56: #{residual_block_forward.1} parent=5 // pred_fallthru
        _
    $region6: #{residual_block_forward.1} parent=1 // loop_footer
      %s20 = sadd.s32 1, %s16
    $region7: #{residual_block_forward.1} parent=1 // loop_footer_branch
      %15 = sbr.rel target = $region3
    $region8: #{residual_block_forward.1} parent=1 // loop_exit
      _
    %8578 = vsyncpa [#allocation4], 1
    %s8579 = scalar_lea.sflag [#allocation4], 1
    %8580 = vsyncpa %s8579, 1

</llo_original>
